<compile_context>
chip_gen: v6e
topology: v6e:2x2x1
jax: 0.10.0
libtpu: 0.0.40
codegen_flags: <defaults>
</compile_context>

<pallas_src>
import jax
import jax.numpy as jnp
from jax.experimental import pallas as pl
from jax.experimental.pallas import tpu as pltpu


def _basic_block_kernel(x_ref, w1_ref, b1_ref, w2_ref, b2_ref, o_ref, xs_ref):
    """Fused BasicBlock for one batch element.

    x_ref  : (1, H, W, C)    input tile (VMEM)
    w*_ref : (3, 3, C, C)    conv weights (HWIO) with BN scale pre-folded
    b*_ref : (1, C)          folded BN bias
    o_ref  : (1, H, W, C)    output tile
    xs_ref : (3, H+2, W, C)  VMEM scratch: the three W-shifted, H-zero-padded
                             copies of the conv input (reused by both convs).
    """
    H, W, C = o_ref.shape[1], o_ref.shape[2], o_ref.shape[3]

    def conv3x3_bn(a, w_ref, b_ref):
        # Materialize the left/center/right (dx) halo-shifted copies once.
        # Stores are full-lane (last dim == C) with sublane offsets only; the
        # per-tap loads below are aligned slices (no strided window copies).
        xs_ref[...] = jnp.zeros_like(xs_ref)
        xs_ref[0, 1:H + 1, 1:W, :] = a[:, 0:W - 1, :]      # dx = 0 (left tap)
        xs_ref[1, 1:H + 1, :, :] = a                        # dx = 1 (center tap)
        xs_ref[2, 1:H + 1, 0:W - 1, :] = a[:, 1:W, :]       # dx = 2 (right tap)

        acc = jnp.zeros((H * W, C), jnp.float32)
        for dx in range(3):
            flat = xs_ref[dx].reshape((H + 2) * W, C)
            for dy in range(3):                              # 9 MXU matmuls
                win = flat[dy * W:dy * W + H * W, :]         # aligned row-window
                acc = acc + jnp.dot(win, w_ref[dy, dx],
                                    preferred_element_type=jnp.float32)
        return acc + b_ref[0]                                # folded-BN bias

    x = x_ref[0].astype(jnp.float32)                         # (H, W, C)

    # conv1 -> bn1 -> relu   (y lives only in VMEM / vregs, never in HBM)
    y = jnp.maximum(conv3x3_bn(x, w1_ref, b1_ref), 0.0).reshape(H, W, C)
    # conv2 -> bn2 -> + residual -> relu
    z = conv3x3_bn(y, w2_ref, b2_ref) + x.reshape(H * W, C)
    o_ref[0] = jnp.maximum(z, 0.0).reshape(H, W, C).astype(o_ref.dtype)


def _fold_conv_bn(w, gamma, beta, mean, var, eps=1e-5):
    """Fold inference-mode BN into the conv: conv(x, w)*s + b == conv(x, w*s) + b."""
    scale = gamma / jnp.sqrt(var + eps)
    w_folded = (w * scale[None, None, None, :]).astype(jnp.float32)
    bias = (beta - mean * scale).reshape(1, -1).astype(jnp.float32)
    return w_folded, bias


def basic_block_forward(x_nchw, params):
    """BasicBlock forward. Input/output in NCHW (PyTorch convention)."""
    x = jnp.transpose(x_nchw, (0, 2, 3, 1)).astype(jnp.float32)   # NHWC, lanes = C
    N, H, W, C = x.shape

    w1, b1 = _fold_conv_bn(params["w1"], params["g1"], params["be1"],
                           params["m1"], params["v1"])
    w2, b2 = _fold_conv_bn(params["w2"], params["g2"], params["be2"],
                           params["m2"], params["v2"])
    assert w1.shape[2] == w1.shape[3] == C, "downsample=None requires inplanes==planes"

    flops = N * 2 * (2 * H * W * 9 * C * C)                 # two convs, 2 flops/MAC
    bytes_accessed = 4 * (2 * N * H * W * C + w1.size + w2.size + b1.size + b2.size)

    out = pl.pallas_call(
        _basic_block_kernel,
        out_shape=jax.ShapeDtypeStruct((N, H, W, C), x_nchw.dtype),
        grid_spec=pltpu.PrefetchScalarGridSpec(
            num_scalar_prefetch=0,
            grid=(N,),
            in_specs=[
                pl.BlockSpec((1, H, W, C), lambda n: (n, 0, 0, 0)),
                pl.BlockSpec((3, 3, C, C), lambda n: (0, 0, 0, 0)),
                pl.BlockSpec((1, C), lambda n: (0, 0)),
                pl.BlockSpec((3, 3, C, C), lambda n: (0, 0, 0, 0)),
                pl.BlockSpec((1, C), lambda n: (0, 0)),
            ],
            out_specs=pl.BlockSpec((1, H, W, C), lambda n: (n, 0, 0, 0)),
            scratch_shapes=[pltpu.VMEM((3, H + 2, W, C), jnp.float32)],
        ),
        compiler_params=pltpu.CompilerParams(
            dimension_semantics=("parallel",),               # megacore on v7x
            vmem_limit_bytes=32 * 1024 * 1024),
        cost_estimate=pl.CostEstimate(flops=flops, transcendentals=0,
                                      bytes_accessed=bytes_accessed),
    )(x, w1, b1, w2, b2)

    return jnp.transpose(out, (0, 3, 1, 2))                  # -> NCHW


def _reference_nhwc(x, params):
    """Pure-JAX reference for correctness checking (unfolded BN)."""
    def conv(a, w):
        return jax.lax.conv_general_dilated(
            a, w, window_strides=(1, 1), padding=((1, 1), (1, 1)),
            dimension_numbers=("NHWC", "HWIO", "NHWC"))

    def bn(a, g, be, m, v, eps=1e-5):
        return (a - m) / jnp.sqrt(v + eps) * g + be

    y = jnp.maximum(bn(conv(x, params["w1"]), params["g1"], params["be1"],
                       params["m1"], params["v1"]), 0.0)
    z = bn(conv(y, params["w2"]), params["g2"], params["be2"],
           params["m2"], params["v2"]) + x
    return jnp.maximum(z, 0.0)


def _init_params(key, inplanes, planes):
    ks = jax.random.split(key, 10)
    return {
        # conv weights in HWIO layout (3, 3, Cin, Cout)
        "w1": 0.1 * jax.random.normal(ks[0], (3, 3, inplanes, planes), jnp.float32),
        "w2": 0.1 * jax.random.normal(ks[1], (3, 3, planes, planes), jnp.float32),
        # BatchNorm 1
        "g1": 0.5 + jax.random.uniform(ks[2], (planes,), jnp.float32),
        "be1": 0.1 * jax.random.normal(ks[3], (planes,), jnp.float32),
        "m1": 0.1 * jax.random.normal(ks[4], (planes,), jnp.float32),
        "v1": 0.5 + jax.random.uniform(ks[5], (planes,), jnp.float32),
        # BatchNorm 2
        "g2": 0.5 + jax.random.uniform(ks[6], (planes,), jnp.float32),
        "be2": 0.1 * jax.random.normal(ks[7], (planes,), jnp.float32),
        "m2": 0.1 * jax.random.normal(ks[8], (planes,), jnp.float32),
        "v2": 0.5 + jax.random.uniform(ks[9], (planes,), jnp.float32),
    }


if __name__ == "__main__":
    key = jax.random.PRNGKey(0)
    k_x, k_p = jax.random.split(key)

    N, C, H, W = 2, 4, 16, 16            # inplanes == planes (downsample=None)
    x_nchw = jax.random.normal(k_x, (N, C, H, W), jnp.float32)
    params = _init_params(k_p, C, C)

    out = basic_block_forward(x_nchw, params)
    out = jax.block_until_ready(out)

    # correctness check against the pure-JAX reference
    ref = _reference_nhwc(jnp.transpose(x_nchw, (0, 2, 3, 1)), params)
    ref = jnp.transpose(ref, (0, 3, 1, 2))
    assert out.shape == (N, C, H, W)
    assert jnp.allclose(out, ref, rtol=1e-4, atol=1e-4), "mismatch vs reference"

    print("KERNEL_OK")
</pallas_src>

<mosaic_0001>
module attributes {stable_mosaic.version = 11 : i64} {
  func.func @_basic_block_kernel(%arg0: i32, %arg1: memref<1x16x16x4xf32, #tpu.memory_space<vmem>>, %arg2: memref<3x3x4x4xf32, #tpu.memory_space<vmem>>, %arg3: memref<1x4xf32, #tpu.memory_space<vmem>>, %arg4: memref<3x3x4x4xf32, #tpu.memory_space<vmem>>, %arg5: memref<1x4xf32, #tpu.memory_space<vmem>>, %arg6: memref<1x16x16x4xf32, #tpu.memory_space<vmem>>, %arg7: memref<3x18x16x4xf32, #tpu.memory_space<vmem>>) attributes {dimension_semantics = [#tpu.dimension_semantics<parallel>], iteration_bounds = array<i64: 2>, scalar_prefetch = 0 : i64, scratch_operands = 1 : i64, tpu.core_type = #tpu.core_type<tc>, window_params = [{transform_indices = @transform_0, window_bounds = array<i64: 1, 16, 16, 4>}, {pipeline_mode = #tpu.pipeline_mode<synchronous>, transform_indices = @transform_1, window_bounds = array<i64: 3, 3, 4, 4>}, {pipeline_mode = #tpu.pipeline_mode<synchronous>, transform_indices = @transform_2, window_bounds = array<i64: 1, 4>}, {pipeline_mode = #tpu.pipeline_mode<synchronous>, transform_indices = @transform_3, window_bounds = array<i64: 3, 3, 4, 4>}, {pipeline_mode = #tpu.pipeline_mode<synchronous>, transform_indices = @transform_4, window_bounds = array<i64: 1, 4>}, {transform_indices = @transform_5, window_bounds = array<i64: 1, 16, 16, 4>}]} {
    %c0 = arith.constant 0 : index
    %c0_0 = arith.constant 0 : index
    %c0_1 = arith.constant 0 : index
    %c0_2 = arith.constant 0 : index
    %0 = vector.load %arg1[%c0, %c0_0, %c0_1, %c0_2] : memref<1x16x16x4xf32, #tpu.memory_space<vmem>>, vector<1x16x16x4xf32>
    %1 = vector.shape_cast %0 : vector<1x16x16x4xf32> to vector<16x16x4xf32>
    %cst = arith.constant 0.000000e+00 : f32
    %2 = vector.broadcast %cst : f32 to vector<3x18x16x4xf32>
    %c0_3 = arith.constant 0 : index
    %c0_4 = arith.constant 0 : index
    %c0_5 = arith.constant 0 : index
    %c0_6 = arith.constant 0 : index
    %3 = vector.load %arg7[%c0_3, %c0_4, %c0_5, %c0_6] : memref<3x18x16x4xf32, #tpu.memory_space<vmem>>, vector<3x18x16x4xf32>
    tpu.vector_store %arg7[%c0_3, %c0_4, %c0_5, %c0_6], %2 {strides = array<i32>} : memref<3x18x16x4xf32, #tpu.memory_space<vmem>>, vector<3x18x16x4xf32>,
    %4 = vector.extract_strided_slice %1 {offsets = [0, 0, 0], sizes = [16, 15, 4], strides = [1, 1, 1]} : vector<16x16x4xf32> to vector<16x15x4xf32>
    %c0_7 = arith.constant 0 : index
    %c1 = arith.constant 1 : index
    %c1_8 = arith.constant 1 : index
    %c0_9 = arith.constant 0 : index
    %5 = vector.load %arg7[%c0_7, %c1, %c1_8, %c0_9] : memref<3x18x16x4xf32, #tpu.memory_space<vmem>>, vector<1x16x15x4xf32>
    %6 = vector.shape_cast %5 : vector<1x16x15x4xf32> to vector<16x15x4xf32>
    %7 = vector.shape_cast %4 : vector<16x15x4xf32> to vector<1x16x15x4xf32>
    tpu.vector_store %arg7[%c0_7, %c1, %c1_8, %c0_9], %7 {strides = array<i32>} : memref<3x18x16x4xf32, #tpu.memory_space<vmem>>, vector<1x16x15x4xf32>,
    %c1_10 = arith.constant 1 : index
    %c1_11 = arith.constant 1 : index
    %c0_12 = arith.constant 0 : index
    %c0_13 = arith.constant 0 : index
    %8 = vector.load %arg7[%c1_10, %c1_11, %c0_12, %c0_13] : memref<3x18x16x4xf32, #tpu.memory_space<vmem>>, vector<1x16x16x4xf32>
    %9 = vector.shape_cast %8 : vector<1x16x16x4xf32> to vector<16x16x4xf32>
    %10 = vector.shape_cast %1 : vector<16x16x4xf32> to vector<1x16x16x4xf32>
    tpu.vector_store %arg7[%c1_10, %c1_11, %c0_12, %c0_13], %10 {strides = array<i32>} : memref<3x18x16x4xf32, #tpu.memory_space<vmem>>, vector<1x16x16x4xf32>,
    %11 = vector.extract_strided_slice %1 {offsets = [0, 1, 0], sizes = [16, 15, 4], strides = [1, 1, 1]} : vector<16x16x4xf32> to vector<16x15x4xf32>
    %c2 = arith.constant 2 : index
    %c1_14 = arith.constant 1 : index
    %c0_15 = arith.constant 0 : index
    %c0_16 = arith.constant 0 : index
    %12 = vector.load %arg7[%c2, %c1_14, %c0_15, %c0_16] : memref<3x18x16x4xf32, #tpu.memory_space<vmem>>, vector<1x16x15x4xf32>
    %13 = vector.shape_cast %12 : vector<1x16x15x4xf32> to vector<16x15x4xf32>
    %14 = vector.shape_cast %11 : vector<16x15x4xf32> to vector<1x16x15x4xf32>
    tpu.vector_store %arg7[%c2, %c1_14, %c0_15, %c0_16], %14 {strides = array<i32>} : memref<3x18x16x4xf32, #tpu.memory_space<vmem>>, vector<1x16x15x4xf32>,
    %cst_17 = arith.constant 0.000000e+00 : f32
    %15 = vector.broadcast %cst_17 : f32 to vector<256x4xf32>
    %c0_18 = arith.constant 0 : index
    %c0_19 = arith.constant 0 : index
    %c0_20 = arith.constant 0 : index
    %c0_21 = arith.constant 0 : index
    %16 = vector.load %arg7[%c0_18, %c0_19, %c0_20, %c0_21] : memref<3x18x16x4xf32, #tpu.memory_space<vmem>>, vector<1x18x16x4xf32>
    %17 = vector.shape_cast %16 : vector<1x18x16x4xf32> to vector<18x16x4xf32>
    %18 = vector.shape_cast %17 : vector<18x16x4xf32> to vector<288x4xf32>
    %19 = vector.extract_strided_slice %18 {offsets = [0, 0], sizes = [256, 4], strides = [1, 1]} : vector<288x4xf32> to vector<256x4xf32>
    %c0_22 = arith.constant 0 : index
    %c0_23 = arith.constant 0 : index
    %c0_24 = arith.constant 0 : index
    %c0_25 = arith.constant 0 : index
    %20 = vector.load %arg2[%c0_22, %c0_23, %c0_24, %c0_25] : memref<3x3x4x4xf32, #tpu.memory_space<vmem>>, vector<1x1x4x4xf32>
    %21 = vector.shape_cast %20 : vector<1x1x4x4xf32> to vector<4x4xf32>
    %cst_26 = arith.constant dense<0.000000e+00> : vector<256x4xf32>
    %22 = tpu.matmul %19, %21, %cst_26 {dimension_numbers = #tpu.dot_dimension_numbers<[1], [0], [0], [1], [0, 0, 1, 1], [], []>} : vector<256x4xf32>, vector<4x4xf32>, vector<256x4xf32> -> vector<256x4xf32>
    %23 = arith.addf %15, %22 : vector<256x4xf32>
    %24 = vector.extract_strided_slice %18 {offsets = [16, 0], sizes = [256, 4], strides = [1, 1]} : vector<288x4xf32> to vector<256x4xf32>
    %c1_27 = arith.constant 1 : index
    %c0_28 = arith.constant 0 : index
    %c0_29 = arith.constant 0 : index
    %c0_30 = arith.constant 0 : index
    %25 = vector.load %arg2[%c1_27, %c0_28, %c0_29, %c0_30] : memref<3x3x4x4xf32, #tpu.memory_space<vmem>>, vector<1x1x4x4xf32>
    %26 = vector.shape_cast %25 : vector<1x1x4x4xf32> to vector<4x4xf32>
    %cst_31 = arith.constant dense<0.000000e+00> : vector<256x4xf32>
    %27 = tpu.matmul %24, %26, %cst_31 {dimension_numbers = #tpu.dot_dimension_numbers<[1], [0], [0], [1], [0, 0, 1, 1], [], []>} : vector<256x4xf32>, vector<4x4xf32>, vector<256x4xf32> -> vector<256x4xf32>
    %28 = arith.addf %23, %27 : vector<256x4xf32>
    %29 = vector.extract_strided_slice %18 {offsets = [32, 0], sizes = [256, 4], strides = [1, 1]} : vector<288x4xf32> to vector<256x4xf32>
    %c2_32 = arith.constant 2 : index
    %c0_33 = arith.constant 0 : index
    %c0_34 = arith.constant 0 : index
    %c0_35 = arith.constant 0 : index
    %30 = vector.load %arg2[%c2_32, %c0_33, %c0_34, %c0_35] : memref<3x3x4x4xf32, #tpu.memory_space<vmem>>, vector<1x1x4x4xf32>
    %31 = vector.shape_cast %30 : vector<1x1x4x4xf32> to vector<4x4xf32>
    %cst_36 = arith.constant dense<0.000000e+00> : vector<256x4xf32>
    %32 = tpu.matmul %29, %31, %cst_36 {dimension_numbers = #tpu.dot_dimension_numbers<[1], [0], [0], [1], [0, 0, 1, 1], [], []>} : vector<256x4xf32>, vector<4x4xf32>, vector<256x4xf32> -> vector<256x4xf32>
    %33 = arith.addf %28, %32 : vector<256x4xf32>
    %c1_37 = arith.constant 1 : index
    %c0_38 = arith.constant 0 : index
    %c0_39 = arith.constant 0 : index
    %c0_40 = arith.constant 0 : index
    %34 = vector.load %arg7[%c1_37, %c0_38, %c0_39, %c0_40] : memref<3x18x16x4xf32, #tpu.memory_space<vmem>>, vector<1x18x16x4xf32>
    %35 = vector.shape_cast %34 : vector<1x18x16x4xf32> to vector<18x16x4xf32>
    %36 = vector.shape_cast %35 : vector<18x16x4xf32> to vector<288x4xf32>
    %37 = vector.extract_strided_slice %36 {offsets = [0, 0], sizes = [256, 4], strides = [1, 1]} : vector<288x4xf32> to vector<256x4xf32>
    %c0_41 = arith.constant 0 : index
    %c1_42 = arith.constant 1 : index
    %c0_43 = arith.constant 0 : index
    %c0_44 = arith.constant 0 : index
    %38 = vector.load %arg2[%c0_41, %c1_42, %c0_43, %c0_44] : memref<3x3x4x4xf32, #tpu.memory_space<vmem>>, vector<1x1x4x4xf32>
    %39 = vector.shape_cast %38 : vector<1x1x4x4xf32> to vector<4x4xf32>
    %cst_45 = arith.constant dense<0.000000e+00> : vector<256x4xf32>
    %40 = tpu.matmul %37, %39, %cst_45 {dimension_numbers = #tpu.dot_dimension_numbers<[1], [0], [0], [1], [0, 0, 1, 1], [], []>} : vector<256x4xf32>, vector<4x4xf32>, vector<256x4xf32> -> vector<256x4xf32>
    %41 = arith.addf %33, %40 : vector<256x4xf32>
    %42 = vector.extract_strided_slice %36 {offsets = [16, 0], sizes = [256, 4], strides = [1, 1]} : vector<288x4xf32> to vector<256x4xf32>
    %c1_46 = arith.constant 1 : index
    %c1_47 = arith.constant 1 : index
    %c0_48 = arith.constant 0 : index
    %c0_49 = arith.constant 0 : index
    %43 = vector.load %arg2[%c1_46, %c1_47, %c0_48, %c0_49] : memref<3x3x4x4xf32, #tpu.memory_space<vmem>>, vector<1x1x4x4xf32>
    %44 = vector.shape_cast %43 : vector<1x1x4x4xf32> to vector<4x4xf32>
    %cst_50 = arith.constant dense<0.000000e+00> : vector<256x4xf32>
    %45 = tpu.matmul %42, %44, %cst_50 {dimension_numbers = #tpu.dot_dimension_numbers<[1], [0], [0], [1], [0, 0, 1, 1], [], []>} : vector<256x4xf32>, vector<4x4xf32>, vector<256x4xf32> -> vector<256x4xf32>
    %46 = arith.addf %41, %45 : vector<256x4xf32>
    %47 = vector.extract_strided_slice %36 {offsets = [32, 0], sizes = [256, 4], strides = [1, 1]} : vector<288x4xf32> to vector<256x4xf32>
    %c2_51 = arith.constant 2 : index
    %c1_52 = arith.constant 1 : index
    %c0_53 = arith.constant 0 : index
    %c0_54 = arith.constant 0 : index
    %48 = vector.load %arg2[%c2_51, %c1_52, %c0_53, %c0_54] : memref<3x3x4x4xf32, #tpu.memory_space<vmem>>, vector<1x1x4x4xf32>
    %49 = vector.shape_cast %48 : vector<1x1x4x4xf32> to vector<4x4xf32>
    %cst_55 = arith.constant dense<0.000000e+00> : vector<256x4xf32>
    %50 = tpu.matmul %47, %49, %cst_55 {dimension_numbers = #tpu.dot_dimension_numbers<[1], [0], [0], [1], [0, 0, 1, 1], [], []>} : vector<256x4xf32>, vector<4x4xf32>, vector<256x4xf32> -> vector<256x4xf32>
    %51 = arith.addf %46, %50 : vector<256x4xf32>
    %c2_56 = arith.constant 2 : index
    %c0_57 = arith.constant 0 : index
    %c0_58 = arith.constant 0 : index
    %c0_59 = arith.constant 0 : index
    %52 = vector.load %arg7[%c2_56, %c0_57, %c0_58, %c0_59] : memref<3x18x16x4xf32, #tpu.memory_space<vmem>>, vector<1x18x16x4xf32>
    %53 = vector.shape_cast %52 : vector<1x18x16x4xf32> to vector<18x16x4xf32>
    %54 = vector.shape_cast %53 : vector<18x16x4xf32> to vector<288x4xf32>
    %55 = vector.extract_strided_slice %54 {offsets = [0, 0], sizes = [256, 4], strides = [1, 1]} : vector<288x4xf32> to vector<256x4xf32>
    %c0_60 = arith.constant 0 : index
    %c2_61 = arith.constant 2 : index
    %c0_62 = arith.constant 0 : index
    %c0_63 = arith.constant 0 : index
    %56 = vector.load %arg2[%c0_60, %c2_61, %c0_62, %c0_63] : memref<3x3x4x4xf32, #tpu.memory_space<vmem>>, vector<1x1x4x4xf32>
    %57 = vector.shape_cast %56 : vector<1x1x4x4xf32> to vector<4x4xf32>
    %cst_64 = arith.constant dense<0.000000e+00> : vector<256x4xf32>
    %58 = tpu.matmul %55, %57, %cst_64 {dimension_numbers = #tpu.dot_dimension_numbers<[1], [0], [0], [1], [0, 0, 1, 1], [], []>} : vector<256x4xf32>, vector<4x4xf32>, vector<256x4xf32> -> vector<256x4xf32>
    %59 = arith.addf %51, %58 : vector<256x4xf32>
    %60 = vector.extract_strided_slice %54 {offsets = [16, 0], sizes = [256, 4], strides = [1, 1]} : vector<288x4xf32> to vector<256x4xf32>
    %c1_65 = arith.constant 1 : index
    %c2_66 = arith.constant 2 : index
    %c0_67 = arith.constant 0 : index
    %c0_68 = arith.constant 0 : index
    %61 = vector.load %arg2[%c1_65, %c2_66, %c0_67, %c0_68] : memref<3x3x4x4xf32, #tpu.memory_space<vmem>>, vector<1x1x4x4xf32>
    %62 = vector.shape_cast %61 : vector<1x1x4x4xf32> to vector<4x4xf32>
    %cst_69 = arith.constant dense<0.000000e+00> : vector<256x4xf32>
    %63 = tpu.matmul %60, %62, %cst_69 {dimension_numbers = #tpu.dot_dimension_numbers<[1], [0], [0], [1], [0, 0, 1, 1], [], []>} : vector<256x4xf32>, vector<4x4xf32>, vector<256x4xf32> -> vector<256x4xf32>
    %64 = arith.addf %59, %63 : vector<256x4xf32>
    %65 = vector.extract_strided_slice %54 {offsets = [32, 0], sizes = [256, 4], strides = [1, 1]} : vector<288x4xf32> to vector<256x4xf32>
    %c2_70 = arith.constant 2 : index
    %c2_71 = arith.constant 2 : index
    %c0_72 = arith.constant 0 : index
    %c0_73 = arith.constant 0 : index
    %66 = vector.load %arg2[%c2_70, %c2_71, %c0_72, %c0_73] : memref<3x3x4x4xf32, #tpu.memory_space<vmem>>, vector<1x1x4x4xf32>
    %67 = vector.shape_cast %66 : vector<1x1x4x4xf32> to vector<4x4xf32>
    %cst_74 = arith.constant dense<0.000000e+00> : vector<256x4xf32>
    %68 = tpu.matmul %65, %67, %cst_74 {dimension_numbers = #tpu.dot_dimension_numbers<[1], [0], [0], [1], [0, 0, 1, 1], [], []>} : vector<256x4xf32>, vector<4x4xf32>, vector<256x4xf32> -> vector<256x4xf32>
    %69 = arith.addf %64, %68 : vector<256x4xf32>
    %c0_75 = arith.constant 0 : index
    %c0_76 = arith.constant 0 : index
    %70 = vector.load %arg3[%c0_75, %c0_76] : memref<1x4xf32, #tpu.memory_space<vmem>>, vector<1x4xf32>
    %71 = vector.shape_cast %70 : vector<1x4xf32> to vector<4xf32>
    %72 = vector.shape_cast %71 : vector<4xf32> to vector<1x4xf32>
    %73 = vector.broadcast %72 : vector<1x4xf32> to vector<256x4xf32>
    %74 = arith.addf %69, %73 : vector<256x4xf32>
    %cst_77 = arith.constant 0.000000e+00 : f32
    %75 = vector.broadcast %cst_77 : f32 to vector<256x4xf32>
    %76 = arith.maximumf %74, %75 : vector<256x4xf32>
    %77 = vector.shape_cast %76 : vector<256x4xf32> to vector<16x16x4xf32>
    %cst_78 = arith.constant 0.000000e+00 : f32
    %78 = vector.broadcast %cst_78 : f32 to vector<3x18x16x4xf32>
    %c0_79 = arith.constant 0 : index
    %c0_80 = arith.constant 0 : index
    %c0_81 = arith.constant 0 : index
    %c0_82 = arith.constant 0 : index
    %79 = vector.load %arg7[%c0_79, %c0_80, %c0_81, %c0_82] : memref<3x18x16x4xf32, #tpu.memory_space<vmem>>, vector<3x18x16x4xf32>
    tpu.vector_store %arg7[%c0_79, %c0_80, %c0_81, %c0_82], %78 {strides = array<i32>} : memref<3x18x16x4xf32, #tpu.memory_space<vmem>>, vector<3x18x16x4xf32>,
    %80 = vector.extract_strided_slice %77 {offsets = [0, 0, 0], sizes = [16, 15, 4], strides = [1, 1, 1]} : vector<16x16x4xf32> to vector<16x15x4xf32>
    %c0_83 = arith.constant 0 : index
    %c1_84 = arith.constant 1 : index
    %c1_85 = arith.constant 1 : index
    %c0_86 = arith.constant 0 : index
    %81 = vector.load %arg7[%c0_83, %c1_84, %c1_85, %c0_86] : memref<3x18x16x4xf32, #tpu.memory_space<vmem>>, vector<1x16x15x4xf32>
    %82 = vector.shape_cast %81 : vector<1x16x15x4xf32> to vector<16x15x4xf32>
    %83 = vector.shape_cast %80 : vector<16x15x4xf32> to vector<1x16x15x4xf32>
    tpu.vector_store %arg7[%c0_83, %c1_84, %c1_85, %c0_86], %83 {strides = array<i32>} : memref<3x18x16x4xf32, #tpu.memory_space<vmem>>, vector<1x16x15x4xf32>,
    %c1_87 = arith.constant 1 : index
    %c1_88 = arith.constant 1 : index
    %c0_89 = arith.constant 0 : index
    %c0_90 = arith.constant 0 : index
    %84 = vector.load %arg7[%c1_87, %c1_88, %c0_89, %c0_90] : memref<3x18x16x4xf32, #tpu.memory_space<vmem>>, vector<1x16x16x4xf32>
    %85 = vector.shape_cast %84 : vector<1x16x16x4xf32> to vector<16x16x4xf32>
    %86 = vector.shape_cast %77 : vector<16x16x4xf32> to vector<1x16x16x4xf32>
    tpu.vector_store %arg7[%c1_87, %c1_88, %c0_89, %c0_90], %86 {strides = array<i32>} : memref<3x18x16x4xf32, #tpu.memory_space<vmem>>, vector<1x16x16x4xf32>,
    %87 = vector.extract_strided_slice %77 {offsets = [0, 1, 0], sizes = [16, 15, 4], strides = [1, 1, 1]} : vector<16x16x4xf32> to vector<16x15x4xf32>
    %c2_91 = arith.constant 2 : index
    %c1_92 = arith.constant 1 : index
    %c0_93 = arith.constant 0 : index
    %c0_94 = arith.constant 0 : index
    %88 = vector.load %arg7[%c2_91, %c1_92, %c0_93, %c0_94] : memref<3x18x16x4xf32, #tpu.memory_space<vmem>>, vector<1x16x15x4xf32>
    %89 = vector.shape_cast %88 : vector<1x16x15x4xf32> to vector<16x15x4xf32>
    %90 = vector.shape_cast %87 : vector<16x15x4xf32> to vector<1x16x15x4xf32>
    tpu.vector_store %arg7[%c2_91, %c1_92, %c0_93, %c0_94], %90 {strides = array<i32>} : memref<3x18x16x4xf32, #tpu.memory_space<vmem>>, vector<1x16x15x4xf32>,
    %cst_95 = arith.constant 0.000000e+00 : f32
    %91 = vector.broadcast %cst_95 : f32 to vector<256x4xf32>
    %c0_96 = arith.constant 0 : index
    %c0_97 = arith.constant 0 : index
    %c0_98 = arith.constant 0 : index
    %c0_99 = arith.constant 0 : index
    %92 = vector.load %arg7[%c0_96, %c0_97, %c0_98, %c0_99] : memref<3x18x16x4xf32, #tpu.memory_space<vmem>>, vector<1x18x16x4xf32>
    %93 = vector.shape_cast %92 : vector<1x18x16x4xf32> to vector<18x16x4xf32>
    %94 = vector.shape_cast %93 : vector<18x16x4xf32> to vector<288x4xf32>
    %95 = vector.extract_strided_slice %94 {offsets = [0, 0], sizes = [256, 4], strides = [1, 1]} : vector<288x4xf32> to vector<256x4xf32>
    %c0_100 = arith.constant 0 : index
    %c0_101 = arith.constant 0 : index
    %c0_102 = arith.constant 0 : index
    %c0_103 = arith.constant 0 : index
    %96 = vector.load %arg4[%c0_100, %c0_101, %c0_102, %c0_103] : memref<3x3x4x4xf32, #tpu.memory_space<vmem>>, vector<1x1x4x4xf32>
    %97 = vector.shape_cast %96 : vector<1x1x4x4xf32> to vector<4x4xf32>
    %cst_104 = arith.constant dense<0.000000e+00> : vector<256x4xf32>
    %98 = tpu.matmul %95, %97, %cst_104 {dimension_numbers = #tpu.dot_dimension_numbers<[1], [0], [0], [1], [0, 0, 1, 1], [], []>} : vector<256x4xf32>, vector<4x4xf32>, vector<256x4xf32> -> vector<256x4xf32>
    %99 = arith.addf %91, %98 : vector<256x4xf32>
    %100 = vector.extract_strided_slice %94 {offsets = [16, 0], sizes = [256, 4], strides = [1, 1]} : vector<288x4xf32> to vector<256x4xf32>
    %c1_105 = arith.constant 1 : index
    %c0_106 = arith.constant 0 : index
    %c0_107 = arith.constant 0 : index
    %c0_108 = arith.constant 0 : index
    %101 = vector.load %arg4[%c1_105, %c0_106, %c0_107, %c0_108] : memref<3x3x4x4xf32, #tpu.memory_space<vmem>>, vector<1x1x4x4xf32>
    %102 = vector.shape_cast %101 : vector<1x1x4x4xf32> to vector<4x4xf32>
    %cst_109 = arith.constant dense<0.000000e+00> : vector<256x4xf32>
    %103 = tpu.matmul %100, %102, %cst_109 {dimension_numbers = #tpu.dot_dimension_numbers<[1], [0], [0], [1], [0, 0, 1, 1], [], []>} : vector<256x4xf32>, vector<4x4xf32>, vector<256x4xf32> -> vector<256x4xf32>
    %104 = arith.addf %99, %103 : vector<256x4xf32>
    %105 = vector.extract_strided_slice %94 {offsets = [32, 0], sizes = [256, 4], strides = [1, 1]} : vector<288x4xf32> to vector<256x4xf32>
    %c2_110 = arith.constant 2 : index
    %c0_111 = arith.constant 0 : index
    %c0_112 = arith.constant 0 : index
    %c0_113 = arith.constant 0 : index
    %106 = vector.load %arg4[%c2_110, %c0_111, %c0_112, %c0_113] : memref<3x3x4x4xf32, #tpu.memory_space<vmem>>, vector<1x1x4x4xf32>
    %107 = vector.shape_cast %106 : vector<1x1x4x4xf32> to vector<4x4xf32>
    %cst_114 = arith.constant dense<0.000000e+00> : vector<256x4xf32>
    %108 = tpu.matmul %105, %107, %cst_114 {dimension_numbers = #tpu.dot_dimension_numbers<[1], [0], [0], [1], [0, 0, 1, 1], [], []>} : vector<256x4xf32>, vector<4x4xf32>, vector<256x4xf32> -> vector<256x4xf32>
    %109 = arith.addf %104, %108 : vector<256x4xf32>
    %c1_115 = arith.constant 1 : index
    %c0_116 = arith.constant 0 : index
    %c0_117 = arith.constant 0 : index
    %c0_118 = arith.constant 0 : index
    %110 = vector.load %arg7[%c1_115, %c0_116, %c0_117, %c0_118] : memref<3x18x16x4xf32, #tpu.memory_space<vmem>>, vector<1x18x16x4xf32>
    %111 = vector.shape_cast %110 : vector<1x18x16x4xf32> to vector<18x16x4xf32>
    %112 = vector.shape_cast %111 : vector<18x16x4xf32> to vector<288x4xf32>
    %113 = vector.extract_strided_slice %112 {offsets = [0, 0], sizes = [256, 4], strides = [1, 1]} : vector<288x4xf32> to vector<256x4xf32>
    %c0_119 = arith.constant 0 : index
    %c1_120 = arith.constant 1 : index
    %c0_121 = arith.constant 0 : index
    %c0_122 = arith.constant 0 : index
    %114 = vector.load %arg4[%c0_119, %c1_120, %c0_121, %c0_122] : memref<3x3x4x4xf32, #tpu.memory_space<vmem>>, vector<1x1x4x4xf32>
    %115 = vector.shape_cast %114 : vector<1x1x4x4xf32> to vector<4x4xf32>
    %cst_123 = arith.constant dense<0.000000e+00> : vector<256x4xf32>
    %116 = tpu.matmul %113, %115, %cst_123 {dimension_numbers = #tpu.dot_dimension_numbers<[1], [0], [0], [1], [0, 0, 1, 1], [], []>} : vector<256x4xf32>, vector<4x4xf32>, vector<256x4xf32> -> vector<256x4xf32>
    %117 = arith.addf %109, %116 : vector<256x4xf32>
    %118 = vector.extract_strided_slice %112 {offsets = [16, 0], sizes = [256, 4], strides = [1, 1]} : vector<288x4xf32> to vector<256x4xf32>
    %c1_124 = arith.constant 1 : index
    %c1_125 = arith.constant 1 : index
    %c0_126 = arith.constant 0 : index
    %c0_127 = arith.constant 0 : index
    %119 = vector.load %arg4[%c1_124, %c1_125, %c0_126, %c0_127] : memref<3x3x4x4xf32, #tpu.memory_space<vmem>>, vector<1x1x4x4xf32>
    %120 = vector.shape_cast %119 : vector<1x1x4x4xf32> to vector<4x4xf32>
    %cst_128 = arith.constant dense<0.000000e+00> : vector<256x4xf32>
    %121 = tpu.matmul %118, %120, %cst_128 {dimension_numbers = #tpu.dot_dimension_numbers<[1], [0], [0], [1], [0, 0, 1, 1], [], []>} : vector<256x4xf32>, vector<4x4xf32>, vector<256x4xf32> -> vector<256x4xf32>
    %122 = arith.addf %117, %121 : vector<256x4xf32>
    %123 = vector.extract_strided_slice %112 {offsets = [32, 0], sizes = [256, 4], strides = [1, 1]} : vector<288x4xf32> to vector<256x4xf32>
    %c2_129 = arith.constant 2 : index
    %c1_130 = arith.constant 1 : index
    %c0_131 = arith.constant 0 : index
    %c0_132 = arith.constant 0 : index
    %124 = vector.load %arg4[%c2_129, %c1_130, %c0_131, %c0_132] : memref<3x3x4x4xf32, #tpu.memory_space<vmem>>, vector<1x1x4x4xf32>
    %125 = vector.shape_cast %124 : vector<1x1x4x4xf32> to vector<4x4xf32>
    %cst_133 = arith.constant dense<0.000000e+00> : vector<256x4xf32>
    %126 = tpu.matmul %123, %125, %cst_133 {dimension_numbers = #tpu.dot_dimension_numbers<[1], [0], [0], [1], [0, 0, 1, 1], [], []>} : vector<256x4xf32>, vector<4x4xf32>, vector<256x4xf32> -> vector<256x4xf32>
    %127 = arith.addf %122, %126 : vector<256x4xf32>
    %c2_134 = arith.constant 2 : index
    %c0_135 = arith.constant 0 : index
    %c0_136 = arith.constant 0 : index
    %c0_137 = arith.constant 0 : index
    %128 = vector.load %arg7[%c2_134, %c0_135, %c0_136, %c0_137] : memref<3x18x16x4xf32, #tpu.memory_space<vmem>>, vector<1x18x16x4xf32>
    %129 = vector.shape_cast %128 : vector<1x18x16x4xf32> to vector<18x16x4xf32>
    %130 = vector.shape_cast %129 : vector<18x16x4xf32> to vector<288x4xf32>
    %131 = vector.extract_strided_slice %130 {offsets = [0, 0], sizes = [256, 4], strides = [1, 1]} : vector<288x4xf32> to vector<256x4xf32>
    %c0_138 = arith.constant 0 : index
    %c2_139 = arith.constant 2 : index
    %c0_140 = arith.constant 0 : index
    %c0_141 = arith.constant 0 : index
    %132 = vector.load %arg4[%c0_138, %c2_139, %c0_140, %c0_141] : memref<3x3x4x4xf32, #tpu.memory_space<vmem>>, vector<1x1x4x4xf32>
    %133 = vector.shape_cast %132 : vector<1x1x4x4xf32> to vector<4x4xf32>
    %cst_142 = arith.constant dense<0.000000e+00> : vector<256x4xf32>
    %134 = tpu.matmul %131, %133, %cst_142 {dimension_numbers = #tpu.dot_dimension_numbers<[1], [0], [0], [1], [0, 0, 1, 1], [], []>} : vector<256x4xf32>, vector<4x4xf32>, vector<256x4xf32> -> vector<256x4xf32>
    %135 = arith.addf %127, %134 : vector<256x4xf32>
    %136 = vector.extract_strided_slice %130 {offsets = [16, 0], sizes = [256, 4], strides = [1, 1]} : vector<288x4xf32> to vector<256x4xf32>
    %c1_143 = arith.constant 1 : index
    %c2_144 = arith.constant 2 : index
    %c0_145 = arith.constant 0 : index
    %c0_146 = arith.constant 0 : index
    %137 = vector.load %arg4[%c1_143, %c2_144, %c0_145, %c0_146] : memref<3x3x4x4xf32, #tpu.memory_space<vmem>>, vector<1x1x4x4xf32>
    %138 = vector.shape_cast %137 : vector<1x1x4x4xf32> to vector<4x4xf32>
    %cst_147 = arith.constant dense<0.000000e+00> : vector<256x4xf32>
    %139 = tpu.matmul %136, %138, %cst_147 {dimension_numbers = #tpu.dot_dimension_numbers<[1], [0], [0], [1], [0, 0, 1, 1], [], []>} : vector<256x4xf32>, vector<4x4xf32>, vector<256x4xf32> -> vector<256x4xf32>
    %140 = arith.addf %135, %139 : vector<256x4xf32>
    %141 = vector.extract_strided_slice %130 {offsets = [32, 0], sizes = [256, 4], strides = [1, 1]} : vector<288x4xf32> to vector<256x4xf32>
    %c2_148 = arith.constant 2 : index
    %c2_149 = arith.constant 2 : index
    %c0_150 = arith.constant 0 : index
    %c0_151 = arith.constant 0 : index
    %142 = vector.load %arg4[%c2_148, %c2_149, %c0_150, %c0_151] : memref<3x3x4x4xf32, #tpu.memory_space<vmem>>, vector<1x1x4x4xf32>
    %143 = vector.shape_cast %142 : vector<1x1x4x4xf32> to vector<4x4xf32>
    %cst_152 = arith.constant dense<0.000000e+00> : vector<256x4xf32>
    %144 = tpu.matmul %141, %143, %cst_152 {dimension_numbers = #tpu.dot_dimension_numbers<[1], [0], [0], [1], [0, 0, 1, 1], [], []>} : vector<256x4xf32>, vector<4x4xf32>, vector<256x4xf32> -> vector<256x4xf32>
    %145 = arith.addf %140, %144 : vector<256x4xf32>
    %c0_153 = arith.constant 0 : index
    %c0_154 = arith.constant 0 : index
    %146 = vector.load %arg5[%c0_153, %c0_154] : memref<1x4xf32, #tpu.memory_space<vmem>>, vector<1x4xf32>
    %147 = vector.shape_cast %146 : vector<1x4xf32> to vector<4xf32>
    %148 = vector.shape_cast %147 : vector<4xf32> to vector<1x4xf32>
    %149 = vector.broadcast %148 : vector<1x4xf32> to vector<256x4xf32>
    %150 = arith.addf %145, %149 : vector<256x4xf32>
    %151 = vector.shape_cast %1 : vector<16x16x4xf32> to vector<256x4xf32>
    %152 = arith.addf %150, %151 : vector<256x4xf32>
    %cst_155 = arith.constant 0.000000e+00 : f32
    %153 = vector.broadcast %cst_155 : f32 to vector<256x4xf32>
    %154 = arith.maximumf %152, %153 : vector<256x4xf32>
    %155 = vector.shape_cast %154 : vector<256x4xf32> to vector<16x16x4xf32>
    %c0_156 = arith.constant 0 : index
    %c0_157 = arith.constant 0 : index
    %c0_158 = arith.constant 0 : index
    %c0_159 = arith.constant 0 : index
    %156 = vector.load %arg6[%c0_156, %c0_157, %c0_158, %c0_159] : memref<1x16x16x4xf32, #tpu.memory_space<vmem>>, vector<1x16x16x4xf32>
    %157 = vector.shape_cast %156 : vector<1x16x16x4xf32> to vector<16x16x4xf32>
    %158 = vector.shape_cast %155 : vector<16x16x4xf32> to vector<1x16x16x4xf32>
    tpu.vector_store %arg6[%c0_156, %c0_157, %c0_158, %c0_159], %158 {strides = array<i32>} : memref<1x16x16x4xf32, #tpu.memory_space<vmem>>, vector<1x16x16x4xf32>,
    return
  }
  func.func @transform_0(%arg0: i32) -> (i32, i32, i32, i32) {
    %c0_i32 = arith.constant 0 : i32
    %c0_i32_0 = arith.constant 0 : i32
    %c0_i32_1 = arith.constant 0 : i32
    %c0_i32_2 = arith.constant 0 : i32
    return %arg0, %c0_i32, %c0_i32_0, %c0_i32_1 : i32, i32, i32, i32
  }
  func.func @transform_1(%arg0: i32) -> (i32, i32, i32, i32) {
    %c0_i32 = arith.constant 0 : i32
    %c0_i32_0 = arith.constant 0 : i32
    %c0_i32_1 = arith.constant 0 : i32
    %c0_i32_2 = arith.constant 0 : i32
    %c0_i32_3 = arith.constant 0 : i32
    return %c0_i32, %c0_i32_0, %c0_i32_1, %c0_i32_2 : i32, i32, i32, i32
  }
  func.func @transform_2(%arg0: i32) -> (i32, i32) {
    %c0_i32 = arith.constant 0 : i32
    %c0_i32_0 = arith.constant 0 : i32
    %c0_i32_1 = arith.constant 0 : i32
    return %c0_i32, %c0_i32_0 : i32, i32
  }
  func.func @transform_3(%arg0: i32) -> (i32, i32, i32, i32) {
    %c0_i32 = arith.constant 0 : i32
    %c0_i32_0 = arith.constant 0 : i32
    %c0_i32_1 = arith.constant 0 : i32
    %c0_i32_2 = arith.constant 0 : i32
    %c0_i32_3 = arith.constant 0 : i32
    return %c0_i32, %c0_i32_0, %c0_i32_1, %c0_i32_2 : i32, i32, i32, i32
  }
  func.func @transform_4(%arg0: i32) -> (i32, i32) {
    %c0_i32 = arith.constant 0 : i32
    %c0_i32_0 = arith.constant 0 : i32
    %c0_i32_1 = arith.constant 0 : i32
    return %c0_i32, %c0_i32_0 : i32, i32
  }
  func.func @transform_5(%arg0: i32) -> (i32, i32, i32, i32) {
    %c0_i32 = arith.constant 0 : i32
    %c0_i32_0 = arith.constant 0 : i32
    %c0_i32_1 = arith.constant 0 : i32
    %c0_i32_2 = arith.constant 0 : i32
    return %arg0, %c0_i32, %c0_i32_0, %c0_i32_1 : i32, i32, i32, i32
  }
}

</mosaic_0001>

<llo_original>
// kernel: tpu_custom_call.1
$region0: #{tpu_custom_call.1}
  #allocation0 [shape = 'u32[]', space=smem, size = 0x4, offset = 0x4, fixed_abs, tag = 'smem constant byte address 0x4 - core index']
  #allocation1 [shape = 'u32[144,128]{1,0:T(1,128)}', space=vmem, size = 0x12000, scoped, tag = 'internal scratch']
  #allocation2 [shape = 'f32[3,18,16,4]{3,2,1,0:T(8,128)}', space=vmem, size = 0x6c000, scoped, tag = 'scratch operand']
  %s0 = inlined_call_operand.vmem [shape: f32[2,16,16,4], index: 0, kind: input, shape index: {}]
  %s1 = inlined_call_operand.vmem [shape: f32[3,3,4,4], index: 1, kind: input, shape index: {}]
  %s2 = inlined_call_operand.vmem [shape: f32[1,4], index: 2, kind: input, shape index: {}]
  %s3 = inlined_call_operand.vmem [shape: f32[3,3,4,4], index: 3, kind: input, shape index: {}]
  %s4 = inlined_call_operand.vmem [shape: f32[1,4], index: 4, kind: input, shape index: {}]
  %s5 = inlined_call_operand.vmem [shape: f32[2,16,16,4], index: 5, kind: output, shape index: {}]
  %s6 = sld [smem:[#allocation0]]
  $region53: #{tpu_custom_call.1} parent=0
    _
  %s8 = ssub.s32 1, %s6
  %s9 = scalar_select 0, %s8, %s6
  loop: start=0, step=1, limit=4
  $region2: #{tpu_custom_call.1} parent=0 // loop_pre_header
    _
  $region3: #{tpu_custom_call.1} parent=0 // loop_header
    %s11 = sphi 0, %s15
    %p12 = scmp.ge.s32.totalorder %s11, 4
    %s21 = sphi 0, %s23
    %s24 = sphi 0, %s21
    %s25 = sphi 0, %s24
    %s41 = sphi 0, %s25
    %s45 = sphi 0, %s45
    %s47 = sphi 0, %s45
    %s48 = sphi 0, %s47
    %s62 = sphi 0, %s48
    %s66 = sphi 0, %s66
    %s68 = sphi 0, %s66
    %s69 = sphi 0, %s68
    %s83 = sphi 0, %s69
    %s87 = sphi 0, %s87
    %s89 = sphi 0, %s87
    %s90 = sphi 0, %s89
    %s104 = sphi 0, %s90
    %s108 = sphi 0, %s108
    %s110 = sphi 0, %s108
    %s111 = sphi 0, %s110
    %s125 = sphi 0, %s111
    %s131 = sphi 0, %s133
    %s134 = sphi 0, %s131
    %s135 = sphi 0, %s134
    %s151 = sphi 0, %s135
  $region4: #{tpu_custom_call.1} parent=0 // loop_header_branch
    %14 = sbr.rel (%p12) target = $region8
  $region5: #{tpu_custom_call.1} parent=0 // loop_body
    %s16 = ssub.s32 %s11, 1
    %s17 = ssub.s32 %s11, 2
    %s18 = sadd.s32 %s11, 1
    %s19 = ssub.s32 %s11, %s18
    %p20 = scmp.eq.s32.totalorder %s19, 0
    %s22 = sadd.s32 %s21, 1
    %s23 = scalar_select %p20, %s21, %s22
    %p26 = pneg %p20
    %p27 = scmp.eq.s32.totalorder %s11, 1
    %p28 = por %p26, %p27
    %p29 = scmp.ne.s32.totalorder %s21, %s24
    %p30 = scmp.eq.s32.totalorder %s11, 0
    %p31 = por %p29, %p30
    %p32 = scmp.ne.s32.totalorder %s21, %s24
    %p33 = scmp.eq.s32.totalorder %s16, 1
    %p34 = por %p32, %p33
    %p35 = scmp.ne.s32.totalorder %s24, %s25
    %p36 = scmp.eq.s32.totalorder %s16, 0
    %p37 = por %p35, %p36
    %p38 = scmp.ne.s32.totalorder %s24, %s25
    %p39 = scmp.eq.s32.totalorder %s17, 1
    %p40 = por %p38, %p39
    %p42 = scmp.ne.s32.totalorder %s25, %s41
    %p43 = scmp.eq.s32.totalorder %s17, 0
    %p44 = por %p42, %p43
    %s46 = sadd.s32 %s45, 1
    %p49 = scmp.eq.s32.totalorder %s11, 1
    %p50 = scmp.ne.s32.totalorder %s45, %s47
    %p51 = scmp.eq.s32.totalorder %s11, 0
    %p52 = por %p50, %p51
    %p53 = scmp.ne.s32.totalorder %s45, %s47
    %p54 = scmp.eq.s32.totalorder %s16, 1
    %p55 = por %p53, %p54
    %p56 = scmp.ne.s32.totalorder %s47, %s48
    %p57 = scmp.eq.s32.totalorder %s16, 0
    %p58 = por %p56, %p57
    %p59 = scmp.ne.s32.totalorder %s47, %s48
    %p60 = scmp.eq.s32.totalorder %s17, 1
    %p61 = por %p59, %p60
    %p63 = scmp.ne.s32.totalorder %s48, %s62
    %p64 = scmp.eq.s32.totalorder %s17, 0
    %p65 = por %p63, %p64
    %s67 = sadd.s32 %s66, 1
    %p70 = scmp.eq.s32.totalorder %s11, 1
    %p71 = scmp.ne.s32.totalorder %s66, %s68
    %p72 = scmp.eq.s32.totalorder %s11, 0
    %p73 = por %p71, %p72
    %p74 = scmp.ne.s32.totalorder %s66, %s68
    %p75 = scmp.eq.s32.totalorder %s16, 1
    %p76 = por %p74, %p75
    %p77 = scmp.ne.s32.totalorder %s68, %s69
    %p78 = scmp.eq.s32.totalorder %s16, 0
    %p79 = por %p77, %p78
    %p80 = scmp.ne.s32.totalorder %s68, %s69
    %p81 = scmp.eq.s32.totalorder %s17, 1
    %p82 = por %p80, %p81
    %p84 = scmp.ne.s32.totalorder %s69, %s83
    %p85 = scmp.eq.s32.totalorder %s17, 0
    %p86 = por %p84, %p85
    %s88 = sadd.s32 %s87, 1
    %p91 = scmp.eq.s32.totalorder %s11, 1
    %p92 = scmp.ne.s32.totalorder %s87, %s89
    %p93 = scmp.eq.s32.totalorder %s11, 0
    %p94 = por %p92, %p93
    %p95 = scmp.ne.s32.totalorder %s87, %s89
    %p96 = scmp.eq.s32.totalorder %s16, 1
    %p97 = por %p95, %p96
    %p98 = scmp.ne.s32.totalorder %s89, %s90
    %p99 = scmp.eq.s32.totalorder %s16, 0
    %p100 = por %p98, %p99
    %p101 = scmp.ne.s32.totalorder %s89, %s90
    %p102 = scmp.eq.s32.totalorder %s17, 1
    %p103 = por %p101, %p102
    %p105 = scmp.ne.s32.totalorder %s90, %s104
    %p106 = scmp.eq.s32.totalorder %s17, 0
    %p107 = por %p105, %p106
    %s109 = sadd.s32 %s108, 1
    %p112 = scmp.eq.s32.totalorder %s11, 1
    %p113 = scmp.ne.s32.totalorder %s108, %s110
    %p114 = scmp.eq.s32.totalorder %s11, 0
    %p115 = por %p113, %p114
    %p116 = scmp.ne.s32.totalorder %s108, %s110
    %p117 = scmp.eq.s32.totalorder %s16, 1
    %p118 = por %p116, %p117
    %p119 = scmp.ne.s32.totalorder %s110, %s111
    %p120 = scmp.eq.s32.totalorder %s16, 0
    %p121 = por %p119, %p120
    %p122 = scmp.ne.s32.totalorder %s110, %s111
    %p123 = scmp.eq.s32.totalorder %s17, 1
    %p124 = por %p122, %p123
    %p126 = scmp.ne.s32.totalorder %s111, %s125
    %p127 = scmp.eq.s32.totalorder %s17, 0
    %p128 = por %p126, %p127
    %s129 = ssub.s32 %s11, %s18
    %p130 = scmp.eq.s32.totalorder %s129, 0
    %s132 = sadd.s32 %s131, 1
    %s133 = scalar_select %p130, %s131, %s132
    %p136 = pneg %p130
    %p137 = scmp.eq.s32.totalorder %s11, 1
    %p138 = por %p136, %p137
    %p139 = scmp.ne.s32.totalorder %s131, %s134
    %p140 = scmp.eq.s32.totalorder %s11, 0
    %p141 = por %p139, %p140
    %p142 = scmp.ne.s32.totalorder %s131, %s134
    %p143 = scmp.eq.s32.totalorder %s16, 1
    %p144 = por %p142, %p143
    %p145 = scmp.ne.s32.totalorder %s134, %s135
    %p146 = scmp.eq.s32.totalorder %s16, 0
    %p147 = por %p145, %p146
    %p148 = scmp.ne.s32.totalorder %s134, %s135
    %p149 = scmp.eq.s32.totalorder %s17, 1
    %p150 = por %p148, %p149
    %p152 = scmp.ne.s32.totalorder %s135, %s151
    %p153 = scmp.eq.s32.totalorder %s17, 0
    %p154 = por %p152, %p153
    %p155 = scmp.le.s32.totalorder 1, %s11
    %p156 = scmp.lt.s32.totalorder %s11, 3
    %p157 = pnand %p155, %p156
    %p158 = pneg %p157
    // Predicated region
    $region9: #{tpu_custom_call.1} parent=5 // pred_check
      _
    $region10: #{tpu_custom_call.1} parent=5 // pred_check_branch
      %160 = sbr.rel (%p157) target = $region12
    $region11: #{tpu_custom_call.1} parent=5 // pred_region
      %s161 = ssub.s32 %s11, 1
      // Predicated region
      $region13: #{tpu_custom_call.1} parent=11 // pred_check
        %p162 = pneg %p58
      $region14: #{tpu_custom_call.1} parent=11 // pred_check_branch
        %164 = sbr.rel (%p162) target = $region16
      $region15: #{tpu_custom_call.1} parent=11 // pred_region
        _
      $region16: #{tpu_custom_call.1} parent=11 // pred_fallthru
        _
      // Predicated region
      $region17: #{tpu_custom_call.1} parent=11 // pred_check
        %p165 = pneg %p79
      $region18: #{tpu_custom_call.1} parent=11 // pred_check_branch
        %167 = sbr.rel (%p165) target = $region20
      $region19: #{tpu_custom_call.1} parent=11 // pred_region
        _
      $region20: #{tpu_custom_call.1} parent=11 // pred_fallthru
        _
      // Predicated region
      $region21: #{tpu_custom_call.1} parent=11 // pred_check
        %p168 = pneg %p100
      $region22: #{tpu_custom_call.1} parent=11 // pred_check_branch
        %170 = sbr.rel (%p168) target = $region24
      $region23: #{tpu_custom_call.1} parent=11 // pred_region
        _
      $region24: #{tpu_custom_call.1} parent=11 // pred_fallthru
        _
      // Predicated region
      $region25: #{tpu_custom_call.1} parent=11 // pred_check
        %p171 = pneg %p121
      $region26: #{tpu_custom_call.1} parent=11 // pred_check_branch
        %173 = sbr.rel (%p171) target = $region28
      $region27: #{tpu_custom_call.1} parent=11 // pred_region
        _
      $region28: #{tpu_custom_call.1} parent=11 // pred_fallthru
        _
    $region12: #{tpu_custom_call.1} parent=5 // pred_fallthru
      _
    %p174 = scmp.lt.s32.totalorder %s11, 2
    // Predicated region
    $region29: #{tpu_custom_call.1} parent=5 // pred_check
      %p175 = pneg %p174
    $region30: #{tpu_custom_call.1} parent=5 // pred_check_branch
      %177 = sbr.rel (%p175) target = $region32
    $region31: #{tpu_custom_call.1} parent=5 // pred_region
      // Predicated region
      $region33: #{tpu_custom_call.1} parent=31 // pred_check
        %p178 = pneg %p31
      $region34: #{tpu_custom_call.1} parent=31 // pred_check_branch
        %180 = sbr.rel (%p178) target = $region36
      $region35: #{tpu_custom_call.1} parent=31 // pred_region
        %p181 = scmp.lt.s32.totalorder %s11, 1
        %s182 = scalar_select %p181, %s11, 1
        %s183 = smul.addr %s182, 32
        %s184 = smul.addr %s183, 8
        %s185 = scalar_lea.vmem %s0, %s184
      $region36: #{tpu_custom_call.1} parent=31 // pred_fallthru
        _
    $region32: #{tpu_custom_call.1} parent=5 // pred_fallthru
      _
    %p186 = scmp.le.s32.totalorder 1, %s11
    %p187 = scmp.lt.s32.totalorder %s11, 3
    %p188 = pnand %p186, %p187
    %p189 = pneg %p188
    // Predicated region
    $region37: #{tpu_custom_call.1} parent=5 // pred_check
      _
    $region38: #{tpu_custom_call.1} parent=5 // pred_check_branch
      %191 = sbr.rel (%p188) target = $region40
    $region39: #{tpu_custom_call.1} parent=5 // pred_region
      %s192 = ssub.s32 %s11, 1
      %p193 = scmp.lt.s32.totalorder %s16, 1
      %s194 = scalar_select %p193, %s16, 1
      %s195 = smul.addr %s194, 32
      %s196 = smul.addr %s195, 8
      %s197 = scalar_lea.vmem %s0, %s196
      %p198 = pneg %p37
      %p199 = pneg %p34
      %p200 = pneg %p58
      %p201 = pneg %p55
      %p202 = pneg %p79
      %p203 = pneg %p76
      %p204 = pneg %p100
      %p205 = pneg %p97
      %p206 = pneg %p121
      %p207 = pneg %p118
      %p208 = pneg %p147
      %p209 = pneg %p144
      %p210 = scmp.lt.s32.totalorder %s16, 1
      %s211 = scalar_select %p210, %s16, 1
      %s212 = smul.addr %s211, 32
      %s213 = smul.addr %s212, 8
      %s214 = scalar_lea.vmem %s5, %s213
      %p215 = scmp.lt.s32.totalorder %s16, 1
      %s216 = scalar_select %p215, %s16, 1
      %s217 = smul.addr %s216, 32
      %s218 = smul.addr %s217, 8
      %s219 = scalar_lea.vmem %s0, %s218
      %p220 = scmp.lt.s32.totalorder %s16, 1
      %s221 = scalar_select %p220, %s16, 1
      %s222 = smul.addr %s221, 32
      %s223 = smul.addr %s222, 8
      %s224 = scalar_lea.vmem %s5, %s223
      %v225 = vld [vmem:[%s219] sm:$0xff]
      %v226 = vld [vmem:[%s219 + $0x8] sm:$0xff]
      %v227 = vld [vmem:[%s219 + $0x10] sm:$0xff]
      %v228 = vld [vmem:[%s219 + $0x18] sm:$0xff]
      %v229 = vld [vmem:[%s219 + $0x20] sm:$0xff]
      %v230 = vld [vmem:[%s219 + $0x28] sm:$0xff]
      %v231 = vld [vmem:[%s219 + $0x30] sm:$0xff]
      %v232 = vld [vmem:[%s219 + $0x38] sm:$0xff]
      %v233 = vld [vmem:[%s219 + $0x40] sm:$0xff]
      %v234 = vld [vmem:[%s219 + $0x48] sm:$0xff]
      %v235 = vld [vmem:[%s219 + $0x50] sm:$0xff]
      %v236 = vld [vmem:[%s219 + $0x58] sm:$0xff]
      %v237 = vld [vmem:[%s219 + $0x60] sm:$0xff]
      %v238 = vld [vmem:[%s219 + $0x68] sm:$0xff]
      %v239 = vld [vmem:[%s219 + $0x70] sm:$0xff]
      %v240 = vld [vmem:[%s219 + $0x78] sm:$0xff]
      %v241 = vld [vmem:[%s219 + $0x80] sm:$0xff]
      %v242 = vld [vmem:[%s219 + $0x88] sm:$0xff]
      %v243 = vld [vmem:[%s219 + $0x90] sm:$0xff]
      %v244 = vld [vmem:[%s219 + $0x98] sm:$0xff]
      %v245 = vld [vmem:[%s219 + $0xa0] sm:$0xff]
      %v246 = vld [vmem:[%s219 + $0xa8] sm:$0xff]
      %v247 = vld [vmem:[%s219 + $0xb0] sm:$0xff]
      %v248 = vld [vmem:[%s219 + $0xb8] sm:$0xff]
      %v249 = vld [vmem:[%s219 + $0xc0] sm:$0xff]
      %v250 = vld [vmem:[%s219 + $0xc8] sm:$0xff]
      %v251 = vld [vmem:[%s219 + $0xd0] sm:$0xff]
      %v252 = vld [vmem:[%s219 + $0xd8] sm:$0xff]
      %v253 = vld [vmem:[%s219 + $0xe0] sm:$0xff]
      %v254 = vld [vmem:[%s219 + $0xe8] sm:$0xff]
      %v255 = vld [vmem:[%s219 + $0xf0] sm:$0xff]
      %v256 = vld [vmem:[%s219 + $0xf8] sm:$0xff]
      %vm257 = vcmask 31744
      %258 = vst.msk [vmem:[#allocation2] sm:$0xff] %vm257, 0.0
      %259 = vst.msk [vmem:[#allocation2 + $0x8] sm:$0xff] %vm257, 0.0
      %260 = vst.msk [vmem:[#allocation2 + $0x10] sm:$0xff] %vm257, 0.0
      %261 = vst.msk [vmem:[#allocation2 + $0x18] sm:$0xff] %vm257, 0.0
      %262 = vst.msk [vmem:[#allocation2 + $0x20] sm:$0xff] %vm257, 0.0
      %263 = vst.msk [vmem:[#allocation2 + $0x28] sm:$0xff] %vm257, 0.0
      %264 = vst.msk [vmem:[#allocation2 + $0x30] sm:$0xff] %vm257, 0.0
      %265 = vst.msk [vmem:[#allocation2 + $0x38] sm:$0xff] %vm257, 0.0
      %266 = vst.msk [vmem:[#allocation2 + $0x40] sm:$0xff] %vm257, 0.0
      %267 = vst.msk [vmem:[#allocation2 + $0x48] sm:$0xff] %vm257, 0.0
      %268 = vst.msk [vmem:[#allocation2 + $0x50] sm:$0xff] %vm257, 0.0
      %269 = vst.msk [vmem:[#allocation2 + $0x58] sm:$0xff] %vm257, 0.0
      %270 = vst.msk [vmem:[#allocation2 + $0x60] sm:$0xff] %vm257, 0.0
      %271 = vst.msk [vmem:[#allocation2 + $0x68] sm:$0xff] %vm257, 0.0
      %272 = vst.msk [vmem:[#allocation2 + $0x70] sm:$0xff] %vm257, 0.0
      %273 = vst.msk [vmem:[#allocation2 + $0x78] sm:$0xff] %vm257, 0.0
      %274 = vst.msk [vmem:[#allocation2 + $0x80] sm:$0xff] %vm257, 0.0
      %275 = vst.msk [vmem:[#allocation2 + $0x88] sm:$0xff] %vm257, 0.0
      %276 = vst.msk [vmem:[#allocation2 + $0x90] sm:$0xff] %vm257, 0.0
      %277 = vst.msk [vmem:[#allocation2 + $0x98] sm:$0xff] %vm257, 0.0
      %278 = vst.msk [vmem:[#allocation2 + $0xa0] sm:$0xff] %vm257, 0.0
      %279 = vst.msk [vmem:[#allocation2 + $0xa8] sm:$0xff] %vm257, 0.0
      %280 = vst.msk [vmem:[#allocation2 + $0xb0] sm:$0xff] %vm257, 0.0
      %281 = vst.msk [vmem:[#allocation2 + $0xb8] sm:$0xff] %vm257, 0.0
      %282 = vst.msk [vmem:[#allocation2 + $0xc0] sm:$0xff] %vm257, 0.0
      %283 = vst.msk [vmem:[#allocation2 + $0xc8] sm:$0xff] %vm257, 0.0
      %284 = vst.msk [vmem:[#allocation2 + $0xd0] sm:$0xff] %vm257, 0.0
      %285 = vst.msk [vmem:[#allocation2 + $0xd8] sm:$0xff] %vm257, 0.0
      %286 = vst.msk [vmem:[#allocation2 + $0xe0] sm:$0xff] %vm257, 0.0
      %287 = vst.msk [vmem:[#allocation2 + $0xe8] sm:$0xff] %vm257, 0.0
      %288 = vst.msk [vmem:[#allocation2 + $0xf0] sm:$0xff] %vm257, 0.0
      %289 = vst.msk [vmem:[#allocation2 + $0xf8] sm:$0xff] %vm257, 0.0
      %290 = vst.msk [vmem:[#allocation2 + $0x100] sm:$0xff] %vm257, 0.0
      %291 = vst.msk [vmem:[#allocation2 + $0x108] sm:$0xff] %vm257, 0.0
      %292 = vst.msk [vmem:[#allocation2 + $0x110] sm:$0xff] %vm257, 0.0
      %293 = vst.msk [vmem:[#allocation2 + $0x118] sm:$0xff] %vm257, 0.0
      %294 = vst.msk [vmem:[#allocation2 + $0x120] sm:$0xff] %vm257, 0.0
      %295 = vst.msk [vmem:[#allocation2 + $0x128] sm:$0xff] %vm257, 0.0
      %296 = vst.msk [vmem:[#allocation2 + $0x130] sm:$0xff] %vm257, 0.0
      %297 = vst.msk [vmem:[#allocation2 + $0x138] sm:$0xff] %vm257, 0.0
      %298 = vst.msk [vmem:[#allocation2 + $0x140] sm:$0xff] %vm257, 0.0
      %299 = vst.msk [vmem:[#allocation2 + $0x148] sm:$0xff] %vm257, 0.0
      %300 = vst.msk [vmem:[#allocation2 + $0x150] sm:$0xff] %vm257, 0.0
      %301 = vst.msk [vmem:[#allocation2 + $0x158] sm:$0xff] %vm257, 0.0
      %302 = vst.msk [vmem:[#allocation2 + $0x160] sm:$0xff] %vm257, 0.0
      %303 = vst.msk [vmem:[#allocation2 + $0x168] sm:$0xff] %vm257, 0.0
      %304 = vst.msk [vmem:[#allocation2 + $0x170] sm:$0xff] %vm257, 0.0
      %305 = vst.msk [vmem:[#allocation2 + $0x178] sm:$0xff] %vm257, 0.0
      %306 = vst.msk [vmem:[#allocation2 + $0x180] sm:$0xff] %vm257, 0.0
      %307 = vst.msk [vmem:[#allocation2 + $0x188] sm:$0xff] %vm257, 0.0
      %308 = vst.msk [vmem:[#allocation2 + $0x190] sm:$0xff] %vm257, 0.0
      %309 = vst.msk [vmem:[#allocation2 + $0x198] sm:$0xff] %vm257, 0.0
      %310 = vst.msk [vmem:[#allocation2 + $0x1a0] sm:$0xff] %vm257, 0.0
      %311 = vst.msk [vmem:[#allocation2 + $0x1a8] sm:$0xff] %vm257, 0.0
      %312 = vst.msk [vmem:[#allocation2 + $0x1b0] sm:$0xff] %vm257, 0.0
      %313 = vst.msk [vmem:[#allocation2 + $0x1b8] sm:$0xff] %vm257, 0.0
      %314 = vst.msk [vmem:[#allocation2 + $0x1c0] sm:$0xff] %vm257, 0.0
      %315 = vst.msk [vmem:[#allocation2 + $0x1c8] sm:$0xff] %vm257, 0.0
      %316 = vst.msk [vmem:[#allocation2 + $0x1d0] sm:$0xff] %vm257, 0.0
      %317 = vst.msk [vmem:[#allocation2 + $0x1d8] sm:$0xff] %vm257, 0.0
      %318 = vst.msk [vmem:[#allocation2 + $0x1e0] sm:$0xff] %vm257, 0.0
      %319 = vst.msk [vmem:[#allocation2 + $0x1e8] sm:$0xff] %vm257, 0.0
      %320 = vst.msk [vmem:[#allocation2 + $0x1f0] sm:$0xff] %vm257, 0.0
      %321 = vst.msk [vmem:[#allocation2 + $0x1f8] sm:$0xff] %vm257, 0.0
      %322 = vst.msk [vmem:[#allocation2 + $0x200] sm:$0xff] %vm257, 0.0
      %323 = vst.msk [vmem:[#allocation2 + $0x208] sm:$0xff] %vm257, 0.0
      %324 = vst.msk [vmem:[#allocation2 + $0x210] sm:$0xff] %vm257, 0.0
      %325 = vst.msk [vmem:[#allocation2 + $0x218] sm:$0xff] %vm257, 0.0
      %326 = vst.msk [vmem:[#allocation2 + $0x220] sm:$0xff] %vm257, 0.0
      %327 = vst.msk [vmem:[#allocation2 + $0x228] sm:$0xff] %vm257, 0.0
      %328 = vst.msk [vmem:[#allocation2 + $0x230] sm:$0xff] %vm257, 0.0
      %329 = vst.msk [vmem:[#allocation2 + $0x238] sm:$0xff] %vm257, 0.0
      %330 = vst.msk [vmem:[#allocation2 + $0x240] sm:$0xff] %vm257, 0.0
      %331 = vst.msk [vmem:[#allocation2 + $0x248] sm:$0xff] %vm257, 0.0
      %332 = vst.msk [vmem:[#allocation2 + $0x250] sm:$0xff] %vm257, 0.0
      %333 = vst.msk [vmem:[#allocation2 + $0x258] sm:$0xff] %vm257, 0.0
      %334 = vst.msk [vmem:[#allocation2 + $0x260] sm:$0xff] %vm257, 0.0
      %335 = vst.msk [vmem:[#allocation2 + $0x268] sm:$0xff] %vm257, 0.0
      %336 = vst.msk [vmem:[#allocation2 + $0x270] sm:$0xff] %vm257, 0.0
      %337 = vst.msk [vmem:[#allocation2 + $0x278] sm:$0xff] %vm257, 0.0
      %338 = vst.msk [vmem:[#allocation2 + $0x280] sm:$0xff] %vm257, 0.0
      %339 = vst.msk [vmem:[#allocation2 + $0x288] sm:$0xff] %vm257, 0.0
      %340 = vst.msk [vmem:[#allocation2 + $0x290] sm:$0xff] %vm257, 0.0
      %341 = vst.msk [vmem:[#allocation2 + $0x298] sm:$0xff] %vm257, 0.0
      %342 = vst.msk [vmem:[#allocation2 + $0x2a0] sm:$0xff] %vm257, 0.0
      %343 = vst.msk [vmem:[#allocation2 + $0x2a8] sm:$0xff] %vm257, 0.0
      %344 = vst.msk [vmem:[#allocation2 + $0x2b0] sm:$0xff] %vm257, 0.0
      %345 = vst.msk [vmem:[#allocation2 + $0x2b8] sm:$0xff] %vm257, 0.0
      %346 = vst.msk [vmem:[#allocation2 + $0x2c0] sm:$0xff] %vm257, 0.0
      %347 = vst.msk [vmem:[#allocation2 + $0x2c8] sm:$0xff] %vm257, 0.0
      %348 = vst.msk [vmem:[#allocation2 + $0x2d0] sm:$0xff] %vm257, 0.0
      %349 = vst.msk [vmem:[#allocation2 + $0x2d8] sm:$0xff] %vm257, 0.0
      %350 = vst.msk [vmem:[#allocation2 + $0x2e0] sm:$0xff] %vm257, 0.0
      %351 = vst.msk [vmem:[#allocation2 + $0x2e8] sm:$0xff] %vm257, 0.0
      %352 = vst.msk [vmem:[#allocation2 + $0x2f0] sm:$0xff] %vm257, 0.0
      %353 = vst.msk [vmem:[#allocation2 + $0x2f8] sm:$0xff] %vm257, 0.0
      %354 = vst.msk [vmem:[#allocation2 + $0x300] sm:$0xff] %vm257, 0.0
      %355 = vst.msk [vmem:[#allocation2 + $0x308] sm:$0xff] %vm257, 0.0
      %356 = vst.msk [vmem:[#allocation2 + $0x310] sm:$0xff] %vm257, 0.0
      %357 = vst.msk [vmem:[#allocation2 + $0x318] sm:$0xff] %vm257, 0.0
      %358 = vst.msk [vmem:[#allocation2 + $0x320] sm:$0xff] %vm257, 0.0
      %359 = vst.msk [vmem:[#allocation2 + $0x328] sm:$0xff] %vm257, 0.0
      %360 = vst.msk [vmem:[#allocation2 + $0x330] sm:$0xff] %vm257, 0.0
      %361 = vst.msk [vmem:[#allocation2 + $0x338] sm:$0xff] %vm257, 0.0
      %362 = vst.msk [vmem:[#allocation2 + $0x340] sm:$0xff] %vm257, 0.0
      %363 = vst.msk [vmem:[#allocation2 + $0x348] sm:$0xff] %vm257, 0.0
      %364 = vst.msk [vmem:[#allocation2 + $0x350] sm:$0xff] %vm257, 0.0
      %365 = vst.msk [vmem:[#allocation2 + $0x358] sm:$0xff] %vm257, 0.0
      %s366 = scalar_lea.vmem [#allocation2], 16
      %367 = vst.msk [vmem:[%s366 + $0x1] sm:$0xff] %vm257, %v225
      %vm368 = vcmask 30720
      %369 = vst.msk [vmem:[%s366 + $0x9] sm:$0x7f] %vm368, %v226
      %370 = vst.msk [vmem:[%s366 + $0x11] sm:$0xff] %vm257, %v227
      %371 = vst.msk [vmem:[%s366 + $0x19] sm:$0x7f] %vm368, %v228
      %372 = vst.msk [vmem:[%s366 + $0x21] sm:$0xff] %vm257, %v229
      %373 = vst.msk [vmem:[%s366 + $0x29] sm:$0x7f] %vm368, %v230
      %374 = vst.msk [vmem:[%s366 + $0x31] sm:$0xff] %vm257, %v231
      %375 = vst.msk [vmem:[%s366 + $0x39] sm:$0x7f] %vm368, %v232
      %376 = vst.msk [vmem:[%s366 + $0x41] sm:$0xff] %vm257, %v233
      %377 = vst.msk [vmem:[%s366 + $0x49] sm:$0x7f] %vm368, %v234
      %378 = vst.msk [vmem:[%s366 + $0x51] sm:$0xff] %vm257, %v235
      %379 = vst.msk [vmem:[%s366 + $0x59] sm:$0x7f] %vm368, %v236
      %380 = vst.msk [vmem:[%s366 + $0x61] sm:$0xff] %vm257, %v237
      %381 = vst.msk [vmem:[%s366 + $0x69] sm:$0x7f] %vm368, %v238
      %382 = vst.msk [vmem:[%s366 + $0x71] sm:$0xff] %vm257, %v239
      %383 = vst.msk [vmem:[%s366 + $0x79] sm:$0x7f] %vm368, %v240
      %384 = vst.msk [vmem:[%s366 + $0x81] sm:$0xff] %vm257, %v241
      %385 = vst.msk [vmem:[%s366 + $0x89] sm:$0x7f] %vm368, %v242
      %386 = vst.msk [vmem:[%s366 + $0x91] sm:$0xff] %vm257, %v243
      %387 = vst.msk [vmem:[%s366 + $0x99] sm:$0x7f] %vm368, %v244
      %388 = vst.msk [vmem:[%s366 + $0xa1] sm:$0xff] %vm257, %v245
      %389 = vst.msk [vmem:[%s366 + $0xa9] sm:$0x7f] %vm368, %v246
      %390 = vst.msk [vmem:[%s366 + $0xb1] sm:$0xff] %vm257, %v247
      %391 = vst.msk [vmem:[%s366 + $0xb9] sm:$0x7f] %vm368, %v248
      %392 = vst.msk [vmem:[%s366 + $0xc1] sm:$0xff] %vm257, %v249
      %393 = vst.msk [vmem:[%s366 + $0xc9] sm:$0x7f] %vm368, %v250
      %394 = vst.msk [vmem:[%s366 + $0xd1] sm:$0xff] %vm257, %v251
      %395 = vst.msk [vmem:[%s366 + $0xd9] sm:$0x7f] %vm368, %v252
      %396 = vst.msk [vmem:[%s366 + $0xe1] sm:$0xff] %vm257, %v253
      %397 = vst.msk [vmem:[%s366 + $0xe9] sm:$0x7f] %vm368, %v254
      %398 = vst.msk [vmem:[%s366 + $0xf1] sm:$0xff] %vm257, %v255
      %399 = vst.msk [vmem:[%s366 + $0xf9] sm:$0x7f] %vm368, %v256
      %s400 = scalar_lea.vmem [#allocation2], 304
      %401 = vst.msk [vmem:[%s400] sm:$0xff] %vm257, %v225
      %402 = vst.msk [vmem:[%s400 + $0x8] sm:$0xff] %vm257, %v226
      %403 = vst.msk [vmem:[%s400 + $0x10] sm:$0xff] %vm257, %v227
      %404 = vst.msk [vmem:[%s400 + $0x18] sm:$0xff] %vm257, %v228
      %405 = vst.msk [vmem:[%s400 + $0x20] sm:$0xff] %vm257, %v229
      %406 = vst.msk [vmem:[%s400 + $0x28] sm:$0xff] %vm257, %v230
      %407 = vst.msk [vmem:[%s400 + $0x30] sm:$0xff] %vm257, %v231
      %408 = vst.msk [vmem:[%s400 + $0x38] sm:$0xff] %vm257, %v232
      %409 = vst.msk [vmem:[%s400 + $0x40] sm:$0xff] %vm257, %v233
      %410 = vst.msk [vmem:[%s400 + $0x48] sm:$0xff] %vm257, %v234
      %411 = vst.msk [vmem:[%s400 + $0x50] sm:$0xff] %vm257, %v235
      %412 = vst.msk [vmem:[%s400 + $0x58] sm:$0xff] %vm257, %v236
      %413 = vst.msk [vmem:[%s400 + $0x60] sm:$0xff] %vm257, %v237
      %414 = vst.msk [vmem:[%s400 + $0x68] sm:$0xff] %vm257, %v238
      %415 = vst.msk [vmem:[%s400 + $0x70] sm:$0xff] %vm257, %v239
      %416 = vst.msk [vmem:[%s400 + $0x78] sm:$0xff] %vm257, %v240
      %417 = vst.msk [vmem:[%s400 + $0x80] sm:$0xff] %vm257, %v241
      %418 = vst.msk [vmem:[%s400 + $0x88] sm:$0xff] %vm257, %v242
      %419 = vst.msk [vmem:[%s400 + $0x90] sm:$0xff] %vm257, %v243
      %420 = vst.msk [vmem:[%s400 + $0x98] sm:$0xff] %vm257, %v244
      %421 = vst.msk [vmem:[%s400 + $0xa0] sm:$0xff] %vm257, %v245
      %422 = vst.msk [vmem:[%s400 + $0xa8] sm:$0xff] %vm257, %v246
      %423 = vst.msk [vmem:[%s400 + $0xb0] sm:$0xff] %vm257, %v247
      %424 = vst.msk [vmem:[%s400 + $0xb8] sm:$0xff] %vm257, %v248
      %425 = vst.msk [vmem:[%s400 + $0xc0] sm:$0xff] %vm257, %v249
      %426 = vst.msk [vmem:[%s400 + $0xc8] sm:$0xff] %vm257, %v250
      %427 = vst.msk [vmem:[%s400 + $0xd0] sm:$0xff] %vm257, %v251
      %428 = vst.msk [vmem:[%s400 + $0xd8] sm:$0xff] %vm257, %v252
      %429 = vst.msk [vmem:[%s400 + $0xe0] sm:$0xff] %vm257, %v253
      %430 = vst.msk [vmem:[%s400 + $0xe8] sm:$0xff] %vm257, %v254
      %431 = vst.msk [vmem:[%s400 + $0xf0] sm:$0xff] %vm257, %v255
      %432 = vst.msk [vmem:[%s400 + $0xf8] sm:$0xff] %vm257, %v256
      %s433 = scalar_lea.vmem [#allocation2], 592
      %vm434 = vcmask 31745
      %435 = vst.msk [vmem:[%s433 - $0x1] sm:$0xfe] %vm434, %v225
      %436 = vst.msk [vmem:[%s433 + $0x7] sm:$0xff] %vm257, %v226
      %437 = vst.msk [vmem:[%s433 + $0xf] sm:$0xfe] %vm434, %v227
      %438 = vst.msk [vmem:[%s433 + $0x17] sm:$0xff] %vm257, %v228
      %439 = vst.msk [vmem:[%s433 + $0x1f] sm:$0xfe] %vm434, %v229
      %440 = vst.msk [vmem:[%s433 + $0x27] sm:$0xff] %vm257, %v230
      %441 = vst.msk [vmem:[%s433 + $0x2f] sm:$0xfe] %vm434, %v231
      %442 = vst.msk [vmem:[%s433 + $0x37] sm:$0xff] %vm257, %v232
      %443 = vst.msk [vmem:[%s433 + $0x3f] sm:$0xfe] %vm434, %v233
      %444 = vst.msk [vmem:[%s433 + $0x47] sm:$0xff] %vm257, %v234
      %445 = vst.msk [vmem:[%s433 + $0x4f] sm:$0xfe] %vm434, %v235
      %446 = vst.msk [vmem:[%s433 + $0x57] sm:$0xff] %vm257, %v236
      %447 = vst.msk [vmem:[%s433 + $0x5f] sm:$0xfe] %vm434, %v237
      %448 = vst.msk [vmem:[%s433 + $0x67] sm:$0xff] %vm257, %v238
      %449 = vst.msk [vmem:[%s433 + $0x6f] sm:$0xfe] %vm434, %v239
      %450 = vst.msk [vmem:[%s433 + $0x77] sm:$0xff] %vm257, %v240
      %451 = vst.msk [vmem:[%s433 + $0x7f] sm:$0xfe] %vm434, %v241
      %452 = vst.msk [vmem:[%s433 + $0x87] sm:$0xff] %vm257, %v242
      %453 = vst.msk [vmem:[%s433 + $0x8f] sm:$0xfe] %vm434, %v243
      %454 = vst.msk [vmem:[%s433 + $0x97] sm:$0xff] %vm257, %v244
      %455 = vst.msk [vmem:[%s433 + $0x9f] sm:$0xfe] %vm434, %v245
      %456 = vst.msk [vmem:[%s433 + $0xa7] sm:$0xff] %vm257, %v246
      %457 = vst.msk [vmem:[%s433 + $0xaf] sm:$0xfe] %vm434, %v247
      %458 = vst.msk [vmem:[%s433 + $0xb7] sm:$0xff] %vm257, %v248
      %459 = vst.msk [vmem:[%s433 + $0xbf] sm:$0xfe] %vm434, %v249
      %460 = vst.msk [vmem:[%s433 + $0xc7] sm:$0xff] %vm257, %v250
      %461 = vst.msk [vmem:[%s433 + $0xcf] sm:$0xfe] %vm434, %v251
      %462 = vst.msk [vmem:[%s433 + $0xd7] sm:$0xff] %vm257, %v252
      %463 = vst.msk [vmem:[%s433 + $0xdf] sm:$0xfe] %vm434, %v253
      %464 = vst.msk [vmem:[%s433 + $0xe7] sm:$0xff] %vm257, %v254
      %465 = vst.msk [vmem:[%s433 + $0xef] sm:$0xfe] %vm434, %v255
      %466 = vst.msk [vmem:[%s433 + $0xf7] sm:$0xff] %vm257, %v256
      %v467 = vld [vmem:[#allocation2] sm:$0xff]
      %v468 = vld [vmem:[#allocation2 + $0x8] sm:$0xff]
      %v469 = vld [vmem:[#allocation2 + $0x10] sm:$0xff]
      %v470 = vld [vmem:[#allocation2 + $0x18] sm:$0xff]
      %v471 = vld [vmem:[#allocation2 + $0x20] sm:$0xff]
      %v472 = vld [vmem:[#allocation2 + $0x28] sm:$0xff]
      %v473 = vld [vmem:[#allocation2 + $0x30] sm:$0xff]
      %v474 = vld [vmem:[#allocation2 + $0x38] sm:$0xff]
      %v475 = vld [vmem:[#allocation2 + $0x40] sm:$0xff]
      %v476 = vld [vmem:[#allocation2 + $0x48] sm:$0xff]
      %v477 = vld [vmem:[#allocation2 + $0x50] sm:$0xff]
      %v478 = vld [vmem:[#allocation2 + $0x58] sm:$0xff]
      %v479 = vld [vmem:[#allocation2 + $0x60] sm:$0xff]
      %v480 = vld [vmem:[#allocation2 + $0x68] sm:$0xff]
      %v481 = vld [vmem:[#allocation2 + $0x70] sm:$0xff]
      %v482 = vld [vmem:[#allocation2 + $0x78] sm:$0xff]
      %v483 = vld [vmem:[#allocation2 + $0x80] sm:$0xff]
      %v484 = vld [vmem:[#allocation2 + $0x88] sm:$0xff]
      %v485 = vld [vmem:[#allocation2 + $0x90] sm:$0xff]
      %v486 = vld [vmem:[#allocation2 + $0x98] sm:$0xff]
      %v487 = vld [vmem:[#allocation2 + $0xa0] sm:$0xff]
      %v488 = vld [vmem:[#allocation2 + $0xa8] sm:$0xff]
      %v489 = vld [vmem:[#allocation2 + $0xb0] sm:$0xff]
      %v490 = vld [vmem:[#allocation2 + $0xb8] sm:$0xff]
      %v491 = vld [vmem:[#allocation2 + $0xc0] sm:$0xff]
      %v492 = vld [vmem:[#allocation2 + $0xc8] sm:$0xff]
      %v493 = vld [vmem:[#allocation2 + $0xd0] sm:$0xff]
      %v494 = vld [vmem:[#allocation2 + $0xd8] sm:$0xff]
      %v495 = vld [vmem:[#allocation2 + $0xe0] sm:$0xff]
      %v496 = vld [vmem:[#allocation2 + $0xe8] sm:$0xff]
      %v497 = vld [vmem:[#allocation2 + $0xf0] sm:$0xff]
      %v498 = vld [vmem:[#allocation2 + $0xf8] sm:$0xff]
      %v499 = vld [vmem:[#allocation2 + $0x100] sm:$0xff]
      %v500 = vld [vmem:[#allocation2 + $0x108] sm:$0xff]
      %v501 = vld [vmem:[#allocation2 + $0x110] sm:$0xff]
      %v502 = vld [vmem:[#allocation2 + $0x118] sm:$0xff]
      %v503 = vld [vmem:[%s1] sm:$0xf]
      %s504 = scalar_lea.vmem %s1, 12
      %v505 = vld [vmem:[%s504] sm:$0xf]
      %v507 = vsel %vm257, %v469, 0
      %v510 = vsel %vm257, %v470, 0
      %v513 = vsel %vm257, %v471, 0
      %v516 = vsel %vm257, %v472, 0
      %v519 = vsel %vm257, %v473, 0
      %v522 = vsel %vm257, %v474, 0
      %v525 = vsel %vm257, %v475, 0
      %v528 = vsel %vm257, %v476, 0
      %v531 = vsel %vm257, %v477, 0
      %v534 = vsel %vm257, %v478, 0
      %v537 = vsel %vm257, %v479, 0
      %v540 = vsel %vm257, %v480, 0
      %v543 = vsel %vm257, %v481, 0
      %v546 = vsel %vm257, %v482, 0
      %v549 = vsel %vm257, %v483, 0
      %v552 = vsel %vm257, %v484, 0
      %v555 = vsel %vm257, %v485, 0
      %v558 = vsel %vm257, %v486, 0
      %v561 = vsel %vm257, %v487, 0
      %v564 = vsel %vm257, %v488, 0
      %v567 = vsel %vm257, %v489, 0
      %v570 = vsel %vm257, %v490, 0
      %v573 = vsel %vm257, %v491, 0
      %v576 = vsel %vm257, %v492, 0
      %v579 = vsel %vm257, %v493, 0
      %v582 = vsel %vm257, %v494, 0
      %v585 = vsel %vm257, %v495, 0
      %v588 = vsel %vm257, %v496, 0
      %v591 = vsel %vm257, %v497, 0
      %v594 = vsel %vm257, %v498, 0
      %v597 = vsel %vm257, %v499, 0
      %v600 = vsel %vm257, %v500, 0
      %vm602 = vcmask 1043456
      %v604 = vsel %vm602, %v505, 0
      %606 = vmatprep.subr.mxu0 0.0
      %607 = vmatpush1.msra.mxu0 0.0
      %608 = vmatprep.subr.mxu0 0.0
      %609 = vmatpush1.msra.mxu0 0.0
      %610 = vmatprep.subr.mxu0 0.0
      %611 = vmatpush1.msra.mxu0 0.0
      %612 = vmatprep.subr.mxu0 0.0
      %613 = vmatpush1.msra.mxu0 0.0
      %614 = vmatprep.subr.mxu0 0.0
      %615 = vmatpush1.msra.mxu0 0.0
      %616 = vmatprep.subr.mxu0 0.0
      %617 = vmatpush1.msra.mxu0 0.0
      %618 = vmatprep.subr.mxu0 0.0
      %619 = vmatpush1.msra.mxu0 0.0
      %620 = vmatprep.subr.mxu0 0.0
      %621 = vmatpush1.msra.mxu0 0.0
      %622 = vmatprep.subr.mxu0 0.0
      %623 = vmatpush1.msra.mxu0 0.0
      %624 = vmatprep.subr.mxu0 0.0
      %625 = vmatpush1.msra.mxu0 0.0
      %626 = vmatprep.subr.mxu0 0.0
      %627 = vmatpush1.msra.mxu0 0.0
      %628 = vmatprep.subr.mxu0 0.0
      %629 = vmatpush1.msra.mxu0 0.0
      %630 = vmatprep.subr.mxu0 0.0
      %631 = vmatpush1.msra.mxu0 0.0
      %632 = vmatprep.subr.mxu0 0.0
      %633 = vmatpush1.msra.mxu0 0.0
      %634 = vmatprep.subr.mxu0 0.0
      %635 = vmatpush1.msra.mxu0 0.0
      %636 = vmatprep.subr.mxu0 0.0
      %637 = vmatpush1.msra.mxu0 %v604
      %638 = vmatprep.subr.mxu0 0.0
      %639 = vmatpush2.msra.mxu0 0.0
      %640 = vmatprep.subr.mxu0 0.0
      %641 = vmatpush2.msra.mxu0 0.0
      %642 = vmatprep.subr.mxu0 0.0
      %643 = vmatpush2.msra.mxu0 0.0
      %644 = vmatprep.subr.mxu0 0.0
      %645 = vmatpush2.msra.mxu0 0.0
      %646 = vmatprep.subr.mxu0 0.0
      %647 = vmatpush2.msra.mxu0 0.0
      %648 = vmatprep.subr.mxu0 0.0
      %649 = vmatpush2.msra.mxu0 0.0
      %650 = vmatprep.subr.mxu0 0.0
      %651 = vmatpush2.msra.mxu0 0.0
      %652 = vmatprep.subr.mxu0 0.0
      %653 = vmatpush2.msra.mxu0 0.0
      %654 = vmatprep.subr.mxu0 0.0
      %655 = vmatpush2.msra.mxu0 0.0
      %656 = vmatprep.subr.mxu0 0.0
      %657 = vmatpush2.msra.mxu0 0.0
      %658 = vmatprep.subr.mxu0 0.0
      %659 = vmatpush2.msra.mxu0 0.0
      %660 = vmatprep.subr.mxu0 0.0
      %661 = vmatpush2.msra.mxu0 0.0
      %662 = vmatprep.subr.mxu0 0.0
      %663 = vmatpush2.msra.mxu0 0.0
      %664 = vmatprep.subr.mxu0 0.0
      %665 = vmatpush2.msra.mxu0 0.0
      %666 = vmatprep.subr.mxu0 0.0
      %667 = vmatpush2.msra.mxu0 0.0
      %668 = vmatprep.subr.mxu0 0.0
      %669 = vmatpush2.msra.mxu0 0.0
      %670 = vmatprep.mubr.f32.mxu0 0.0
      %671 = vmatmul.mubr.f32.gmra.mxu0 %v507
      %v672 = vpop.f32.mrf.mxu0
      %v673 = vadd.f32 0.0, %v672
      %v674 = vpop.f32.mrf.mxu0
      %675 = vmatprep.mubr.f32.mxu0 0.0
      %676 = vmatmul.mubr.f32.gmra.mxu0 %v510
      %v677 = vpop.f32.mrf.mxu0
      %v678 = vadd.f32 0.0, %v677
      %v679 = vpop.f32.mrf.mxu0
      %680 = vmatprep.mubr.f32.mxu0 0.0
      %681 = vmatmul.mubr.f32.gmra.mxu0 %v513
      %v682 = vpop.f32.mrf.mxu0
      %v683 = vadd.f32 0.0, %v682
      %v684 = vpop.f32.mrf.mxu0
      %685 = vmatprep.mubr.f32.mxu0 0.0
      %686 = vmatmul.mubr.f32.gmra.mxu0 %v516
      %v687 = vpop.f32.mrf.mxu0
      %v688 = vadd.f32 0.0, %v687
      %v689 = vpop.f32.mrf.mxu0
      %690 = vmatprep.mubr.f32.mxu0 0.0
      %691 = vmatmul.mubr.f32.gmra.mxu0 %v519
      %v692 = vpop.f32.mrf.mxu0
      %v693 = vadd.f32 0.0, %v692
      %v694 = vpop.f32.mrf.mxu0
      %695 = vmatprep.mubr.f32.mxu0 0.0
      %696 = vmatmul.mubr.f32.gmra.mxu0 %v522
      %v697 = vpop.f32.mrf.mxu0
      %v698 = vadd.f32 0.0, %v697
      %v699 = vpop.f32.mrf.mxu0
      %700 = vmatprep.mubr.f32.mxu0 0.0
      %701 = vmatmul.mubr.f32.gmra.mxu0 %v525
      %v702 = vpop.f32.mrf.mxu0
      %v703 = vadd.f32 0.0, %v702
      %v704 = vpop.f32.mrf.mxu0
      %705 = vmatprep.mubr.f32.mxu0 0.0
      %706 = vmatmul.mubr.f32.gmra.mxu0 %v528
      %v707 = vpop.f32.mrf.mxu0
      %v708 = vadd.f32 0.0, %v707
      %v709 = vpop.f32.mrf.mxu0
      %710 = vmatprep.mubr.f32.mxu0 0.0
      %711 = vmatmul.mubr.f32.gmra.mxu0 %v531
      %v712 = vpop.f32.mrf.mxu0
      %v713 = vadd.f32 0.0, %v712
      %v714 = vpop.f32.mrf.mxu0
      %715 = vmatprep.mubr.f32.mxu0 0.0
      %716 = vmatmul.mubr.f32.gmra.mxu0 %v534
      %v717 = vpop.f32.mrf.mxu0
      %v718 = vadd.f32 0.0, %v717
      %v719 = vpop.f32.mrf.mxu0
      %720 = vmatprep.mubr.f32.mxu0 0.0
      %721 = vmatmul.mubr.f32.gmra.mxu0 %v537
      %v722 = vpop.f32.mrf.mxu0
      %v723 = vadd.f32 0.0, %v722
      %v724 = vpop.f32.mrf.mxu0
      %725 = vmatprep.mubr.f32.mxu0 0.0
      %726 = vmatmul.mubr.f32.gmra.mxu0 %v540
      %v727 = vpop.f32.mrf.mxu0
      %v728 = vadd.f32 0.0, %v727
      %v729 = vpop.f32.mrf.mxu0
      %730 = vmatprep.mubr.f32.mxu0 0.0
      %731 = vmatmul.mubr.f32.gmra.mxu0 %v543
      %v732 = vpop.f32.mrf.mxu0
      %v733 = vadd.f32 0.0, %v732
      %v734 = vpop.f32.mrf.mxu0
      %735 = vmatprep.mubr.f32.mxu0 0.0
      %736 = vmatmul.mubr.f32.gmra.mxu0 %v546
      %v737 = vpop.f32.mrf.mxu0
      %v738 = vadd.f32 0.0, %v737
      %v739 = vpop.f32.mrf.mxu0
      %740 = vmatprep.mubr.f32.mxu0 0.0
      %741 = vmatmul.mubr.f32.gmra.mxu0 %v549
      %v742 = vpop.f32.mrf.mxu0
      %v743 = vadd.f32 0.0, %v742
      %v744 = vpop.f32.mrf.mxu0
      %745 = vmatprep.mubr.f32.mxu0 0.0
      %746 = vmatmul.mubr.f32.gmra.mxu0 %v552
      %v747 = vpop.f32.mrf.mxu0
      %v748 = vadd.f32 0.0, %v747
      %v749 = vpop.f32.mrf.mxu0
      %750 = vmatprep.mubr.f32.mxu0 0.0
      %751 = vmatmul.mubr.f32.gmra.mxu0 %v555
      %v752 = vpop.f32.mrf.mxu0
      %v753 = vadd.f32 0.0, %v752
      %v754 = vpop.f32.mrf.mxu0
      %755 = vmatprep.mubr.f32.mxu0 0.0
      %756 = vmatmul.mubr.f32.gmra.mxu0 %v558
      %v757 = vpop.f32.mrf.mxu0
      %v758 = vadd.f32 0.0, %v757
      %v759 = vpop.f32.mrf.mxu0
      %760 = vmatprep.mubr.f32.mxu0 0.0
      %761 = vmatmul.mubr.f32.gmra.mxu0 %v561
      %v762 = vpop.f32.mrf.mxu0
      %v763 = vadd.f32 0.0, %v762
      %v764 = vpop.f32.mrf.mxu0
      %765 = vmatprep.mubr.f32.mxu0 0.0
      %766 = vmatmul.mubr.f32.gmra.mxu0 %v564
      %v767 = vpop.f32.mrf.mxu0
      %v768 = vadd.f32 0.0, %v767
      %v769 = vpop.f32.mrf.mxu0
      %770 = vmatprep.mubr.f32.mxu0 0.0
      %771 = vmatmul.mubr.f32.gmra.mxu0 %v567
      %v772 = vpop.f32.mrf.mxu0
      %v773 = vadd.f32 0.0, %v772
      %v774 = vpop.f32.mrf.mxu0
      %775 = vmatprep.mubr.f32.mxu0 0.0
      %776 = vmatmul.mubr.f32.gmra.mxu0 %v570
      %v777 = vpop.f32.mrf.mxu0
      %v778 = vadd.f32 0.0, %v777
      %v779 = vpop.f32.mrf.mxu0
      %780 = vmatprep.mubr.f32.mxu0 0.0
      %781 = vmatmul.mubr.f32.gmra.mxu0 %v573
      %v782 = vpop.f32.mrf.mxu0
      %v783 = vadd.f32 0.0, %v782
      %v784 = vpop.f32.mrf.mxu0
      %785 = vmatprep.mubr.f32.mxu0 0.0
      %786 = vmatmul.mubr.f32.gmra.mxu0 %v576
      %v787 = vpop.f32.mrf.mxu0
      %v788 = vadd.f32 0.0, %v787
      %v789 = vpop.f32.mrf.mxu0
      %790 = vmatprep.mubr.f32.mxu0 0.0
      %791 = vmatmul.mubr.f32.gmra.mxu0 %v579
      %v792 = vpop.f32.mrf.mxu0
      %v793 = vadd.f32 0.0, %v792
      %v794 = vpop.f32.mrf.mxu0
      %795 = vmatprep.mubr.f32.mxu0 0.0
      %796 = vmatmul.mubr.f32.gmra.mxu0 %v582
      %v797 = vpop.f32.mrf.mxu0
      %v798 = vadd.f32 0.0, %v797
      %v799 = vpop.f32.mrf.mxu0
      %800 = vmatprep.mubr.f32.mxu0 0.0
      %801 = vmatmul.mubr.f32.gmra.mxu0 %v585
      %v802 = vpop.f32.mrf.mxu0
      %v803 = vadd.f32 0.0, %v802
      %v804 = vpop.f32.mrf.mxu0
      %805 = vmatprep.mubr.f32.mxu0 0.0
      %806 = vmatmul.mubr.f32.gmra.mxu0 %v588
      %v807 = vpop.f32.mrf.mxu0
      %v808 = vadd.f32 0.0, %v807
      %v809 = vpop.f32.mrf.mxu0
      %810 = vmatprep.mubr.f32.mxu0 0.0
      %811 = vmatmul.mubr.f32.gmra.mxu0 %v591
      %v812 = vpop.f32.mrf.mxu0
      %v813 = vadd.f32 0.0, %v812
      %v814 = vpop.f32.mrf.mxu0
      %815 = vmatprep.mubr.f32.mxu0 0.0
      %816 = vmatmul.mubr.f32.gmra.mxu0 %v594
      %v817 = vpop.f32.mrf.mxu0
      %v818 = vadd.f32 0.0, %v817
      %v819 = vpop.f32.mrf.mxu0
      %820 = vmatprep.mubr.f32.mxu0 0.0
      %821 = vmatmul.mubr.f32.gmra.mxu0 %v597
      %v822 = vpop.f32.mrf.mxu0
      %v823 = vadd.f32 0.0, %v822
      %v824 = vpop.f32.mrf.mxu0
      %825 = vmatprep.mubr.f32.mxu0 0.0
      %826 = vmatmul.mubr.f32.gmra.mxu0 %v600
      %v827 = vpop.f32.mrf.mxu0
      %v828 = vadd.f32 0.0, %v827
      %v829 = vpop.f32.mrf.mxu0
      %830 = vdwg.mxu0
      %v832 = vsel %vm257, %v467, 0
      %v835 = vsel %vm257, %v468, 0
      %v838 = vsel %vm602, %v503, 0
      %840 = vmatprep.subr.mxu0 0.0
      %841 = vmatpush1.msra.mxu0 0.0
      %842 = vmatprep.subr.mxu0 0.0
      %843 = vmatpush1.msra.mxu0 0.0
      %844 = vmatprep.subr.mxu0 0.0
      %845 = vmatpush1.msra.mxu0 0.0
      %846 = vmatprep.subr.mxu0 0.0
      %847 = vmatpush1.msra.mxu0 0.0
      %848 = vmatprep.subr.mxu0 0.0
      %849 = vmatpush1.msra.mxu0 0.0
      %850 = vmatprep.subr.mxu0 0.0
      %851 = vmatpush1.msra.mxu0 0.0
      %852 = vmatprep.subr.mxu0 0.0
      %853 = vmatpush1.msra.mxu0 0.0
      %854 = vmatprep.subr.mxu0 0.0
      %855 = vmatpush1.msra.mxu0 0.0
      %856 = vmatprep.subr.mxu0 0.0
      %857 = vmatpush1.msra.mxu0 0.0
      %858 = vmatprep.subr.mxu0 0.0
      %859 = vmatpush1.msra.mxu0 0.0
      %860 = vmatprep.subr.mxu0 0.0
      %861 = vmatpush1.msra.mxu0 0.0
      %862 = vmatprep.subr.mxu0 0.0
      %863 = vmatpush1.msra.mxu0 0.0
      %864 = vmatprep.subr.mxu0 0.0
      %865 = vmatpush1.msra.mxu0 0.0
      %866 = vmatprep.subr.mxu0 0.0
      %867 = vmatpush1.msra.mxu0 0.0
      %868 = vmatprep.subr.mxu0 0.0
      %869 = vmatpush1.msra.mxu0 0.0
      %870 = vmatprep.subr.mxu0 0.0
      %871 = vmatpush1.msra.mxu0 %v838
      %872 = vmatprep.subr.mxu0 0.0
      %873 = vmatpush2.msra.mxu0 0.0
      %874 = vmatprep.subr.mxu0 0.0
      %875 = vmatpush2.msra.mxu0 0.0
      %876 = vmatprep.subr.mxu0 0.0
      %877 = vmatpush2.msra.mxu0 0.0
      %878 = vmatprep.subr.mxu0 0.0
      %879 = vmatpush2.msra.mxu0 0.0
      %880 = vmatprep.subr.mxu0 0.0
      %881 = vmatpush2.msra.mxu0 0.0
      %882 = vmatprep.subr.mxu0 0.0
      %883 = vmatpush2.msra.mxu0 0.0
      %884 = vmatprep.subr.mxu0 0.0
      %885 = vmatpush2.msra.mxu0 0.0
      %886 = vmatprep.subr.mxu0 0.0
      %887 = vmatpush2.msra.mxu0 0.0
      %888 = vmatprep.subr.mxu0 0.0
      %889 = vmatpush2.msra.mxu0 0.0
      %890 = vmatprep.subr.mxu0 0.0
      %891 = vmatpush2.msra.mxu0 0.0
      %892 = vmatprep.subr.mxu0 0.0
      %893 = vmatpush2.msra.mxu0 0.0
      %894 = vmatprep.subr.mxu0 0.0
      %895 = vmatpush2.msra.mxu0 0.0
      %896 = vmatprep.subr.mxu0 0.0
      %897 = vmatpush2.msra.mxu0 0.0
      %898 = vmatprep.subr.mxu0 0.0
      %899 = vmatpush2.msra.mxu0 0.0
      %900 = vmatprep.subr.mxu0 0.0
      %901 = vmatpush2.msra.mxu0 0.0
      %902 = vmatprep.subr.mxu0 0.0
      %903 = vmatpush2.msra.mxu0 0.0
      %904 = vmatprep.mubr.f32.mxu0 0.0
      %905 = vmatmul.mubr.f32.gmra.mxu0 %v832
      %v906 = vpop.f32.mrf.mxu0
      %v907 = vadd.f32 %v673, %v906
      %v908 = vpop.f32.mrf.mxu0
      %909 = vmatprep.mubr.f32.mxu0 0.0
      %910 = vmatmul.mubr.f32.gmra.mxu0 %v835
      %v911 = vpop.f32.mrf.mxu0
      %v912 = vadd.f32 %v678, %v911
      %v913 = vpop.f32.mrf.mxu0
      %914 = vmatprep.mubr.f32.mxu0 0.0
      %915 = vmatmul.mubr.f32.gmra.mxu0 %v507
      %v916 = vpop.f32.mrf.mxu0
      %v917 = vadd.f32 %v683, %v916
      %v918 = vpop.f32.mrf.mxu0
      %919 = vmatprep.mubr.f32.mxu0 0.0
      %920 = vmatmul.mubr.f32.gmra.mxu0 %v510
      %v921 = vpop.f32.mrf.mxu0
      %v922 = vadd.f32 %v688, %v921
      %v923 = vpop.f32.mrf.mxu0
      %924 = vmatprep.mubr.f32.mxu0 0.0
      %925 = vmatmul.mubr.f32.gmra.mxu0 %v513
      %v926 = vpop.f32.mrf.mxu0
      %v927 = vadd.f32 %v693, %v926
      %v928 = vpop.f32.mrf.mxu0
      %929 = vmatprep.mubr.f32.mxu0 0.0
      %930 = vmatmul.mubr.f32.gmra.mxu0 %v516
      %v931 = vpop.f32.mrf.mxu0
      %v932 = vadd.f32 %v698, %v931
      %v933 = vpop.f32.mrf.mxu0
      %934 = vmatprep.mubr.f32.mxu0 0.0
      %935 = vmatmul.mubr.f32.gmra.mxu0 %v519
      %v936 = vpop.f32.mrf.mxu0
      %v937 = vadd.f32 %v703, %v936
      %v938 = vpop.f32.mrf.mxu0
      %939 = vmatprep.mubr.f32.mxu0 0.0
      %940 = vmatmul.mubr.f32.gmra.mxu0 %v522
      %v941 = vpop.f32.mrf.mxu0
      %v942 = vadd.f32 %v708, %v941
      %v943 = vpop.f32.mrf.mxu0
      %944 = vmatprep.mubr.f32.mxu0 0.0
      %945 = vmatmul.mubr.f32.gmra.mxu0 %v525
      %v946 = vpop.f32.mrf.mxu0
      %v947 = vadd.f32 %v713, %v946
      %v948 = vpop.f32.mrf.mxu0
      %949 = vmatprep.mubr.f32.mxu0 0.0
      %950 = vmatmul.mubr.f32.gmra.mxu0 %v528
      %v951 = vpop.f32.mrf.mxu0
      %v952 = vadd.f32 %v718, %v951
      %v953 = vpop.f32.mrf.mxu0
      %954 = vmatprep.mubr.f32.mxu0 0.0
      %955 = vmatmul.mubr.f32.gmra.mxu0 %v531
      %v956 = vpop.f32.mrf.mxu0
      %v957 = vadd.f32 %v723, %v956
      %v958 = vpop.f32.mrf.mxu0
      %959 = vmatprep.mubr.f32.mxu0 0.0
      %960 = vmatmul.mubr.f32.gmra.mxu0 %v534
      %v961 = vpop.f32.mrf.mxu0
      %v962 = vadd.f32 %v728, %v961
      %v963 = vpop.f32.mrf.mxu0
      %964 = vmatprep.mubr.f32.mxu0 0.0
      %965 = vmatmul.mubr.f32.gmra.mxu0 %v537
      %v966 = vpop.f32.mrf.mxu0
      %v967 = vadd.f32 %v733, %v966
      %v968 = vpop.f32.mrf.mxu0
      %969 = vmatprep.mubr.f32.mxu0 0.0
      %970 = vmatmul.mubr.f32.gmra.mxu0 %v540
      %v971 = vpop.f32.mrf.mxu0
      %v972 = vadd.f32 %v738, %v971
      %v973 = vpop.f32.mrf.mxu0
      %974 = vmatprep.mubr.f32.mxu0 0.0
      %975 = vmatmul.mubr.f32.gmra.mxu0 %v543
      %v976 = vpop.f32.mrf.mxu0
      %v977 = vadd.f32 %v743, %v976
      %v978 = vpop.f32.mrf.mxu0
      %979 = vmatprep.mubr.f32.mxu0 0.0
      %980 = vmatmul.mubr.f32.gmra.mxu0 %v546
      %v981 = vpop.f32.mrf.mxu0
      %v982 = vadd.f32 %v748, %v981
      %v983 = vpop.f32.mrf.mxu0
      %984 = vmatprep.mubr.f32.mxu0 0.0
      %985 = vmatmul.mubr.f32.gmra.mxu0 %v549
      %v986 = vpop.f32.mrf.mxu0
      %v987 = vadd.f32 %v753, %v986
      %v988 = vpop.f32.mrf.mxu0
      %989 = vmatprep.mubr.f32.mxu0 0.0
      %990 = vmatmul.mubr.f32.gmra.mxu0 %v552
      %v991 = vpop.f32.mrf.mxu0
      %v992 = vadd.f32 %v758, %v991
      %v993 = vpop.f32.mrf.mxu0
      %994 = vmatprep.mubr.f32.mxu0 0.0
      %995 = vmatmul.mubr.f32.gmra.mxu0 %v555
      %v996 = vpop.f32.mrf.mxu0
      %v997 = vadd.f32 %v763, %v996
      %v998 = vpop.f32.mrf.mxu0
      %999 = vmatprep.mubr.f32.mxu0 0.0
      %1000 = vmatmul.mubr.f32.gmra.mxu0 %v558
      %v1001 = vpop.f32.mrf.mxu0
      %v1002 = vadd.f32 %v768, %v1001
      %v1003 = vpop.f32.mrf.mxu0
      %1004 = vmatprep.mubr.f32.mxu0 0.0
      %1005 = vmatmul.mubr.f32.gmra.mxu0 %v561
      %v1006 = vpop.f32.mrf.mxu0
      %v1007 = vadd.f32 %v773, %v1006
      %v1008 = vpop.f32.mrf.mxu0
      %1009 = vmatprep.mubr.f32.mxu0 0.0
      %1010 = vmatmul.mubr.f32.gmra.mxu0 %v564
      %v1011 = vpop.f32.mrf.mxu0
      %v1012 = vadd.f32 %v778, %v1011
      %v1013 = vpop.f32.mrf.mxu0
      %1014 = vmatprep.mubr.f32.mxu0 0.0
      %1015 = vmatmul.mubr.f32.gmra.mxu0 %v567
      %v1016 = vpop.f32.mrf.mxu0
      %v1017 = vadd.f32 %v783, %v1016
      %v1018 = vpop.f32.mrf.mxu0
      %1019 = vmatprep.mubr.f32.mxu0 0.0
      %1020 = vmatmul.mubr.f32.gmra.mxu0 %v570
      %v1021 = vpop.f32.mrf.mxu0
      %v1022 = vadd.f32 %v788, %v1021
      %v1023 = vpop.f32.mrf.mxu0
      %1024 = vmatprep.mubr.f32.mxu0 0.0
      %1025 = vmatmul.mubr.f32.gmra.mxu0 %v573
      %v1026 = vpop.f32.mrf.mxu0
      %v1027 = vadd.f32 %v793, %v1026
      %v1028 = vpop.f32.mrf.mxu0
      %1029 = vmatprep.mubr.f32.mxu0 0.0
      %1030 = vmatmul.mubr.f32.gmra.mxu0 %v576
      %v1031 = vpop.f32.mrf.mxu0
      %v1032 = vadd.f32 %v798, %v1031
      %v1033 = vpop.f32.mrf.mxu0
      %1034 = vmatprep.mubr.f32.mxu0 0.0
      %1035 = vmatmul.mubr.f32.gmra.mxu0 %v579
      %v1036 = vpop.f32.mrf.mxu0
      %v1037 = vadd.f32 %v803, %v1036
      %v1038 = vpop.f32.mrf.mxu0
      %1039 = vmatprep.mubr.f32.mxu0 0.0
      %1040 = vmatmul.mubr.f32.gmra.mxu0 %v582
      %v1041 = vpop.f32.mrf.mxu0
      %v1042 = vadd.f32 %v808, %v1041
      %v1043 = vpop.f32.mrf.mxu0
      %1044 = vmatprep.mubr.f32.mxu0 0.0
      %1045 = vmatmul.mubr.f32.gmra.mxu0 %v585
      %v1046 = vpop.f32.mrf.mxu0
      %v1047 = vadd.f32 %v813, %v1046
      %v1048 = vpop.f32.mrf.mxu0
      %1049 = vmatprep.mubr.f32.mxu0 0.0
      %1050 = vmatmul.mubr.f32.gmra.mxu0 %v588
      %v1051 = vpop.f32.mrf.mxu0
      %v1052 = vadd.f32 %v818, %v1051
      %v1053 = vpop.f32.mrf.mxu0
      %1054 = vmatprep.mubr.f32.mxu0 0.0
      %1055 = vmatmul.mubr.f32.gmra.mxu0 %v591
      %v1056 = vpop.f32.mrf.mxu0
      %v1057 = vadd.f32 %v823, %v1056
      %v1058 = vpop.f32.mrf.mxu0
      %1059 = vmatprep.mubr.f32.mxu0 0.0
      %1060 = vmatmul.mubr.f32.gmra.mxu0 %v594
      %v1061 = vpop.f32.mrf.mxu0
      %v1062 = vadd.f32 %v828, %v1061
      %v1063 = vpop.f32.mrf.mxu0
      %1064 = vdwg.mxu0
      %s1065 = scalar_lea.vmem %s1, 24
      %v1066 = vld [vmem:[%s1065] sm:$0xf]
      %v1068 = vsel %vm257, %v501, 0
      %v1071 = vsel %vm257, %v502, 0
      %v1074 = vsel %vm602, %v1066, 0
      %1076 = vmatprep.subr.mxu0 0.0
      %1077 = vmatpush1.msra.mxu0 0.0
      %1078 = vmatprep.subr.mxu0 0.0
      %1079 = vmatpush1.msra.mxu0 0.0
      %1080 = vmatprep.subr.mxu0 0.0
      %1081 = vmatpush1.msra.mxu0 0.0
      %1082 = vmatprep.subr.mxu0 0.0
      %1083 = vmatpush1.msra.mxu0 0.0
      %1084 = vmatprep.subr.mxu0 0.0
      %1085 = vmatpush1.msra.mxu0 0.0
      %1086 = vmatprep.subr.mxu0 0.0
      %1087 = vmatpush1.msra.mxu0 0.0
      %1088 = vmatprep.subr.mxu0 0.0
      %1089 = vmatpush1.msra.mxu0 0.0
      %1090 = vmatprep.subr.mxu0 0.0
      %1091 = vmatpush1.msra.mxu0 0.0
      %1092 = vmatprep.subr.mxu0 0.0
      %1093 = vmatpush1.msra.mxu0 0.0
      %1094 = vmatprep.subr.mxu0 0.0
      %1095 = vmatpush1.msra.mxu0 0.0
      %1096 = vmatprep.subr.mxu0 0.0
      %1097 = vmatpush1.msra.mxu0 0.0
      %1098 = vmatprep.subr.mxu0 0.0
      %1099 = vmatpush1.msra.mxu0 0.0
      %1100 = vmatprep.subr.mxu0 0.0
      %1101 = vmatpush1.msra.mxu0 0.0
      %1102 = vmatprep.subr.mxu0 0.0
      %1103 = vmatpush1.msra.mxu0 0.0
      %1104 = vmatprep.subr.mxu0 0.0
      %1105 = vmatpush1.msra.mxu0 0.0
      %1106 = vmatprep.subr.mxu0 0.0
      %1107 = vmatpush1.msra.mxu0 %v1074
      %1108 = vmatprep.subr.mxu0 0.0
      %1109 = vmatpush2.msra.mxu0 0.0
      %1110 = vmatprep.subr.mxu0 0.0
      %1111 = vmatpush2.msra.mxu0 0.0
      %1112 = vmatprep.subr.mxu0 0.0
      %1113 = vmatpush2.msra.mxu0 0.0
      %1114 = vmatprep.subr.mxu0 0.0
      %1115 = vmatpush2.msra.mxu0 0.0
      %1116 = vmatprep.subr.mxu0 0.0
      %1117 = vmatpush2.msra.mxu0 0.0
      %1118 = vmatprep.subr.mxu0 0.0
      %1119 = vmatpush2.msra.mxu0 0.0
      %1120 = vmatprep.subr.mxu0 0.0
      %1121 = vmatpush2.msra.mxu0 0.0
      %1122 = vmatprep.subr.mxu0 0.0
      %1123 = vmatpush2.msra.mxu0 0.0
      %1124 = vmatprep.subr.mxu0 0.0
      %1125 = vmatpush2.msra.mxu0 0.0
      %1126 = vmatprep.subr.mxu0 0.0
      %1127 = vmatpush2.msra.mxu0 0.0
      %1128 = vmatprep.subr.mxu0 0.0
      %1129 = vmatpush2.msra.mxu0 0.0
      %1130 = vmatprep.subr.mxu0 0.0
      %1131 = vmatpush2.msra.mxu0 0.0
      %1132 = vmatprep.subr.mxu0 0.0
      %1133 = vmatpush2.msra.mxu0 0.0
      %1134 = vmatprep.subr.mxu0 0.0
      %1135 = vmatpush2.msra.mxu0 0.0
      %1136 = vmatprep.subr.mxu0 0.0
      %1137 = vmatpush2.msra.mxu0 0.0
      %1138 = vmatprep.subr.mxu0 0.0
      %1139 = vmatpush2.msra.mxu0 0.0
      %1140 = vmatprep.mubr.f32.mxu0 0.0
      %1141 = vmatmul.mubr.f32.gmra.mxu0 %v513
      %v1142 = vpop.f32.mrf.mxu0
      %v1143 = vadd.f32 0.0, %v1142
      %v1144 = vpop.f32.mrf.mxu0
      %1145 = vmatprep.mubr.f32.mxu0 0.0
      %1146 = vmatmul.mubr.f32.gmra.mxu0 %v516
      %v1147 = vpop.f32.mrf.mxu0
      %v1148 = vadd.f32 0.0, %v1147
      %v1149 = vpop.f32.mrf.mxu0
      %1150 = vmatprep.mubr.f32.mxu0 0.0
      %1151 = vmatmul.mubr.f32.gmra.mxu0 %v519
      %v1152 = vpop.f32.mrf.mxu0
      %v1153 = vadd.f32 0.0, %v1152
      %v1154 = vpop.f32.mrf.mxu0
      %1155 = vmatprep.mubr.f32.mxu0 0.0
      %1156 = vmatmul.mubr.f32.gmra.mxu0 %v522
      %v1157 = vpop.f32.mrf.mxu0
      %v1158 = vadd.f32 0.0, %v1157
      %v1159 = vpop.f32.mrf.mxu0
      %1160 = vmatprep.mubr.f32.mxu0 0.0
      %1161 = vmatmul.mubr.f32.gmra.mxu0 %v525
      %v1162 = vpop.f32.mrf.mxu0
      %v1163 = vadd.f32 0.0, %v1162
      %v1164 = vpop.f32.mrf.mxu0
      %1165 = vmatprep.mubr.f32.mxu0 0.0
      %1166 = vmatmul.mubr.f32.gmra.mxu0 %v528
      %v1167 = vpop.f32.mrf.mxu0
      %v1168 = vadd.f32 0.0, %v1167
      %v1169 = vpop.f32.mrf.mxu0
      %1170 = vmatprep.mubr.f32.mxu0 0.0
      %1171 = vmatmul.mubr.f32.gmra.mxu0 %v531
      %v1172 = vpop.f32.mrf.mxu0
      %v1173 = vadd.f32 0.0, %v1172
      %v1174 = vpop.f32.mrf.mxu0
      %1175 = vmatprep.mubr.f32.mxu0 0.0
      %1176 = vmatmul.mubr.f32.gmra.mxu0 %v534
      %v1177 = vpop.f32.mrf.mxu0
      %v1178 = vadd.f32 0.0, %v1177
      %v1179 = vpop.f32.mrf.mxu0
      %1180 = vmatprep.mubr.f32.mxu0 0.0
      %1181 = vmatmul.mubr.f32.gmra.mxu0 %v537
      %v1182 = vpop.f32.mrf.mxu0
      %v1183 = vadd.f32 0.0, %v1182
      %v1184 = vpop.f32.mrf.mxu0
      %1185 = vmatprep.mubr.f32.mxu0 0.0
      %1186 = vmatmul.mubr.f32.gmra.mxu0 %v540
      %v1187 = vpop.f32.mrf.mxu0
      %v1188 = vadd.f32 0.0, %v1187
      %v1189 = vpop.f32.mrf.mxu0
      %1190 = vmatprep.mubr.f32.mxu0 0.0
      %1191 = vmatmul.mubr.f32.gmra.mxu0 %v543
      %v1192 = vpop.f32.mrf.mxu0
      %v1193 = vadd.f32 0.0, %v1192
      %v1194 = vpop.f32.mrf.mxu0
      %1195 = vmatprep.mubr.f32.mxu0 0.0
      %1196 = vmatmul.mubr.f32.gmra.mxu0 %v546
      %v1197 = vpop.f32.mrf.mxu0
      %v1198 = vadd.f32 0.0, %v1197
      %v1199 = vpop.f32.mrf.mxu0
      %1200 = vmatprep.mubr.f32.mxu0 0.0
      %1201 = vmatmul.mubr.f32.gmra.mxu0 %v549
      %v1202 = vpop.f32.mrf.mxu0
      %v1203 = vadd.f32 0.0, %v1202
      %v1204 = vpop.f32.mrf.mxu0
      %1205 = vmatprep.mubr.f32.mxu0 0.0
      %1206 = vmatmul.mubr.f32.gmra.mxu0 %v552
      %v1207 = vpop.f32.mrf.mxu0
      %v1208 = vadd.f32 0.0, %v1207
      %v1209 = vpop.f32.mrf.mxu0
      %1210 = vmatprep.mubr.f32.mxu0 0.0
      %1211 = vmatmul.mubr.f32.gmra.mxu0 %v555
      %v1212 = vpop.f32.mrf.mxu0
      %v1213 = vadd.f32 0.0, %v1212
      %v1214 = vpop.f32.mrf.mxu0
      %1215 = vmatprep.mubr.f32.mxu0 0.0
      %1216 = vmatmul.mubr.f32.gmra.mxu0 %v558
      %v1217 = vpop.f32.mrf.mxu0
      %v1218 = vadd.f32 0.0, %v1217
      %v1219 = vpop.f32.mrf.mxu0
      %1220 = vmatprep.mubr.f32.mxu0 0.0
      %1221 = vmatmul.mubr.f32.gmra.mxu0 %v561
      %v1222 = vpop.f32.mrf.mxu0
      %v1223 = vadd.f32 0.0, %v1222
      %v1224 = vpop.f32.mrf.mxu0
      %1225 = vmatprep.mubr.f32.mxu0 0.0
      %1226 = vmatmul.mubr.f32.gmra.mxu0 %v564
      %v1227 = vpop.f32.mrf.mxu0
      %v1228 = vadd.f32 0.0, %v1227
      %v1229 = vpop.f32.mrf.mxu0
      %1230 = vmatprep.mubr.f32.mxu0 0.0
      %1231 = vmatmul.mubr.f32.gmra.mxu0 %v567
      %v1232 = vpop.f32.mrf.mxu0
      %v1233 = vadd.f32 0.0, %v1232
      %v1234 = vpop.f32.mrf.mxu0
      %1235 = vmatprep.mubr.f32.mxu0 0.0
      %1236 = vmatmul.mubr.f32.gmra.mxu0 %v570
      %v1237 = vpop.f32.mrf.mxu0
      %v1238 = vadd.f32 0.0, %v1237
      %v1239 = vpop.f32.mrf.mxu0
      %1240 = vmatprep.mubr.f32.mxu0 0.0
      %1241 = vmatmul.mubr.f32.gmra.mxu0 %v573
      %v1242 = vpop.f32.mrf.mxu0
      %v1243 = vadd.f32 0.0, %v1242
      %v1244 = vpop.f32.mrf.mxu0
      %1245 = vmatprep.mubr.f32.mxu0 0.0
      %1246 = vmatmul.mubr.f32.gmra.mxu0 %v576
      %v1247 = vpop.f32.mrf.mxu0
      %v1248 = vadd.f32 0.0, %v1247
      %v1249 = vpop.f32.mrf.mxu0
      %1250 = vmatprep.mubr.f32.mxu0 0.0
      %1251 = vmatmul.mubr.f32.gmra.mxu0 %v579
      %v1252 = vpop.f32.mrf.mxu0
      %v1253 = vadd.f32 0.0, %v1252
      %v1254 = vpop.f32.mrf.mxu0
      %1255 = vmatprep.mubr.f32.mxu0 0.0
      %1256 = vmatmul.mubr.f32.gmra.mxu0 %v582
      %v1257 = vpop.f32.mrf.mxu0
      %v1258 = vadd.f32 0.0, %v1257
      %v1259 = vpop.f32.mrf.mxu0
      %1260 = vmatprep.mubr.f32.mxu0 0.0
      %1261 = vmatmul.mubr.f32.gmra.mxu0 %v585
      %v1262 = vpop.f32.mrf.mxu0
      %v1263 = vadd.f32 0.0, %v1262
      %v1264 = vpop.f32.mrf.mxu0
      %1265 = vmatprep.mubr.f32.mxu0 0.0
      %1266 = vmatmul.mubr.f32.gmra.mxu0 %v588
      %v1267 = vpop.f32.mrf.mxu0
      %v1268 = vadd.f32 0.0, %v1267
      %v1269 = vpop.f32.mrf.mxu0
      %1270 = vmatprep.mubr.f32.mxu0 0.0
      %1271 = vmatmul.mubr.f32.gmra.mxu0 %v591
      %v1272 = vpop.f32.mrf.mxu0
      %v1273 = vadd.f32 0.0, %v1272
      %v1274 = vpop.f32.mrf.mxu0
      %1275 = vmatprep.mubr.f32.mxu0 0.0
      %1276 = vmatmul.mubr.f32.gmra.mxu0 %v594
      %v1277 = vpop.f32.mrf.mxu0
      %v1278 = vadd.f32 0.0, %v1277
      %v1279 = vpop.f32.mrf.mxu0
      %1280 = vmatprep.mubr.f32.mxu0 0.0
      %1281 = vmatmul.mubr.f32.gmra.mxu0 %v597
      %v1282 = vpop.f32.mrf.mxu0
      %v1283 = vadd.f32 0.0, %v1282
      %v1284 = vpop.f32.mrf.mxu0
      %1285 = vmatprep.mubr.f32.mxu0 0.0
      %1286 = vmatmul.mubr.f32.gmra.mxu0 %v600
      %v1287 = vpop.f32.mrf.mxu0
      %v1288 = vadd.f32 0.0, %v1287
      %v1289 = vpop.f32.mrf.mxu0
      %1290 = vmatprep.mubr.f32.mxu0 0.0
      %1291 = vmatmul.mubr.f32.gmra.mxu0 %v1068
      %v1292 = vpop.f32.mrf.mxu0
      %v1293 = vadd.f32 0.0, %v1292
      %v1294 = vpop.f32.mrf.mxu0
      %1295 = vmatprep.mubr.f32.mxu0 0.0
      %1296 = vmatmul.mubr.f32.gmra.mxu0 %v1071
      %v1297 = vpop.f32.mrf.mxu0
      %v1298 = vadd.f32 0.0, %v1297
      %v1299 = vpop.f32.mrf.mxu0
      %1300 = vdwg.mxu0
      %v1301 = vadd.f32 %v907, %v1143
      %v1302 = vadd.f32 %v912, %v1148
      %v1303 = vadd.f32 %v917, %v1153
      %v1304 = vadd.f32 %v922, %v1158
      %v1305 = vadd.f32 %v927, %v1163
      %v1306 = vadd.f32 %v932, %v1168
      %v1307 = vadd.f32 %v937, %v1173
      %v1308 = vadd.f32 %v942, %v1178
      %v1309 = vadd.f32 %v947, %v1183
      %v1310 = vadd.f32 %v952, %v1188
      %v1311 = vadd.f32 %v957, %v1193
      %v1312 = vadd.f32 %v962, %v1198
      %v1313 = vadd.f32 %v967, %v1203
      %v1314 = vadd.f32 %v972, %v1208
      %v1315 = vadd.f32 %v977, %v1213
      %v1316 = vadd.f32 %v982, %v1218
      %v1317 = vadd.f32 %v987, %v1223
      %v1318 = vadd.f32 %v992, %v1228
      %v1319 = vadd.f32 %v997, %v1233
      %v1320 = vadd.f32 %v1002, %v1238
      %v1321 = vadd.f32 %v1007, %v1243
      %v1322 = vadd.f32 %v1012, %v1248
      %v1323 = vadd.f32 %v1017, %v1253
      %v1324 = vadd.f32 %v1022, %v1258
      %v1325 = vadd.f32 %v1027, %v1263
      %v1326 = vadd.f32 %v1032, %v1268
      %v1327 = vadd.f32 %v1037, %v1273
      %v1328 = vadd.f32 %v1042, %v1278
      %v1329 = vadd.f32 %v1047, %v1283
      %v1330 = vadd.f32 %v1052, %v1288
      %v1331 = vadd.f32 %v1057, %v1293
      %v1332 = vadd.f32 %v1062, %v1298
      %s1333 = scalar_lea.vmem [#allocation2], 288
      %v1334 = vld [vmem:[%s1333] sm:$0xff]
      %v1335 = vld [vmem:[%s1333 + $0x8] sm:$0xff]
      %v1336 = vld [vmem:[%s1333 + $0x10] sm:$0xff]
      %v1337 = vld [vmem:[%s1333 + $0x18] sm:$0xff]
      %v1338 = vld [vmem:[%s1333 + $0x20] sm:$0xff]
      %v1339 = vld [vmem:[%s1333 + $0x28] sm:$0xff]
      %v1340 = vld [vmem:[%s1333 + $0x30] sm:$0xff]
      %v1341 = vld [vmem:[%s1333 + $0x38] sm:$0xff]
      %v1342 = vld [vmem:[%s1333 + $0x40] sm:$0xff]
      %v1343 = vld [vmem:[%s1333 + $0x48] sm:$0xff]
      %v1344 = vld [vmem:[%s1333 + $0x50] sm:$0xff]
      %v1345 = vld [vmem:[%s1333 + $0x58] sm:$0xff]
      %v1346 = vld [vmem:[%s1333 + $0x60] sm:$0xff]
      %v1347 = vld [vmem:[%s1333 + $0x68] sm:$0xff]
      %v1348 = vld [vmem:[%s1333 + $0x70] sm:$0xff]
      %v1349 = vld [vmem:[%s1333 + $0x78] sm:$0xff]
      %v1350 = vld [vmem:[%s1333 + $0x80] sm:$0xff]
      %v1351 = vld [vmem:[%s1333 + $0x88] sm:$0xff]
      %v1352 = vld [vmem:[%s1333 + $0x90] sm:$0xff]
      %v1353 = vld [vmem:[%s1333 + $0x98] sm:$0xff]
      %v1354 = vld [vmem:[%s1333 + $0xa0] sm:$0xff]
      %v1355 = vld [vmem:[%s1333 + $0xa8] sm:$0xff]
      %v1356 = vld [vmem:[%s1333 + $0xb0] sm:$0xff]
      %v1357 = vld [vmem:[%s1333 + $0xb8] sm:$0xff]
      %v1358 = vld [vmem:[%s1333 + $0xc0] sm:$0xff]
      %v1359 = vld [vmem:[%s1333 + $0xc8] sm:$0xff]
      %v1360 = vld [vmem:[%s1333 + $0xd0] sm:$0xff]
      %v1361 = vld [vmem:[%s1333 + $0xd8] sm:$0xff]
      %v1362 = vld [vmem:[%s1333 + $0xe0] sm:$0xff]
      %v1363 = vld [vmem:[%s1333 + $0xe8] sm:$0xff]
      %v1364 = vld [vmem:[%s1333 + $0xf0] sm:$0xff]
      %v1365 = vld [vmem:[%s1333 + $0xf8] sm:$0xff]
      %v1366 = vld [vmem:[%s1333 + $0x100] sm:$0xff]
      %v1367 = vld [vmem:[%s1333 + $0x108] sm:$0xff]
      %v1368 = vld [vmem:[%s1333 + $0x110] sm:$0xff]
      %v1369 = vld [vmem:[%s1333 + $0x118] sm:$0xff]
      %s1370 = scalar_lea.vmem %s1, 4
      %v1371 = vld [vmem:[%s1370] sm:$0xf]
      %v1373 = vsel %vm257, %v1334, 0
      %v1376 = vsel %vm257, %v1335, 0
      %v1379 = vsel %vm257, %v1336, 0
      %v1382 = vsel %vm257, %v1337, 0
      %v1385 = vsel %vm257, %v1338, 0
      %v1388 = vsel %vm257, %v1339, 0
      %v1391 = vsel %vm257, %v1340, 0
      %v1394 = vsel %vm257, %v1341, 0
      %v1397 = vsel %vm257, %v1342, 0
      %v1400 = vsel %vm257, %v1343, 0
      %v1403 = vsel %vm257, %v1344, 0
      %v1406 = vsel %vm257, %v1345, 0
      %v1409 = vsel %vm257, %v1346, 0
      %v1412 = vsel %vm257, %v1347, 0
      %v1415 = vsel %vm257, %v1348, 0
      %v1418 = vsel %vm257, %v1349, 0
      %v1421 = vsel %vm257, %v1350, 0
      %v1424 = vsel %vm257, %v1351, 0
      %v1427 = vsel %vm257, %v1352, 0
      %v1430 = vsel %vm257, %v1353, 0
      %v1433 = vsel %vm257, %v1354, 0
      %v1436 = vsel %vm257, %v1355, 0
      %v1439 = vsel %vm257, %v1356, 0
      %v1442 = vsel %vm257, %v1357, 0
      %v1445 = vsel %vm257, %v1358, 0
      %v1448 = vsel %vm257, %v1359, 0
      %v1451 = vsel %vm257, %v1360, 0
      %v1454 = vsel %vm257, %v1361, 0
      %v1457 = vsel %vm257, %v1362, 0
      %v1460 = vsel %vm257, %v1363, 0
      %v1463 = vsel %vm257, %v1364, 0
      %v1466 = vsel %vm257, %v1365, 0
      %v1469 = vsel %vm602, %v1371, 0
      %1471 = vmatprep.subr.mxu0 0.0
      %1472 = vmatpush1.msra.mxu0 0.0
      %1473 = vmatprep.subr.mxu0 0.0
      %1474 = vmatpush1.msra.mxu0 0.0
      %1475 = vmatprep.subr.mxu0 0.0
      %1476 = vmatpush1.msra.mxu0 0.0
      %1477 = vmatprep.subr.mxu0 0.0
      %1478 = vmatpush1.msra.mxu0 0.0
      %1479 = vmatprep.subr.mxu0 0.0
      %1480 = vmatpush1.msra.mxu0 0.0
      %1481 = vmatprep.subr.mxu0 0.0
      %1482 = vmatpush1.msra.mxu0 0.0
      %1483 = vmatprep.subr.mxu0 0.0
      %1484 = vmatpush1.msra.mxu0 0.0
      %1485 = vmatprep.subr.mxu0 0.0
      %1486 = vmatpush1.msra.mxu0 0.0
      %1487 = vmatprep.subr.mxu0 0.0
      %1488 = vmatpush1.msra.mxu0 0.0
      %1489 = vmatprep.subr.mxu0 0.0
      %1490 = vmatpush1.msra.mxu0 0.0
      %1491 = vmatprep.subr.mxu0 0.0
      %1492 = vmatpush1.msra.mxu0 0.0
      %1493 = vmatprep.subr.mxu0 0.0
      %1494 = vmatpush1.msra.mxu0 0.0
      %1495 = vmatprep.subr.mxu0 0.0
      %1496 = vmatpush1.msra.mxu0 0.0
      %1497 = vmatprep.subr.mxu0 0.0
      %1498 = vmatpush1.msra.mxu0 0.0
      %1499 = vmatprep.subr.mxu0 0.0
      %1500 = vmatpush1.msra.mxu0 0.0
      %1501 = vmatprep.subr.mxu0 0.0
      %1502 = vmatpush1.msra.mxu0 %v1469
      %1503 = vmatprep.subr.mxu0 0.0
      %1504 = vmatpush2.msra.mxu0 0.0
      %1505 = vmatprep.subr.mxu0 0.0
      %1506 = vmatpush2.msra.mxu0 0.0
      %1507 = vmatprep.subr.mxu0 0.0
      %1508 = vmatpush2.msra.mxu0 0.0
      %1509 = vmatprep.subr.mxu0 0.0
      %1510 = vmatpush2.msra.mxu0 0.0
      %1511 = vmatprep.subr.mxu0 0.0
      %1512 = vmatpush2.msra.mxu0 0.0
      %1513 = vmatprep.subr.mxu0 0.0
      %1514 = vmatpush2.msra.mxu0 0.0
      %1515 = vmatprep.subr.mxu0 0.0
      %1516 = vmatpush2.msra.mxu0 0.0
      %1517 = vmatprep.subr.mxu0 0.0
      %1518 = vmatpush2.msra.mxu0 0.0
      %1519 = vmatprep.subr.mxu0 0.0
      %1520 = vmatpush2.msra.mxu0 0.0
      %1521 = vmatprep.subr.mxu0 0.0
      %1522 = vmatpush2.msra.mxu0 0.0
      %1523 = vmatprep.subr.mxu0 0.0
      %1524 = vmatpush2.msra.mxu0 0.0
      %1525 = vmatprep.subr.mxu0 0.0
      %1526 = vmatpush2.msra.mxu0 0.0
      %1527 = vmatprep.subr.mxu0 0.0
      %1528 = vmatpush2.msra.mxu0 0.0
      %1529 = vmatprep.subr.mxu0 0.0
      %1530 = vmatpush2.msra.mxu0 0.0
      %1531 = vmatprep.subr.mxu0 0.0
      %1532 = vmatpush2.msra.mxu0 0.0
      %1533 = vmatprep.subr.mxu0 0.0
      %1534 = vmatpush2.msra.mxu0 0.0
      %1535 = vmatprep.mubr.f32.mxu0 0.0
      %1536 = vmatmul.mubr.f32.gmra.mxu0 %v1373
      %v1537 = vpop.f32.mrf.mxu0
      %v1538 = vadd.f32 0.0, %v1537
      %v1539 = vpop.f32.mrf.mxu0
      %1540 = vmatprep.mubr.f32.mxu0 0.0
      %1541 = vmatmul.mubr.f32.gmra.mxu0 %v1376
      %v1542 = vpop.f32.mrf.mxu0
      %v1543 = vadd.f32 0.0, %v1542
      %v1544 = vpop.f32.mrf.mxu0
      %1545 = vmatprep.mubr.f32.mxu0 0.0
      %1546 = vmatmul.mubr.f32.gmra.mxu0 %v1379
      %v1547 = vpop.f32.mrf.mxu0
      %v1548 = vadd.f32 0.0, %v1547
      %v1549 = vpop.f32.mrf.mxu0
      %1550 = vmatprep.mubr.f32.mxu0 0.0
      %1551 = vmatmul.mubr.f32.gmra.mxu0 %v1382
      %v1552 = vpop.f32.mrf.mxu0
      %v1553 = vadd.f32 0.0, %v1552
      %v1554 = vpop.f32.mrf.mxu0
      %1555 = vmatprep.mubr.f32.mxu0 0.0
      %1556 = vmatmul.mubr.f32.gmra.mxu0 %v1385
      %v1557 = vpop.f32.mrf.mxu0
      %v1558 = vadd.f32 0.0, %v1557
      %v1559 = vpop.f32.mrf.mxu0
      %1560 = vmatprep.mubr.f32.mxu0 0.0
      %1561 = vmatmul.mubr.f32.gmra.mxu0 %v1388
      %v1562 = vpop.f32.mrf.mxu0
      %v1563 = vadd.f32 0.0, %v1562
      %v1564 = vpop.f32.mrf.mxu0
      %1565 = vmatprep.mubr.f32.mxu0 0.0
      %1566 = vmatmul.mubr.f32.gmra.mxu0 %v1391
      %v1567 = vpop.f32.mrf.mxu0
      %v1568 = vadd.f32 0.0, %v1567
      %v1569 = vpop.f32.mrf.mxu0
      %1570 = vmatprep.mubr.f32.mxu0 0.0
      %1571 = vmatmul.mubr.f32.gmra.mxu0 %v1394
      %v1572 = vpop.f32.mrf.mxu0
      %v1573 = vadd.f32 0.0, %v1572
      %v1574 = vpop.f32.mrf.mxu0
      %1575 = vmatprep.mubr.f32.mxu0 0.0
      %1576 = vmatmul.mubr.f32.gmra.mxu0 %v1397
      %v1577 = vpop.f32.mrf.mxu0
      %v1578 = vadd.f32 0.0, %v1577
      %v1579 = vpop.f32.mrf.mxu0
      %1580 = vmatprep.mubr.f32.mxu0 0.0
      %1581 = vmatmul.mubr.f32.gmra.mxu0 %v1400
      %v1582 = vpop.f32.mrf.mxu0
      %v1583 = vadd.f32 0.0, %v1582
      %v1584 = vpop.f32.mrf.mxu0
      %1585 = vmatprep.mubr.f32.mxu0 0.0
      %1586 = vmatmul.mubr.f32.gmra.mxu0 %v1403
      %v1587 = vpop.f32.mrf.mxu0
      %v1588 = vadd.f32 0.0, %v1587
      %v1589 = vpop.f32.mrf.mxu0
      %1590 = vmatprep.mubr.f32.mxu0 0.0
      %1591 = vmatmul.mubr.f32.gmra.mxu0 %v1406
      %v1592 = vpop.f32.mrf.mxu0
      %v1593 = vadd.f32 0.0, %v1592
      %v1594 = vpop.f32.mrf.mxu0
      %1595 = vmatprep.mubr.f32.mxu0 0.0
      %1596 = vmatmul.mubr.f32.gmra.mxu0 %v1409
      %v1597 = vpop.f32.mrf.mxu0
      %v1598 = vadd.f32 0.0, %v1597
      %v1599 = vpop.f32.mrf.mxu0
      %1600 = vmatprep.mubr.f32.mxu0 0.0
      %1601 = vmatmul.mubr.f32.gmra.mxu0 %v1412
      %v1602 = vpop.f32.mrf.mxu0
      %v1603 = vadd.f32 0.0, %v1602
      %v1604 = vpop.f32.mrf.mxu0
      %1605 = vmatprep.mubr.f32.mxu0 0.0
      %1606 = vmatmul.mubr.f32.gmra.mxu0 %v1415
      %v1607 = vpop.f32.mrf.mxu0
      %v1608 = vadd.f32 0.0, %v1607
      %v1609 = vpop.f32.mrf.mxu0
      %1610 = vmatprep.mubr.f32.mxu0 0.0
      %1611 = vmatmul.mubr.f32.gmra.mxu0 %v1418
      %v1612 = vpop.f32.mrf.mxu0
      %v1613 = vadd.f32 0.0, %v1612
      %v1614 = vpop.f32.mrf.mxu0
      %1615 = vmatprep.mubr.f32.mxu0 0.0
      %1616 = vmatmul.mubr.f32.gmra.mxu0 %v1421
      %v1617 = vpop.f32.mrf.mxu0
      %v1618 = vadd.f32 0.0, %v1617
      %v1619 = vpop.f32.mrf.mxu0
      %1620 = vmatprep.mubr.f32.mxu0 0.0
      %1621 = vmatmul.mubr.f32.gmra.mxu0 %v1424
      %v1622 = vpop.f32.mrf.mxu0
      %v1623 = vadd.f32 0.0, %v1622
      %v1624 = vpop.f32.mrf.mxu0
      %1625 = vmatprep.mubr.f32.mxu0 0.0
      %1626 = vmatmul.mubr.f32.gmra.mxu0 %v1427
      %v1627 = vpop.f32.mrf.mxu0
      %v1628 = vadd.f32 0.0, %v1627
      %v1629 = vpop.f32.mrf.mxu0
      %1630 = vmatprep.mubr.f32.mxu0 0.0
      %1631 = vmatmul.mubr.f32.gmra.mxu0 %v1430
      %v1632 = vpop.f32.mrf.mxu0
      %v1633 = vadd.f32 0.0, %v1632
      %v1634 = vpop.f32.mrf.mxu0
      %1635 = vmatprep.mubr.f32.mxu0 0.0
      %1636 = vmatmul.mubr.f32.gmra.mxu0 %v1433
      %v1637 = vpop.f32.mrf.mxu0
      %v1638 = vadd.f32 0.0, %v1637
      %v1639 = vpop.f32.mrf.mxu0
      %1640 = vmatprep.mubr.f32.mxu0 0.0
      %1641 = vmatmul.mubr.f32.gmra.mxu0 %v1436
      %v1642 = vpop.f32.mrf.mxu0
      %v1643 = vadd.f32 0.0, %v1642
      %v1644 = vpop.f32.mrf.mxu0
      %1645 = vmatprep.mubr.f32.mxu0 0.0
      %1646 = vmatmul.mubr.f32.gmra.mxu0 %v1439
      %v1647 = vpop.f32.mrf.mxu0
      %v1648 = vadd.f32 0.0, %v1647
      %v1649 = vpop.f32.mrf.mxu0
      %1650 = vmatprep.mubr.f32.mxu0 0.0
      %1651 = vmatmul.mubr.f32.gmra.mxu0 %v1442
      %v1652 = vpop.f32.mrf.mxu0
      %v1653 = vadd.f32 0.0, %v1652
      %v1654 = vpop.f32.mrf.mxu0
      %1655 = vmatprep.mubr.f32.mxu0 0.0
      %1656 = vmatmul.mubr.f32.gmra.mxu0 %v1445
      %v1657 = vpop.f32.mrf.mxu0
      %v1658 = vadd.f32 0.0, %v1657
      %v1659 = vpop.f32.mrf.mxu0
      %1660 = vmatprep.mubr.f32.mxu0 0.0
      %1661 = vmatmul.mubr.f32.gmra.mxu0 %v1448
      %v1662 = vpop.f32.mrf.mxu0
      %v1663 = vadd.f32 0.0, %v1662
      %v1664 = vpop.f32.mrf.mxu0
      %1665 = vmatprep.mubr.f32.mxu0 0.0
      %1666 = vmatmul.mubr.f32.gmra.mxu0 %v1451
      %v1667 = vpop.f32.mrf.mxu0
      %v1668 = vadd.f32 0.0, %v1667
      %v1669 = vpop.f32.mrf.mxu0
      %1670 = vmatprep.mubr.f32.mxu0 0.0
      %1671 = vmatmul.mubr.f32.gmra.mxu0 %v1454
      %v1672 = vpop.f32.mrf.mxu0
      %v1673 = vadd.f32 0.0, %v1672
      %v1674 = vpop.f32.mrf.mxu0
      %1675 = vmatprep.mubr.f32.mxu0 0.0
      %1676 = vmatmul.mubr.f32.gmra.mxu0 %v1457
      %v1677 = vpop.f32.mrf.mxu0
      %v1678 = vadd.f32 0.0, %v1677
      %v1679 = vpop.f32.mrf.mxu0
      %1680 = vmatprep.mubr.f32.mxu0 0.0
      %1681 = vmatmul.mubr.f32.gmra.mxu0 %v1460
      %v1682 = vpop.f32.mrf.mxu0
      %v1683 = vadd.f32 0.0, %v1682
      %v1684 = vpop.f32.mrf.mxu0
      %1685 = vmatprep.mubr.f32.mxu0 0.0
      %1686 = vmatmul.mubr.f32.gmra.mxu0 %v1463
      %v1687 = vpop.f32.mrf.mxu0
      %v1688 = vadd.f32 0.0, %v1687
      %v1689 = vpop.f32.mrf.mxu0
      %1690 = vmatprep.mubr.f32.mxu0 0.0
      %1691 = vmatmul.mubr.f32.gmra.mxu0 %v1466
      %v1692 = vpop.f32.mrf.mxu0
      %v1693 = vadd.f32 0.0, %v1692
      %v1694 = vpop.f32.mrf.mxu0
      %1695 = vdwg.mxu0
      %v1696 = vadd.f32 %v1301, %v1538
      %v1697 = vadd.f32 %v1302, %v1543
      %v1698 = vadd.f32 %v1303, %v1548
      %v1699 = vadd.f32 %v1304, %v1553
      %v1700 = vadd.f32 %v1305, %v1558
      %v1701 = vadd.f32 %v1306, %v1563
      %v1702 = vadd.f32 %v1307, %v1568
      %v1703 = vadd.f32 %v1308, %v1573
      %v1704 = vadd.f32 %v1309, %v1578
      %v1705 = vadd.f32 %v1310, %v1583
      %v1706 = vadd.f32 %v1311, %v1588
      %v1707 = vadd.f32 %v1312, %v1593
      %v1708 = vadd.f32 %v1313, %v1598
      %v1709 = vadd.f32 %v1314, %v1603
      %v1710 = vadd.f32 %v1315, %v1608
      %v1711 = vadd.f32 %v1316, %v1613
      %v1712 = vadd.f32 %v1317, %v1618
      %v1713 = vadd.f32 %v1318, %v1623
      %v1714 = vadd.f32 %v1319, %v1628
      %v1715 = vadd.f32 %v1320, %v1633
      %v1716 = vadd.f32 %v1321, %v1638
      %v1717 = vadd.f32 %v1322, %v1643
      %v1718 = vadd.f32 %v1323, %v1648
      %v1719 = vadd.f32 %v1324, %v1653
      %v1720 = vadd.f32 %v1325, %v1658
      %v1721 = vadd.f32 %v1326, %v1663
      %v1722 = vadd.f32 %v1327, %v1668
      %v1723 = vadd.f32 %v1328, %v1673
      %v1724 = vadd.f32 %v1329, %v1678
      %v1725 = vadd.f32 %v1330, %v1683
      %v1726 = vadd.f32 %v1331, %v1688
      %v1727 = vadd.f32 %v1332, %v1693
      %s1728 = scalar_lea.vmem %s1, 16
      %v1729 = vld [vmem:[%s1728] sm:$0xf]
      %v1731 = vsel %vm257, %v1366, 0
      %v1734 = vsel %vm257, %v1367, 0
      %v1737 = vsel %vm602, %v1729, 0
      %1739 = vmatprep.subr.mxu0 0.0
      %1740 = vmatpush1.msra.mxu0 0.0
      %1741 = vmatprep.subr.mxu0 0.0
      %1742 = vmatpush1.msra.mxu0 0.0
      %1743 = vmatprep.subr.mxu0 0.0
      %1744 = vmatpush1.msra.mxu0 0.0
      %1745 = vmatprep.subr.mxu0 0.0
      %1746 = vmatpush1.msra.mxu0 0.0
      %1747 = vmatprep.subr.mxu0 0.0
      %1748 = vmatpush1.msra.mxu0 0.0
      %1749 = vmatprep.subr.mxu0 0.0
      %1750 = vmatpush1.msra.mxu0 0.0
      %1751 = vmatprep.subr.mxu0 0.0
      %1752 = vmatpush1.msra.mxu0 0.0
      %1753 = vmatprep.subr.mxu0 0.0
      %1754 = vmatpush1.msra.mxu0 0.0
      %1755 = vmatprep.subr.mxu0 0.0
      %1756 = vmatpush1.msra.mxu0 0.0
      %1757 = vmatprep.subr.mxu0 0.0
      %1758 = vmatpush1.msra.mxu0 0.0
      %1759 = vmatprep.subr.mxu0 0.0
      %1760 = vmatpush1.msra.mxu0 0.0
      %1761 = vmatprep.subr.mxu0 0.0
      %1762 = vmatpush1.msra.mxu0 0.0
      %1763 = vmatprep.subr.mxu0 0.0
      %1764 = vmatpush1.msra.mxu0 0.0
      %1765 = vmatprep.subr.mxu0 0.0
      %1766 = vmatpush1.msra.mxu0 0.0
      %1767 = vmatprep.subr.mxu0 0.0
      %1768 = vmatpush1.msra.mxu0 0.0
      %1769 = vmatprep.subr.mxu0 0.0
      %1770 = vmatpush1.msra.mxu0 %v1737
      %1771 = vmatprep.subr.mxu0 0.0
      %1772 = vmatpush2.msra.mxu0 0.0
      %1773 = vmatprep.subr.mxu0 0.0
      %1774 = vmatpush2.msra.mxu0 0.0
      %1775 = vmatprep.subr.mxu0 0.0
      %1776 = vmatpush2.msra.mxu0 0.0
      %1777 = vmatprep.subr.mxu0 0.0
      %1778 = vmatpush2.msra.mxu0 0.0
      %1779 = vmatprep.subr.mxu0 0.0
      %1780 = vmatpush2.msra.mxu0 0.0
      %1781 = vmatprep.subr.mxu0 0.0
      %1782 = vmatpush2.msra.mxu0 0.0
      %1783 = vmatprep.subr.mxu0 0.0
      %1784 = vmatpush2.msra.mxu0 0.0
      %1785 = vmatprep.subr.mxu0 0.0
      %1786 = vmatpush2.msra.mxu0 0.0
      %1787 = vmatprep.subr.mxu0 0.0
      %1788 = vmatpush2.msra.mxu0 0.0
      %1789 = vmatprep.subr.mxu0 0.0
      %1790 = vmatpush2.msra.mxu0 0.0
      %1791 = vmatprep.subr.mxu0 0.0
      %1792 = vmatpush2.msra.mxu0 0.0
      %1793 = vmatprep.subr.mxu0 0.0
      %1794 = vmatpush2.msra.mxu0 0.0
      %1795 = vmatprep.subr.mxu0 0.0
      %1796 = vmatpush2.msra.mxu0 0.0
      %1797 = vmatprep.subr.mxu0 0.0
      %1798 = vmatpush2.msra.mxu0 0.0
      %1799 = vmatprep.subr.mxu0 0.0
      %1800 = vmatpush2.msra.mxu0 0.0
      %1801 = vmatprep.subr.mxu0 0.0
      %1802 = vmatpush2.msra.mxu0 0.0
      %1803 = vmatprep.mubr.f32.mxu0 0.0
      %1804 = vmatmul.mubr.f32.gmra.mxu0 %v1379
      %v1805 = vpop.f32.mrf.mxu0
      %v1806 = vadd.f32 0.0, %v1805
      %v1807 = vpop.f32.mrf.mxu0
      %1808 = vmatprep.mubr.f32.mxu0 0.0
      %1809 = vmatmul.mubr.f32.gmra.mxu0 %v1382
      %v1810 = vpop.f32.mrf.mxu0
      %v1811 = vadd.f32 0.0, %v1810
      %v1812 = vpop.f32.mrf.mxu0
      %1813 = vmatprep.mubr.f32.mxu0 0.0
      %1814 = vmatmul.mubr.f32.gmra.mxu0 %v1385
      %v1815 = vpop.f32.mrf.mxu0
      %v1816 = vadd.f32 0.0, %v1815
      %v1817 = vpop.f32.mrf.mxu0
      %1818 = vmatprep.mubr.f32.mxu0 0.0
      %1819 = vmatmul.mubr.f32.gmra.mxu0 %v1388
      %v1820 = vpop.f32.mrf.mxu0
      %v1821 = vadd.f32 0.0, %v1820
      %v1822 = vpop.f32.mrf.mxu0
      %1823 = vmatprep.mubr.f32.mxu0 0.0
      %1824 = vmatmul.mubr.f32.gmra.mxu0 %v1391
      %v1825 = vpop.f32.mrf.mxu0
      %v1826 = vadd.f32 0.0, %v1825
      %v1827 = vpop.f32.mrf.mxu0
      %1828 = vmatprep.mubr.f32.mxu0 0.0
      %1829 = vmatmul.mubr.f32.gmra.mxu0 %v1394
      %v1830 = vpop.f32.mrf.mxu0
      %v1831 = vadd.f32 0.0, %v1830
      %v1832 = vpop.f32.mrf.mxu0
      %1833 = vmatprep.mubr.f32.mxu0 0.0
      %1834 = vmatmul.mubr.f32.gmra.mxu0 %v1397
      %v1835 = vpop.f32.mrf.mxu0
      %v1836 = vadd.f32 0.0, %v1835
      %v1837 = vpop.f32.mrf.mxu0
      %1838 = vmatprep.mubr.f32.mxu0 0.0
      %1839 = vmatmul.mubr.f32.gmra.mxu0 %v1400
      %v1840 = vpop.f32.mrf.mxu0
      %v1841 = vadd.f32 0.0, %v1840
      %v1842 = vpop.f32.mrf.mxu0
      %1843 = vmatprep.mubr.f32.mxu0 0.0
      %1844 = vmatmul.mubr.f32.gmra.mxu0 %v1403
      %v1845 = vpop.f32.mrf.mxu0
      %v1846 = vadd.f32 0.0, %v1845
      %v1847 = vpop.f32.mrf.mxu0
      %1848 = vmatprep.mubr.f32.mxu0 0.0
      %1849 = vmatmul.mubr.f32.gmra.mxu0 %v1406
      %v1850 = vpop.f32.mrf.mxu0
      %v1851 = vadd.f32 0.0, %v1850
      %v1852 = vpop.f32.mrf.mxu0
      %1853 = vmatprep.mubr.f32.mxu0 0.0
      %1854 = vmatmul.mubr.f32.gmra.mxu0 %v1409
      %v1855 = vpop.f32.mrf.mxu0
      %v1856 = vadd.f32 0.0, %v1855
      %v1857 = vpop.f32.mrf.mxu0
      %1858 = vmatprep.mubr.f32.mxu0 0.0
      %1859 = vmatmul.mubr.f32.gmra.mxu0 %v1412
      %v1860 = vpop.f32.mrf.mxu0
      %v1861 = vadd.f32 0.0, %v1860
      %v1862 = vpop.f32.mrf.mxu0
      %1863 = vmatprep.mubr.f32.mxu0 0.0
      %1864 = vmatmul.mubr.f32.gmra.mxu0 %v1415
      %v1865 = vpop.f32.mrf.mxu0
      %v1866 = vadd.f32 0.0, %v1865
      %v1867 = vpop.f32.mrf.mxu0
      %1868 = vmatprep.mubr.f32.mxu0 0.0
      %1869 = vmatmul.mubr.f32.gmra.mxu0 %v1418
      %v1870 = vpop.f32.mrf.mxu0
      %v1871 = vadd.f32 0.0, %v1870
      %v1872 = vpop.f32.mrf.mxu0
      %1873 = vmatprep.mubr.f32.mxu0 0.0
      %1874 = vmatmul.mubr.f32.gmra.mxu0 %v1421
      %v1875 = vpop.f32.mrf.mxu0
      %v1876 = vadd.f32 0.0, %v1875
      %v1877 = vpop.f32.mrf.mxu0
      %1878 = vmatprep.mubr.f32.mxu0 0.0
      %1879 = vmatmul.mubr.f32.gmra.mxu0 %v1424
      %v1880 = vpop.f32.mrf.mxu0
      %v1881 = vadd.f32 0.0, %v1880
      %v1882 = vpop.f32.mrf.mxu0
      %1883 = vmatprep.mubr.f32.mxu0 0.0
      %1884 = vmatmul.mubr.f32.gmra.mxu0 %v1427
      %v1885 = vpop.f32.mrf.mxu0
      %v1886 = vadd.f32 0.0, %v1885
      %v1887 = vpop.f32.mrf.mxu0
      %1888 = vmatprep.mubr.f32.mxu0 0.0
      %1889 = vmatmul.mubr.f32.gmra.mxu0 %v1430
      %v1890 = vpop.f32.mrf.mxu0
      %v1891 = vadd.f32 0.0, %v1890
      %v1892 = vpop.f32.mrf.mxu0
      %1893 = vmatprep.mubr.f32.mxu0 0.0
      %1894 = vmatmul.mubr.f32.gmra.mxu0 %v1433
      %v1895 = vpop.f32.mrf.mxu0
      %v1896 = vadd.f32 0.0, %v1895
      %v1897 = vpop.f32.mrf.mxu0
      %1898 = vmatprep.mubr.f32.mxu0 0.0
      %1899 = vmatmul.mubr.f32.gmra.mxu0 %v1436
      %v1900 = vpop.f32.mrf.mxu0
      %v1901 = vadd.f32 0.0, %v1900
      %v1902 = vpop.f32.mrf.mxu0
      %1903 = vmatprep.mubr.f32.mxu0 0.0
      %1904 = vmatmul.mubr.f32.gmra.mxu0 %v1439
      %v1905 = vpop.f32.mrf.mxu0
      %v1906 = vadd.f32 0.0, %v1905
      %v1907 = vpop.f32.mrf.mxu0
      %1908 = vmatprep.mubr.f32.mxu0 0.0
      %1909 = vmatmul.mubr.f32.gmra.mxu0 %v1442
      %v1910 = vpop.f32.mrf.mxu0
      %v1911 = vadd.f32 0.0, %v1910
      %v1912 = vpop.f32.mrf.mxu0
      %1913 = vmatprep.mubr.f32.mxu0 0.0
      %1914 = vmatmul.mubr.f32.gmra.mxu0 %v1445
      %v1915 = vpop.f32.mrf.mxu0
      %v1916 = vadd.f32 0.0, %v1915
      %v1917 = vpop.f32.mrf.mxu0
      %1918 = vmatprep.mubr.f32.mxu0 0.0
      %1919 = vmatmul.mubr.f32.gmra.mxu0 %v1448
      %v1920 = vpop.f32.mrf.mxu0
      %v1921 = vadd.f32 0.0, %v1920
      %v1922 = vpop.f32.mrf.mxu0
      %1923 = vmatprep.mubr.f32.mxu0 0.0
      %1924 = vmatmul.mubr.f32.gmra.mxu0 %v1451
      %v1925 = vpop.f32.mrf.mxu0
      %v1926 = vadd.f32 0.0, %v1925
      %v1927 = vpop.f32.mrf.mxu0
      %1928 = vmatprep.mubr.f32.mxu0 0.0
      %1929 = vmatmul.mubr.f32.gmra.mxu0 %v1454
      %v1930 = vpop.f32.mrf.mxu0
      %v1931 = vadd.f32 0.0, %v1930
      %v1932 = vpop.f32.mrf.mxu0
      %1933 = vmatprep.mubr.f32.mxu0 0.0
      %1934 = vmatmul.mubr.f32.gmra.mxu0 %v1457
      %v1935 = vpop.f32.mrf.mxu0
      %v1936 = vadd.f32 0.0, %v1935
      %v1937 = vpop.f32.mrf.mxu0
      %1938 = vmatprep.mubr.f32.mxu0 0.0
      %1939 = vmatmul.mubr.f32.gmra.mxu0 %v1460
      %v1940 = vpop.f32.mrf.mxu0
      %v1941 = vadd.f32 0.0, %v1940
      %v1942 = vpop.f32.mrf.mxu0
      %1943 = vmatprep.mubr.f32.mxu0 0.0
      %1944 = vmatmul.mubr.f32.gmra.mxu0 %v1463
      %v1945 = vpop.f32.mrf.mxu0
      %v1946 = vadd.f32 0.0, %v1945
      %v1947 = vpop.f32.mrf.mxu0
      %1948 = vmatprep.mubr.f32.mxu0 0.0
      %1949 = vmatmul.mubr.f32.gmra.mxu0 %v1466
      %v1950 = vpop.f32.mrf.mxu0
      %v1951 = vadd.f32 0.0, %v1950
      %v1952 = vpop.f32.mrf.mxu0
      %1953 = vmatprep.mubr.f32.mxu0 0.0
      %1954 = vmatmul.mubr.f32.gmra.mxu0 %v1731
      %v1955 = vpop.f32.mrf.mxu0
      %v1956 = vadd.f32 0.0, %v1955
      %v1957 = vpop.f32.mrf.mxu0
      %1958 = vmatprep.mubr.f32.mxu0 0.0
      %1959 = vmatmul.mubr.f32.gmra.mxu0 %v1734
      %v1960 = vpop.f32.mrf.mxu0
      %v1961 = vadd.f32 0.0, %v1960
      %v1962 = vpop.f32.mrf.mxu0
      %1963 = vdwg.mxu0
      %v1964 = vadd.f32 %v1696, %v1806
      %v1965 = vadd.f32 %v1697, %v1811
      %v1966 = vadd.f32 %v1698, %v1816
      %v1967 = vadd.f32 %v1699, %v1821
      %v1968 = vadd.f32 %v1700, %v1826
      %v1969 = vadd.f32 %v1701, %v1831
      %v1970 = vadd.f32 %v1702, %v1836
      %v1971 = vadd.f32 %v1703, %v1841
      %v1972 = vadd.f32 %v1704, %v1846
      %v1973 = vadd.f32 %v1705, %v1851
      %v1974 = vadd.f32 %v1706, %v1856
      %v1975 = vadd.f32 %v1707, %v1861
      %v1976 = vadd.f32 %v1708, %v1866
      %v1977 = vadd.f32 %v1709, %v1871
      %v1978 = vadd.f32 %v1710, %v1876
      %v1979 = vadd.f32 %v1711, %v1881
      %v1980 = vadd.f32 %v1712, %v1886
      %v1981 = vadd.f32 %v1713, %v1891
      %v1982 = vadd.f32 %v1714, %v1896
      %v1983 = vadd.f32 %v1715, %v1901
      %v1984 = vadd.f32 %v1716, %v1906
      %v1985 = vadd.f32 %v1717, %v1911
      %v1986 = vadd.f32 %v1718, %v1916
      %v1987 = vadd.f32 %v1719, %v1921
      %v1988 = vadd.f32 %v1720, %v1926
      %v1989 = vadd.f32 %v1721, %v1931
      %v1990 = vadd.f32 %v1722, %v1936
      %v1991 = vadd.f32 %v1723, %v1941
      %v1992 = vadd.f32 %v1724, %v1946
      %v1993 = vadd.f32 %v1725, %v1951
      %v1994 = vadd.f32 %v1726, %v1956
      %v1995 = vadd.f32 %v1727, %v1961
      %s1996 = scalar_lea.vmem %s1, 28
      %v1997 = vld [vmem:[%s1996] sm:$0xf]
      %v1999 = vsel %vm257, %v1368, 0
      %v2002 = vsel %vm257, %v1369, 0
      %v2005 = vsel %vm602, %v1997, 0
      %2007 = vmatprep.subr.mxu0 0.0
      %2008 = vmatpush1.msra.mxu0 0.0
      %2009 = vmatprep.subr.mxu0 0.0
      %2010 = vmatpush1.msra.mxu0 0.0
      %2011 = vmatprep.subr.mxu0 0.0
      %2012 = vmatpush1.msra.mxu0 0.0
      %2013 = vmatprep.subr.mxu0 0.0
      %2014 = vmatpush1.msra.mxu0 0.0
      %2015 = vmatprep.subr.mxu0 0.0
      %2016 = vmatpush1.msra.mxu0 0.0
      %2017 = vmatprep.subr.mxu0 0.0
      %2018 = vmatpush1.msra.mxu0 0.0
      %2019 = vmatprep.subr.mxu0 0.0
      %2020 = vmatpush1.msra.mxu0 0.0
      %2021 = vmatprep.subr.mxu0 0.0
      %2022 = vmatpush1.msra.mxu0 0.0
      %2023 = vmatprep.subr.mxu0 0.0
      %2024 = vmatpush1.msra.mxu0 0.0
      %2025 = vmatprep.subr.mxu0 0.0
      %2026 = vmatpush1.msra.mxu0 0.0
      %2027 = vmatprep.subr.mxu0 0.0
      %2028 = vmatpush1.msra.mxu0 0.0
      %2029 = vmatprep.subr.mxu0 0.0
      %2030 = vmatpush1.msra.mxu0 0.0
      %2031 = vmatprep.subr.mxu0 0.0
      %2032 = vmatpush1.msra.mxu0 0.0
      %2033 = vmatprep.subr.mxu0 0.0
      %2034 = vmatpush1.msra.mxu0 0.0
      %2035 = vmatprep.subr.mxu0 0.0
      %2036 = vmatpush1.msra.mxu0 0.0
      %2037 = vmatprep.subr.mxu0 0.0
      %2038 = vmatpush1.msra.mxu0 %v2005
      %2039 = vmatprep.subr.mxu0 0.0
      %2040 = vmatpush2.msra.mxu0 0.0
      %2041 = vmatprep.subr.mxu0 0.0
      %2042 = vmatpush2.msra.mxu0 0.0
      %2043 = vmatprep.subr.mxu0 0.0
      %2044 = vmatpush2.msra.mxu0 0.0
      %2045 = vmatprep.subr.mxu0 0.0
      %2046 = vmatpush2.msra.mxu0 0.0
      %2047 = vmatprep.subr.mxu0 0.0
      %2048 = vmatpush2.msra.mxu0 0.0
      %2049 = vmatprep.subr.mxu0 0.0
      %2050 = vmatpush2.msra.mxu0 0.0
      %2051 = vmatprep.subr.mxu0 0.0
      %2052 = vmatpush2.msra.mxu0 0.0
      %2053 = vmatprep.subr.mxu0 0.0
      %2054 = vmatpush2.msra.mxu0 0.0
      %2055 = vmatprep.subr.mxu0 0.0
      %2056 = vmatpush2.msra.mxu0 0.0
      %2057 = vmatprep.subr.mxu0 0.0
      %2058 = vmatpush2.msra.mxu0 0.0
      %2059 = vmatprep.subr.mxu0 0.0
      %2060 = vmatpush2.msra.mxu0 0.0
      %2061 = vmatprep.subr.mxu0 0.0
      %2062 = vmatpush2.msra.mxu0 0.0
      %2063 = vmatprep.subr.mxu0 0.0
      %2064 = vmatpush2.msra.mxu0 0.0
      %2065 = vmatprep.subr.mxu0 0.0
      %2066 = vmatpush2.msra.mxu0 0.0
      %2067 = vmatprep.subr.mxu0 0.0
      %2068 = vmatpush2.msra.mxu0 0.0
      %2069 = vmatprep.subr.mxu0 0.0
      %2070 = vmatpush2.msra.mxu0 0.0
      %2071 = vmatprep.mubr.f32.mxu0 0.0
      %2072 = vmatmul.mubr.f32.gmra.mxu0 %v1385
      %v2073 = vpop.f32.mrf.mxu0
      %v2074 = vadd.f32 0.0, %v2073
      %v2075 = vpop.f32.mrf.mxu0
      %2076 = vmatprep.mubr.f32.mxu0 0.0
      %2077 = vmatmul.mubr.f32.gmra.mxu0 %v1388
      %v2078 = vpop.f32.mrf.mxu0
      %v2079 = vadd.f32 0.0, %v2078
      %v2080 = vpop.f32.mrf.mxu0
      %2081 = vmatprep.mubr.f32.mxu0 0.0
      %2082 = vmatmul.mubr.f32.gmra.mxu0 %v1391
      %v2083 = vpop.f32.mrf.mxu0
      %v2084 = vadd.f32 0.0, %v2083
      %v2085 = vpop.f32.mrf.mxu0
      %2086 = vmatprep.mubr.f32.mxu0 0.0
      %2087 = vmatmul.mubr.f32.gmra.mxu0 %v1394
      %v2088 = vpop.f32.mrf.mxu0
      %v2089 = vadd.f32 0.0, %v2088
      %v2090 = vpop.f32.mrf.mxu0
      %2091 = vmatprep.mubr.f32.mxu0 0.0
      %2092 = vmatmul.mubr.f32.gmra.mxu0 %v1397
      %v2093 = vpop.f32.mrf.mxu0
      %v2094 = vadd.f32 0.0, %v2093
      %v2095 = vpop.f32.mrf.mxu0
      %2096 = vmatprep.mubr.f32.mxu0 0.0
      %2097 = vmatmul.mubr.f32.gmra.mxu0 %v1400
      %v2098 = vpop.f32.mrf.mxu0
      %v2099 = vadd.f32 0.0, %v2098
      %v2100 = vpop.f32.mrf.mxu0
      %2101 = vmatprep.mubr.f32.mxu0 0.0
      %2102 = vmatmul.mubr.f32.gmra.mxu0 %v1403
      %v2103 = vpop.f32.mrf.mxu0
      %v2104 = vadd.f32 0.0, %v2103
      %v2105 = vpop.f32.mrf.mxu0
      %2106 = vmatprep.mubr.f32.mxu0 0.0
      %2107 = vmatmul.mubr.f32.gmra.mxu0 %v1406
      %v2108 = vpop.f32.mrf.mxu0
      %v2109 = vadd.f32 0.0, %v2108
      %v2110 = vpop.f32.mrf.mxu0
      %2111 = vmatprep.mubr.f32.mxu0 0.0
      %2112 = vmatmul.mubr.f32.gmra.mxu0 %v1409
      %v2113 = vpop.f32.mrf.mxu0
      %v2114 = vadd.f32 0.0, %v2113
      %v2115 = vpop.f32.mrf.mxu0
      %2116 = vmatprep.mubr.f32.mxu0 0.0
      %2117 = vmatmul.mubr.f32.gmra.mxu0 %v1412
      %v2118 = vpop.f32.mrf.mxu0
      %v2119 = vadd.f32 0.0, %v2118
      %v2120 = vpop.f32.mrf.mxu0
      %2121 = vmatprep.mubr.f32.mxu0 0.0
      %2122 = vmatmul.mubr.f32.gmra.mxu0 %v1415
      %v2123 = vpop.f32.mrf.mxu0
      %v2124 = vadd.f32 0.0, %v2123
      %v2125 = vpop.f32.mrf.mxu0
      %2126 = vmatprep.mubr.f32.mxu0 0.0
      %2127 = vmatmul.mubr.f32.gmra.mxu0 %v1418
      %v2128 = vpop.f32.mrf.mxu0
      %v2129 = vadd.f32 0.0, %v2128
      %v2130 = vpop.f32.mrf.mxu0
      %2131 = vmatprep.mubr.f32.mxu0 0.0
      %2132 = vmatmul.mubr.f32.gmra.mxu0 %v1421
      %v2133 = vpop.f32.mrf.mxu0
      %v2134 = vadd.f32 0.0, %v2133
      %v2135 = vpop.f32.mrf.mxu0
      %2136 = vmatprep.mubr.f32.mxu0 0.0
      %2137 = vmatmul.mubr.f32.gmra.mxu0 %v1424
      %v2138 = vpop.f32.mrf.mxu0
      %v2139 = vadd.f32 0.0, %v2138
      %v2140 = vpop.f32.mrf.mxu0
      %2141 = vmatprep.mubr.f32.mxu0 0.0
      %2142 = vmatmul.mubr.f32.gmra.mxu0 %v1427
      %v2143 = vpop.f32.mrf.mxu0
      %v2144 = vadd.f32 0.0, %v2143
      %v2145 = vpop.f32.mrf.mxu0
      %2146 = vmatprep.mubr.f32.mxu0 0.0
      %2147 = vmatmul.mubr.f32.gmra.mxu0 %v1430
      %v2148 = vpop.f32.mrf.mxu0
      %v2149 = vadd.f32 0.0, %v2148
      %v2150 = vpop.f32.mrf.mxu0
      %2151 = vmatprep.mubr.f32.mxu0 0.0
      %2152 = vmatmul.mubr.f32.gmra.mxu0 %v1433
      %v2153 = vpop.f32.mrf.mxu0
      %v2154 = vadd.f32 0.0, %v2153
      %v2155 = vpop.f32.mrf.mxu0
      %2156 = vmatprep.mubr.f32.mxu0 0.0
      %2157 = vmatmul.mubr.f32.gmra.mxu0 %v1436
      %v2158 = vpop.f32.mrf.mxu0
      %v2159 = vadd.f32 0.0, %v2158
      %v2160 = vpop.f32.mrf.mxu0
      %2161 = vmatprep.mubr.f32.mxu0 0.0
      %2162 = vmatmul.mubr.f32.gmra.mxu0 %v1439
      %v2163 = vpop.f32.mrf.mxu0
      %v2164 = vadd.f32 0.0, %v2163
      %v2165 = vpop.f32.mrf.mxu0
      %2166 = vmatprep.mubr.f32.mxu0 0.0
      %2167 = vmatmul.mubr.f32.gmra.mxu0 %v1442
      %v2168 = vpop.f32.mrf.mxu0
      %v2169 = vadd.f32 0.0, %v2168
      %v2170 = vpop.f32.mrf.mxu0
      %2171 = vmatprep.mubr.f32.mxu0 0.0
      %2172 = vmatmul.mubr.f32.gmra.mxu0 %v1445
      %v2173 = vpop.f32.mrf.mxu0
      %v2174 = vadd.f32 0.0, %v2173
      %v2175 = vpop.f32.mrf.mxu0
      %2176 = vmatprep.mubr.f32.mxu0 0.0
      %2177 = vmatmul.mubr.f32.gmra.mxu0 %v1448
      %v2178 = vpop.f32.mrf.mxu0
      %v2179 = vadd.f32 0.0, %v2178
      %v2180 = vpop.f32.mrf.mxu0
      %2181 = vmatprep.mubr.f32.mxu0 0.0
      %2182 = vmatmul.mubr.f32.gmra.mxu0 %v1451
      %v2183 = vpop.f32.mrf.mxu0
      %v2184 = vadd.f32 0.0, %v2183
      %v2185 = vpop.f32.mrf.mxu0
      %2186 = vmatprep.mubr.f32.mxu0 0.0
      %2187 = vmatmul.mubr.f32.gmra.mxu0 %v1454
      %v2188 = vpop.f32.mrf.mxu0
      %v2189 = vadd.f32 0.0, %v2188
      %v2190 = vpop.f32.mrf.mxu0
      %2191 = vmatprep.mubr.f32.mxu0 0.0
      %2192 = vmatmul.mubr.f32.gmra.mxu0 %v1457
      %v2193 = vpop.f32.mrf.mxu0
      %v2194 = vadd.f32 0.0, %v2193
      %v2195 = vpop.f32.mrf.mxu0
      %2196 = vmatprep.mubr.f32.mxu0 0.0
      %2197 = vmatmul.mubr.f32.gmra.mxu0 %v1460
      %v2198 = vpop.f32.mrf.mxu0
      %v2199 = vadd.f32 0.0, %v2198
      %v2200 = vpop.f32.mrf.mxu0
      %2201 = vmatprep.mubr.f32.mxu0 0.0
      %2202 = vmatmul.mubr.f32.gmra.mxu0 %v1463
      %v2203 = vpop.f32.mrf.mxu0
      %v2204 = vadd.f32 0.0, %v2203
      %v2205 = vpop.f32.mrf.mxu0
      %2206 = vmatprep.mubr.f32.mxu0 0.0
      %2207 = vmatmul.mubr.f32.gmra.mxu0 %v1466
      %v2208 = vpop.f32.mrf.mxu0
      %v2209 = vadd.f32 0.0, %v2208
      %v2210 = vpop.f32.mrf.mxu0
      %2211 = vmatprep.mubr.f32.mxu0 0.0
      %2212 = vmatmul.mubr.f32.gmra.mxu0 %v1731
      %v2213 = vpop.f32.mrf.mxu0
      %v2214 = vadd.f32 0.0, %v2213
      %v2215 = vpop.f32.mrf.mxu0
      %2216 = vmatprep.mubr.f32.mxu0 0.0
      %2217 = vmatmul.mubr.f32.gmra.mxu0 %v1734
      %v2218 = vpop.f32.mrf.mxu0
      %v2219 = vadd.f32 0.0, %v2218
      %v2220 = vpop.f32.mrf.mxu0
      %2221 = vmatprep.mubr.f32.mxu0 0.0
      %2222 = vmatmul.mubr.f32.gmra.mxu0 %v1999
      %v2223 = vpop.f32.mrf.mxu0
      %v2224 = vadd.f32 0.0, %v2223
      %v2225 = vpop.f32.mrf.mxu0
      %2226 = vmatprep.mubr.f32.mxu0 0.0
      %2227 = vmatmul.mubr.f32.gmra.mxu0 %v2002
      %v2228 = vpop.f32.mrf.mxu0
      %v2229 = vadd.f32 0.0, %v2228
      %v2230 = vpop.f32.mrf.mxu0
      %2231 = vdwg.mxu0
      %v2232 = vadd.f32 %v1964, %v2074
      %v2233 = vadd.f32 %v1965, %v2079
      %v2234 = vadd.f32 %v1966, %v2084
      %v2235 = vadd.f32 %v1967, %v2089
      %v2236 = vadd.f32 %v1968, %v2094
      %v2237 = vadd.f32 %v1969, %v2099
      %v2238 = vadd.f32 %v1970, %v2104
      %v2239 = vadd.f32 %v1971, %v2109
      %v2240 = vadd.f32 %v1972, %v2114
      %v2241 = vadd.f32 %v1973, %v2119
      %v2242 = vadd.f32 %v1974, %v2124
      %v2243 = vadd.f32 %v1975, %v2129
      %v2244 = vadd.f32 %v1976, %v2134
      %v2245 = vadd.f32 %v1977, %v2139
      %v2246 = vadd.f32 %v1978, %v2144
      %v2247 = vadd.f32 %v1979, %v2149
      %v2248 = vadd.f32 %v1980, %v2154
      %v2249 = vadd.f32 %v1981, %v2159
      %v2250 = vadd.f32 %v1982, %v2164
      %v2251 = vadd.f32 %v1983, %v2169
      %v2252 = vadd.f32 %v1984, %v2174
      %v2253 = vadd.f32 %v1985, %v2179
      %v2254 = vadd.f32 %v1986, %v2184
      %v2255 = vadd.f32 %v1987, %v2189
      %v2256 = vadd.f32 %v1988, %v2194
      %v2257 = vadd.f32 %v1989, %v2199
      %v2258 = vadd.f32 %v1990, %v2204
      %v2259 = vadd.f32 %v1991, %v2209
      %v2260 = vadd.f32 %v1992, %v2214
      %v2261 = vadd.f32 %v1993, %v2219
      %v2262 = vadd.f32 %v1994, %v2224
      %v2263 = vadd.f32 %v1995, %v2229
      %s2264 = scalar_lea.vmem [#allocation2], 576
      %v2265 = vld [vmem:[%s2264] sm:$0xff]
      %v2266 = vld [vmem:[%s2264 + $0x8] sm:$0xff]
      %v2267 = vld [vmem:[%s2264 + $0x10] sm:$0xff]
      %v2268 = vld [vmem:[%s2264 + $0x18] sm:$0xff]
      %v2269 = vld [vmem:[%s2264 + $0x20] sm:$0xff]
      %v2270 = vld [vmem:[%s2264 + $0x28] sm:$0xff]
      %v2271 = vld [vmem:[%s2264 + $0x30] sm:$0xff]
      %v2272 = vld [vmem:[%s2264 + $0x38] sm:$0xff]
      %v2273 = vld [vmem:[%s2264 + $0x40] sm:$0xff]
      %v2274 = vld [vmem:[%s2264 + $0x48] sm:$0xff]
      %v2275 = vld [vmem:[%s2264 + $0x50] sm:$0xff]
      %v2276 = vld [vmem:[%s2264 + $0x58] sm:$0xff]
      %v2277 = vld [vmem:[%s2264 + $0x60] sm:$0xff]
      %v2278 = vld [vmem:[%s2264 + $0x68] sm:$0xff]
      %v2279 = vld [vmem:[%s2264 + $0x70] sm:$0xff]
      %v2280 = vld [vmem:[%s2264 + $0x78] sm:$0xff]
      %v2281 = vld [vmem:[%s2264 + $0x80] sm:$0xff]
      %v2282 = vld [vmem:[%s2264 + $0x88] sm:$0xff]
      %v2283 = vld [vmem:[%s2264 + $0x90] sm:$0xff]
      %v2284 = vld [vmem:[%s2264 + $0x98] sm:$0xff]
      %v2285 = vld [vmem:[%s2264 + $0xa0] sm:$0xff]
      %v2286 = vld [vmem:[%s2264 + $0xa8] sm:$0xff]
      %v2287 = vld [vmem:[%s2264 + $0xb0] sm:$0xff]
      %v2288 = vld [vmem:[%s2264 + $0xb8] sm:$0xff]
      %v2289 = vld [vmem:[%s2264 + $0xc0] sm:$0xff]
      %v2290 = vld [vmem:[%s2264 + $0xc8] sm:$0xff]
      %v2291 = vld [vmem:[%s2264 + $0xd0] sm:$0xff]
      %v2292 = vld [vmem:[%s2264 + $0xd8] sm:$0xff]
      %v2293 = vld [vmem:[%s2264 + $0xe0] sm:$0xff]
      %v2294 = vld [vmem:[%s2264 + $0xe8] sm:$0xff]
      %v2295 = vld [vmem:[%s2264 + $0xf0] sm:$0xff]
      %v2296 = vld [vmem:[%s2264 + $0xf8] sm:$0xff]
      %v2297 = vld [vmem:[%s2264 + $0x100] sm:$0xff]
      %v2298 = vld [vmem:[%s2264 + $0x108] sm:$0xff]
      %v2299 = vld [vmem:[%s2264 + $0x110] sm:$0xff]
      %v2300 = vld [vmem:[%s2264 + $0x118] sm:$0xff]
      %s2301 = scalar_lea.vmem %s1, 8
      %v2302 = vld [vmem:[%s2301] sm:$0xf]
      %v2304 = vsel %vm257, %v2265, 0
      %v2307 = vsel %vm257, %v2266, 0
      %v2310 = vsel %vm257, %v2267, 0
      %v2313 = vsel %vm257, %v2268, 0
      %v2316 = vsel %vm257, %v2269, 0
      %v2319 = vsel %vm257, %v2270, 0
      %v2322 = vsel %vm257, %v2271, 0
      %v2325 = vsel %vm257, %v2272, 0
      %v2328 = vsel %vm257, %v2273, 0
      %v2331 = vsel %vm257, %v2274, 0
      %v2334 = vsel %vm257, %v2275, 0
      %v2337 = vsel %vm257, %v2276, 0
      %v2340 = vsel %vm257, %v2277, 0
      %v2343 = vsel %vm257, %v2278, 0
      %v2346 = vsel %vm257, %v2279, 0
      %v2349 = vsel %vm257, %v2280, 0
      %v2352 = vsel %vm257, %v2281, 0
      %v2355 = vsel %vm257, %v2282, 0
      %v2358 = vsel %vm257, %v2283, 0
      %v2361 = vsel %vm257, %v2284, 0
      %v2364 = vsel %vm257, %v2285, 0
      %v2367 = vsel %vm257, %v2286, 0
      %v2370 = vsel %vm257, %v2287, 0
      %v2373 = vsel %vm257, %v2288, 0
      %v2376 = vsel %vm257, %v2289, 0
      %v2379 = vsel %vm257, %v2290, 0
      %v2382 = vsel %vm257, %v2291, 0
      %v2385 = vsel %vm257, %v2292, 0
      %v2388 = vsel %vm257, %v2293, 0
      %v2391 = vsel %vm257, %v2294, 0
      %v2394 = vsel %vm257, %v2295, 0
      %v2397 = vsel %vm257, %v2296, 0
      %v2400 = vsel %vm602, %v2302, 0
      %2402 = vmatprep.subr.mxu0 0.0
      %2403 = vmatpush1.msra.mxu0 0.0
      %2404 = vmatprep.subr.mxu0 0.0
      %2405 = vmatpush1.msra.mxu0 0.0
      %2406 = vmatprep.subr.mxu0 0.0
      %2407 = vmatpush1.msra.mxu0 0.0
      %2408 = vmatprep.subr.mxu0 0.0
      %2409 = vmatpush1.msra.mxu0 0.0
      %2410 = vmatprep.subr.mxu0 0.0
      %2411 = vmatpush1.msra.mxu0 0.0
      %2412 = vmatprep.subr.mxu0 0.0
      %2413 = vmatpush1.msra.mxu0 0.0
      %2414 = vmatprep.subr.mxu0 0.0
      %2415 = vmatpush1.msra.mxu0 0.0
      %2416 = vmatprep.subr.mxu0 0.0
      %2417 = vmatpush1.msra.mxu0 0.0
      %2418 = vmatprep.subr.mxu0 0.0
      %2419 = vmatpush1.msra.mxu0 0.0
      %2420 = vmatprep.subr.mxu0 0.0
      %2421 = vmatpush1.msra.mxu0 0.0
      %2422 = vmatprep.subr.mxu0 0.0
      %2423 = vmatpush1.msra.mxu0 0.0
      %2424 = vmatprep.subr.mxu0 0.0
      %2425 = vmatpush1.msra.mxu0 0.0
      %2426 = vmatprep.subr.mxu0 0.0
      %2427 = vmatpush1.msra.mxu0 0.0
      %2428 = vmatprep.subr.mxu0 0.0
      %2429 = vmatpush1.msra.mxu0 0.0
      %2430 = vmatprep.subr.mxu0 0.0
      %2431 = vmatpush1.msra.mxu0 0.0
      %2432 = vmatprep.subr.mxu0 0.0
      %2433 = vmatpush1.msra.mxu0 %v2400
      %2434 = vmatprep.subr.mxu0 0.0
      %2435 = vmatpush2.msra.mxu0 0.0
      %2436 = vmatprep.subr.mxu0 0.0
      %2437 = vmatpush2.msra.mxu0 0.0
      %2438 = vmatprep.subr.mxu0 0.0
      %2439 = vmatpush2.msra.mxu0 0.0
      %2440 = vmatprep.subr.mxu0 0.0
      %2441 = vmatpush2.msra.mxu0 0.0
      %2442 = vmatprep.subr.mxu0 0.0
      %2443 = vmatpush2.msra.mxu0 0.0
      %2444 = vmatprep.subr.mxu0 0.0
      %2445 = vmatpush2.msra.mxu0 0.0
      %2446 = vmatprep.subr.mxu0 0.0
      %2447 = vmatpush2.msra.mxu0 0.0
      %2448 = vmatprep.subr.mxu0 0.0
      %2449 = vmatpush2.msra.mxu0 0.0
      %2450 = vmatprep.subr.mxu0 0.0
      %2451 = vmatpush2.msra.mxu0 0.0
      %2452 = vmatprep.subr.mxu0 0.0
      %2453 = vmatpush2.msra.mxu0 0.0
      %2454 = vmatprep.subr.mxu0 0.0
      %2455 = vmatpush2.msra.mxu0 0.0
      %2456 = vmatprep.subr.mxu0 0.0
      %2457 = vmatpush2.msra.mxu0 0.0
      %2458 = vmatprep.subr.mxu0 0.0
      %2459 = vmatpush2.msra.mxu0 0.0
      %2460 = vmatprep.subr.mxu0 0.0
      %2461 = vmatpush2.msra.mxu0 0.0
      %2462 = vmatprep.subr.mxu0 0.0
      %2463 = vmatpush2.msra.mxu0 0.0
      %2464 = vmatprep.subr.mxu0 0.0
      %2465 = vmatpush2.msra.mxu0 0.0
      %2466 = vmatprep.mubr.f32.mxu0 0.0
      %2467 = vmatmul.mubr.f32.gmra.mxu0 %v2304
      %v2468 = vpop.f32.mrf.mxu0
      %v2469 = vadd.f32 0.0, %v2468
      %v2470 = vpop.f32.mrf.mxu0
      %2471 = vmatprep.mubr.f32.mxu0 0.0
      %2472 = vmatmul.mubr.f32.gmra.mxu0 %v2307
      %v2473 = vpop.f32.mrf.mxu0
      %v2474 = vadd.f32 0.0, %v2473
      %v2475 = vpop.f32.mrf.mxu0
      %2476 = vmatprep.mubr.f32.mxu0 0.0
      %2477 = vmatmul.mubr.f32.gmra.mxu0 %v2310
      %v2478 = vpop.f32.mrf.mxu0
      %v2479 = vadd.f32 0.0, %v2478
      %v2480 = vpop.f32.mrf.mxu0
      %2481 = vmatprep.mubr.f32.mxu0 0.0
      %2482 = vmatmul.mubr.f32.gmra.mxu0 %v2313
      %v2483 = vpop.f32.mrf.mxu0
      %v2484 = vadd.f32 0.0, %v2483
      %v2485 = vpop.f32.mrf.mxu0
      %2486 = vmatprep.mubr.f32.mxu0 0.0
      %2487 = vmatmul.mubr.f32.gmra.mxu0 %v2316
      %v2488 = vpop.f32.mrf.mxu0
      %v2489 = vadd.f32 0.0, %v2488
      %v2490 = vpop.f32.mrf.mxu0
      %2491 = vmatprep.mubr.f32.mxu0 0.0
      %2492 = vmatmul.mubr.f32.gmra.mxu0 %v2319
      %v2493 = vpop.f32.mrf.mxu0
      %v2494 = vadd.f32 0.0, %v2493
      %v2495 = vpop.f32.mrf.mxu0
      %2496 = vmatprep.mubr.f32.mxu0 0.0
      %2497 = vmatmul.mubr.f32.gmra.mxu0 %v2322
      %v2498 = vpop.f32.mrf.mxu0
      %v2499 = vadd.f32 0.0, %v2498
      %v2500 = vpop.f32.mrf.mxu0
      %2501 = vmatprep.mubr.f32.mxu0 0.0
      %2502 = vmatmul.mubr.f32.gmra.mxu0 %v2325
      %v2503 = vpop.f32.mrf.mxu0
      %v2504 = vadd.f32 0.0, %v2503
      %v2505 = vpop.f32.mrf.mxu0
      %2506 = vmatprep.mubr.f32.mxu0 0.0
      %2507 = vmatmul.mubr.f32.gmra.mxu0 %v2328
      %v2508 = vpop.f32.mrf.mxu0
      %v2509 = vadd.f32 0.0, %v2508
      %v2510 = vpop.f32.mrf.mxu0
      %2511 = vmatprep.mubr.f32.mxu0 0.0
      %2512 = vmatmul.mubr.f32.gmra.mxu0 %v2331
      %v2513 = vpop.f32.mrf.mxu0
      %v2514 = vadd.f32 0.0, %v2513
      %v2515 = vpop.f32.mrf.mxu0
      %2516 = vmatprep.mubr.f32.mxu0 0.0
      %2517 = vmatmul.mubr.f32.gmra.mxu0 %v2334
      %v2518 = vpop.f32.mrf.mxu0
      %v2519 = vadd.f32 0.0, %v2518
      %v2520 = vpop.f32.mrf.mxu0
      %2521 = vmatprep.mubr.f32.mxu0 0.0
      %2522 = vmatmul.mubr.f32.gmra.mxu0 %v2337
      %v2523 = vpop.f32.mrf.mxu0
      %v2524 = vadd.f32 0.0, %v2523
      %v2525 = vpop.f32.mrf.mxu0
      %2526 = vmatprep.mubr.f32.mxu0 0.0
      %2527 = vmatmul.mubr.f32.gmra.mxu0 %v2340
      %v2528 = vpop.f32.mrf.mxu0
      %v2529 = vadd.f32 0.0, %v2528
      %v2530 = vpop.f32.mrf.mxu0
      %2531 = vmatprep.mubr.f32.mxu0 0.0
      %2532 = vmatmul.mubr.f32.gmra.mxu0 %v2343
      %v2533 = vpop.f32.mrf.mxu0
      %v2534 = vadd.f32 0.0, %v2533
      %v2535 = vpop.f32.mrf.mxu0
      %2536 = vmatprep.mubr.f32.mxu0 0.0
      %2537 = vmatmul.mubr.f32.gmra.mxu0 %v2346
      %v2538 = vpop.f32.mrf.mxu0
      %v2539 = vadd.f32 0.0, %v2538
      %v2540 = vpop.f32.mrf.mxu0
      %2541 = vmatprep.mubr.f32.mxu0 0.0
      %2542 = vmatmul.mubr.f32.gmra.mxu0 %v2349
      %v2543 = vpop.f32.mrf.mxu0
      %v2544 = vadd.f32 0.0, %v2543
      %v2545 = vpop.f32.mrf.mxu0
      %2546 = vmatprep.mubr.f32.mxu0 0.0
      %2547 = vmatmul.mubr.f32.gmra.mxu0 %v2352
      %v2548 = vpop.f32.mrf.mxu0
      %v2549 = vadd.f32 0.0, %v2548
      %v2550 = vpop.f32.mrf.mxu0
      %2551 = vmatprep.mubr.f32.mxu0 0.0
      %2552 = vmatmul.mubr.f32.gmra.mxu0 %v2355
      %v2553 = vpop.f32.mrf.mxu0
      %v2554 = vadd.f32 0.0, %v2553
      %v2555 = vpop.f32.mrf.mxu0
      %2556 = vmatprep.mubr.f32.mxu0 0.0
      %2557 = vmatmul.mubr.f32.gmra.mxu0 %v2358
      %v2558 = vpop.f32.mrf.mxu0
      %v2559 = vadd.f32 0.0, %v2558
      %v2560 = vpop.f32.mrf.mxu0
      %2561 = vmatprep.mubr.f32.mxu0 0.0
      %2562 = vmatmul.mubr.f32.gmra.mxu0 %v2361
      %v2563 = vpop.f32.mrf.mxu0
      %v2564 = vadd.f32 0.0, %v2563
      %v2565 = vpop.f32.mrf.mxu0
      %2566 = vmatprep.mubr.f32.mxu0 0.0
      %2567 = vmatmul.mubr.f32.gmra.mxu0 %v2364
      %v2568 = vpop.f32.mrf.mxu0
      %v2569 = vadd.f32 0.0, %v2568
      %v2570 = vpop.f32.mrf.mxu0
      %2571 = vmatprep.mubr.f32.mxu0 0.0
      %2572 = vmatmul.mubr.f32.gmra.mxu0 %v2367
      %v2573 = vpop.f32.mrf.mxu0
      %v2574 = vadd.f32 0.0, %v2573
      %v2575 = vpop.f32.mrf.mxu0
      %2576 = vmatprep.mubr.f32.mxu0 0.0
      %2577 = vmatmul.mubr.f32.gmra.mxu0 %v2370
      %v2578 = vpop.f32.mrf.mxu0
      %v2579 = vadd.f32 0.0, %v2578
      %v2580 = vpop.f32.mrf.mxu0
      %2581 = vmatprep.mubr.f32.mxu0 0.0
      %2582 = vmatmul.mubr.f32.gmra.mxu0 %v2373
      %v2583 = vpop.f32.mrf.mxu0
      %v2584 = vadd.f32 0.0, %v2583
      %v2585 = vpop.f32.mrf.mxu0
      %2586 = vmatprep.mubr.f32.mxu0 0.0
      %2587 = vmatmul.mubr.f32.gmra.mxu0 %v2376
      %v2588 = vpop.f32.mrf.mxu0
      %v2589 = vadd.f32 0.0, %v2588
      %v2590 = vpop.f32.mrf.mxu0
      %2591 = vmatprep.mubr.f32.mxu0 0.0
      %2592 = vmatmul.mubr.f32.gmra.mxu0 %v2379
      %v2593 = vpop.f32.mrf.mxu0
      %v2594 = vadd.f32 0.0, %v2593
      %v2595 = vpop.f32.mrf.mxu0
      %2596 = vmatprep.mubr.f32.mxu0 0.0
      %2597 = vmatmul.mubr.f32.gmra.mxu0 %v2382
      %v2598 = vpop.f32.mrf.mxu0
      %v2599 = vadd.f32 0.0, %v2598
      %v2600 = vpop.f32.mrf.mxu0
      %2601 = vmatprep.mubr.f32.mxu0 0.0
      %2602 = vmatmul.mubr.f32.gmra.mxu0 %v2385
      %v2603 = vpop.f32.mrf.mxu0
      %v2604 = vadd.f32 0.0, %v2603
      %v2605 = vpop.f32.mrf.mxu0
      %2606 = vmatprep.mubr.f32.mxu0 0.0
      %2607 = vmatmul.mubr.f32.gmra.mxu0 %v2388
      %v2608 = vpop.f32.mrf.mxu0
      %v2609 = vadd.f32 0.0, %v2608
      %v2610 = vpop.f32.mrf.mxu0
      %2611 = vmatprep.mubr.f32.mxu0 0.0
      %2612 = vmatmul.mubr.f32.gmra.mxu0 %v2391
      %v2613 = vpop.f32.mrf.mxu0
      %v2614 = vadd.f32 0.0, %v2613
      %v2615 = vpop.f32.mrf.mxu0
      %2616 = vmatprep.mubr.f32.mxu0 0.0
      %2617 = vmatmul.mubr.f32.gmra.mxu0 %v2394
      %v2618 = vpop.f32.mrf.mxu0
      %v2619 = vadd.f32 0.0, %v2618
      %v2620 = vpop.f32.mrf.mxu0
      %2621 = vmatprep.mubr.f32.mxu0 0.0
      %2622 = vmatmul.mubr.f32.gmra.mxu0 %v2397
      %v2623 = vpop.f32.mrf.mxu0
      %v2624 = vadd.f32 0.0, %v2623
      %v2625 = vpop.f32.mrf.mxu0
      %2626 = vdwg.mxu0
      %v2627 = vadd.f32 %v2232, %v2469
      %v2628 = vadd.f32 %v2233, %v2474
      %v2629 = vadd.f32 %v2234, %v2479
      %v2630 = vadd.f32 %v2235, %v2484
      %v2631 = vadd.f32 %v2236, %v2489
      %v2632 = vadd.f32 %v2237, %v2494
      %v2633 = vadd.f32 %v2238, %v2499
      %v2634 = vadd.f32 %v2239, %v2504
      %v2635 = vadd.f32 %v2240, %v2509
      %v2636 = vadd.f32 %v2241, %v2514
      %v2637 = vadd.f32 %v2242, %v2519
      %v2638 = vadd.f32 %v2243, %v2524
      %v2639 = vadd.f32 %v2244, %v2529
      %v2640 = vadd.f32 %v2245, %v2534
      %v2641 = vadd.f32 %v2246, %v2539
      %v2642 = vadd.f32 %v2247, %v2544
      %v2643 = vadd.f32 %v2248, %v2549
      %v2644 = vadd.f32 %v2249, %v2554
      %v2645 = vadd.f32 %v2250, %v2559
      %v2646 = vadd.f32 %v2251, %v2564
      %v2647 = vadd.f32 %v2252, %v2569
      %v2648 = vadd.f32 %v2253, %v2574
      %v2649 = vadd.f32 %v2254, %v2579
      %v2650 = vadd.f32 %v2255, %v2584
      %v2651 = vadd.f32 %v2256, %v2589
      %v2652 = vadd.f32 %v2257, %v2594
      %v2653 = vadd.f32 %v2258, %v2599
      %v2654 = vadd.f32 %v2259, %v2604
      %v2655 = vadd.f32 %v2260, %v2609
      %v2656 = vadd.f32 %v2261, %v2614
      %v2657 = vadd.f32 %v2262, %v2619
      %v2658 = vadd.f32 %v2263, %v2624
      %s2659 = scalar_lea.vmem %s1, 20
      %v2660 = vld [vmem:[%s2659] sm:$0xf]
      %v2662 = vsel %vm257, %v2297, 0
      %v2665 = vsel %vm257, %v2298, 0
      %v2668 = vsel %vm602, %v2660, 0
      %2670 = vmatprep.subr.mxu0 0.0
      %2671 = vmatpush1.msra.mxu0 0.0
      %2672 = vmatprep.subr.mxu0 0.0
      %2673 = vmatpush1.msra.mxu0 0.0
      %2674 = vmatprep.subr.mxu0 0.0
      %2675 = vmatpush1.msra.mxu0 0.0
      %2676 = vmatprep.subr.mxu0 0.0
      %2677 = vmatpush1.msra.mxu0 0.0
      %2678 = vmatprep.subr.mxu0 0.0
      %2679 = vmatpush1.msra.mxu0 0.0
      %2680 = vmatprep.subr.mxu0 0.0
      %2681 = vmatpush1.msra.mxu0 0.0
      %2682 = vmatprep.subr.mxu0 0.0
      %2683 = vmatpush1.msra.mxu0 0.0
      %2684 = vmatprep.subr.mxu0 0.0
      %2685 = vmatpush1.msra.mxu0 0.0
      %2686 = vmatprep.subr.mxu0 0.0
      %2687 = vmatpush1.msra.mxu0 0.0
      %2688 = vmatprep.subr.mxu0 0.0
      %2689 = vmatpush1.msra.mxu0 0.0
      %2690 = vmatprep.subr.mxu0 0.0
      %2691 = vmatpush1.msra.mxu0 0.0
      %2692 = vmatprep.subr.mxu0 0.0
      %2693 = vmatpush1.msra.mxu0 0.0
      %2694 = vmatprep.subr.mxu0 0.0
      %2695 = vmatpush1.msra.mxu0 0.0
      %2696 = vmatprep.subr.mxu0 0.0
      %2697 = vmatpush1.msra.mxu0 0.0
      %2698 = vmatprep.subr.mxu0 0.0
      %2699 = vmatpush1.msra.mxu0 0.0
      %2700 = vmatprep.subr.mxu0 0.0
      %2701 = vmatpush1.msra.mxu0 %v2668
      %2702 = vmatprep.subr.mxu0 0.0
      %2703 = vmatpush2.msra.mxu0 0.0
      %2704 = vmatprep.subr.mxu0 0.0
      %2705 = vmatpush2.msra.mxu0 0.0
      %2706 = vmatprep.subr.mxu0 0.0
      %2707 = vmatpush2.msra.mxu0 0.0
      %2708 = vmatprep.subr.mxu0 0.0
      %2709 = vmatpush2.msra.mxu0 0.0
      %2710 = vmatprep.subr.mxu0 0.0
      %2711 = vmatpush2.msra.mxu0 0.0
      %2712 = vmatprep.subr.mxu0 0.0
      %2713 = vmatpush2.msra.mxu0 0.0
      %2714 = vmatprep.subr.mxu0 0.0
      %2715 = vmatpush2.msra.mxu0 0.0
      %2716 = vmatprep.subr.mxu0 0.0
      %2717 = vmatpush2.msra.mxu0 0.0
      %2718 = vmatprep.subr.mxu0 0.0
      %2719 = vmatpush2.msra.mxu0 0.0
      %2720 = vmatprep.subr.mxu0 0.0
      %2721 = vmatpush2.msra.mxu0 0.0
      %2722 = vmatprep.subr.mxu0 0.0
      %2723 = vmatpush2.msra.mxu0 0.0
      %2724 = vmatprep.subr.mxu0 0.0
      %2725 = vmatpush2.msra.mxu0 0.0
      %2726 = vmatprep.subr.mxu0 0.0
      %2727 = vmatpush2.msra.mxu0 0.0
      %2728 = vmatprep.subr.mxu0 0.0
      %2729 = vmatpush2.msra.mxu0 0.0
      %2730 = vmatprep.subr.mxu0 0.0
      %2731 = vmatpush2.msra.mxu0 0.0
      %2732 = vmatprep.subr.mxu0 0.0
      %2733 = vmatpush2.msra.mxu0 0.0
      %2734 = vmatprep.mubr.f32.mxu0 0.0
      %2735 = vmatmul.mubr.f32.gmra.mxu0 %v2310
      %v2736 = vpop.f32.mrf.mxu0
      %v2737 = vadd.f32 0.0, %v2736
      %v2738 = vpop.f32.mrf.mxu0
      %2739 = vmatprep.mubr.f32.mxu0 0.0
      %2740 = vmatmul.mubr.f32.gmra.mxu0 %v2313
      %v2741 = vpop.f32.mrf.mxu0
      %v2742 = vadd.f32 0.0, %v2741
      %v2743 = vpop.f32.mrf.mxu0
      %2744 = vmatprep.mubr.f32.mxu0 0.0
      %2745 = vmatmul.mubr.f32.gmra.mxu0 %v2316
      %v2746 = vpop.f32.mrf.mxu0
      %v2747 = vadd.f32 0.0, %v2746
      %v2748 = vpop.f32.mrf.mxu0
      %2749 = vmatprep.mubr.f32.mxu0 0.0
      %2750 = vmatmul.mubr.f32.gmra.mxu0 %v2319
      %v2751 = vpop.f32.mrf.mxu0
      %v2752 = vadd.f32 0.0, %v2751
      %v2753 = vpop.f32.mrf.mxu0
      %2754 = vmatprep.mubr.f32.mxu0 0.0
      %2755 = vmatmul.mubr.f32.gmra.mxu0 %v2322
      %v2756 = vpop.f32.mrf.mxu0
      %v2757 = vadd.f32 0.0, %v2756
      %v2758 = vpop.f32.mrf.mxu0
      %2759 = vmatprep.mubr.f32.mxu0 0.0
      %2760 = vmatmul.mubr.f32.gmra.mxu0 %v2325
      %v2761 = vpop.f32.mrf.mxu0
      %v2762 = vadd.f32 0.0, %v2761
      %v2763 = vpop.f32.mrf.mxu0
      %2764 = vmatprep.mubr.f32.mxu0 0.0
      %2765 = vmatmul.mubr.f32.gmra.mxu0 %v2328
      %v2766 = vpop.f32.mrf.mxu0
      %v2767 = vadd.f32 0.0, %v2766
      %v2768 = vpop.f32.mrf.mxu0
      %2769 = vmatprep.mubr.f32.mxu0 0.0
      %2770 = vmatmul.mubr.f32.gmra.mxu0 %v2331
      %v2771 = vpop.f32.mrf.mxu0
      %v2772 = vadd.f32 0.0, %v2771
      %v2773 = vpop.f32.mrf.mxu0
      %2774 = vmatprep.mubr.f32.mxu0 0.0
      %2775 = vmatmul.mubr.f32.gmra.mxu0 %v2334
      %v2776 = vpop.f32.mrf.mxu0
      %v2777 = vadd.f32 0.0, %v2776
      %v2778 = vpop.f32.mrf.mxu0
      %2779 = vmatprep.mubr.f32.mxu0 0.0
      %2780 = vmatmul.mubr.f32.gmra.mxu0 %v2337
      %v2781 = vpop.f32.mrf.mxu0
      %v2782 = vadd.f32 0.0, %v2781
      %v2783 = vpop.f32.mrf.mxu0
      %2784 = vmatprep.mubr.f32.mxu0 0.0
      %2785 = vmatmul.mubr.f32.gmra.mxu0 %v2340
      %v2786 = vpop.f32.mrf.mxu0
      %v2787 = vadd.f32 0.0, %v2786
      %v2788 = vpop.f32.mrf.mxu0
      %2789 = vmatprep.mubr.f32.mxu0 0.0
      %2790 = vmatmul.mubr.f32.gmra.mxu0 %v2343
      %v2791 = vpop.f32.mrf.mxu0
      %v2792 = vadd.f32 0.0, %v2791
      %v2793 = vpop.f32.mrf.mxu0
      %2794 = vmatprep.mubr.f32.mxu0 0.0
      %2795 = vmatmul.mubr.f32.gmra.mxu0 %v2346
      %v2796 = vpop.f32.mrf.mxu0
      %v2797 = vadd.f32 0.0, %v2796
      %v2798 = vpop.f32.mrf.mxu0
      %2799 = vmatprep.mubr.f32.mxu0 0.0
      %2800 = vmatmul.mubr.f32.gmra.mxu0 %v2349
      %v2801 = vpop.f32.mrf.mxu0
      %v2802 = vadd.f32 0.0, %v2801
      %v2803 = vpop.f32.mrf.mxu0
      %2804 = vmatprep.mubr.f32.mxu0 0.0
      %2805 = vmatmul.mubr.f32.gmra.mxu0 %v2352
      %v2806 = vpop.f32.mrf.mxu0
      %v2807 = vadd.f32 0.0, %v2806
      %v2808 = vpop.f32.mrf.mxu0
      %2809 = vmatprep.mubr.f32.mxu0 0.0
      %2810 = vmatmul.mubr.f32.gmra.mxu0 %v2355
      %v2811 = vpop.f32.mrf.mxu0
      %v2812 = vadd.f32 0.0, %v2811
      %v2813 = vpop.f32.mrf.mxu0
      %2814 = vmatprep.mubr.f32.mxu0 0.0
      %2815 = vmatmul.mubr.f32.gmra.mxu0 %v2358
      %v2816 = vpop.f32.mrf.mxu0
      %v2817 = vadd.f32 0.0, %v2816
      %v2818 = vpop.f32.mrf.mxu0
      %2819 = vmatprep.mubr.f32.mxu0 0.0
      %2820 = vmatmul.mubr.f32.gmra.mxu0 %v2361
      %v2821 = vpop.f32.mrf.mxu0
      %v2822 = vadd.f32 0.0, %v2821
      %v2823 = vpop.f32.mrf.mxu0
      %2824 = vmatprep.mubr.f32.mxu0 0.0
      %2825 = vmatmul.mubr.f32.gmra.mxu0 %v2364
      %v2826 = vpop.f32.mrf.mxu0
      %v2827 = vadd.f32 0.0, %v2826
      %v2828 = vpop.f32.mrf.mxu0
      %2829 = vmatprep.mubr.f32.mxu0 0.0
      %2830 = vmatmul.mubr.f32.gmra.mxu0 %v2367
      %v2831 = vpop.f32.mrf.mxu0
      %v2832 = vadd.f32 0.0, %v2831
      %v2833 = vpop.f32.mrf.mxu0
      %2834 = vmatprep.mubr.f32.mxu0 0.0
      %2835 = vmatmul.mubr.f32.gmra.mxu0 %v2370
      %v2836 = vpop.f32.mrf.mxu0
      %v2837 = vadd.f32 0.0, %v2836
      %v2838 = vpop.f32.mrf.mxu0
      %2839 = vmatprep.mubr.f32.mxu0 0.0
      %2840 = vmatmul.mubr.f32.gmra.mxu0 %v2373
      %v2841 = vpop.f32.mrf.mxu0
      %v2842 = vadd.f32 0.0, %v2841
      %v2843 = vpop.f32.mrf.mxu0
      %2844 = vmatprep.mubr.f32.mxu0 0.0
      %2845 = vmatmul.mubr.f32.gmra.mxu0 %v2376
      %v2846 = vpop.f32.mrf.mxu0
      %v2847 = vadd.f32 0.0, %v2846
      %v2848 = vpop.f32.mrf.mxu0
      %2849 = vmatprep.mubr.f32.mxu0 0.0
      %2850 = vmatmul.mubr.f32.gmra.mxu0 %v2379
      %v2851 = vpop.f32.mrf.mxu0
      %v2852 = vadd.f32 0.0, %v2851
      %v2853 = vpop.f32.mrf.mxu0
      %2854 = vmatprep.mubr.f32.mxu0 0.0
      %2855 = vmatmul.mubr.f32.gmra.mxu0 %v2382
      %v2856 = vpop.f32.mrf.mxu0
      %v2857 = vadd.f32 0.0, %v2856
      %v2858 = vpop.f32.mrf.mxu0
      %2859 = vmatprep.mubr.f32.mxu0 0.0
      %2860 = vmatmul.mubr.f32.gmra.mxu0 %v2385
      %v2861 = vpop.f32.mrf.mxu0
      %v2862 = vadd.f32 0.0, %v2861
      %v2863 = vpop.f32.mrf.mxu0
      %2864 = vmatprep.mubr.f32.mxu0 0.0
      %2865 = vmatmul.mubr.f32.gmra.mxu0 %v2388
      %v2866 = vpop.f32.mrf.mxu0
      %v2867 = vadd.f32 0.0, %v2866
      %v2868 = vpop.f32.mrf.mxu0
      %2869 = vmatprep.mubr.f32.mxu0 0.0
      %2870 = vmatmul.mubr.f32.gmra.mxu0 %v2391
      %v2871 = vpop.f32.mrf.mxu0
      %v2872 = vadd.f32 0.0, %v2871
      %v2873 = vpop.f32.mrf.mxu0
      %2874 = vmatprep.mubr.f32.mxu0 0.0
      %2875 = vmatmul.mubr.f32.gmra.mxu0 %v2394
      %v2876 = vpop.f32.mrf.mxu0
      %v2877 = vadd.f32 0.0, %v2876
      %v2878 = vpop.f32.mrf.mxu0
      %2879 = vmatprep.mubr.f32.mxu0 0.0
      %2880 = vmatmul.mubr.f32.gmra.mxu0 %v2397
      %v2881 = vpop.f32.mrf.mxu0
      %v2882 = vadd.f32 0.0, %v2881
      %v2883 = vpop.f32.mrf.mxu0
      %2884 = vmatprep.mubr.f32.mxu0 0.0
      %2885 = vmatmul.mubr.f32.gmra.mxu0 %v2662
      %v2886 = vpop.f32.mrf.mxu0
      %v2887 = vadd.f32 0.0, %v2886
      %v2888 = vpop.f32.mrf.mxu0
      %2889 = vmatprep.mubr.f32.mxu0 0.0
      %2890 = vmatmul.mubr.f32.gmra.mxu0 %v2665
      %v2891 = vpop.f32.mrf.mxu0
      %v2892 = vadd.f32 0.0, %v2891
      %v2893 = vpop.f32.mrf.mxu0
      %2894 = vdwg.mxu0
      %v2895 = vadd.f32 %v2627, %v2737
      %v2896 = vadd.f32 %v2628, %v2742
      %v2897 = vadd.f32 %v2629, %v2747
      %v2898 = vadd.f32 %v2630, %v2752
      %v2899 = vadd.f32 %v2631, %v2757
      %v2900 = vadd.f32 %v2632, %v2762
      %v2901 = vadd.f32 %v2633, %v2767
      %v2902 = vadd.f32 %v2634, %v2772
      %v2903 = vadd.f32 %v2635, %v2777
      %v2904 = vadd.f32 %v2636, %v2782
      %v2905 = vadd.f32 %v2637, %v2787
      %v2906 = vadd.f32 %v2638, %v2792
      %v2907 = vadd.f32 %v2639, %v2797
      %v2908 = vadd.f32 %v2640, %v2802
      %v2909 = vadd.f32 %v2641, %v2807
      %v2910 = vadd.f32 %v2642, %v2812
      %v2911 = vadd.f32 %v2643, %v2817
      %v2912 = vadd.f32 %v2644, %v2822
      %v2913 = vadd.f32 %v2645, %v2827
      %v2914 = vadd.f32 %v2646, %v2832
      %v2915 = vadd.f32 %v2647, %v2837
      %v2916 = vadd.f32 %v2648, %v2842
      %v2917 = vadd.f32 %v2649, %v2847
      %v2918 = vadd.f32 %v2650, %v2852
      %v2919 = vadd.f32 %v2651, %v2857
      %v2920 = vadd.f32 %v2652, %v2862
      %v2921 = vadd.f32 %v2653, %v2867
      %v2922 = vadd.f32 %v2654, %v2872
      %v2923 = vadd.f32 %v2655, %v2877
      %v2924 = vadd.f32 %v2656, %v2882
      %v2925 = vadd.f32 %v2657, %v2887
      %v2926 = vadd.f32 %v2658, %v2892
      %s2927 = scalar_lea.vmem %s1, 32
      %v2928 = vld [vmem:[%s2927] sm:$0xf]
      %v2930 = vsel %vm257, %v2299, 0
      %v2933 = vsel %vm257, %v2300, 0
      %v2936 = vsel %vm602, %v2928, 0
      %2938 = vmatprep.subr.mxu0 0.0
      %2939 = vmatpush1.msra.mxu0 0.0
      %2940 = vmatprep.subr.mxu0 0.0
      %2941 = vmatpush1.msra.mxu0 0.0
      %2942 = vmatprep.subr.mxu0 0.0
      %2943 = vmatpush1.msra.mxu0 0.0
      %2944 = vmatprep.subr.mxu0 0.0
      %2945 = vmatpush1.msra.mxu0 0.0
      %2946 = vmatprep.subr.mxu0 0.0
      %2947 = vmatpush1.msra.mxu0 0.0
      %2948 = vmatprep.subr.mxu0 0.0
      %2949 = vmatpush1.msra.mxu0 0.0
      %2950 = vmatprep.subr.mxu0 0.0
      %2951 = vmatpush1.msra.mxu0 0.0
      %2952 = vmatprep.subr.mxu0 0.0
      %2953 = vmatpush1.msra.mxu0 0.0
      %2954 = vmatprep.subr.mxu0 0.0
      %2955 = vmatpush1.msra.mxu0 0.0
      %2956 = vmatprep.subr.mxu0 0.0
      %2957 = vmatpush1.msra.mxu0 0.0
      %2958 = vmatprep.subr.mxu0 0.0
      %2959 = vmatpush1.msra.mxu0 0.0
      %2960 = vmatprep.subr.mxu0 0.0
      %2961 = vmatpush1.msra.mxu0 0.0
      %2962 = vmatprep.subr.mxu0 0.0
      %2963 = vmatpush1.msra.mxu0 0.0
      %2964 = vmatprep.subr.mxu0 0.0
      %2965 = vmatpush1.msra.mxu0 0.0
      %2966 = vmatprep.subr.mxu0 0.0
      %2967 = vmatpush1.msra.mxu0 0.0
      %2968 = vmatprep.subr.mxu0 0.0
      %2969 = vmatpush1.msra.mxu0 %v2936
      %2970 = vmatprep.subr.mxu0 0.0
      %2971 = vmatpush2.msra.mxu0 0.0
      %2972 = vmatprep.subr.mxu0 0.0
      %2973 = vmatpush2.msra.mxu0 0.0
      %2974 = vmatprep.subr.mxu0 0.0
      %2975 = vmatpush2.msra.mxu0 0.0
      %2976 = vmatprep.subr.mxu0 0.0
      %2977 = vmatpush2.msra.mxu0 0.0
      %2978 = vmatprep.subr.mxu0 0.0
      %2979 = vmatpush2.msra.mxu0 0.0
      %2980 = vmatprep.subr.mxu0 0.0
      %2981 = vmatpush2.msra.mxu0 0.0
      %2982 = vmatprep.subr.mxu0 0.0
      %2983 = vmatpush2.msra.mxu0 0.0
      %2984 = vmatprep.subr.mxu0 0.0
      %2985 = vmatpush2.msra.mxu0 0.0
      %2986 = vmatprep.subr.mxu0 0.0
      %2987 = vmatpush2.msra.mxu0 0.0
      %2988 = vmatprep.subr.mxu0 0.0
      %2989 = vmatpush2.msra.mxu0 0.0
      %2990 = vmatprep.subr.mxu0 0.0
      %2991 = vmatpush2.msra.mxu0 0.0
      %2992 = vmatprep.subr.mxu0 0.0
      %2993 = vmatpush2.msra.mxu0 0.0
      %2994 = vmatprep.subr.mxu0 0.0
      %2995 = vmatpush2.msra.mxu0 0.0
      %2996 = vmatprep.subr.mxu0 0.0
      %2997 = vmatpush2.msra.mxu0 0.0
      %2998 = vmatprep.subr.mxu0 0.0
      %2999 = vmatpush2.msra.mxu0 0.0
      %3000 = vmatprep.subr.mxu0 0.0
      %3001 = vmatpush2.msra.mxu0 0.0
      %3002 = vmatprep.mubr.f32.mxu0 0.0
      %3003 = vmatmul.mubr.f32.gmra.mxu0 %v2316
      %v3004 = vpop.f32.mrf.mxu0
      %v3005 = vadd.f32 0.0, %v3004
      %v3006 = vpop.f32.mrf.mxu0
      %3007 = vmatprep.mubr.f32.mxu0 0.0
      %3008 = vmatmul.mubr.f32.gmra.mxu0 %v2319
      %v3009 = vpop.f32.mrf.mxu0
      %v3010 = vadd.f32 0.0, %v3009
      %v3011 = vpop.f32.mrf.mxu0
      %3012 = vmatprep.mubr.f32.mxu0 0.0
      %3013 = vmatmul.mubr.f32.gmra.mxu0 %v2322
      %v3014 = vpop.f32.mrf.mxu0
      %v3015 = vadd.f32 0.0, %v3014
      %v3016 = vpop.f32.mrf.mxu0
      %3017 = vmatprep.mubr.f32.mxu0 0.0
      %3018 = vmatmul.mubr.f32.gmra.mxu0 %v2325
      %v3019 = vpop.f32.mrf.mxu0
      %v3020 = vadd.f32 0.0, %v3019
      %v3021 = vpop.f32.mrf.mxu0
      %3022 = vmatprep.mubr.f32.mxu0 0.0
      %3023 = vmatmul.mubr.f32.gmra.mxu0 %v2328
      %v3024 = vpop.f32.mrf.mxu0
      %v3025 = vadd.f32 0.0, %v3024
      %v3026 = vpop.f32.mrf.mxu0
      %3027 = vmatprep.mubr.f32.mxu0 0.0
      %3028 = vmatmul.mubr.f32.gmra.mxu0 %v2331
      %v3029 = vpop.f32.mrf.mxu0
      %v3030 = vadd.f32 0.0, %v3029
      %v3031 = vpop.f32.mrf.mxu0
      %3032 = vmatprep.mubr.f32.mxu0 0.0
      %3033 = vmatmul.mubr.f32.gmra.mxu0 %v2334
      %v3034 = vpop.f32.mrf.mxu0
      %v3035 = vadd.f32 0.0, %v3034
      %v3036 = vpop.f32.mrf.mxu0
      %3037 = vmatprep.mubr.f32.mxu0 0.0
      %3038 = vmatmul.mubr.f32.gmra.mxu0 %v2337
      %v3039 = vpop.f32.mrf.mxu0
      %v3040 = vadd.f32 0.0, %v3039
      %v3041 = vpop.f32.mrf.mxu0
      %3042 = vmatprep.mubr.f32.mxu0 0.0
      %3043 = vmatmul.mubr.f32.gmra.mxu0 %v2340
      %v3044 = vpop.f32.mrf.mxu0
      %v3045 = vadd.f32 0.0, %v3044
      %v3046 = vpop.f32.mrf.mxu0
      %3047 = vmatprep.mubr.f32.mxu0 0.0
      %3048 = vmatmul.mubr.f32.gmra.mxu0 %v2343
      %v3049 = vpop.f32.mrf.mxu0
      %v3050 = vadd.f32 0.0, %v3049
      %v3051 = vpop.f32.mrf.mxu0
      %3052 = vmatprep.mubr.f32.mxu0 0.0
      %3053 = vmatmul.mubr.f32.gmra.mxu0 %v2346
      %v3054 = vpop.f32.mrf.mxu0
      %v3055 = vadd.f32 0.0, %v3054
      %v3056 = vpop.f32.mrf.mxu0
      %3057 = vmatprep.mubr.f32.mxu0 0.0
      %3058 = vmatmul.mubr.f32.gmra.mxu0 %v2349
      %v3059 = vpop.f32.mrf.mxu0
      %v3060 = vadd.f32 0.0, %v3059
      %v3061 = vpop.f32.mrf.mxu0
      %3062 = vmatprep.mubr.f32.mxu0 0.0
      %3063 = vmatmul.mubr.f32.gmra.mxu0 %v2352
      %v3064 = vpop.f32.mrf.mxu0
      %v3065 = vadd.f32 0.0, %v3064
      %v3066 = vpop.f32.mrf.mxu0
      %3067 = vmatprep.mubr.f32.mxu0 0.0
      %3068 = vmatmul.mubr.f32.gmra.mxu0 %v2355
      %v3069 = vpop.f32.mrf.mxu0
      %v3070 = vadd.f32 0.0, %v3069
      %v3071 = vpop.f32.mrf.mxu0
      %3072 = vmatprep.mubr.f32.mxu0 0.0
      %3073 = vmatmul.mubr.f32.gmra.mxu0 %v2358
      %v3074 = vpop.f32.mrf.mxu0
      %v3075 = vadd.f32 0.0, %v3074
      %v3076 = vpop.f32.mrf.mxu0
      %3077 = vmatprep.mubr.f32.mxu0 0.0
      %3078 = vmatmul.mubr.f32.gmra.mxu0 %v2361
      %v3079 = vpop.f32.mrf.mxu0
      %v3080 = vadd.f32 0.0, %v3079
      %v3081 = vpop.f32.mrf.mxu0
      %3082 = vmatprep.mubr.f32.mxu0 0.0
      %3083 = vmatmul.mubr.f32.gmra.mxu0 %v2364
      %v3084 = vpop.f32.mrf.mxu0
      %v3085 = vadd.f32 0.0, %v3084
      %v3086 = vpop.f32.mrf.mxu0
      %3087 = vmatprep.mubr.f32.mxu0 0.0
      %3088 = vmatmul.mubr.f32.gmra.mxu0 %v2367
      %v3089 = vpop.f32.mrf.mxu0
      %v3090 = vadd.f32 0.0, %v3089
      %v3091 = vpop.f32.mrf.mxu0
      %3092 = vmatprep.mubr.f32.mxu0 0.0
      %3093 = vmatmul.mubr.f32.gmra.mxu0 %v2370
      %v3094 = vpop.f32.mrf.mxu0
      %v3095 = vadd.f32 0.0, %v3094
      %v3096 = vpop.f32.mrf.mxu0
      %3097 = vmatprep.mubr.f32.mxu0 0.0
      %3098 = vmatmul.mubr.f32.gmra.mxu0 %v2373
      %v3099 = vpop.f32.mrf.mxu0
      %v3100 = vadd.f32 0.0, %v3099
      %v3101 = vpop.f32.mrf.mxu0
      %3102 = vmatprep.mubr.f32.mxu0 0.0
      %3103 = vmatmul.mubr.f32.gmra.mxu0 %v2376
      %v3104 = vpop.f32.mrf.mxu0
      %v3105 = vadd.f32 0.0, %v3104
      %v3106 = vpop.f32.mrf.mxu0
      %3107 = vmatprep.mubr.f32.mxu0 0.0
      %3108 = vmatmul.mubr.f32.gmra.mxu0 %v2379
      %v3109 = vpop.f32.mrf.mxu0
      %v3110 = vadd.f32 0.0, %v3109
      %v3111 = vpop.f32.mrf.mxu0
      %3112 = vmatprep.mubr.f32.mxu0 0.0
      %3113 = vmatmul.mubr.f32.gmra.mxu0 %v2382
      %v3114 = vpop.f32.mrf.mxu0
      %v3115 = vadd.f32 0.0, %v3114
      %v3116 = vpop.f32.mrf.mxu0
      %3117 = vmatprep.mubr.f32.mxu0 0.0
      %3118 = vmatmul.mubr.f32.gmra.mxu0 %v2385
      %v3119 = vpop.f32.mrf.mxu0
      %v3120 = vadd.f32 0.0, %v3119
      %v3121 = vpop.f32.mrf.mxu0
      %3122 = vmatprep.mubr.f32.mxu0 0.0
      %3123 = vmatmul.mubr.f32.gmra.mxu0 %v2388
      %v3124 = vpop.f32.mrf.mxu0
      %v3125 = vadd.f32 0.0, %v3124
      %v3126 = vpop.f32.mrf.mxu0
      %3127 = vmatprep.mubr.f32.mxu0 0.0
      %3128 = vmatmul.mubr.f32.gmra.mxu0 %v2391
      %v3129 = vpop.f32.mrf.mxu0
      %v3130 = vadd.f32 0.0, %v3129
      %v3131 = vpop.f32.mrf.mxu0
      %3132 = vmatprep.mubr.f32.mxu0 0.0
      %3133 = vmatmul.mubr.f32.gmra.mxu0 %v2394
      %v3134 = vpop.f32.mrf.mxu0
      %v3135 = vadd.f32 0.0, %v3134
      %v3136 = vpop.f32.mrf.mxu0
      %3137 = vmatprep.mubr.f32.mxu0 0.0
      %3138 = vmatmul.mubr.f32.gmra.mxu0 %v2397
      %v3139 = vpop.f32.mrf.mxu0
      %v3140 = vadd.f32 0.0, %v3139
      %v3141 = vpop.f32.mrf.mxu0
      %3142 = vmatprep.mubr.f32.mxu0 0.0
      %3143 = vmatmul.mubr.f32.gmra.mxu0 %v2662
      %v3144 = vpop.f32.mrf.mxu0
      %v3145 = vadd.f32 0.0, %v3144
      %v3146 = vpop.f32.mrf.mxu0
      %3147 = vmatprep.mubr.f32.mxu0 0.0
      %3148 = vmatmul.mubr.f32.gmra.mxu0 %v2665
      %v3149 = vpop.f32.mrf.mxu0
      %v3150 = vadd.f32 0.0, %v3149
      %v3151 = vpop.f32.mrf.mxu0
      %3152 = vmatprep.mubr.f32.mxu0 0.0
      %3153 = vmatmul.mubr.f32.gmra.mxu0 %v2930
      %v3154 = vpop.f32.mrf.mxu0
      %v3155 = vadd.f32 0.0, %v3154
      %v3156 = vpop.f32.mrf.mxu0
      %3157 = vmatprep.mubr.f32.mxu0 0.0
      %3158 = vmatmul.mubr.f32.gmra.mxu0 %v2933
      %v3159 = vpop.f32.mrf.mxu0
      %v3160 = vadd.f32 0.0, %v3159
      %v3161 = vpop.f32.mrf.mxu0
      %3162 = vdwg.mxu0
      %v3163 = vadd.f32 %v2895, %v3005
      %v3164 = vadd.f32 %v2896, %v3010
      %v3165 = vadd.f32 %v2897, %v3015
      %v3166 = vadd.f32 %v2898, %v3020
      %v3167 = vadd.f32 %v2899, %v3025
      %v3168 = vadd.f32 %v2900, %v3030
      %v3169 = vadd.f32 %v2901, %v3035
      %v3170 = vadd.f32 %v2902, %v3040
      %v3171 = vadd.f32 %v2903, %v3045
      %v3172 = vadd.f32 %v2904, %v3050
      %v3173 = vadd.f32 %v2905, %v3055
      %v3174 = vadd.f32 %v2906, %v3060
      %v3175 = vadd.f32 %v2907, %v3065
      %v3176 = vadd.f32 %v2908, %v3070
      %v3177 = vadd.f32 %v2909, %v3075
      %v3178 = vadd.f32 %v2910, %v3080
      %v3179 = vadd.f32 %v2911, %v3085
      %v3180 = vadd.f32 %v2912, %v3090
      %v3181 = vadd.f32 %v2913, %v3095
      %v3182 = vadd.f32 %v2914, %v3100
      %v3183 = vadd.f32 %v2915, %v3105
      %v3184 = vadd.f32 %v2916, %v3110
      %v3185 = vadd.f32 %v2917, %v3115
      %v3186 = vadd.f32 %v2918, %v3120
      %v3187 = vadd.f32 %v2919, %v3125
      %v3188 = vadd.f32 %v2920, %v3130
      %v3189 = vadd.f32 %v2921, %v3135
      %v3190 = vadd.f32 %v2922, %v3140
      %v3191 = vadd.f32 %v2923, %v3145
      %v3192 = vadd.f32 %v2924, %v3150
      %v3193 = vadd.f32 %v2925, %v3155
      %v3194 = vadd.f32 %v2926, %v3160
      %v3195 = vld [vmem:[%s2] sm:$0x1]
      %v3197 = vlaneseq
      %v3198 = vshrl.u32 %v3197, 7
      %v3199 = vsub.s32 0, %v3198
      %v3200 = vrot.slane %v3195, %v3199
      %v3202 = vadd.f32 %v3163, %v3200
      %v3203 = vadd.f32 %v3164, %v3200
      %v3204 = vadd.f32 %v3165, %v3200
      %v3205 = vadd.f32 %v3166, %v3200
      %v3206 = vadd.f32 %v3167, %v3200
      %v3207 = vadd.f32 %v3168, %v3200
      %v3208 = vadd.f32 %v3169, %v3200
      %v3209 = vadd.f32 %v3170, %v3200
      %v3210 = vadd.f32 %v3171, %v3200
      %v3211 = vadd.f32 %v3172, %v3200
      %v3212 = vadd.f32 %v3173, %v3200
      %v3213 = vadd.f32 %v3174, %v3200
      %v3214 = vadd.f32 %v3175, %v3200
      %v3215 = vadd.f32 %v3176, %v3200
      %v3216 = vadd.f32 %v3177, %v3200
      %v3217 = vadd.f32 %v3178, %v3200
      %v3218 = vadd.f32 %v3179, %v3200
      %v3219 = vadd.f32 %v3180, %v3200
      %v3220 = vadd.f32 %v3181, %v3200
      %v3221 = vadd.f32 %v3182, %v3200
      %v3222 = vadd.f32 %v3183, %v3200
      %v3223 = vadd.f32 %v3184, %v3200
      %v3224 = vadd.f32 %v3185, %v3200
      %v3225 = vadd.f32 %v3186, %v3200
      %v3226 = vadd.f32 %v3187, %v3200
      %v3227 = vadd.f32 %v3188, %v3200
      %v3228 = vadd.f32 %v3189, %v3200
      %v3229 = vadd.f32 %v3190, %v3200
      %v3230 = vadd.f32 %v3191, %v3200
      %v3231 = vadd.f32 %v3192, %v3200
      %v3232 = vadd.f32 %v3193, %v3200
      %v3233 = vadd.f32 %v3194, %v3200
      %v3234 = vmax.f32 %v3202, 0.0
      %v3235 = vmax.f32 %v3203, 0.0
      %v3236 = vmax.f32 %v3204, 0.0
      %v3237 = vmax.f32 %v3205, 0.0
      %v3238 = vmax.f32 %v3206, 0.0
      %v3239 = vmax.f32 %v3207, 0.0
      %v3240 = vmax.f32 %v3208, 0.0
      %v3241 = vmax.f32 %v3209, 0.0
      %v3242 = vmax.f32 %v3210, 0.0
      %v3243 = vmax.f32 %v3211, 0.0
      %v3244 = vmax.f32 %v3212, 0.0
      %v3245 = vmax.f32 %v3213, 0.0
      %v3246 = vmax.f32 %v3214, 0.0
      %v3247 = vmax.f32 %v3215, 0.0
      %v3248 = vmax.f32 %v3216, 0.0
      %v3249 = vmax.f32 %v3217, 0.0
      %v3250 = vmax.f32 %v3218, 0.0
      %v3251 = vmax.f32 %v3219, 0.0
      %v3252 = vmax.f32 %v3220, 0.0
      %v3253 = vmax.f32 %v3221, 0.0
      %v3254 = vmax.f32 %v3222, 0.0
      %v3255 = vmax.f32 %v3223, 0.0
      %v3256 = vmax.f32 %v3224, 0.0
      %v3257 = vmax.f32 %v3225, 0.0
      %v3258 = vmax.f32 %v3226, 0.0
      %v3259 = vmax.f32 %v3227, 0.0
      %v3260 = vmax.f32 %v3228, 0.0
      %v3261 = vmax.f32 %v3229, 0.0
      %v3262 = vmax.f32 %v3230, 0.0
      %v3263 = vmax.f32 %v3231, 0.0
      %v3264 = vmax.f32 %v3232, 0.0
      %v3265 = vmax.f32 %v3233, 0.0
      %3266 = vst.msk [vmem:[#allocation2] sm:$0xff] %vm257, 0.0
      %3267 = vst.msk [vmem:[#allocation2 + $0x8] sm:$0xff] %vm257, 0.0
      %3268 = vst.msk [vmem:[#allocation2 + $0x10] sm:$0xff] %vm257, 0.0
      %3269 = vst.msk [vmem:[#allocation2 + $0x18] sm:$0xff] %vm257, 0.0
      %3270 = vst.msk [vmem:[#allocation2 + $0x20] sm:$0xff] %vm257, 0.0
      %3271 = vst.msk [vmem:[#allocation2 + $0x28] sm:$0xff] %vm257, 0.0
      %3272 = vst.msk [vmem:[#allocation2 + $0x30] sm:$0xff] %vm257, 0.0
      %3273 = vst.msk [vmem:[#allocation2 + $0x38] sm:$0xff] %vm257, 0.0
      %3274 = vst.msk [vmem:[#allocation2 + $0x40] sm:$0xff] %vm257, 0.0
      %3275 = vst.msk [vmem:[#allocation2 + $0x48] sm:$0xff] %vm257, 0.0
      %3276 = vst.msk [vmem:[#allocation2 + $0x50] sm:$0xff] %vm257, 0.0
      %3277 = vst.msk [vmem:[#allocation2 + $0x58] sm:$0xff] %vm257, 0.0
      %3278 = vst.msk [vmem:[#allocation2 + $0x60] sm:$0xff] %vm257, 0.0
      %3279 = vst.msk [vmem:[#allocation2 + $0x68] sm:$0xff] %vm257, 0.0
      %3280 = vst.msk [vmem:[#allocation2 + $0x70] sm:$0xff] %vm257, 0.0
      %3281 = vst.msk [vmem:[#allocation2 + $0x78] sm:$0xff] %vm257, 0.0
      %3282 = vst.msk [vmem:[#allocation2 + $0x80] sm:$0xff] %vm257, 0.0
      %3283 = vst.msk [vmem:[#allocation2 + $0x88] sm:$0xff] %vm257, 0.0
      %3284 = vst.msk [vmem:[#allocation2 + $0x90] sm:$0xff] %vm257, 0.0
      %3285 = vst.msk [vmem:[#allocation2 + $0x98] sm:$0xff] %vm257, 0.0
      %3286 = vst.msk [vmem:[#allocation2 + $0xa0] sm:$0xff] %vm257, 0.0
      %3287 = vst.msk [vmem:[#allocation2 + $0xa8] sm:$0xff] %vm257, 0.0
      %3288 = vst.msk [vmem:[#allocation2 + $0xb0] sm:$0xff] %vm257, 0.0
      %3289 = vst.msk [vmem:[#allocation2 + $0xb8] sm:$0xff] %vm257, 0.0
      %3290 = vst.msk [vmem:[#allocation2 + $0xc0] sm:$0xff] %vm257, 0.0
      %3291 = vst.msk [vmem:[#allocation2 + $0xc8] sm:$0xff] %vm257, 0.0
      %3292 = vst.msk [vmem:[#allocation2 + $0xd0] sm:$0xff] %vm257, 0.0
      %3293 = vst.msk [vmem:[#allocation2 + $0xd8] sm:$0xff] %vm257, 0.0
      %3294 = vst.msk [vmem:[#allocation2 + $0xe0] sm:$0xff] %vm257, 0.0
      %3295 = vst.msk [vmem:[#allocation2 + $0xe8] sm:$0xff] %vm257, 0.0
      %3296 = vst.msk [vmem:[#allocation2 + $0xf0] sm:$0xff] %vm257, 0.0
      %3297 = vst.msk [vmem:[#allocation2 + $0xf8] sm:$0xff] %vm257, 0.0
      %3298 = vst.msk [vmem:[#allocation2 + $0x100] sm:$0xff] %vm257, 0.0
      %3299 = vst.msk [vmem:[#allocation2 + $0x108] sm:$0xff] %vm257, 0.0
      %3300 = vst.msk [vmem:[#allocation2 + $0x110] sm:$0xff] %vm257, 0.0
      %3301 = vst.msk [vmem:[#allocation2 + $0x118] sm:$0xff] %vm257, 0.0
      %3302 = vst.msk [vmem:[#allocation2 + $0x120] sm:$0xff] %vm257, 0.0
      %3303 = vst.msk [vmem:[#allocation2 + $0x128] sm:$0xff] %vm257, 0.0
      %3304 = vst.msk [vmem:[#allocation2 + $0x130] sm:$0xff] %vm257, 0.0
      %3305 = vst.msk [vmem:[#allocation2 + $0x138] sm:$0xff] %vm257, 0.0
      %3306 = vst.msk [vmem:[#allocation2 + $0x140] sm:$0xff] %vm257, 0.0
      %3307 = vst.msk [vmem:[#allocation2 + $0x148] sm:$0xff] %vm257, 0.0
      %3308 = vst.msk [vmem:[#allocation2 + $0x150] sm:$0xff] %vm257, 0.0
      %3309 = vst.msk [vmem:[#allocation2 + $0x158] sm:$0xff] %vm257, 0.0
      %3310 = vst.msk [vmem:[#allocation2 + $0x160] sm:$0xff] %vm257, 0.0
      %3311 = vst.msk [vmem:[#allocation2 + $0x168] sm:$0xff] %vm257, 0.0
      %3312 = vst.msk [vmem:[#allocation2 + $0x170] sm:$0xff] %vm257, 0.0
      %3313 = vst.msk [vmem:[#allocation2 + $0x178] sm:$0xff] %vm257, 0.0
      %3314 = vst.msk [vmem:[#allocation2 + $0x180] sm:$0xff] %vm257, 0.0
      %3315 = vst.msk [vmem:[#allocation2 + $0x188] sm:$0xff] %vm257, 0.0
      %3316 = vst.msk [vmem:[#allocation2 + $0x190] sm:$0xff] %vm257, 0.0
      %3317 = vst.msk [vmem:[#allocation2 + $0x198] sm:$0xff] %vm257, 0.0
      %3318 = vst.msk [vmem:[#allocation2 + $0x1a0] sm:$0xff] %vm257, 0.0
      %3319 = vst.msk [vmem:[#allocation2 + $0x1a8] sm:$0xff] %vm257, 0.0
      %3320 = vst.msk [vmem:[#allocation2 + $0x1b0] sm:$0xff] %vm257, 0.0
      %3321 = vst.msk [vmem:[#allocation2 + $0x1b8] sm:$0xff] %vm257, 0.0
      %3322 = vst.msk [vmem:[#allocation2 + $0x1c0] sm:$0xff] %vm257, 0.0
      %3323 = vst.msk [vmem:[#allocation2 + $0x1c8] sm:$0xff] %vm257, 0.0
      %3324 = vst.msk [vmem:[#allocation2 + $0x1d0] sm:$0xff] %vm257, 0.0
      %3325 = vst.msk [vmem:[#allocation2 + $0x1d8] sm:$0xff] %vm257, 0.0
      %3326 = vst.msk [vmem:[#allocation2 + $0x1e0] sm:$0xff] %vm257, 0.0
      %3327 = vst.msk [vmem:[#allocation2 + $0x1e8] sm:$0xff] %vm257, 0.0
      %3328 = vst.msk [vmem:[#allocation2 + $0x1f0] sm:$0xff] %vm257, 0.0
      %3329 = vst.msk [vmem:[#allocation2 + $0x1f8] sm:$0xff] %vm257, 0.0
      %3330 = vst.msk [vmem:[#allocation2 + $0x200] sm:$0xff] %vm257, 0.0
      %3331 = vst.msk [vmem:[#allocation2 + $0x208] sm:$0xff] %vm257, 0.0
      %3332 = vst.msk [vmem:[#allocation2 + $0x210] sm:$0xff] %vm257, 0.0
      %3333 = vst.msk [vmem:[#allocation2 + $0x218] sm:$0xff] %vm257, 0.0
      %3334 = vst.msk [vmem:[#allocation2 + $0x220] sm:$0xff] %vm257, 0.0
      %3335 = vst.msk [vmem:[#allocation2 + $0x228] sm:$0xff] %vm257, 0.0
      %3336 = vst.msk [vmem:[#allocation2 + $0x230] sm:$0xff] %vm257, 0.0
      %3337 = vst.msk [vmem:[#allocation2 + $0x238] sm:$0xff] %vm257, 0.0
      %3338 = vst.msk [vmem:[#allocation2 + $0x240] sm:$0xff] %vm257, 0.0
      %3339 = vst.msk [vmem:[#allocation2 + $0x248] sm:$0xff] %vm257, 0.0
      %3340 = vst.msk [vmem:[#allocation2 + $0x250] sm:$0xff] %vm257, 0.0
      %3341 = vst.msk [vmem:[#allocation2 + $0x258] sm:$0xff] %vm257, 0.0
      %3342 = vst.msk [vmem:[#allocation2 + $0x260] sm:$0xff] %vm257, 0.0
      %3343 = vst.msk [vmem:[#allocation2 + $0x268] sm:$0xff] %vm257, 0.0
      %3344 = vst.msk [vmem:[#allocation2 + $0x270] sm:$0xff] %vm257, 0.0
      %3345 = vst.msk [vmem:[#allocation2 + $0x278] sm:$0xff] %vm257, 0.0
      %3346 = vst.msk [vmem:[#allocation2 + $0x280] sm:$0xff] %vm257, 0.0
      %3347 = vst.msk [vmem:[#allocation2 + $0x288] sm:$0xff] %vm257, 0.0
      %3348 = vst.msk [vmem:[#allocation2 + $0x290] sm:$0xff] %vm257, 0.0
      %3349 = vst.msk [vmem:[#allocation2 + $0x298] sm:$0xff] %vm257, 0.0
      %3350 = vst.msk [vmem:[#allocation2 + $0x2a0] sm:$0xff] %vm257, 0.0
      %3351 = vst.msk [vmem:[#allocation2 + $0x2a8] sm:$0xff] %vm257, 0.0
      %3352 = vst.msk [vmem:[#allocation2 + $0x2b0] sm:$0xff] %vm257, 0.0
      %3353 = vst.msk [vmem:[#allocation2 + $0x2b8] sm:$0xff] %vm257, 0.0
      %3354 = vst.msk [vmem:[#allocation2 + $0x2c0] sm:$0xff] %vm257, 0.0
      %3355 = vst.msk [vmem:[#allocation2 + $0x2c8] sm:$0xff] %vm257, 0.0
      %3356 = vst.msk [vmem:[#allocation2 + $0x2d0] sm:$0xff] %vm257, 0.0
      %3357 = vst.msk [vmem:[#allocation2 + $0x2d8] sm:$0xff] %vm257, 0.0
      %3358 = vst.msk [vmem:[#allocation2 + $0x2e0] sm:$0xff] %vm257, 0.0
      %3359 = vst.msk [vmem:[#allocation2 + $0x2e8] sm:$0xff] %vm257, 0.0
      %3360 = vst.msk [vmem:[#allocation2 + $0x2f0] sm:$0xff] %vm257, 0.0
      %3361 = vst.msk [vmem:[#allocation2 + $0x2f8] sm:$0xff] %vm257, 0.0
      %3362 = vst.msk [vmem:[#allocation2 + $0x300] sm:$0xff] %vm257, 0.0
      %3363 = vst.msk [vmem:[#allocation2 + $0x308] sm:$0xff] %vm257, 0.0
      %3364 = vst.msk [vmem:[#allocation2 + $0x310] sm:$0xff] %vm257, 0.0
      %3365 = vst.msk [vmem:[#allocation2 + $0x318] sm:$0xff] %vm257, 0.0
      %3366 = vst.msk [vmem:[#allocation2 + $0x320] sm:$0xff] %vm257, 0.0
      %3367 = vst.msk [vmem:[#allocation2 + $0x328] sm:$0xff] %vm257, 0.0
      %3368 = vst.msk [vmem:[#allocation2 + $0x330] sm:$0xff] %vm257, 0.0
      %3369 = vst.msk [vmem:[#allocation2 + $0x338] sm:$0xff] %vm257, 0.0
      %3370 = vst.msk [vmem:[#allocation2 + $0x340] sm:$0xff] %vm257, 0.0
      %3371 = vst.msk [vmem:[#allocation2 + $0x348] sm:$0xff] %vm257, 0.0
      %3372 = vst.msk [vmem:[#allocation2 + $0x350] sm:$0xff] %vm257, 0.0
      %3373 = vst.msk [vmem:[#allocation2 + $0x358] sm:$0xff] %vm257, 0.0
      %3374 = vst.msk [vmem:[%s366 + $0x1] sm:$0xff] %vm257, %v3234
      %3375 = vst.msk [vmem:[%s366 + $0x9] sm:$0x7f] %vm368, %v3235
      %3376 = vst.msk [vmem:[%s366 + $0x11] sm:$0xff] %vm257, %v3236
      %3377 = vst.msk [vmem:[%s366 + $0x19] sm:$0x7f] %vm368, %v3237
      %3378 = vst.msk [vmem:[%s366 + $0x21] sm:$0xff] %vm257, %v3238
      %3379 = vst.msk [vmem:[%s366 + $0x29] sm:$0x7f] %vm368, %v3239
      %3380 = vst.msk [vmem:[%s366 + $0x31] sm:$0xff] %vm257, %v3240
      %3381 = vst.msk [vmem:[%s366 + $0x39] sm:$0x7f] %vm368, %v3241
      %3382 = vst.msk [vmem:[%s366 + $0x41] sm:$0xff] %vm257, %v3242
      %3383 = vst.msk [vmem:[%s366 + $0x49] sm:$0x7f] %vm368, %v3243
      %3384 = vst.msk [vmem:[%s366 + $0x51] sm:$0xff] %vm257, %v3244
      %3385 = vst.msk [vmem:[%s366 + $0x59] sm:$0x7f] %vm368, %v3245
      %3386 = vst.msk [vmem:[%s366 + $0x61] sm:$0xff] %vm257, %v3246
      %3387 = vst.msk [vmem:[%s366 + $0x69] sm:$0x7f] %vm368, %v3247
      %3388 = vst.msk [vmem:[%s366 + $0x71] sm:$0xff] %vm257, %v3248
      %3389 = vst.msk [vmem:[%s366 + $0x79] sm:$0x7f] %vm368, %v3249
      %3390 = vst.msk [vmem:[%s366 + $0x81] sm:$0xff] %vm257, %v3250
      %3391 = vst.msk [vmem:[%s366 + $0x89] sm:$0x7f] %vm368, %v3251
      %3392 = vst.msk [vmem:[%s366 + $0x91] sm:$0xff] %vm257, %v3252
      %3393 = vst.msk [vmem:[%s366 + $0x99] sm:$0x7f] %vm368, %v3253
      %3394 = vst.msk [vmem:[%s366 + $0xa1] sm:$0xff] %vm257, %v3254
      %3395 = vst.msk [vmem:[%s366 + $0xa9] sm:$0x7f] %vm368, %v3255
      %3396 = vst.msk [vmem:[%s366 + $0xb1] sm:$0xff] %vm257, %v3256
      %3397 = vst.msk [vmem:[%s366 + $0xb9] sm:$0x7f] %vm368, %v3257
      %3398 = vst.msk [vmem:[%s366 + $0xc1] sm:$0xff] %vm257, %v3258
      %3399 = vst.msk [vmem:[%s366 + $0xc9] sm:$0x7f] %vm368, %v3259
      %3400 = vst.msk [vmem:[%s366 + $0xd1] sm:$0xff] %vm257, %v3260
      %3401 = vst.msk [vmem:[%s366 + $0xd9] sm:$0x7f] %vm368, %v3261
      %3402 = vst.msk [vmem:[%s366 + $0xe1] sm:$0xff] %vm257, %v3262
      %3403 = vst.msk [vmem:[%s366 + $0xe9] sm:$0x7f] %vm368, %v3263
      %3404 = vst.msk [vmem:[%s366 + $0xf1] sm:$0xff] %vm257, %v3264
      %3405 = vst.msk [vmem:[%s366 + $0xf9] sm:$0x7f] %vm368, %v3265
      %3406 = vst.msk [vmem:[%s400] sm:$0xff] %vm257, %v3234
      %3407 = vst.msk [vmem:[%s400 + $0x8] sm:$0xff] %vm257, %v3235
      %3408 = vst.msk [vmem:[%s400 + $0x10] sm:$0xff] %vm257, %v3236
      %3409 = vst.msk [vmem:[%s400 + $0x18] sm:$0xff] %vm257, %v3237
      %3410 = vst.msk [vmem:[%s400 + $0x20] sm:$0xff] %vm257, %v3238
      %3411 = vst.msk [vmem:[%s400 + $0x28] sm:$0xff] %vm257, %v3239
      %3412 = vst.msk [vmem:[%s400 + $0x30] sm:$0xff] %vm257, %v3240
      %3413 = vst.msk [vmem:[%s400 + $0x38] sm:$0xff] %vm257, %v3241
      %3414 = vst.msk [vmem:[%s400 + $0x40] sm:$0xff] %vm257, %v3242
      %3415 = vst.msk [vmem:[%s400 + $0x48] sm:$0xff] %vm257, %v3243
      %3416 = vst.msk [vmem:[%s400 + $0x50] sm:$0xff] %vm257, %v3244
      %3417 = vst.msk [vmem:[%s400 + $0x58] sm:$0xff] %vm257, %v3245
      %3418 = vst.msk [vmem:[%s400 + $0x60] sm:$0xff] %vm257, %v3246
      %3419 = vst.msk [vmem:[%s400 + $0x68] sm:$0xff] %vm257, %v3247
      %3420 = vst.msk [vmem:[%s400 + $0x70] sm:$0xff] %vm257, %v3248
      %3421 = vst.msk [vmem:[%s400 + $0x78] sm:$0xff] %vm257, %v3249
      %3422 = vst.msk [vmem:[%s400 + $0x80] sm:$0xff] %vm257, %v3250
      %3423 = vst.msk [vmem:[%s400 + $0x88] sm:$0xff] %vm257, %v3251
      %3424 = vst.msk [vmem:[%s400 + $0x90] sm:$0xff] %vm257, %v3252
      %3425 = vst.msk [vmem:[%s400 + $0x98] sm:$0xff] %vm257, %v3253
      %3426 = vst.msk [vmem:[%s400 + $0xa0] sm:$0xff] %vm257, %v3254
      %3427 = vst.msk [vmem:[%s400 + $0xa8] sm:$0xff] %vm257, %v3255
      %3428 = vst.msk [vmem:[%s400 + $0xb0] sm:$0xff] %vm257, %v3256
      %3429 = vst.msk [vmem:[%s400 + $0xb8] sm:$0xff] %vm257, %v3257
      %3430 = vst.msk [vmem:[%s400 + $0xc0] sm:$0xff] %vm257, %v3258
      %3431 = vst.msk [vmem:[%s400 + $0xc8] sm:$0xff] %vm257, %v3259
      %3432 = vst.msk [vmem:[%s400 + $0xd0] sm:$0xff] %vm257, %v3260
      %3433 = vst.msk [vmem:[%s400 + $0xd8] sm:$0xff] %vm257, %v3261
      %3434 = vst.msk [vmem:[%s400 + $0xe0] sm:$0xff] %vm257, %v3262
      %3435 = vst.msk [vmem:[%s400 + $0xe8] sm:$0xff] %vm257, %v3263
      %3436 = vst.msk [vmem:[%s400 + $0xf0] sm:$0xff] %vm257, %v3264
      %3437 = vst.msk [vmem:[%s400 + $0xf8] sm:$0xff] %vm257, %v3265
      %3438 = vst.msk [vmem:[%s433 - $0x1] sm:$0xfe] %vm434, %v3234
      %3439 = vst.msk [vmem:[%s433 + $0x7] sm:$0xff] %vm257, %v3235
      %3440 = vst.msk [vmem:[%s433 + $0xf] sm:$0xfe] %vm434, %v3236
      %3441 = vst.msk [vmem:[%s433 + $0x17] sm:$0xff] %vm257, %v3237
      %3442 = vst.msk [vmem:[%s433 + $0x1f] sm:$0xfe] %vm434, %v3238
      %3443 = vst.msk [vmem:[%s433 + $0x27] sm:$0xff] %vm257, %v3239
      %3444 = vst.msk [vmem:[%s433 + $0x2f] sm:$0xfe] %vm434, %v3240
      %3445 = vst.msk [vmem:[%s433 + $0x37] sm:$0xff] %vm257, %v3241
      %3446 = vst.msk [vmem:[%s433 + $0x3f] sm:$0xfe] %vm434, %v3242
      %3447 = vst.msk [vmem:[%s433 + $0x47] sm:$0xff] %vm257, %v3243
      %3448 = vst.msk [vmem:[%s433 + $0x4f] sm:$0xfe] %vm434, %v3244
      %3449 = vst.msk [vmem:[%s433 + $0x57] sm:$0xff] %vm257, %v3245
      %3450 = vst.msk [vmem:[%s433 + $0x5f] sm:$0xfe] %vm434, %v3246
      %3451 = vst.msk [vmem:[%s433 + $0x67] sm:$0xff] %vm257, %v3247
      %3452 = vst.msk [vmem:[%s433 + $0x6f] sm:$0xfe] %vm434, %v3248
      %3453 = vst.msk [vmem:[%s433 + $0x77] sm:$0xff] %vm257, %v3249
      %3454 = vst.msk [vmem:[%s433 + $0x7f] sm:$0xfe] %vm434, %v3250
      %3455 = vst.msk [vmem:[%s433 + $0x87] sm:$0xff] %vm257, %v3251
      %3456 = vst.msk [vmem:[%s433 + $0x8f] sm:$0xfe] %vm434, %v3252
      %3457 = vst.msk [vmem:[%s433 + $0x97] sm:$0xff] %vm257, %v3253
      %3458 = vst.msk [vmem:[%s433 + $0x9f] sm:$0xfe] %vm434, %v3254
      %3459 = vst.msk [vmem:[%s433 + $0xa7] sm:$0xff] %vm257, %v3255
      %3460 = vst.msk [vmem:[%s433 + $0xaf] sm:$0xfe] %vm434, %v3256
      %3461 = vst.msk [vmem:[%s433 + $0xb7] sm:$0xff] %vm257, %v3257
      %3462 = vst.msk [vmem:[%s433 + $0xbf] sm:$0xfe] %vm434, %v3258
      %3463 = vst.msk [vmem:[%s433 + $0xc7] sm:$0xff] %vm257, %v3259
      %3464 = vst.msk [vmem:[%s433 + $0xcf] sm:$0xfe] %vm434, %v3260
      %3465 = vst.msk [vmem:[%s433 + $0xd7] sm:$0xff] %vm257, %v3261
      %3466 = vst.msk [vmem:[%s433 + $0xdf] sm:$0xfe] %vm434, %v3262
      %3467 = vst.msk [vmem:[%s433 + $0xe7] sm:$0xff] %vm257, %v3263
      %3468 = vst.msk [vmem:[%s433 + $0xef] sm:$0xfe] %vm434, %v3264
      %3469 = vst.msk [vmem:[%s433 + $0xf7] sm:$0xff] %vm257, %v3265
      %v3470 = vld [vmem:[#allocation2] sm:$0xff]
      %v3471 = vld [vmem:[#allocation2 + $0x8] sm:$0xff]
      %v3472 = vld [vmem:[#allocation2 + $0x10] sm:$0xff]
      %v3473 = vld [vmem:[#allocation2 + $0x18] sm:$0xff]
      %v3474 = vld [vmem:[#allocation2 + $0x20] sm:$0xff]
      %v3475 = vld [vmem:[#allocation2 + $0x28] sm:$0xff]
      %v3476 = vld [vmem:[#allocation2 + $0x30] sm:$0xff]
      %v3477 = vld [vmem:[#allocation2 + $0x38] sm:$0xff]
      %v3478 = vld [vmem:[#allocation2 + $0x40] sm:$0xff]
      %v3479 = vld [vmem:[#allocation2 + $0x48] sm:$0xff]
      %v3480 = vld [vmem:[#allocation2 + $0x50] sm:$0xff]
      %v3481 = vld [vmem:[#allocation2 + $0x58] sm:$0xff]
      %v3482 = vld [vmem:[#allocation2 + $0x60] sm:$0xff]
      %v3483 = vld [vmem:[#allocation2 + $0x68] sm:$0xff]
      %v3484 = vld [vmem:[#allocation2 + $0x70] sm:$0xff]
      %v3485 = vld [vmem:[#allocation2 + $0x78] sm:$0xff]
      %v3486 = vld [vmem:[#allocation2 + $0x80] sm:$0xff]
      %v3487 = vld [vmem:[#allocation2 + $0x88] sm:$0xff]
      %v3488 = vld [vmem:[#allocation2 + $0x90] sm:$0xff]
      %v3489 = vld [vmem:[#allocation2 + $0x98] sm:$0xff]
      %v3490 = vld [vmem:[#allocation2 + $0xa0] sm:$0xff]
      %v3491 = vld [vmem:[#allocation2 + $0xa8] sm:$0xff]
      %v3492 = vld [vmem:[#allocation2 + $0xb0] sm:$0xff]
      %v3493 = vld [vmem:[#allocation2 + $0xb8] sm:$0xff]
      %v3494 = vld [vmem:[#allocation2 + $0xc0] sm:$0xff]
      %v3495 = vld [vmem:[#allocation2 + $0xc8] sm:$0xff]
      %v3496 = vld [vmem:[#allocation2 + $0xd0] sm:$0xff]
      %v3497 = vld [vmem:[#allocation2 + $0xd8] sm:$0xff]
      %v3498 = vld [vmem:[#allocation2 + $0xe0] sm:$0xff]
      %v3499 = vld [vmem:[#allocation2 + $0xe8] sm:$0xff]
      %v3500 = vld [vmem:[#allocation2 + $0xf0] sm:$0xff]
      %v3501 = vld [vmem:[#allocation2 + $0xf8] sm:$0xff]
      %v3502 = vld [vmem:[#allocation2 + $0x100] sm:$0xff]
      %v3503 = vld [vmem:[#allocation2 + $0x108] sm:$0xff]
      %v3504 = vld [vmem:[#allocation2 + $0x110] sm:$0xff]
      %v3505 = vld [vmem:[#allocation2 + $0x118] sm:$0xff]
      %v3506 = vld [vmem:[%s3] sm:$0xf]
      %s3507 = scalar_lea.vmem %s3, 12
      %v3508 = vld [vmem:[%s3507] sm:$0xf]
      %v3510 = vsel %vm257, %v3472, 0
      %v3513 = vsel %vm257, %v3473, 0
      %v3516 = vsel %vm257, %v3474, 0
      %v3519 = vsel %vm257, %v3475, 0
      %v3522 = vsel %vm257, %v3476, 0
      %v3525 = vsel %vm257, %v3477, 0
      %v3528 = vsel %vm257, %v3478, 0
      %v3531 = vsel %vm257, %v3479, 0
      %v3534 = vsel %vm257, %v3480, 0
      %v3537 = vsel %vm257, %v3481, 0
      %v3540 = vsel %vm257, %v3482, 0
      %v3543 = vsel %vm257, %v3483, 0
      %v3546 = vsel %vm257, %v3484, 0
      %v3549 = vsel %vm257, %v3485, 0
      %v3552 = vsel %vm257, %v3486, 0
      %v3555 = vsel %vm257, %v3487, 0
      %v3558 = vsel %vm257, %v3488, 0
      %v3561 = vsel %vm257, %v3489, 0
      %v3564 = vsel %vm257, %v3490, 0
      %v3567 = vsel %vm257, %v3491, 0
      %v3570 = vsel %vm257, %v3492, 0
      %v3573 = vsel %vm257, %v3493, 0
      %v3576 = vsel %vm257, %v3494, 0
      %v3579 = vsel %vm257, %v3495, 0
      %v3582 = vsel %vm257, %v3496, 0
      %v3585 = vsel %vm257, %v3497, 0
      %v3588 = vsel %vm257, %v3498, 0
      %v3591 = vsel %vm257, %v3499, 0
      %v3594 = vsel %vm257, %v3500, 0
      %v3597 = vsel %vm257, %v3501, 0
      %v3600 = vsel %vm257, %v3502, 0
      %v3603 = vsel %vm257, %v3503, 0
      %v3606 = vsel %vm602, %v3508, 0
      %3608 = vmatprep.subr.mxu0 0.0
      %3609 = vmatpush1.msra.mxu0 0.0
      %3610 = vmatprep.subr.mxu0 0.0
      %3611 = vmatpush1.msra.mxu0 0.0
      %3612 = vmatprep.subr.mxu0 0.0
      %3613 = vmatpush1.msra.mxu0 0.0
      %3614 = vmatprep.subr.mxu0 0.0
      %3615 = vmatpush1.msra.mxu0 0.0
      %3616 = vmatprep.subr.mxu0 0.0
      %3617 = vmatpush1.msra.mxu0 0.0
      %3618 = vmatprep.subr.mxu0 0.0
      %3619 = vmatpush1.msra.mxu0 0.0
      %3620 = vmatprep.subr.mxu0 0.0
      %3621 = vmatpush1.msra.mxu0 0.0
      %3622 = vmatprep.subr.mxu0 0.0
      %3623 = vmatpush1.msra.mxu0 0.0
      %3624 = vmatprep.subr.mxu0 0.0
      %3625 = vmatpush1.msra.mxu0 0.0
      %3626 = vmatprep.subr.mxu0 0.0
      %3627 = vmatpush1.msra.mxu0 0.0
      %3628 = vmatprep.subr.mxu0 0.0
      %3629 = vmatpush1.msra.mxu0 0.0
      %3630 = vmatprep.subr.mxu0 0.0
      %3631 = vmatpush1.msra.mxu0 0.0
      %3632 = vmatprep.subr.mxu0 0.0
      %3633 = vmatpush1.msra.mxu0 0.0
      %3634 = vmatprep.subr.mxu0 0.0
      %3635 = vmatpush1.msra.mxu0 0.0
      %3636 = vmatprep.subr.mxu0 0.0
      %3637 = vmatpush1.msra.mxu0 0.0
      %3638 = vmatprep.subr.mxu0 0.0
      %3639 = vmatpush1.msra.mxu0 %v3606
      %3640 = vmatprep.subr.mxu0 0.0
      %3641 = vmatpush2.msra.mxu0 0.0
      %3642 = vmatprep.subr.mxu0 0.0
      %3643 = vmatpush2.msra.mxu0 0.0
      %3644 = vmatprep.subr.mxu0 0.0
      %3645 = vmatpush2.msra.mxu0 0.0
      %3646 = vmatprep.subr.mxu0 0.0
      %3647 = vmatpush2.msra.mxu0 0.0
      %3648 = vmatprep.subr.mxu0 0.0
      %3649 = vmatpush2.msra.mxu0 0.0
      %3650 = vmatprep.subr.mxu0 0.0
      %3651 = vmatpush2.msra.mxu0 0.0
      %3652 = vmatprep.subr.mxu0 0.0
      %3653 = vmatpush2.msra.mxu0 0.0
      %3654 = vmatprep.subr.mxu0 0.0
      %3655 = vmatpush2.msra.mxu0 0.0
      %3656 = vmatprep.subr.mxu0 0.0
      %3657 = vmatpush2.msra.mxu0 0.0
      %3658 = vmatprep.subr.mxu0 0.0
      %3659 = vmatpush2.msra.mxu0 0.0
      %3660 = vmatprep.subr.mxu0 0.0
      %3661 = vmatpush2.msra.mxu0 0.0
      %3662 = vmatprep.subr.mxu0 0.0
      %3663 = vmatpush2.msra.mxu0 0.0
      %3664 = vmatprep.subr.mxu0 0.0
      %3665 = vmatpush2.msra.mxu0 0.0
      %3666 = vmatprep.subr.mxu0 0.0
      %3667 = vmatpush2.msra.mxu0 0.0
      %3668 = vmatprep.subr.mxu0 0.0
      %3669 = vmatpush2.msra.mxu0 0.0
      %3670 = vmatprep.subr.mxu0 0.0
      %3671 = vmatpush2.msra.mxu0 0.0
      %3672 = vmatprep.mubr.f32.mxu0 0.0
      %3673 = vmatmul.mubr.f32.gmra.mxu0 %v3510
      %v3674 = vpop.f32.mrf.mxu0
      %v3675 = vadd.f32 0.0, %v3674
      %v3676 = vpop.f32.mrf.mxu0
      %3677 = vmatprep.mubr.f32.mxu0 0.0
      %3678 = vmatmul.mubr.f32.gmra.mxu0 %v3513
      %v3679 = vpop.f32.mrf.mxu0
      %v3680 = vadd.f32 0.0, %v3679
      %v3681 = vpop.f32.mrf.mxu0
      %3682 = vmatprep.mubr.f32.mxu0 0.0
      %3683 = vmatmul.mubr.f32.gmra.mxu0 %v3516
      %v3684 = vpop.f32.mrf.mxu0
      %v3685 = vadd.f32 0.0, %v3684
      %v3686 = vpop.f32.mrf.mxu0
      %3687 = vmatprep.mubr.f32.mxu0 0.0
      %3688 = vmatmul.mubr.f32.gmra.mxu0 %v3519
      %v3689 = vpop.f32.mrf.mxu0
      %v3690 = vadd.f32 0.0, %v3689
      %v3691 = vpop.f32.mrf.mxu0
      %3692 = vmatprep.mubr.f32.mxu0 0.0
      %3693 = vmatmul.mubr.f32.gmra.mxu0 %v3522
      %v3694 = vpop.f32.mrf.mxu0
      %v3695 = vadd.f32 0.0, %v3694
      %v3696 = vpop.f32.mrf.mxu0
      %3697 = vmatprep.mubr.f32.mxu0 0.0
      %3698 = vmatmul.mubr.f32.gmra.mxu0 %v3525
      %v3699 = vpop.f32.mrf.mxu0
      %v3700 = vadd.f32 0.0, %v3699
      %v3701 = vpop.f32.mrf.mxu0
      %3702 = vmatprep.mubr.f32.mxu0 0.0
      %3703 = vmatmul.mubr.f32.gmra.mxu0 %v3528
      %v3704 = vpop.f32.mrf.mxu0
      %v3705 = vadd.f32 0.0, %v3704
      %v3706 = vpop.f32.mrf.mxu0
      %3707 = vmatprep.mubr.f32.mxu0 0.0
      %3708 = vmatmul.mubr.f32.gmra.mxu0 %v3531
      %v3709 = vpop.f32.mrf.mxu0
      %v3710 = vadd.f32 0.0, %v3709
      %v3711 = vpop.f32.mrf.mxu0
      %3712 = vmatprep.mubr.f32.mxu0 0.0
      %3713 = vmatmul.mubr.f32.gmra.mxu0 %v3534
      %v3714 = vpop.f32.mrf.mxu0
      %v3715 = vadd.f32 0.0, %v3714
      %v3716 = vpop.f32.mrf.mxu0
      %3717 = vmatprep.mubr.f32.mxu0 0.0
      %3718 = vmatmul.mubr.f32.gmra.mxu0 %v3537
      %v3719 = vpop.f32.mrf.mxu0
      %v3720 = vadd.f32 0.0, %v3719
      %v3721 = vpop.f32.mrf.mxu0
      %3722 = vmatprep.mubr.f32.mxu0 0.0
      %3723 = vmatmul.mubr.f32.gmra.mxu0 %v3540
      %v3724 = vpop.f32.mrf.mxu0
      %v3725 = vadd.f32 0.0, %v3724
      %v3726 = vpop.f32.mrf.mxu0
      %3727 = vmatprep.mubr.f32.mxu0 0.0
      %3728 = vmatmul.mubr.f32.gmra.mxu0 %v3543
      %v3729 = vpop.f32.mrf.mxu0
      %v3730 = vadd.f32 0.0, %v3729
      %v3731 = vpop.f32.mrf.mxu0
      %3732 = vmatprep.mubr.f32.mxu0 0.0
      %3733 = vmatmul.mubr.f32.gmra.mxu0 %v3546
      %v3734 = vpop.f32.mrf.mxu0
      %v3735 = vadd.f32 0.0, %v3734
      %v3736 = vpop.f32.mrf.mxu0
      %3737 = vmatprep.mubr.f32.mxu0 0.0
      %3738 = vmatmul.mubr.f32.gmra.mxu0 %v3549
      %v3739 = vpop.f32.mrf.mxu0
      %v3740 = vadd.f32 0.0, %v3739
      %v3741 = vpop.f32.mrf.mxu0
      %3742 = vmatprep.mubr.f32.mxu0 0.0
      %3743 = vmatmul.mubr.f32.gmra.mxu0 %v3552
      %v3744 = vpop.f32.mrf.mxu0
      %v3745 = vadd.f32 0.0, %v3744
      %v3746 = vpop.f32.mrf.mxu0
      %3747 = vmatprep.mubr.f32.mxu0 0.0
      %3748 = vmatmul.mubr.f32.gmra.mxu0 %v3555
      %v3749 = vpop.f32.mrf.mxu0
      %v3750 = vadd.f32 0.0, %v3749
      %v3751 = vpop.f32.mrf.mxu0
      %3752 = vmatprep.mubr.f32.mxu0 0.0
      %3753 = vmatmul.mubr.f32.gmra.mxu0 %v3558
      %v3754 = vpop.f32.mrf.mxu0
      %v3755 = vadd.f32 0.0, %v3754
      %v3756 = vpop.f32.mrf.mxu0
      %3757 = vmatprep.mubr.f32.mxu0 0.0
      %3758 = vmatmul.mubr.f32.gmra.mxu0 %v3561
      %v3759 = vpop.f32.mrf.mxu0
      %v3760 = vadd.f32 0.0, %v3759
      %v3761 = vpop.f32.mrf.mxu0
      %3762 = vmatprep.mubr.f32.mxu0 0.0
      %3763 = vmatmul.mubr.f32.gmra.mxu0 %v3564
      %v3764 = vpop.f32.mrf.mxu0
      %v3765 = vadd.f32 0.0, %v3764
      %v3766 = vpop.f32.mrf.mxu0
      %3767 = vmatprep.mubr.f32.mxu0 0.0
      %3768 = vmatmul.mubr.f32.gmra.mxu0 %v3567
      %v3769 = vpop.f32.mrf.mxu0
      %v3770 = vadd.f32 0.0, %v3769
      %v3771 = vpop.f32.mrf.mxu0
      %3772 = vmatprep.mubr.f32.mxu0 0.0
      %3773 = vmatmul.mubr.f32.gmra.mxu0 %v3570
      %v3774 = vpop.f32.mrf.mxu0
      %v3775 = vadd.f32 0.0, %v3774
      %v3776 = vpop.f32.mrf.mxu0
      %3777 = vmatprep.mubr.f32.mxu0 0.0
      %3778 = vmatmul.mubr.f32.gmra.mxu0 %v3573
      %v3779 = vpop.f32.mrf.mxu0
      %v3780 = vadd.f32 0.0, %v3779
      %v3781 = vpop.f32.mrf.mxu0
      %3782 = vmatprep.mubr.f32.mxu0 0.0
      %3783 = vmatmul.mubr.f32.gmra.mxu0 %v3576
      %v3784 = vpop.f32.mrf.mxu0
      %v3785 = vadd.f32 0.0, %v3784
      %v3786 = vpop.f32.mrf.mxu0
      %3787 = vmatprep.mubr.f32.mxu0 0.0
      %3788 = vmatmul.mubr.f32.gmra.mxu0 %v3579
      %v3789 = vpop.f32.mrf.mxu0
      %v3790 = vadd.f32 0.0, %v3789
      %v3791 = vpop.f32.mrf.mxu0
      %3792 = vmatprep.mubr.f32.mxu0 0.0
      %3793 = vmatmul.mubr.f32.gmra.mxu0 %v3582
      %v3794 = vpop.f32.mrf.mxu0
      %v3795 = vadd.f32 0.0, %v3794
      %v3796 = vpop.f32.mrf.mxu0
      %3797 = vmatprep.mubr.f32.mxu0 0.0
      %3798 = vmatmul.mubr.f32.gmra.mxu0 %v3585
      %v3799 = vpop.f32.mrf.mxu0
      %v3800 = vadd.f32 0.0, %v3799
      %v3801 = vpop.f32.mrf.mxu0
      %3802 = vmatprep.mubr.f32.mxu0 0.0
      %3803 = vmatmul.mubr.f32.gmra.mxu0 %v3588
      %v3804 = vpop.f32.mrf.mxu0
      %v3805 = vadd.f32 0.0, %v3804
      %v3806 = vpop.f32.mrf.mxu0
      %3807 = vmatprep.mubr.f32.mxu0 0.0
      %3808 = vmatmul.mubr.f32.gmra.mxu0 %v3591
      %v3809 = vpop.f32.mrf.mxu0
      %v3810 = vadd.f32 0.0, %v3809
      %v3811 = vpop.f32.mrf.mxu0
      %3812 = vmatprep.mubr.f32.mxu0 0.0
      %3813 = vmatmul.mubr.f32.gmra.mxu0 %v3594
      %v3814 = vpop.f32.mrf.mxu0
      %v3815 = vadd.f32 0.0, %v3814
      %v3816 = vpop.f32.mrf.mxu0
      %3817 = vmatprep.mubr.f32.mxu0 0.0
      %3818 = vmatmul.mubr.f32.gmra.mxu0 %v3597
      %v3819 = vpop.f32.mrf.mxu0
      %v3820 = vadd.f32 0.0, %v3819
      %v3821 = vpop.f32.mrf.mxu0
      %3822 = vmatprep.mubr.f32.mxu0 0.0
      %3823 = vmatmul.mubr.f32.gmra.mxu0 %v3600
      %v3824 = vpop.f32.mrf.mxu0
      %v3825 = vadd.f32 0.0, %v3824
      %v3826 = vpop.f32.mrf.mxu0
      %3827 = vmatprep.mubr.f32.mxu0 0.0
      %3828 = vmatmul.mubr.f32.gmra.mxu0 %v3603
      %v3829 = vpop.f32.mrf.mxu0
      %v3830 = vadd.f32 0.0, %v3829
      %v3831 = vpop.f32.mrf.mxu0
      %3832 = vdwg.mxu0
      %v3834 = vsel %vm257, %v3470, 0
      %v3837 = vsel %vm257, %v3471, 0
      %v3840 = vsel %vm602, %v3506, 0
      %3842 = vmatprep.subr.mxu0 0.0
      %3843 = vmatpush1.msra.mxu0 0.0
      %3844 = vmatprep.subr.mxu0 0.0
      %3845 = vmatpush1.msra.mxu0 0.0
      %3846 = vmatprep.subr.mxu0 0.0
      %3847 = vmatpush1.msra.mxu0 0.0
      %3848 = vmatprep.subr.mxu0 0.0
      %3849 = vmatpush1.msra.mxu0 0.0
      %3850 = vmatprep.subr.mxu0 0.0
      %3851 = vmatpush1.msra.mxu0 0.0
      %3852 = vmatprep.subr.mxu0 0.0
      %3853 = vmatpush1.msra.mxu0 0.0
      %3854 = vmatprep.subr.mxu0 0.0
      %3855 = vmatpush1.msra.mxu0 0.0
      %3856 = vmatprep.subr.mxu0 0.0
      %3857 = vmatpush1.msra.mxu0 0.0
      %3858 = vmatprep.subr.mxu0 0.0
      %3859 = vmatpush1.msra.mxu0 0.0
      %3860 = vmatprep.subr.mxu0 0.0
      %3861 = vmatpush1.msra.mxu0 0.0
      %3862 = vmatprep.subr.mxu0 0.0
      %3863 = vmatpush1.msra.mxu0 0.0
      %3864 = vmatprep.subr.mxu0 0.0
      %3865 = vmatpush1.msra.mxu0 0.0
      %3866 = vmatprep.subr.mxu0 0.0
      %3867 = vmatpush1.msra.mxu0 0.0
      %3868 = vmatprep.subr.mxu0 0.0
      %3869 = vmatpush1.msra.mxu0 0.0
      %3870 = vmatprep.subr.mxu0 0.0
      %3871 = vmatpush1.msra.mxu0 0.0
      %3872 = vmatprep.subr.mxu0 0.0
      %3873 = vmatpush1.msra.mxu0 %v3840
      %3874 = vmatprep.subr.mxu0 0.0
      %3875 = vmatpush2.msra.mxu0 0.0
      %3876 = vmatprep.subr.mxu0 0.0
      %3877 = vmatpush2.msra.mxu0 0.0
      %3878 = vmatprep.subr.mxu0 0.0
      %3879 = vmatpush2.msra.mxu0 0.0
      %3880 = vmatprep.subr.mxu0 0.0
      %3881 = vmatpush2.msra.mxu0 0.0
      %3882 = vmatprep.subr.mxu0 0.0
      %3883 = vmatpush2.msra.mxu0 0.0
      %3884 = vmatprep.subr.mxu0 0.0
      %3885 = vmatpush2.msra.mxu0 0.0
      %3886 = vmatprep.subr.mxu0 0.0
      %3887 = vmatpush2.msra.mxu0 0.0
      %3888 = vmatprep.subr.mxu0 0.0
      %3889 = vmatpush2.msra.mxu0 0.0
      %3890 = vmatprep.subr.mxu0 0.0
      %3891 = vmatpush2.msra.mxu0 0.0
      %3892 = vmatprep.subr.mxu0 0.0
      %3893 = vmatpush2.msra.mxu0 0.0
      %3894 = vmatprep.subr.mxu0 0.0
      %3895 = vmatpush2.msra.mxu0 0.0
      %3896 = vmatprep.subr.mxu0 0.0
      %3897 = vmatpush2.msra.mxu0 0.0
      %3898 = vmatprep.subr.mxu0 0.0
      %3899 = vmatpush2.msra.mxu0 0.0
      %3900 = vmatprep.subr.mxu0 0.0
      %3901 = vmatpush2.msra.mxu0 0.0
      %3902 = vmatprep.subr.mxu0 0.0
      %3903 = vmatpush2.msra.mxu0 0.0
      %3904 = vmatprep.subr.mxu0 0.0
      %3905 = vmatpush2.msra.mxu0 0.0
      %3906 = vmatprep.mubr.f32.mxu0 0.0
      %3907 = vmatmul.mubr.f32.gmra.mxu0 %v3834
      %v3908 = vpop.f32.mrf.mxu0
      %v3909 = vadd.f32 %v3675, %v3908
      %v3910 = vpop.f32.mrf.mxu0
      %3911 = vmatprep.mubr.f32.mxu0 0.0
      %3912 = vmatmul.mubr.f32.gmra.mxu0 %v3837
      %v3913 = vpop.f32.mrf.mxu0
      %v3914 = vadd.f32 %v3680, %v3913
      %v3915 = vpop.f32.mrf.mxu0
      %3916 = vmatprep.mubr.f32.mxu0 0.0
      %3917 = vmatmul.mubr.f32.gmra.mxu0 %v3510
      %v3918 = vpop.f32.mrf.mxu0
      %v3919 = vadd.f32 %v3685, %v3918
      %v3920 = vpop.f32.mrf.mxu0
      %3921 = vmatprep.mubr.f32.mxu0 0.0
      %3922 = vmatmul.mubr.f32.gmra.mxu0 %v3513
      %v3923 = vpop.f32.mrf.mxu0
      %v3924 = vadd.f32 %v3690, %v3923
      %v3925 = vpop.f32.mrf.mxu0
      %3926 = vmatprep.mubr.f32.mxu0 0.0
      %3927 = vmatmul.mubr.f32.gmra.mxu0 %v3516
      %v3928 = vpop.f32.mrf.mxu0
      %v3929 = vadd.f32 %v3695, %v3928
      %v3930 = vpop.f32.mrf.mxu0
      %3931 = vmatprep.mubr.f32.mxu0 0.0
      %3932 = vmatmul.mubr.f32.gmra.mxu0 %v3519
      %v3933 = vpop.f32.mrf.mxu0
      %v3934 = vadd.f32 %v3700, %v3933
      %v3935 = vpop.f32.mrf.mxu0
      %3936 = vmatprep.mubr.f32.mxu0 0.0
      %3937 = vmatmul.mubr.f32.gmra.mxu0 %v3522
      %v3938 = vpop.f32.mrf.mxu0
      %v3939 = vadd.f32 %v3705, %v3938
      %v3940 = vpop.f32.mrf.mxu0
      %3941 = vmatprep.mubr.f32.mxu0 0.0
      %3942 = vmatmul.mubr.f32.gmra.mxu0 %v3525
      %v3943 = vpop.f32.mrf.mxu0
      %v3944 = vadd.f32 %v3710, %v3943
      %v3945 = vpop.f32.mrf.mxu0
      %3946 = vmatprep.mubr.f32.mxu0 0.0
      %3947 = vmatmul.mubr.f32.gmra.mxu0 %v3528
      %v3948 = vpop.f32.mrf.mxu0
      %v3949 = vadd.f32 %v3715, %v3948
      %v3950 = vpop.f32.mrf.mxu0
      %3951 = vmatprep.mubr.f32.mxu0 0.0
      %3952 = vmatmul.mubr.f32.gmra.mxu0 %v3531
      %v3953 = vpop.f32.mrf.mxu0
      %v3954 = vadd.f32 %v3720, %v3953
      %v3955 = vpop.f32.mrf.mxu0
      %3956 = vmatprep.mubr.f32.mxu0 0.0
      %3957 = vmatmul.mubr.f32.gmra.mxu0 %v3534
      %v3958 = vpop.f32.mrf.mxu0
      %v3959 = vadd.f32 %v3725, %v3958
      %v3960 = vpop.f32.mrf.mxu0
      %3961 = vmatprep.mubr.f32.mxu0 0.0
      %3962 = vmatmul.mubr.f32.gmra.mxu0 %v3537
      %v3963 = vpop.f32.mrf.mxu0
      %v3964 = vadd.f32 %v3730, %v3963
      %v3965 = vpop.f32.mrf.mxu0
      %3966 = vmatprep.mubr.f32.mxu0 0.0
      %3967 = vmatmul.mubr.f32.gmra.mxu0 %v3540
      %v3968 = vpop.f32.mrf.mxu0
      %v3969 = vadd.f32 %v3735, %v3968
      %v3970 = vpop.f32.mrf.mxu0
      %3971 = vmatprep.mubr.f32.mxu0 0.0
      %3972 = vmatmul.mubr.f32.gmra.mxu0 %v3543
      %v3973 = vpop.f32.mrf.mxu0
      %v3974 = vadd.f32 %v3740, %v3973
      %v3975 = vpop.f32.mrf.mxu0
      %3976 = vmatprep.mubr.f32.mxu0 0.0
      %3977 = vmatmul.mubr.f32.gmra.mxu0 %v3546
      %v3978 = vpop.f32.mrf.mxu0
      %v3979 = vadd.f32 %v3745, %v3978
      %v3980 = vpop.f32.mrf.mxu0
      %3981 = vmatprep.mubr.f32.mxu0 0.0
      %3982 = vmatmul.mubr.f32.gmra.mxu0 %v3549
      %v3983 = vpop.f32.mrf.mxu0
      %v3984 = vadd.f32 %v3750, %v3983
      %v3985 = vpop.f32.mrf.mxu0
      %3986 = vmatprep.mubr.f32.mxu0 0.0
      %3987 = vmatmul.mubr.f32.gmra.mxu0 %v3552
      %v3988 = vpop.f32.mrf.mxu0
      %v3989 = vadd.f32 %v3755, %v3988
      %v3990 = vpop.f32.mrf.mxu0
      %3991 = vmatprep.mubr.f32.mxu0 0.0
      %3992 = vmatmul.mubr.f32.gmra.mxu0 %v3555
      %v3993 = vpop.f32.mrf.mxu0
      %v3994 = vadd.f32 %v3760, %v3993
      %v3995 = vpop.f32.mrf.mxu0
      %3996 = vmatprep.mubr.f32.mxu0 0.0
      %3997 = vmatmul.mubr.f32.gmra.mxu0 %v3558
      %v3998 = vpop.f32.mrf.mxu0
      %v3999 = vadd.f32 %v3765, %v3998
      %v4000 = vpop.f32.mrf.mxu0
      %4001 = vmatprep.mubr.f32.mxu0 0.0
      %4002 = vmatmul.mubr.f32.gmra.mxu0 %v3561
      %v4003 = vpop.f32.mrf.mxu0
      %v4004 = vadd.f32 %v3770, %v4003
      %v4005 = vpop.f32.mrf.mxu0
      %4006 = vmatprep.mubr.f32.mxu0 0.0
      %4007 = vmatmul.mubr.f32.gmra.mxu0 %v3564
      %v4008 = vpop.f32.mrf.mxu0
      %v4009 = vadd.f32 %v3775, %v4008
      %v4010 = vpop.f32.mrf.mxu0
      %4011 = vmatprep.mubr.f32.mxu0 0.0
      %4012 = vmatmul.mubr.f32.gmra.mxu0 %v3567
      %v4013 = vpop.f32.mrf.mxu0
      %v4014 = vadd.f32 %v3780, %v4013
      %v4015 = vpop.f32.mrf.mxu0
      %4016 = vmatprep.mubr.f32.mxu0 0.0
      %4017 = vmatmul.mubr.f32.gmra.mxu0 %v3570
      %v4018 = vpop.f32.mrf.mxu0
      %v4019 = vadd.f32 %v3785, %v4018
      %v4020 = vpop.f32.mrf.mxu0
      %4021 = vmatprep.mubr.f32.mxu0 0.0
      %4022 = vmatmul.mubr.f32.gmra.mxu0 %v3573
      %v4023 = vpop.f32.mrf.mxu0
      %v4024 = vadd.f32 %v3790, %v4023
      %v4025 = vpop.f32.mrf.mxu0
      %4026 = vmatprep.mubr.f32.mxu0 0.0
      %4027 = vmatmul.mubr.f32.gmra.mxu0 %v3576
      %v4028 = vpop.f32.mrf.mxu0
      %v4029 = vadd.f32 %v3795, %v4028
      %v4030 = vpop.f32.mrf.mxu0
      %4031 = vmatprep.mubr.f32.mxu0 0.0
      %4032 = vmatmul.mubr.f32.gmra.mxu0 %v3579
      %v4033 = vpop.f32.mrf.mxu0
      %v4034 = vadd.f32 %v3800, %v4033
      %v4035 = vpop.f32.mrf.mxu0
      %4036 = vmatprep.mubr.f32.mxu0 0.0
      %4037 = vmatmul.mubr.f32.gmra.mxu0 %v3582
      %v4038 = vpop.f32.mrf.mxu0
      %v4039 = vadd.f32 %v3805, %v4038
      %v4040 = vpop.f32.mrf.mxu0
      %4041 = vmatprep.mubr.f32.mxu0 0.0
      %4042 = vmatmul.mubr.f32.gmra.mxu0 %v3585
      %v4043 = vpop.f32.mrf.mxu0
      %v4044 = vadd.f32 %v3810, %v4043
      %v4045 = vpop.f32.mrf.mxu0
      %4046 = vmatprep.mubr.f32.mxu0 0.0
      %4047 = vmatmul.mubr.f32.gmra.mxu0 %v3588
      %v4048 = vpop.f32.mrf.mxu0
      %v4049 = vadd.f32 %v3815, %v4048
      %v4050 = vpop.f32.mrf.mxu0
      %4051 = vmatprep.mubr.f32.mxu0 0.0
      %4052 = vmatmul.mubr.f32.gmra.mxu0 %v3591
      %v4053 = vpop.f32.mrf.mxu0
      %v4054 = vadd.f32 %v3820, %v4053
      %v4055 = vpop.f32.mrf.mxu0
      %4056 = vmatprep.mubr.f32.mxu0 0.0
      %4057 = vmatmul.mubr.f32.gmra.mxu0 %v3594
      %v4058 = vpop.f32.mrf.mxu0
      %v4059 = vadd.f32 %v3825, %v4058
      %v4060 = vpop.f32.mrf.mxu0
      %4061 = vmatprep.mubr.f32.mxu0 0.0
      %4062 = vmatmul.mubr.f32.gmra.mxu0 %v3597
      %v4063 = vpop.f32.mrf.mxu0
      %v4064 = vadd.f32 %v3830, %v4063
      %v4065 = vpop.f32.mrf.mxu0
      %4066 = vdwg.mxu0
      %s4067 = scalar_lea.vmem %s3, 24
      %v4068 = vld [vmem:[%s4067] sm:$0xf]
      %v4070 = vsel %vm257, %v3504, 0
      %v4073 = vsel %vm257, %v3505, 0
      %v4076 = vsel %vm602, %v4068, 0
      %4078 = vmatprep.subr.mxu0 0.0
      %4079 = vmatpush1.msra.mxu0 0.0
      %4080 = vmatprep.subr.mxu0 0.0
      %4081 = vmatpush1.msra.mxu0 0.0
      %4082 = vmatprep.subr.mxu0 0.0
      %4083 = vmatpush1.msra.mxu0 0.0
      %4084 = vmatprep.subr.mxu0 0.0
      %4085 = vmatpush1.msra.mxu0 0.0
      %4086 = vmatprep.subr.mxu0 0.0
      %4087 = vmatpush1.msra.mxu0 0.0
      %4088 = vmatprep.subr.mxu0 0.0
      %4089 = vmatpush1.msra.mxu0 0.0
      %4090 = vmatprep.subr.mxu0 0.0
      %4091 = vmatpush1.msra.mxu0 0.0
      %4092 = vmatprep.subr.mxu0 0.0
      %4093 = vmatpush1.msra.mxu0 0.0
      %4094 = vmatprep.subr.mxu0 0.0
      %4095 = vmatpush1.msra.mxu0 0.0
      %4096 = vmatprep.subr.mxu0 0.0
      %4097 = vmatpush1.msra.mxu0 0.0
      %4098 = vmatprep.subr.mxu0 0.0
      %4099 = vmatpush1.msra.mxu0 0.0
      %4100 = vmatprep.subr.mxu0 0.0
      %4101 = vmatpush1.msra.mxu0 0.0
      %4102 = vmatprep.subr.mxu0 0.0
      %4103 = vmatpush1.msra.mxu0 0.0
      %4104 = vmatprep.subr.mxu0 0.0
      %4105 = vmatpush1.msra.mxu0 0.0
      %4106 = vmatprep.subr.mxu0 0.0
      %4107 = vmatpush1.msra.mxu0 0.0
      %4108 = vmatprep.subr.mxu0 0.0
      %4109 = vmatpush1.msra.mxu0 %v4076
      %4110 = vmatprep.subr.mxu0 0.0
      %4111 = vmatpush2.msra.mxu0 0.0
      %4112 = vmatprep.subr.mxu0 0.0
      %4113 = vmatpush2.msra.mxu0 0.0
      %4114 = vmatprep.subr.mxu0 0.0
      %4115 = vmatpush2.msra.mxu0 0.0
      %4116 = vmatprep.subr.mxu0 0.0
      %4117 = vmatpush2.msra.mxu0 0.0
      %4118 = vmatprep.subr.mxu0 0.0
      %4119 = vmatpush2.msra.mxu0 0.0
      %4120 = vmatprep.subr.mxu0 0.0
      %4121 = vmatpush2.msra.mxu0 0.0
      %4122 = vmatprep.subr.mxu0 0.0
      %4123 = vmatpush2.msra.mxu0 0.0
      %4124 = vmatprep.subr.mxu0 0.0
      %4125 = vmatpush2.msra.mxu0 0.0
      %4126 = vmatprep.subr.mxu0 0.0
      %4127 = vmatpush2.msra.mxu0 0.0
      %4128 = vmatprep.subr.mxu0 0.0
      %4129 = vmatpush2.msra.mxu0 0.0
      %4130 = vmatprep.subr.mxu0 0.0
      %4131 = vmatpush2.msra.mxu0 0.0
      %4132 = vmatprep.subr.mxu0 0.0
      %4133 = vmatpush2.msra.mxu0 0.0
      %4134 = vmatprep.subr.mxu0 0.0
      %4135 = vmatpush2.msra.mxu0 0.0
      %4136 = vmatprep.subr.mxu0 0.0
      %4137 = vmatpush2.msra.mxu0 0.0
      %4138 = vmatprep.subr.mxu0 0.0
      %4139 = vmatpush2.msra.mxu0 0.0
      %4140 = vmatprep.subr.mxu0 0.0
      %4141 = vmatpush2.msra.mxu0 0.0
      %4142 = vmatprep.mubr.f32.mxu0 0.0
      %4143 = vmatmul.mubr.f32.gmra.mxu0 %v3516
      %v4144 = vpop.f32.mrf.mxu0
      %v4145 = vadd.f32 0.0, %v4144
      %v4146 = vpop.f32.mrf.mxu0
      %4147 = vmatprep.mubr.f32.mxu0 0.0
      %4148 = vmatmul.mubr.f32.gmra.mxu0 %v3519
      %v4149 = vpop.f32.mrf.mxu0
      %v4150 = vadd.f32 0.0, %v4149
      %v4151 = vpop.f32.mrf.mxu0
      %4152 = vmatprep.mubr.f32.mxu0 0.0
      %4153 = vmatmul.mubr.f32.gmra.mxu0 %v3522
      %v4154 = vpop.f32.mrf.mxu0
      %v4155 = vadd.f32 0.0, %v4154
      %v4156 = vpop.f32.mrf.mxu0
      %4157 = vmatprep.mubr.f32.mxu0 0.0
      %4158 = vmatmul.mubr.f32.gmra.mxu0 %v3525
      %v4159 = vpop.f32.mrf.mxu0
      %v4160 = vadd.f32 0.0, %v4159
      %v4161 = vpop.f32.mrf.mxu0
      %4162 = vmatprep.mubr.f32.mxu0 0.0
      %4163 = vmatmul.mubr.f32.gmra.mxu0 %v3528
      %v4164 = vpop.f32.mrf.mxu0
      %v4165 = vadd.f32 0.0, %v4164
      %v4166 = vpop.f32.mrf.mxu0
      %4167 = vmatprep.mubr.f32.mxu0 0.0
      %4168 = vmatmul.mubr.f32.gmra.mxu0 %v3531
      %v4169 = vpop.f32.mrf.mxu0
      %v4170 = vadd.f32 0.0, %v4169
      %v4171 = vpop.f32.mrf.mxu0
      %4172 = vmatprep.mubr.f32.mxu0 0.0
      %4173 = vmatmul.mubr.f32.gmra.mxu0 %v3534
      %v4174 = vpop.f32.mrf.mxu0
      %v4175 = vadd.f32 0.0, %v4174
      %v4176 = vpop.f32.mrf.mxu0
      %4177 = vmatprep.mubr.f32.mxu0 0.0
      %4178 = vmatmul.mubr.f32.gmra.mxu0 %v3537
      %v4179 = vpop.f32.mrf.mxu0
      %v4180 = vadd.f32 0.0, %v4179
      %v4181 = vpop.f32.mrf.mxu0
      %4182 = vmatprep.mubr.f32.mxu0 0.0
      %4183 = vmatmul.mubr.f32.gmra.mxu0 %v3540
      %v4184 = vpop.f32.mrf.mxu0
      %v4185 = vadd.f32 0.0, %v4184
      %v4186 = vpop.f32.mrf.mxu0
      %4187 = vmatprep.mubr.f32.mxu0 0.0
      %4188 = vmatmul.mubr.f32.gmra.mxu0 %v3543
      %v4189 = vpop.f32.mrf.mxu0
      %v4190 = vadd.f32 0.0, %v4189
      %v4191 = vpop.f32.mrf.mxu0
      %4192 = vmatprep.mubr.f32.mxu0 0.0
      %4193 = vmatmul.mubr.f32.gmra.mxu0 %v3546
      %v4194 = vpop.f32.mrf.mxu0
      %v4195 = vadd.f32 0.0, %v4194
      %v4196 = vpop.f32.mrf.mxu0
      %4197 = vmatprep.mubr.f32.mxu0 0.0
      %4198 = vmatmul.mubr.f32.gmra.mxu0 %v3549
      %v4199 = vpop.f32.mrf.mxu0
      %v4200 = vadd.f32 0.0, %v4199
      %v4201 = vpop.f32.mrf.mxu0
      %4202 = vmatprep.mubr.f32.mxu0 0.0
      %4203 = vmatmul.mubr.f32.gmra.mxu0 %v3552
      %v4204 = vpop.f32.mrf.mxu0
      %v4205 = vadd.f32 0.0, %v4204
      %v4206 = vpop.f32.mrf.mxu0
      %4207 = vmatprep.mubr.f32.mxu0 0.0
      %4208 = vmatmul.mubr.f32.gmra.mxu0 %v3555
      %v4209 = vpop.f32.mrf.mxu0
      %v4210 = vadd.f32 0.0, %v4209
      %v4211 = vpop.f32.mrf.mxu0
      %4212 = vmatprep.mubr.f32.mxu0 0.0
      %4213 = vmatmul.mubr.f32.gmra.mxu0 %v3558
      %v4214 = vpop.f32.mrf.mxu0
      %v4215 = vadd.f32 0.0, %v4214
      %v4216 = vpop.f32.mrf.mxu0
      %4217 = vmatprep.mubr.f32.mxu0 0.0
      %4218 = vmatmul.mubr.f32.gmra.mxu0 %v3561
      %v4219 = vpop.f32.mrf.mxu0
      %v4220 = vadd.f32 0.0, %v4219
      %v4221 = vpop.f32.mrf.mxu0
      %4222 = vmatprep.mubr.f32.mxu0 0.0
      %4223 = vmatmul.mubr.f32.gmra.mxu0 %v3564
      %v4224 = vpop.f32.mrf.mxu0
      %v4225 = vadd.f32 0.0, %v4224
      %v4226 = vpop.f32.mrf.mxu0
      %4227 = vmatprep.mubr.f32.mxu0 0.0
      %4228 = vmatmul.mubr.f32.gmra.mxu0 %v3567
      %v4229 = vpop.f32.mrf.mxu0
      %v4230 = vadd.f32 0.0, %v4229
      %v4231 = vpop.f32.mrf.mxu0
      %4232 = vmatprep.mubr.f32.mxu0 0.0
      %4233 = vmatmul.mubr.f32.gmra.mxu0 %v3570
      %v4234 = vpop.f32.mrf.mxu0
      %v4235 = vadd.f32 0.0, %v4234
      %v4236 = vpop.f32.mrf.mxu0
      %4237 = vmatprep.mubr.f32.mxu0 0.0
      %4238 = vmatmul.mubr.f32.gmra.mxu0 %v3573
      %v4239 = vpop.f32.mrf.mxu0
      %v4240 = vadd.f32 0.0, %v4239
      %v4241 = vpop.f32.mrf.mxu0
      %4242 = vmatprep.mubr.f32.mxu0 0.0
      %4243 = vmatmul.mubr.f32.gmra.mxu0 %v3576
      %v4244 = vpop.f32.mrf.mxu0
      %v4245 = vadd.f32 0.0, %v4244
      %v4246 = vpop.f32.mrf.mxu0
      %4247 = vmatprep.mubr.f32.mxu0 0.0
      %4248 = vmatmul.mubr.f32.gmra.mxu0 %v3579
      %v4249 = vpop.f32.mrf.mxu0
      %v4250 = vadd.f32 0.0, %v4249
      %v4251 = vpop.f32.mrf.mxu0
      %4252 = vmatprep.mubr.f32.mxu0 0.0
      %4253 = vmatmul.mubr.f32.gmra.mxu0 %v3582
      %v4254 = vpop.f32.mrf.mxu0
      %v4255 = vadd.f32 0.0, %v4254
      %v4256 = vpop.f32.mrf.mxu0
      %4257 = vmatprep.mubr.f32.mxu0 0.0
      %4258 = vmatmul.mubr.f32.gmra.mxu0 %v3585
      %v4259 = vpop.f32.mrf.mxu0
      %v4260 = vadd.f32 0.0, %v4259
      %v4261 = vpop.f32.mrf.mxu0
      %4262 = vmatprep.mubr.f32.mxu0 0.0
      %4263 = vmatmul.mubr.f32.gmra.mxu0 %v3588
      %v4264 = vpop.f32.mrf.mxu0
      %v4265 = vadd.f32 0.0, %v4264
      %v4266 = vpop.f32.mrf.mxu0
      %4267 = vmatprep.mubr.f32.mxu0 0.0
      %4268 = vmatmul.mubr.f32.gmra.mxu0 %v3591
      %v4269 = vpop.f32.mrf.mxu0
      %v4270 = vadd.f32 0.0, %v4269
      %v4271 = vpop.f32.mrf.mxu0
      %4272 = vmatprep.mubr.f32.mxu0 0.0
      %4273 = vmatmul.mubr.f32.gmra.mxu0 %v3594
      %v4274 = vpop.f32.mrf.mxu0
      %v4275 = vadd.f32 0.0, %v4274
      %v4276 = vpop.f32.mrf.mxu0
      %4277 = vmatprep.mubr.f32.mxu0 0.0
      %4278 = vmatmul.mubr.f32.gmra.mxu0 %v3597
      %v4279 = vpop.f32.mrf.mxu0
      %v4280 = vadd.f32 0.0, %v4279
      %v4281 = vpop.f32.mrf.mxu0
      %4282 = vmatprep.mubr.f32.mxu0 0.0
      %4283 = vmatmul.mubr.f32.gmra.mxu0 %v3600
      %v4284 = vpop.f32.mrf.mxu0
      %v4285 = vadd.f32 0.0, %v4284
      %v4286 = vpop.f32.mrf.mxu0
      %4287 = vmatprep.mubr.f32.mxu0 0.0
      %4288 = vmatmul.mubr.f32.gmra.mxu0 %v3603
      %v4289 = vpop.f32.mrf.mxu0
      %v4290 = vadd.f32 0.0, %v4289
      %v4291 = vpop.f32.mrf.mxu0
      %4292 = vmatprep.mubr.f32.mxu0 0.0
      %4293 = vmatmul.mubr.f32.gmra.mxu0 %v4070
      %v4294 = vpop.f32.mrf.mxu0
      %v4295 = vadd.f32 0.0, %v4294
      %v4296 = vpop.f32.mrf.mxu0
      %4297 = vmatprep.mubr.f32.mxu0 0.0
      %4298 = vmatmul.mubr.f32.gmra.mxu0 %v4073
      %v4299 = vpop.f32.mrf.mxu0
      %v4300 = vadd.f32 0.0, %v4299
      %v4301 = vpop.f32.mrf.mxu0
      %4302 = vdwg.mxu0
      %v4303 = vadd.f32 %v3909, %v4145
      %v4304 = vadd.f32 %v3914, %v4150
      %v4305 = vadd.f32 %v3919, %v4155
      %v4306 = vadd.f32 %v3924, %v4160
      %v4307 = vadd.f32 %v3929, %v4165
      %v4308 = vadd.f32 %v3934, %v4170
      %v4309 = vadd.f32 %v3939, %v4175
      %v4310 = vadd.f32 %v3944, %v4180
      %v4311 = vadd.f32 %v3949, %v4185
      %v4312 = vadd.f32 %v3954, %v4190
      %v4313 = vadd.f32 %v3959, %v4195
      %v4314 = vadd.f32 %v3964, %v4200
      %v4315 = vadd.f32 %v3969, %v4205
      %v4316 = vadd.f32 %v3974, %v4210
      %v4317 = vadd.f32 %v3979, %v4215
      %v4318 = vadd.f32 %v3984, %v4220
      %v4319 = vadd.f32 %v3989, %v4225
      %v4320 = vadd.f32 %v3994, %v4230
      %v4321 = vadd.f32 %v3999, %v4235
      %v4322 = vadd.f32 %v4004, %v4240
      %v4323 = vadd.f32 %v4009, %v4245
      %v4324 = vadd.f32 %v4014, %v4250
      %v4325 = vadd.f32 %v4019, %v4255
      %v4326 = vadd.f32 %v4024, %v4260
      %v4327 = vadd.f32 %v4029, %v4265
      %v4328 = vadd.f32 %v4034, %v4270
      %v4329 = vadd.f32 %v4039, %v4275
      %v4330 = vadd.f32 %v4044, %v4280
      %v4331 = vadd.f32 %v4049, %v4285
      %v4332 = vadd.f32 %v4054, %v4290
      %v4333 = vadd.f32 %v4059, %v4295
      %v4334 = vadd.f32 %v4064, %v4300
      %v4335 = vld [vmem:[%s1333] sm:$0xff]
      %v4336 = vld [vmem:[%s1333 + $0x8] sm:$0xff]
      %v4337 = vld [vmem:[%s1333 + $0x10] sm:$0xff]
      %v4338 = vld [vmem:[%s1333 + $0x18] sm:$0xff]
      %v4339 = vld [vmem:[%s1333 + $0x20] sm:$0xff]
      %v4340 = vld [vmem:[%s1333 + $0x28] sm:$0xff]
      %v4341 = vld [vmem:[%s1333 + $0x30] sm:$0xff]
      %v4342 = vld [vmem:[%s1333 + $0x38] sm:$0xff]
      %v4343 = vld [vmem:[%s1333 + $0x40] sm:$0xff]
      %v4344 = vld [vmem:[%s1333 + $0x48] sm:$0xff]
      %v4345 = vld [vmem:[%s1333 + $0x50] sm:$0xff]
      %v4346 = vld [vmem:[%s1333 + $0x58] sm:$0xff]
      %v4347 = vld [vmem:[%s1333 + $0x60] sm:$0xff]
      %v4348 = vld [vmem:[%s1333 + $0x68] sm:$0xff]
      %v4349 = vld [vmem:[%s1333 + $0x70] sm:$0xff]
      %v4350 = vld [vmem:[%s1333 + $0x78] sm:$0xff]
      %v4351 = vld [vmem:[%s1333 + $0x80] sm:$0xff]
      %v4352 = vld [vmem:[%s1333 + $0x88] sm:$0xff]
      %v4353 = vld [vmem:[%s1333 + $0x90] sm:$0xff]
      %v4354 = vld [vmem:[%s1333 + $0x98] sm:$0xff]
      %v4355 = vld [vmem:[%s1333 + $0xa0] sm:$0xff]
      %v4356 = vld [vmem:[%s1333 + $0xa8] sm:$0xff]
      %v4357 = vld [vmem:[%s1333 + $0xb0] sm:$0xff]
      %v4358 = vld [vmem:[%s1333 + $0xb8] sm:$0xff]
      %v4359 = vld [vmem:[%s1333 + $0xc0] sm:$0xff]
      %v4360 = vld [vmem:[%s1333 + $0xc8] sm:$0xff]
      %v4361 = vld [vmem:[%s1333 + $0xd0] sm:$0xff]
      %v4362 = vld [vmem:[%s1333 + $0xd8] sm:$0xff]
      %v4363 = vld [vmem:[%s1333 + $0xe0] sm:$0xff]
      %v4364 = vld [vmem:[%s1333 + $0xe8] sm:$0xff]
      %v4365 = vld [vmem:[%s1333 + $0xf0] sm:$0xff]
      %v4366 = vld [vmem:[%s1333 + $0xf8] sm:$0xff]
      %v4367 = vld [vmem:[%s1333 + $0x100] sm:$0xff]
      %v4368 = vld [vmem:[%s1333 + $0x108] sm:$0xff]
      %v4369 = vld [vmem:[%s1333 + $0x110] sm:$0xff]
      %v4370 = vld [vmem:[%s1333 + $0x118] sm:$0xff]
      %s4371 = scalar_lea.vmem %s3, 4
      %v4372 = vld [vmem:[%s4371] sm:$0xf]
      %v4374 = vsel %vm257, %v4335, 0
      %v4377 = vsel %vm257, %v4336, 0
      %v4380 = vsel %vm257, %v4337, 0
      %v4383 = vsel %vm257, %v4338, 0
      %v4386 = vsel %vm257, %v4339, 0
      %v4389 = vsel %vm257, %v4340, 0
      %v4392 = vsel %vm257, %v4341, 0
      %v4395 = vsel %vm257, %v4342, 0
      %v4398 = vsel %vm257, %v4343, 0
      %v4401 = vsel %vm257, %v4344, 0
      %v4404 = vsel %vm257, %v4345, 0
      %v4407 = vsel %vm257, %v4346, 0
      %v4410 = vsel %vm257, %v4347, 0
      %v4413 = vsel %vm257, %v4348, 0
      %v4416 = vsel %vm257, %v4349, 0
      %v4419 = vsel %vm257, %v4350, 0
      %v4422 = vsel %vm257, %v4351, 0
      %v4425 = vsel %vm257, %v4352, 0
      %v4428 = vsel %vm257, %v4353, 0
      %v4431 = vsel %vm257, %v4354, 0
      %v4434 = vsel %vm257, %v4355, 0
      %v4437 = vsel %vm257, %v4356, 0
      %v4440 = vsel %vm257, %v4357, 0
      %v4443 = vsel %vm257, %v4358, 0
      %v4446 = vsel %vm257, %v4359, 0
      %v4449 = vsel %vm257, %v4360, 0
      %v4452 = vsel %vm257, %v4361, 0
      %v4455 = vsel %vm257, %v4362, 0
      %v4458 = vsel %vm257, %v4363, 0
      %v4461 = vsel %vm257, %v4364, 0
      %v4464 = vsel %vm257, %v4365, 0
      %v4467 = vsel %vm257, %v4366, 0
      %v4470 = vsel %vm602, %v4372, 0
      %4472 = vmatprep.subr.mxu0 0.0
      %4473 = vmatpush1.msra.mxu0 0.0
      %4474 = vmatprep.subr.mxu0 0.0
      %4475 = vmatpush1.msra.mxu0 0.0
      %4476 = vmatprep.subr.mxu0 0.0
      %4477 = vmatpush1.msra.mxu0 0.0
      %4478 = vmatprep.subr.mxu0 0.0
      %4479 = vmatpush1.msra.mxu0 0.0
      %4480 = vmatprep.subr.mxu0 0.0
      %4481 = vmatpush1.msra.mxu0 0.0
      %4482 = vmatprep.subr.mxu0 0.0
      %4483 = vmatpush1.msra.mxu0 0.0
      %4484 = vmatprep.subr.mxu0 0.0
      %4485 = vmatpush1.msra.mxu0 0.0
      %4486 = vmatprep.subr.mxu0 0.0
      %4487 = vmatpush1.msra.mxu0 0.0
      %4488 = vmatprep.subr.mxu0 0.0
      %4489 = vmatpush1.msra.mxu0 0.0
      %4490 = vmatprep.subr.mxu0 0.0
      %4491 = vmatpush1.msra.mxu0 0.0
      %4492 = vmatprep.subr.mxu0 0.0
      %4493 = vmatpush1.msra.mxu0 0.0
      %4494 = vmatprep.subr.mxu0 0.0
      %4495 = vmatpush1.msra.mxu0 0.0
      %4496 = vmatprep.subr.mxu0 0.0
      %4497 = vmatpush1.msra.mxu0 0.0
      %4498 = vmatprep.subr.mxu0 0.0
      %4499 = vmatpush1.msra.mxu0 0.0
      %4500 = vmatprep.subr.mxu0 0.0
      %4501 = vmatpush1.msra.mxu0 0.0
      %4502 = vmatprep.subr.mxu0 0.0
      %4503 = vmatpush1.msra.mxu0 %v4470
      %4504 = vmatprep.subr.mxu0 0.0
      %4505 = vmatpush2.msra.mxu0 0.0
      %4506 = vmatprep.subr.mxu0 0.0
      %4507 = vmatpush2.msra.mxu0 0.0
      %4508 = vmatprep.subr.mxu0 0.0
      %4509 = vmatpush2.msra.mxu0 0.0
      %4510 = vmatprep.subr.mxu0 0.0
      %4511 = vmatpush2.msra.mxu0 0.0
      %4512 = vmatprep.subr.mxu0 0.0
      %4513 = vmatpush2.msra.mxu0 0.0
      %4514 = vmatprep.subr.mxu0 0.0
      %4515 = vmatpush2.msra.mxu0 0.0
      %4516 = vmatprep.subr.mxu0 0.0
      %4517 = vmatpush2.msra.mxu0 0.0
      %4518 = vmatprep.subr.mxu0 0.0
      %4519 = vmatpush2.msra.mxu0 0.0
      %4520 = vmatprep.subr.mxu0 0.0
      %4521 = vmatpush2.msra.mxu0 0.0
      %4522 = vmatprep.subr.mxu0 0.0
      %4523 = vmatpush2.msra.mxu0 0.0
      %4524 = vmatprep.subr.mxu0 0.0
      %4525 = vmatpush2.msra.mxu0 0.0
      %4526 = vmatprep.subr.mxu0 0.0
      %4527 = vmatpush2.msra.mxu0 0.0
      %4528 = vmatprep.subr.mxu0 0.0
      %4529 = vmatpush2.msra.mxu0 0.0
      %4530 = vmatprep.subr.mxu0 0.0
      %4531 = vmatpush2.msra.mxu0 0.0
      %4532 = vmatprep.subr.mxu0 0.0
      %4533 = vmatpush2.msra.mxu0 0.0
      %4534 = vmatprep.subr.mxu0 0.0
      %4535 = vmatpush2.msra.mxu0 0.0
      %4536 = vmatprep.mubr.f32.mxu0 0.0
      %4537 = vmatmul.mubr.f32.gmra.mxu0 %v4374
      %v4538 = vpop.f32.mrf.mxu0
      %v4539 = vadd.f32 0.0, %v4538
      %v4540 = vpop.f32.mrf.mxu0
      %4541 = vmatprep.mubr.f32.mxu0 0.0
      %4542 = vmatmul.mubr.f32.gmra.mxu0 %v4377
      %v4543 = vpop.f32.mrf.mxu0
      %v4544 = vadd.f32 0.0, %v4543
      %v4545 = vpop.f32.mrf.mxu0
      %4546 = vmatprep.mubr.f32.mxu0 0.0
      %4547 = vmatmul.mubr.f32.gmra.mxu0 %v4380
      %v4548 = vpop.f32.mrf.mxu0
      %v4549 = vadd.f32 0.0, %v4548
      %v4550 = vpop.f32.mrf.mxu0
      %4551 = vmatprep.mubr.f32.mxu0 0.0
      %4552 = vmatmul.mubr.f32.gmra.mxu0 %v4383
      %v4553 = vpop.f32.mrf.mxu0
      %v4554 = vadd.f32 0.0, %v4553
      %v4555 = vpop.f32.mrf.mxu0
      %4556 = vmatprep.mubr.f32.mxu0 0.0
      %4557 = vmatmul.mubr.f32.gmra.mxu0 %v4386
      %v4558 = vpop.f32.mrf.mxu0
      %v4559 = vadd.f32 0.0, %v4558
      %v4560 = vpop.f32.mrf.mxu0
      %4561 = vmatprep.mubr.f32.mxu0 0.0
      %4562 = vmatmul.mubr.f32.gmra.mxu0 %v4389
      %v4563 = vpop.f32.mrf.mxu0
      %v4564 = vadd.f32 0.0, %v4563
      %v4565 = vpop.f32.mrf.mxu0
      %4566 = vmatprep.mubr.f32.mxu0 0.0
      %4567 = vmatmul.mubr.f32.gmra.mxu0 %v4392
      %v4568 = vpop.f32.mrf.mxu0
      %v4569 = vadd.f32 0.0, %v4568
      %v4570 = vpop.f32.mrf.mxu0
      %4571 = vmatprep.mubr.f32.mxu0 0.0
      %4572 = vmatmul.mubr.f32.gmra.mxu0 %v4395
      %v4573 = vpop.f32.mrf.mxu0
      %v4574 = vadd.f32 0.0, %v4573
      %v4575 = vpop.f32.mrf.mxu0
      %4576 = vmatprep.mubr.f32.mxu0 0.0
      %4577 = vmatmul.mubr.f32.gmra.mxu0 %v4398
      %v4578 = vpop.f32.mrf.mxu0
      %v4579 = vadd.f32 0.0, %v4578
      %v4580 = vpop.f32.mrf.mxu0
      %4581 = vmatprep.mubr.f32.mxu0 0.0
      %4582 = vmatmul.mubr.f32.gmra.mxu0 %v4401
      %v4583 = vpop.f32.mrf.mxu0
      %v4584 = vadd.f32 0.0, %v4583
      %v4585 = vpop.f32.mrf.mxu0
      %4586 = vmatprep.mubr.f32.mxu0 0.0
      %4587 = vmatmul.mubr.f32.gmra.mxu0 %v4404
      %v4588 = vpop.f32.mrf.mxu0
      %v4589 = vadd.f32 0.0, %v4588
      %v4590 = vpop.f32.mrf.mxu0
      %4591 = vmatprep.mubr.f32.mxu0 0.0
      %4592 = vmatmul.mubr.f32.gmra.mxu0 %v4407
      %v4593 = vpop.f32.mrf.mxu0
      %v4594 = vadd.f32 0.0, %v4593
      %v4595 = vpop.f32.mrf.mxu0
      %4596 = vmatprep.mubr.f32.mxu0 0.0
      %4597 = vmatmul.mubr.f32.gmra.mxu0 %v4410
      %v4598 = vpop.f32.mrf.mxu0
      %v4599 = vadd.f32 0.0, %v4598
      %v4600 = vpop.f32.mrf.mxu0
      %4601 = vmatprep.mubr.f32.mxu0 0.0
      %4602 = vmatmul.mubr.f32.gmra.mxu0 %v4413
      %v4603 = vpop.f32.mrf.mxu0
      %v4604 = vadd.f32 0.0, %v4603
      %v4605 = vpop.f32.mrf.mxu0
      %4606 = vmatprep.mubr.f32.mxu0 0.0
      %4607 = vmatmul.mubr.f32.gmra.mxu0 %v4416
      %v4608 = vpop.f32.mrf.mxu0
      %v4609 = vadd.f32 0.0, %v4608
      %v4610 = vpop.f32.mrf.mxu0
      %4611 = vmatprep.mubr.f32.mxu0 0.0
      %4612 = vmatmul.mubr.f32.gmra.mxu0 %v4419
      %v4613 = vpop.f32.mrf.mxu0
      %v4614 = vadd.f32 0.0, %v4613
      %v4615 = vpop.f32.mrf.mxu0
      %4616 = vmatprep.mubr.f32.mxu0 0.0
      %4617 = vmatmul.mubr.f32.gmra.mxu0 %v4422
      %v4618 = vpop.f32.mrf.mxu0
      %v4619 = vadd.f32 0.0, %v4618
      %v4620 = vpop.f32.mrf.mxu0
      %4621 = vmatprep.mubr.f32.mxu0 0.0
      %4622 = vmatmul.mubr.f32.gmra.mxu0 %v4425
      %v4623 = vpop.f32.mrf.mxu0
      %v4624 = vadd.f32 0.0, %v4623
      %v4625 = vpop.f32.mrf.mxu0
      %4626 = vmatprep.mubr.f32.mxu0 0.0
      %4627 = vmatmul.mubr.f32.gmra.mxu0 %v4428
      %v4628 = vpop.f32.mrf.mxu0
      %v4629 = vadd.f32 0.0, %v4628
      %v4630 = vpop.f32.mrf.mxu0
      %4631 = vmatprep.mubr.f32.mxu0 0.0
      %4632 = vmatmul.mubr.f32.gmra.mxu0 %v4431
      %v4633 = vpop.f32.mrf.mxu0
      %v4634 = vadd.f32 0.0, %v4633
      %v4635 = vpop.f32.mrf.mxu0
      %4636 = vmatprep.mubr.f32.mxu0 0.0
      %4637 = vmatmul.mubr.f32.gmra.mxu0 %v4434
      %v4638 = vpop.f32.mrf.mxu0
      %v4639 = vadd.f32 0.0, %v4638
      %v4640 = vpop.f32.mrf.mxu0
      %4641 = vmatprep.mubr.f32.mxu0 0.0
      %4642 = vmatmul.mubr.f32.gmra.mxu0 %v4437
      %v4643 = vpop.f32.mrf.mxu0
      %v4644 = vadd.f32 0.0, %v4643
      %v4645 = vpop.f32.mrf.mxu0
      %4646 = vmatprep.mubr.f32.mxu0 0.0
      %4647 = vmatmul.mubr.f32.gmra.mxu0 %v4440
      %v4648 = vpop.f32.mrf.mxu0
      %v4649 = vadd.f32 0.0, %v4648
      %v4650 = vpop.f32.mrf.mxu0
      %4651 = vmatprep.mubr.f32.mxu0 0.0
      %4652 = vmatmul.mubr.f32.gmra.mxu0 %v4443
      %v4653 = vpop.f32.mrf.mxu0
      %v4654 = vadd.f32 0.0, %v4653
      %v4655 = vpop.f32.mrf.mxu0
      %4656 = vmatprep.mubr.f32.mxu0 0.0
      %4657 = vmatmul.mubr.f32.gmra.mxu0 %v4446
      %v4658 = vpop.f32.mrf.mxu0
      %v4659 = vadd.f32 0.0, %v4658
      %v4660 = vpop.f32.mrf.mxu0
      %4661 = vmatprep.mubr.f32.mxu0 0.0
      %4662 = vmatmul.mubr.f32.gmra.mxu0 %v4449
      %v4663 = vpop.f32.mrf.mxu0
      %v4664 = vadd.f32 0.0, %v4663
      %v4665 = vpop.f32.mrf.mxu0
      %4666 = vmatprep.mubr.f32.mxu0 0.0
      %4667 = vmatmul.mubr.f32.gmra.mxu0 %v4452
      %v4668 = vpop.f32.mrf.mxu0
      %v4669 = vadd.f32 0.0, %v4668
      %v4670 = vpop.f32.mrf.mxu0
      %4671 = vmatprep.mubr.f32.mxu0 0.0
      %4672 = vmatmul.mubr.f32.gmra.mxu0 %v4455
      %v4673 = vpop.f32.mrf.mxu0
      %v4674 = vadd.f32 0.0, %v4673
      %v4675 = vpop.f32.mrf.mxu0
      %4676 = vmatprep.mubr.f32.mxu0 0.0
      %4677 = vmatmul.mubr.f32.gmra.mxu0 %v4458
      %v4678 = vpop.f32.mrf.mxu0
      %v4679 = vadd.f32 0.0, %v4678
      %v4680 = vpop.f32.mrf.mxu0
      %4681 = vmatprep.mubr.f32.mxu0 0.0
      %4682 = vmatmul.mubr.f32.gmra.mxu0 %v4461
      %v4683 = vpop.f32.mrf.mxu0
      %v4684 = vadd.f32 0.0, %v4683
      %v4685 = vpop.f32.mrf.mxu0
      %4686 = vmatprep.mubr.f32.mxu0 0.0
      %4687 = vmatmul.mubr.f32.gmra.mxu0 %v4464
      %v4688 = vpop.f32.mrf.mxu0
      %v4689 = vadd.f32 0.0, %v4688
      %v4690 = vpop.f32.mrf.mxu0
      %4691 = vmatprep.mubr.f32.mxu0 0.0
      %4692 = vmatmul.mubr.f32.gmra.mxu0 %v4467
      %v4693 = vpop.f32.mrf.mxu0
      %v4694 = vadd.f32 0.0, %v4693
      %v4695 = vpop.f32.mrf.mxu0
      %4696 = vdwg.mxu0
      %v4697 = vadd.f32 %v4303, %v4539
      %v4698 = vadd.f32 %v4304, %v4544
      %v4699 = vadd.f32 %v4305, %v4549
      %v4700 = vadd.f32 %v4306, %v4554
      %v4701 = vadd.f32 %v4307, %v4559
      %v4702 = vadd.f32 %v4308, %v4564
      %v4703 = vadd.f32 %v4309, %v4569
      %v4704 = vadd.f32 %v4310, %v4574
      %v4705 = vadd.f32 %v4311, %v4579
      %v4706 = vadd.f32 %v4312, %v4584
      %v4707 = vadd.f32 %v4313, %v4589
      %v4708 = vadd.f32 %v4314, %v4594
      %v4709 = vadd.f32 %v4315, %v4599
      %v4710 = vadd.f32 %v4316, %v4604
      %v4711 = vadd.f32 %v4317, %v4609
      %v4712 = vadd.f32 %v4318, %v4614
      %v4713 = vadd.f32 %v4319, %v4619
      %v4714 = vadd.f32 %v4320, %v4624
      %v4715 = vadd.f32 %v4321, %v4629
      %v4716 = vadd.f32 %v4322, %v4634
      %v4717 = vadd.f32 %v4323, %v4639
      %v4718 = vadd.f32 %v4324, %v4644
      %v4719 = vadd.f32 %v4325, %v4649
      %v4720 = vadd.f32 %v4326, %v4654
      %v4721 = vadd.f32 %v4327, %v4659
      %v4722 = vadd.f32 %v4328, %v4664
      %v4723 = vadd.f32 %v4329, %v4669
      %v4724 = vadd.f32 %v4330, %v4674
      %v4725 = vadd.f32 %v4331, %v4679
      %v4726 = vadd.f32 %v4332, %v4684
      %v4727 = vadd.f32 %v4333, %v4689
      %v4728 = vadd.f32 %v4334, %v4694
      %s4729 = scalar_lea.vmem %s3, 16
      %v4730 = vld [vmem:[%s4729] sm:$0xf]
      %v4732 = vsel %vm257, %v4367, 0
      %v4735 = vsel %vm257, %v4368, 0
      %v4738 = vsel %vm602, %v4730, 0
      %4740 = vmatprep.subr.mxu0 0.0
      %4741 = vmatpush1.msra.mxu0 0.0
      %4742 = vmatprep.subr.mxu0 0.0
      %4743 = vmatpush1.msra.mxu0 0.0
      %4744 = vmatprep.subr.mxu0 0.0
      %4745 = vmatpush1.msra.mxu0 0.0
      %4746 = vmatprep.subr.mxu0 0.0
      %4747 = vmatpush1.msra.mxu0 0.0
      %4748 = vmatprep.subr.mxu0 0.0
      %4749 = vmatpush1.msra.mxu0 0.0
      %4750 = vmatprep.subr.mxu0 0.0
      %4751 = vmatpush1.msra.mxu0 0.0
      %4752 = vmatprep.subr.mxu0 0.0
      %4753 = vmatpush1.msra.mxu0 0.0
      %4754 = vmatprep.subr.mxu0 0.0
      %4755 = vmatpush1.msra.mxu0 0.0
      %4756 = vmatprep.subr.mxu0 0.0
      %4757 = vmatpush1.msra.mxu0 0.0
      %4758 = vmatprep.subr.mxu0 0.0
      %4759 = vmatpush1.msra.mxu0 0.0
      %4760 = vmatprep.subr.mxu0 0.0
      %4761 = vmatpush1.msra.mxu0 0.0
      %4762 = vmatprep.subr.mxu0 0.0
      %4763 = vmatpush1.msra.mxu0 0.0
      %4764 = vmatprep.subr.mxu0 0.0
      %4765 = vmatpush1.msra.mxu0 0.0
      %4766 = vmatprep.subr.mxu0 0.0
      %4767 = vmatpush1.msra.mxu0 0.0
      %4768 = vmatprep.subr.mxu0 0.0
      %4769 = vmatpush1.msra.mxu0 0.0
      %4770 = vmatprep.subr.mxu0 0.0
      %4771 = vmatpush1.msra.mxu0 %v4738
      %4772 = vmatprep.subr.mxu0 0.0
      %4773 = vmatpush2.msra.mxu0 0.0
      %4774 = vmatprep.subr.mxu0 0.0
      %4775 = vmatpush2.msra.mxu0 0.0
      %4776 = vmatprep.subr.mxu0 0.0
      %4777 = vmatpush2.msra.mxu0 0.0
      %4778 = vmatprep.subr.mxu0 0.0
      %4779 = vmatpush2.msra.mxu0 0.0
      %4780 = vmatprep.subr.mxu0 0.0
      %4781 = vmatpush2.msra.mxu0 0.0
      %4782 = vmatprep.subr.mxu0 0.0
      %4783 = vmatpush2.msra.mxu0 0.0
      %4784 = vmatprep.subr.mxu0 0.0
      %4785 = vmatpush2.msra.mxu0 0.0
      %4786 = vmatprep.subr.mxu0 0.0
      %4787 = vmatpush2.msra.mxu0 0.0
      %4788 = vmatprep.subr.mxu0 0.0
      %4789 = vmatpush2.msra.mxu0 0.0
      %4790 = vmatprep.subr.mxu0 0.0
      %4791 = vmatpush2.msra.mxu0 0.0
      %4792 = vmatprep.subr.mxu0 0.0
      %4793 = vmatpush2.msra.mxu0 0.0
      %4794 = vmatprep.subr.mxu0 0.0
      %4795 = vmatpush2.msra.mxu0 0.0
      %4796 = vmatprep.subr.mxu0 0.0
      %4797 = vmatpush2.msra.mxu0 0.0
      %4798 = vmatprep.subr.mxu0 0.0
      %4799 = vmatpush2.msra.mxu0 0.0
      %4800 = vmatprep.subr.mxu0 0.0
      %4801 = vmatpush2.msra.mxu0 0.0
      %4802 = vmatprep.subr.mxu0 0.0
      %4803 = vmatpush2.msra.mxu0 0.0
      %4804 = vmatprep.mubr.f32.mxu0 0.0
      %4805 = vmatmul.mubr.f32.gmra.mxu0 %v4380
      %v4806 = vpop.f32.mrf.mxu0
      %v4807 = vadd.f32 0.0, %v4806
      %v4808 = vpop.f32.mrf.mxu0
      %4809 = vmatprep.mubr.f32.mxu0 0.0
      %4810 = vmatmul.mubr.f32.gmra.mxu0 %v4383
      %v4811 = vpop.f32.mrf.mxu0
      %v4812 = vadd.f32 0.0, %v4811
      %v4813 = vpop.f32.mrf.mxu0
      %4814 = vmatprep.mubr.f32.mxu0 0.0
      %4815 = vmatmul.mubr.f32.gmra.mxu0 %v4386
      %v4816 = vpop.f32.mrf.mxu0
      %v4817 = vadd.f32 0.0, %v4816
      %v4818 = vpop.f32.mrf.mxu0
      %4819 = vmatprep.mubr.f32.mxu0 0.0
      %4820 = vmatmul.mubr.f32.gmra.mxu0 %v4389
      %v4821 = vpop.f32.mrf.mxu0
      %v4822 = vadd.f32 0.0, %v4821
      %v4823 = vpop.f32.mrf.mxu0
      %4824 = vmatprep.mubr.f32.mxu0 0.0
      %4825 = vmatmul.mubr.f32.gmra.mxu0 %v4392
      %v4826 = vpop.f32.mrf.mxu0
      %v4827 = vadd.f32 0.0, %v4826
      %v4828 = vpop.f32.mrf.mxu0
      %4829 = vmatprep.mubr.f32.mxu0 0.0
      %4830 = vmatmul.mubr.f32.gmra.mxu0 %v4395
      %v4831 = vpop.f32.mrf.mxu0
      %v4832 = vadd.f32 0.0, %v4831
      %v4833 = vpop.f32.mrf.mxu0
      %4834 = vmatprep.mubr.f32.mxu0 0.0
      %4835 = vmatmul.mubr.f32.gmra.mxu0 %v4398
      %v4836 = vpop.f32.mrf.mxu0
      %v4837 = vadd.f32 0.0, %v4836
      %v4838 = vpop.f32.mrf.mxu0
      %4839 = vmatprep.mubr.f32.mxu0 0.0
      %4840 = vmatmul.mubr.f32.gmra.mxu0 %v4401
      %v4841 = vpop.f32.mrf.mxu0
      %v4842 = vadd.f32 0.0, %v4841
      %v4843 = vpop.f32.mrf.mxu0
      %4844 = vmatprep.mubr.f32.mxu0 0.0
      %4845 = vmatmul.mubr.f32.gmra.mxu0 %v4404
      %v4846 = vpop.f32.mrf.mxu0
      %v4847 = vadd.f32 0.0, %v4846
      %v4848 = vpop.f32.mrf.mxu0
      %4849 = vmatprep.mubr.f32.mxu0 0.0
      %4850 = vmatmul.mubr.f32.gmra.mxu0 %v4407
      %v4851 = vpop.f32.mrf.mxu0
      %v4852 = vadd.f32 0.0, %v4851
      %v4853 = vpop.f32.mrf.mxu0
      %4854 = vmatprep.mubr.f32.mxu0 0.0
      %4855 = vmatmul.mubr.f32.gmra.mxu0 %v4410
      %v4856 = vpop.f32.mrf.mxu0
      %v4857 = vadd.f32 0.0, %v4856
      %v4858 = vpop.f32.mrf.mxu0
      %4859 = vmatprep.mubr.f32.mxu0 0.0
      %4860 = vmatmul.mubr.f32.gmra.mxu0 %v4413
      %v4861 = vpop.f32.mrf.mxu0
      %v4862 = vadd.f32 0.0, %v4861
      %v4863 = vpop.f32.mrf.mxu0
      %4864 = vmatprep.mubr.f32.mxu0 0.0
      %4865 = vmatmul.mubr.f32.gmra.mxu0 %v4416
      %v4866 = vpop.f32.mrf.mxu0
      %v4867 = vadd.f32 0.0, %v4866
      %v4868 = vpop.f32.mrf.mxu0
      %4869 = vmatprep.mubr.f32.mxu0 0.0
      %4870 = vmatmul.mubr.f32.gmra.mxu0 %v4419
      %v4871 = vpop.f32.mrf.mxu0
      %v4872 = vadd.f32 0.0, %v4871
      %v4873 = vpop.f32.mrf.mxu0
      %4874 = vmatprep.mubr.f32.mxu0 0.0
      %4875 = vmatmul.mubr.f32.gmra.mxu0 %v4422
      %v4876 = vpop.f32.mrf.mxu0
      %v4877 = vadd.f32 0.0, %v4876
      %v4878 = vpop.f32.mrf.mxu0
      %4879 = vmatprep.mubr.f32.mxu0 0.0
      %4880 = vmatmul.mubr.f32.gmra.mxu0 %v4425
      %v4881 = vpop.f32.mrf.mxu0
      %v4882 = vadd.f32 0.0, %v4881
      %v4883 = vpop.f32.mrf.mxu0
      %4884 = vmatprep.mubr.f32.mxu0 0.0
      %4885 = vmatmul.mubr.f32.gmra.mxu0 %v4428
      %v4886 = vpop.f32.mrf.mxu0
      %v4887 = vadd.f32 0.0, %v4886
      %v4888 = vpop.f32.mrf.mxu0
      %4889 = vmatprep.mubr.f32.mxu0 0.0
      %4890 = vmatmul.mubr.f32.gmra.mxu0 %v4431
      %v4891 = vpop.f32.mrf.mxu0
      %v4892 = vadd.f32 0.0, %v4891
      %v4893 = vpop.f32.mrf.mxu0
      %4894 = vmatprep.mubr.f32.mxu0 0.0
      %4895 = vmatmul.mubr.f32.gmra.mxu0 %v4434
      %v4896 = vpop.f32.mrf.mxu0
      %v4897 = vadd.f32 0.0, %v4896
      %v4898 = vpop.f32.mrf.mxu0
      %4899 = vmatprep.mubr.f32.mxu0 0.0
      %4900 = vmatmul.mubr.f32.gmra.mxu0 %v4437
      %v4901 = vpop.f32.mrf.mxu0
      %v4902 = vadd.f32 0.0, %v4901
      %v4903 = vpop.f32.mrf.mxu0
      %4904 = vmatprep.mubr.f32.mxu0 0.0
      %4905 = vmatmul.mubr.f32.gmra.mxu0 %v4440
      %v4906 = vpop.f32.mrf.mxu0
      %v4907 = vadd.f32 0.0, %v4906
      %v4908 = vpop.f32.mrf.mxu0
      %4909 = vmatprep.mubr.f32.mxu0 0.0
      %4910 = vmatmul.mubr.f32.gmra.mxu0 %v4443
      %v4911 = vpop.f32.mrf.mxu0
      %v4912 = vadd.f32 0.0, %v4911
      %v4913 = vpop.f32.mrf.mxu0
      %4914 = vmatprep.mubr.f32.mxu0 0.0
      %4915 = vmatmul.mubr.f32.gmra.mxu0 %v4446
      %v4916 = vpop.f32.mrf.mxu0
      %v4917 = vadd.f32 0.0, %v4916
      %v4918 = vpop.f32.mrf.mxu0
      %4919 = vmatprep.mubr.f32.mxu0 0.0
      %4920 = vmatmul.mubr.f32.gmra.mxu0 %v4449
      %v4921 = vpop.f32.mrf.mxu0
      %v4922 = vadd.f32 0.0, %v4921
      %v4923 = vpop.f32.mrf.mxu0
      %4924 = vmatprep.mubr.f32.mxu0 0.0
      %4925 = vmatmul.mubr.f32.gmra.mxu0 %v4452
      %v4926 = vpop.f32.mrf.mxu0
      %v4927 = vadd.f32 0.0, %v4926
      %v4928 = vpop.f32.mrf.mxu0
      %4929 = vmatprep.mubr.f32.mxu0 0.0
      %4930 = vmatmul.mubr.f32.gmra.mxu0 %v4455
      %v4931 = vpop.f32.mrf.mxu0
      %v4932 = vadd.f32 0.0, %v4931
      %v4933 = vpop.f32.mrf.mxu0
      %4934 = vmatprep.mubr.f32.mxu0 0.0
      %4935 = vmatmul.mubr.f32.gmra.mxu0 %v4458
      %v4936 = vpop.f32.mrf.mxu0
      %v4937 = vadd.f32 0.0, %v4936
      %v4938 = vpop.f32.mrf.mxu0
      %4939 = vmatprep.mubr.f32.mxu0 0.0
      %4940 = vmatmul.mubr.f32.gmra.mxu0 %v4461
      %v4941 = vpop.f32.mrf.mxu0
      %v4942 = vadd.f32 0.0, %v4941
      %v4943 = vpop.f32.mrf.mxu0
      %4944 = vmatprep.mubr.f32.mxu0 0.0
      %4945 = vmatmul.mubr.f32.gmra.mxu0 %v4464
      %v4946 = vpop.f32.mrf.mxu0
      %v4947 = vadd.f32 0.0, %v4946
      %v4948 = vpop.f32.mrf.mxu0
      %4949 = vmatprep.mubr.f32.mxu0 0.0
      %4950 = vmatmul.mubr.f32.gmra.mxu0 %v4467
      %v4951 = vpop.f32.mrf.mxu0
      %v4952 = vadd.f32 0.0, %v4951
      %v4953 = vpop.f32.mrf.mxu0
      %4954 = vmatprep.mubr.f32.mxu0 0.0
      %4955 = vmatmul.mubr.f32.gmra.mxu0 %v4732
      %v4956 = vpop.f32.mrf.mxu0
      %v4957 = vadd.f32 0.0, %v4956
      %v4958 = vpop.f32.mrf.mxu0
      %4959 = vmatprep.mubr.f32.mxu0 0.0
      %4960 = vmatmul.mubr.f32.gmra.mxu0 %v4735
      %v4961 = vpop.f32.mrf.mxu0
      %v4962 = vadd.f32 0.0, %v4961
      %v4963 = vpop.f32.mrf.mxu0
      %4964 = vdwg.mxu0
      %v4965 = vadd.f32 %v4697, %v4807
      %v4966 = vadd.f32 %v4698, %v4812
      %v4967 = vadd.f32 %v4699, %v4817
      %v4968 = vadd.f32 %v4700, %v4822
      %v4969 = vadd.f32 %v4701, %v4827
      %v4970 = vadd.f32 %v4702, %v4832
      %v4971 = vadd.f32 %v4703, %v4837
      %v4972 = vadd.f32 %v4704, %v4842
      %v4973 = vadd.f32 %v4705, %v4847
      %v4974 = vadd.f32 %v4706, %v4852
      %v4975 = vadd.f32 %v4707, %v4857
      %v4976 = vadd.f32 %v4708, %v4862
      %v4977 = vadd.f32 %v4709, %v4867
      %v4978 = vadd.f32 %v4710, %v4872
      %v4979 = vadd.f32 %v4711, %v4877
      %v4980 = vadd.f32 %v4712, %v4882
      %v4981 = vadd.f32 %v4713, %v4887
      %v4982 = vadd.f32 %v4714, %v4892
      %v4983 = vadd.f32 %v4715, %v4897
      %v4984 = vadd.f32 %v4716, %v4902
      %v4985 = vadd.f32 %v4717, %v4907
      %v4986 = vadd.f32 %v4718, %v4912
      %v4987 = vadd.f32 %v4719, %v4917
      %v4988 = vadd.f32 %v4720, %v4922
      %v4989 = vadd.f32 %v4721, %v4927
      %v4990 = vadd.f32 %v4722, %v4932
      %v4991 = vadd.f32 %v4723, %v4937
      %v4992 = vadd.f32 %v4724, %v4942
      %v4993 = vadd.f32 %v4725, %v4947
      %v4994 = vadd.f32 %v4726, %v4952
      %v4995 = vadd.f32 %v4727, %v4957
      %v4996 = vadd.f32 %v4728, %v4962
      %s4997 = scalar_lea.vmem %s3, 28
      %v4998 = vld [vmem:[%s4997] sm:$0xf]
      %v5000 = vsel %vm257, %v4369, 0
      %v5003 = vsel %vm257, %v4370, 0
      %v5006 = vsel %vm602, %v4998, 0
      %5008 = vmatprep.subr.mxu0 0.0
      %5009 = vmatpush1.msra.mxu0 0.0
      %5010 = vmatprep.subr.mxu0 0.0
      %5011 = vmatpush1.msra.mxu0 0.0
      %5012 = vmatprep.subr.mxu0 0.0
      %5013 = vmatpush1.msra.mxu0 0.0
      %5014 = vmatprep.subr.mxu0 0.0
      %5015 = vmatpush1.msra.mxu0 0.0
      %5016 = vmatprep.subr.mxu0 0.0
      %5017 = vmatpush1.msra.mxu0 0.0
      %5018 = vmatprep.subr.mxu0 0.0
      %5019 = vmatpush1.msra.mxu0 0.0
      %5020 = vmatprep.subr.mxu0 0.0
      %5021 = vmatpush1.msra.mxu0 0.0
      %5022 = vmatprep.subr.mxu0 0.0
      %5023 = vmatpush1.msra.mxu0 0.0
      %5024 = vmatprep.subr.mxu0 0.0
      %5025 = vmatpush1.msra.mxu0 0.0
      %5026 = vmatprep.subr.mxu0 0.0
      %5027 = vmatpush1.msra.mxu0 0.0
      %5028 = vmatprep.subr.mxu0 0.0
      %5029 = vmatpush1.msra.mxu0 0.0
      %5030 = vmatprep.subr.mxu0 0.0
      %5031 = vmatpush1.msra.mxu0 0.0
      %5032 = vmatprep.subr.mxu0 0.0
      %5033 = vmatpush1.msra.mxu0 0.0
      %5034 = vmatprep.subr.mxu0 0.0
      %5035 = vmatpush1.msra.mxu0 0.0
      %5036 = vmatprep.subr.mxu0 0.0
      %5037 = vmatpush1.msra.mxu0 0.0
      %5038 = vmatprep.subr.mxu0 0.0
      %5039 = vmatpush1.msra.mxu0 %v5006
      %5040 = vmatprep.subr.mxu0 0.0
      %5041 = vmatpush2.msra.mxu0 0.0
      %5042 = vmatprep.subr.mxu0 0.0
      %5043 = vmatpush2.msra.mxu0 0.0
      %5044 = vmatprep.subr.mxu0 0.0
      %5045 = vmatpush2.msra.mxu0 0.0
      %5046 = vmatprep.subr.mxu0 0.0
      %5047 = vmatpush2.msra.mxu0 0.0
      %5048 = vmatprep.subr.mxu0 0.0
      %5049 = vmatpush2.msra.mxu0 0.0
      %5050 = vmatprep.subr.mxu0 0.0
      %5051 = vmatpush2.msra.mxu0 0.0
      %5052 = vmatprep.subr.mxu0 0.0
      %5053 = vmatpush2.msra.mxu0 0.0
      %5054 = vmatprep.subr.mxu0 0.0
      %5055 = vmatpush2.msra.mxu0 0.0
      %5056 = vmatprep.subr.mxu0 0.0
      %5057 = vmatpush2.msra.mxu0 0.0
      %5058 = vmatprep.subr.mxu0 0.0
      %5059 = vmatpush2.msra.mxu0 0.0
      %5060 = vmatprep.subr.mxu0 0.0
      %5061 = vmatpush2.msra.mxu0 0.0
      %5062 = vmatprep.subr.mxu0 0.0
      %5063 = vmatpush2.msra.mxu0 0.0
      %5064 = vmatprep.subr.mxu0 0.0
      %5065 = vmatpush2.msra.mxu0 0.0
      %5066 = vmatprep.subr.mxu0 0.0
      %5067 = vmatpush2.msra.mxu0 0.0
      %5068 = vmatprep.subr.mxu0 0.0
      %5069 = vmatpush2.msra.mxu0 0.0
      %5070 = vmatprep.subr.mxu0 0.0
      %5071 = vmatpush2.msra.mxu0 0.0
      %5072 = vmatprep.mubr.f32.mxu0 0.0
      %5073 = vmatmul.mubr.f32.gmra.mxu0 %v4386
      %v5074 = vpop.f32.mrf.mxu0
      %v5075 = vadd.f32 0.0, %v5074
      %v5076 = vpop.f32.mrf.mxu0
      %5077 = vmatprep.mubr.f32.mxu0 0.0
      %5078 = vmatmul.mubr.f32.gmra.mxu0 %v4389
      %v5079 = vpop.f32.mrf.mxu0
      %v5080 = vadd.f32 0.0, %v5079
      %v5081 = vpop.f32.mrf.mxu0
      %5082 = vmatprep.mubr.f32.mxu0 0.0
      %5083 = vmatmul.mubr.f32.gmra.mxu0 %v4392
      %v5084 = vpop.f32.mrf.mxu0
      %v5085 = vadd.f32 0.0, %v5084
      %v5086 = vpop.f32.mrf.mxu0
      %5087 = vmatprep.mubr.f32.mxu0 0.0
      %5088 = vmatmul.mubr.f32.gmra.mxu0 %v4395
      %v5089 = vpop.f32.mrf.mxu0
      %v5090 = vadd.f32 0.0, %v5089
      %v5091 = vpop.f32.mrf.mxu0
      %5092 = vmatprep.mubr.f32.mxu0 0.0
      %5093 = vmatmul.mubr.f32.gmra.mxu0 %v4398
      %v5094 = vpop.f32.mrf.mxu0
      %v5095 = vadd.f32 0.0, %v5094
      %v5096 = vpop.f32.mrf.mxu0
      %5097 = vmatprep.mubr.f32.mxu0 0.0
      %5098 = vmatmul.mubr.f32.gmra.mxu0 %v4401
      %v5099 = vpop.f32.mrf.mxu0
      %v5100 = vadd.f32 0.0, %v5099
      %v5101 = vpop.f32.mrf.mxu0
      %5102 = vmatprep.mubr.f32.mxu0 0.0
      %5103 = vmatmul.mubr.f32.gmra.mxu0 %v4404
      %v5104 = vpop.f32.mrf.mxu0
      %v5105 = vadd.f32 0.0, %v5104
      %v5106 = vpop.f32.mrf.mxu0
      %5107 = vmatprep.mubr.f32.mxu0 0.0
      %5108 = vmatmul.mubr.f32.gmra.mxu0 %v4407
      %v5109 = vpop.f32.mrf.mxu0
      %v5110 = vadd.f32 0.0, %v5109
      %v5111 = vpop.f32.mrf.mxu0
      %5112 = vmatprep.mubr.f32.mxu0 0.0
      %5113 = vmatmul.mubr.f32.gmra.mxu0 %v4410
      %v5114 = vpop.f32.mrf.mxu0
      %v5115 = vadd.f32 0.0, %v5114
      %v5116 = vpop.f32.mrf.mxu0
      %5117 = vmatprep.mubr.f32.mxu0 0.0
      %5118 = vmatmul.mubr.f32.gmra.mxu0 %v4413
      %v5119 = vpop.f32.mrf.mxu0
      %v5120 = vadd.f32 0.0, %v5119
      %v5121 = vpop.f32.mrf.mxu0
      %5122 = vmatprep.mubr.f32.mxu0 0.0
      %5123 = vmatmul.mubr.f32.gmra.mxu0 %v4416
      %v5124 = vpop.f32.mrf.mxu0
      %v5125 = vadd.f32 0.0, %v5124
      %v5126 = vpop.f32.mrf.mxu0
      %5127 = vmatprep.mubr.f32.mxu0 0.0
      %5128 = vmatmul.mubr.f32.gmra.mxu0 %v4419
      %v5129 = vpop.f32.mrf.mxu0
      %v5130 = vadd.f32 0.0, %v5129
      %v5131 = vpop.f32.mrf.mxu0
      %5132 = vmatprep.mubr.f32.mxu0 0.0
      %5133 = vmatmul.mubr.f32.gmra.mxu0 %v4422
      %v5134 = vpop.f32.mrf.mxu0
      %v5135 = vadd.f32 0.0, %v5134
      %v5136 = vpop.f32.mrf.mxu0
      %5137 = vmatprep.mubr.f32.mxu0 0.0
      %5138 = vmatmul.mubr.f32.gmra.mxu0 %v4425
      %v5139 = vpop.f32.mrf.mxu0
      %v5140 = vadd.f32 0.0, %v5139
      %v5141 = vpop.f32.mrf.mxu0
      %5142 = vmatprep.mubr.f32.mxu0 0.0
      %5143 = vmatmul.mubr.f32.gmra.mxu0 %v4428
      %v5144 = vpop.f32.mrf.mxu0
      %v5145 = vadd.f32 0.0, %v5144
      %v5146 = vpop.f32.mrf.mxu0
      %5147 = vmatprep.mubr.f32.mxu0 0.0
      %5148 = vmatmul.mubr.f32.gmra.mxu0 %v4431
      %v5149 = vpop.f32.mrf.mxu0
      %v5150 = vadd.f32 0.0, %v5149
      %v5151 = vpop.f32.mrf.mxu0
      %5152 = vmatprep.mubr.f32.mxu0 0.0
      %5153 = vmatmul.mubr.f32.gmra.mxu0 %v4434
      %v5154 = vpop.f32.mrf.mxu0
      %v5155 = vadd.f32 0.0, %v5154
      %v5156 = vpop.f32.mrf.mxu0
      %5157 = vmatprep.mubr.f32.mxu0 0.0
      %5158 = vmatmul.mubr.f32.gmra.mxu0 %v4437
      %v5159 = vpop.f32.mrf.mxu0
      %v5160 = vadd.f32 0.0, %v5159
      %v5161 = vpop.f32.mrf.mxu0
      %5162 = vmatprep.mubr.f32.mxu0 0.0
      %5163 = vmatmul.mubr.f32.gmra.mxu0 %v4440
      %v5164 = vpop.f32.mrf.mxu0
      %v5165 = vadd.f32 0.0, %v5164
      %v5166 = vpop.f32.mrf.mxu0
      %5167 = vmatprep.mubr.f32.mxu0 0.0
      %5168 = vmatmul.mubr.f32.gmra.mxu0 %v4443
      %v5169 = vpop.f32.mrf.mxu0
      %v5170 = vadd.f32 0.0, %v5169
      %v5171 = vpop.f32.mrf.mxu0
      %5172 = vmatprep.mubr.f32.mxu0 0.0
      %5173 = vmatmul.mubr.f32.gmra.mxu0 %v4446
      %v5174 = vpop.f32.mrf.mxu0
      %v5175 = vadd.f32 0.0, %v5174
      %v5176 = vpop.f32.mrf.mxu0
      %5177 = vmatprep.mubr.f32.mxu0 0.0
      %5178 = vmatmul.mubr.f32.gmra.mxu0 %v4449
      %v5179 = vpop.f32.mrf.mxu0
      %v5180 = vadd.f32 0.0, %v5179
      %v5181 = vpop.f32.mrf.mxu0
      %5182 = vmatprep.mubr.f32.mxu0 0.0
      %5183 = vmatmul.mubr.f32.gmra.mxu0 %v4452
      %v5184 = vpop.f32.mrf.mxu0
      %v5185 = vadd.f32 0.0, %v5184
      %v5186 = vpop.f32.mrf.mxu0
      %5187 = vmatprep.mubr.f32.mxu0 0.0
      %5188 = vmatmul.mubr.f32.gmra.mxu0 %v4455
      %v5189 = vpop.f32.mrf.mxu0
      %v5190 = vadd.f32 0.0, %v5189
      %v5191 = vpop.f32.mrf.mxu0
      %5192 = vmatprep.mubr.f32.mxu0 0.0
      %5193 = vmatmul.mubr.f32.gmra.mxu0 %v4458
      %v5194 = vpop.f32.mrf.mxu0
      %v5195 = vadd.f32 0.0, %v5194
      %v5196 = vpop.f32.mrf.mxu0
      %5197 = vmatprep.mubr.f32.mxu0 0.0
      %5198 = vmatmul.mubr.f32.gmra.mxu0 %v4461
      %v5199 = vpop.f32.mrf.mxu0
      %v5200 = vadd.f32 0.0, %v5199
      %v5201 = vpop.f32.mrf.mxu0
      %5202 = vmatprep.mubr.f32.mxu0 0.0
      %5203 = vmatmul.mubr.f32.gmra.mxu0 %v4464
      %v5204 = vpop.f32.mrf.mxu0
      %v5205 = vadd.f32 0.0, %v5204
      %v5206 = vpop.f32.mrf.mxu0
      %5207 = vmatprep.mubr.f32.mxu0 0.0
      %5208 = vmatmul.mubr.f32.gmra.mxu0 %v4467
      %v5209 = vpop.f32.mrf.mxu0
      %v5210 = vadd.f32 0.0, %v5209
      %v5211 = vpop.f32.mrf.mxu0
      %5212 = vmatprep.mubr.f32.mxu0 0.0
      %5213 = vmatmul.mubr.f32.gmra.mxu0 %v4732
      %v5214 = vpop.f32.mrf.mxu0
      %v5215 = vadd.f32 0.0, %v5214
      %v5216 = vpop.f32.mrf.mxu0
      %5217 = vmatprep.mubr.f32.mxu0 0.0
      %5218 = vmatmul.mubr.f32.gmra.mxu0 %v4735
      %v5219 = vpop.f32.mrf.mxu0
      %v5220 = vadd.f32 0.0, %v5219
      %v5221 = vpop.f32.mrf.mxu0
      %5222 = vmatprep.mubr.f32.mxu0 0.0
      %5223 = vmatmul.mubr.f32.gmra.mxu0 %v5000
      %v5224 = vpop.f32.mrf.mxu0
      %v5225 = vadd.f32 0.0, %v5224
      %v5226 = vpop.f32.mrf.mxu0
      %5227 = vmatprep.mubr.f32.mxu0 0.0
      %5228 = vmatmul.mubr.f32.gmra.mxu0 %v5003
      %v5229 = vpop.f32.mrf.mxu0
      %v5230 = vadd.f32 0.0, %v5229
      %v5231 = vpop.f32.mrf.mxu0
      %5232 = vdwg.mxu0
      %v5233 = vadd.f32 %v4965, %v5075
      %v5234 = vadd.f32 %v4966, %v5080
      %v5235 = vadd.f32 %v4967, %v5085
      %v5236 = vadd.f32 %v4968, %v5090
      %v5237 = vadd.f32 %v4969, %v5095
      %v5238 = vadd.f32 %v4970, %v5100
      %v5239 = vadd.f32 %v4971, %v5105
      %v5240 = vadd.f32 %v4972, %v5110
      %v5241 = vadd.f32 %v4973, %v5115
      %v5242 = vadd.f32 %v4974, %v5120
      %v5243 = vadd.f32 %v4975, %v5125
      %v5244 = vadd.f32 %v4976, %v5130
      %v5245 = vadd.f32 %v4977, %v5135
      %v5246 = vadd.f32 %v4978, %v5140
      %v5247 = vadd.f32 %v4979, %v5145
      %v5248 = vadd.f32 %v4980, %v5150
      %v5249 = vadd.f32 %v4981, %v5155
      %v5250 = vadd.f32 %v4982, %v5160
      %v5251 = vadd.f32 %v4983, %v5165
      %v5252 = vadd.f32 %v4984, %v5170
      %v5253 = vadd.f32 %v4985, %v5175
      %v5254 = vadd.f32 %v4986, %v5180
      %v5255 = vadd.f32 %v4987, %v5185
      %v5256 = vadd.f32 %v4988, %v5190
      %v5257 = vadd.f32 %v4989, %v5195
      %v5258 = vadd.f32 %v4990, %v5200
      %v5259 = vadd.f32 %v4991, %v5205
      %v5260 = vadd.f32 %v4992, %v5210
      %v5261 = vadd.f32 %v4993, %v5215
      %v5262 = vadd.f32 %v4994, %v5220
      %v5263 = vadd.f32 %v4995, %v5225
      %v5264 = vadd.f32 %v4996, %v5230
      %v5265 = vld [vmem:[%s2264] sm:$0xff]
      %v5266 = vld [vmem:[%s2264 + $0x8] sm:$0xff]
      %v5267 = vld [vmem:[%s2264 + $0x10] sm:$0xff]
      %v5268 = vld [vmem:[%s2264 + $0x18] sm:$0xff]
      %v5269 = vld [vmem:[%s2264 + $0x20] sm:$0xff]
      %v5270 = vld [vmem:[%s2264 + $0x28] sm:$0xff]
      %v5271 = vld [vmem:[%s2264 + $0x30] sm:$0xff]
      %v5272 = vld [vmem:[%s2264 + $0x38] sm:$0xff]
      %v5273 = vld [vmem:[%s2264 + $0x40] sm:$0xff]
      %v5274 = vld [vmem:[%s2264 + $0x48] sm:$0xff]
      %v5275 = vld [vmem:[%s2264 + $0x50] sm:$0xff]
      %v5276 = vld [vmem:[%s2264 + $0x58] sm:$0xff]
      %v5277 = vld [vmem:[%s2264 + $0x60] sm:$0xff]
      %v5278 = vld [vmem:[%s2264 + $0x68] sm:$0xff]
      %v5279 = vld [vmem:[%s2264 + $0x70] sm:$0xff]
      %v5280 = vld [vmem:[%s2264 + $0x78] sm:$0xff]
      %v5281 = vld [vmem:[%s2264 + $0x80] sm:$0xff]
      %v5282 = vld [vmem:[%s2264 + $0x88] sm:$0xff]
      %v5283 = vld [vmem:[%s2264 + $0x90] sm:$0xff]
      %v5284 = vld [vmem:[%s2264 + $0x98] sm:$0xff]
      %v5285 = vld [vmem:[%s2264 + $0xa0] sm:$0xff]
      %v5286 = vld [vmem:[%s2264 + $0xa8] sm:$0xff]
      %v5287 = vld [vmem:[%s2264 + $0xb0] sm:$0xff]
      %v5288 = vld [vmem:[%s2264 + $0xb8] sm:$0xff]
      %v5289 = vld [vmem:[%s2264 + $0xc0] sm:$0xff]
      %v5290 = vld [vmem:[%s2264 + $0xc8] sm:$0xff]
      %v5291 = vld [vmem:[%s2264 + $0xd0] sm:$0xff]
      %v5292 = vld [vmem:[%s2264 + $0xd8] sm:$0xff]
      %v5293 = vld [vmem:[%s2264 + $0xe0] sm:$0xff]
      %v5294 = vld [vmem:[%s2264 + $0xe8] sm:$0xff]
      %v5295 = vld [vmem:[%s2264 + $0xf0] sm:$0xff]
      %v5296 = vld [vmem:[%s2264 + $0xf8] sm:$0xff]
      %v5297 = vld [vmem:[%s2264 + $0x100] sm:$0xff]
      %v5298 = vld [vmem:[%s2264 + $0x108] sm:$0xff]
      %v5299 = vld [vmem:[%s2264 + $0x110] sm:$0xff]
      %v5300 = vld [vmem:[%s2264 + $0x118] sm:$0xff]
      %s5301 = scalar_lea.vmem %s3, 8
      %v5302 = vld [vmem:[%s5301] sm:$0xf]
      %v5304 = vsel %vm257, %v5265, 0
      %v5307 = vsel %vm257, %v5266, 0
      %v5310 = vsel %vm257, %v5267, 0
      %v5313 = vsel %vm257, %v5268, 0
      %v5316 = vsel %vm257, %v5269, 0
      %v5319 = vsel %vm257, %v5270, 0
      %v5322 = vsel %vm257, %v5271, 0
      %v5325 = vsel %vm257, %v5272, 0
      %v5328 = vsel %vm257, %v5273, 0
      %v5331 = vsel %vm257, %v5274, 0
      %v5334 = vsel %vm257, %v5275, 0
      %v5337 = vsel %vm257, %v5276, 0
      %v5340 = vsel %vm257, %v5277, 0
      %v5343 = vsel %vm257, %v5278, 0
      %v5346 = vsel %vm257, %v5279, 0
      %v5349 = vsel %vm257, %v5280, 0
      %v5352 = vsel %vm257, %v5281, 0
      %v5355 = vsel %vm257, %v5282, 0
      %v5358 = vsel %vm257, %v5283, 0
      %v5361 = vsel %vm257, %v5284, 0
      %v5364 = vsel %vm257, %v5285, 0
      %v5367 = vsel %vm257, %v5286, 0
      %v5370 = vsel %vm257, %v5287, 0
      %v5373 = vsel %vm257, %v5288, 0
      %v5376 = vsel %vm257, %v5289, 0
      %v5379 = vsel %vm257, %v5290, 0
      %v5382 = vsel %vm257, %v5291, 0
      %v5385 = vsel %vm257, %v5292, 0
      %v5388 = vsel %vm257, %v5293, 0
      %v5391 = vsel %vm257, %v5294, 0
      %v5394 = vsel %vm257, %v5295, 0
      %v5397 = vsel %vm257, %v5296, 0
      %v5400 = vsel %vm602, %v5302, 0
      %5402 = vmatprep.subr.mxu0 0.0
      %5403 = vmatpush1.msra.mxu0 0.0
      %5404 = vmatprep.subr.mxu0 0.0
      %5405 = vmatpush1.msra.mxu0 0.0
      %5406 = vmatprep.subr.mxu0 0.0
      %5407 = vmatpush1.msra.mxu0 0.0
      %5408 = vmatprep.subr.mxu0 0.0
      %5409 = vmatpush1.msra.mxu0 0.0
      %5410 = vmatprep.subr.mxu0 0.0
      %5411 = vmatpush1.msra.mxu0 0.0
      %5412 = vmatprep.subr.mxu0 0.0
      %5413 = vmatpush1.msra.mxu0 0.0
      %5414 = vmatprep.subr.mxu0 0.0
      %5415 = vmatpush1.msra.mxu0 0.0
      %5416 = vmatprep.subr.mxu0 0.0
      %5417 = vmatpush1.msra.mxu0 0.0
      %5418 = vmatprep.subr.mxu0 0.0
      %5419 = vmatpush1.msra.mxu0 0.0
      %5420 = vmatprep.subr.mxu0 0.0
      %5421 = vmatpush1.msra.mxu0 0.0
      %5422 = vmatprep.subr.mxu0 0.0
      %5423 = vmatpush1.msra.mxu0 0.0
      %5424 = vmatprep.subr.mxu0 0.0
      %5425 = vmatpush1.msra.mxu0 0.0
      %5426 = vmatprep.subr.mxu0 0.0
      %5427 = vmatpush1.msra.mxu0 0.0
      %5428 = vmatprep.subr.mxu0 0.0
      %5429 = vmatpush1.msra.mxu0 0.0
      %5430 = vmatprep.subr.mxu0 0.0
      %5431 = vmatpush1.msra.mxu0 0.0
      %5432 = vmatprep.subr.mxu0 0.0
      %5433 = vmatpush1.msra.mxu0 %v5400
      %5434 = vmatprep.subr.mxu0 0.0
      %5435 = vmatpush2.msra.mxu0 0.0
      %5436 = vmatprep.subr.mxu0 0.0
      %5437 = vmatpush2.msra.mxu0 0.0
      %5438 = vmatprep.subr.mxu0 0.0
      %5439 = vmatpush2.msra.mxu0 0.0
      %5440 = vmatprep.subr.mxu0 0.0
      %5441 = vmatpush2.msra.mxu0 0.0
      %5442 = vmatprep.subr.mxu0 0.0
      %5443 = vmatpush2.msra.mxu0 0.0
      %5444 = vmatprep.subr.mxu0 0.0
      %5445 = vmatpush2.msra.mxu0 0.0
      %5446 = vmatprep.subr.mxu0 0.0
      %5447 = vmatpush2.msra.mxu0 0.0
      %5448 = vmatprep.subr.mxu0 0.0
      %5449 = vmatpush2.msra.mxu0 0.0
      %5450 = vmatprep.subr.mxu0 0.0
      %5451 = vmatpush2.msra.mxu0 0.0
      %5452 = vmatprep.subr.mxu0 0.0
      %5453 = vmatpush2.msra.mxu0 0.0
      %5454 = vmatprep.subr.mxu0 0.0
      %5455 = vmatpush2.msra.mxu0 0.0
      %5456 = vmatprep.subr.mxu0 0.0
      %5457 = vmatpush2.msra.mxu0 0.0
      %5458 = vmatprep.subr.mxu0 0.0
      %5459 = vmatpush2.msra.mxu0 0.0
      %5460 = vmatprep.subr.mxu0 0.0
      %5461 = vmatpush2.msra.mxu0 0.0
      %5462 = vmatprep.subr.mxu0 0.0
      %5463 = vmatpush2.msra.mxu0 0.0
      %5464 = vmatprep.subr.mxu0 0.0
      %5465 = vmatpush2.msra.mxu0 0.0
      %5466 = vmatprep.mubr.f32.mxu0 0.0
      %5467 = vmatmul.mubr.f32.gmra.mxu0 %v5304
      %v5468 = vpop.f32.mrf.mxu0
      %v5469 = vadd.f32 0.0, %v5468
      %v5470 = vpop.f32.mrf.mxu0
      %5471 = vmatprep.mubr.f32.mxu0 0.0
      %5472 = vmatmul.mubr.f32.gmra.mxu0 %v5307
      %v5473 = vpop.f32.mrf.mxu0
      %v5474 = vadd.f32 0.0, %v5473
      %v5475 = vpop.f32.mrf.mxu0
      %5476 = vmatprep.mubr.f32.mxu0 0.0
      %5477 = vmatmul.mubr.f32.gmra.mxu0 %v5310
      %v5478 = vpop.f32.mrf.mxu0
      %v5479 = vadd.f32 0.0, %v5478
      %v5480 = vpop.f32.mrf.mxu0
      %5481 = vmatprep.mubr.f32.mxu0 0.0
      %5482 = vmatmul.mubr.f32.gmra.mxu0 %v5313
      %v5483 = vpop.f32.mrf.mxu0
      %v5484 = vadd.f32 0.0, %v5483
      %v5485 = vpop.f32.mrf.mxu0
      %5486 = vmatprep.mubr.f32.mxu0 0.0
      %5487 = vmatmul.mubr.f32.gmra.mxu0 %v5316
      %v5488 = vpop.f32.mrf.mxu0
      %v5489 = vadd.f32 0.0, %v5488
      %v5490 = vpop.f32.mrf.mxu0
      %5491 = vmatprep.mubr.f32.mxu0 0.0
      %5492 = vmatmul.mubr.f32.gmra.mxu0 %v5319
      %v5493 = vpop.f32.mrf.mxu0
      %v5494 = vadd.f32 0.0, %v5493
      %v5495 = vpop.f32.mrf.mxu0
      %5496 = vmatprep.mubr.f32.mxu0 0.0
      %5497 = vmatmul.mubr.f32.gmra.mxu0 %v5322
      %v5498 = vpop.f32.mrf.mxu0
      %v5499 = vadd.f32 0.0, %v5498
      %v5500 = vpop.f32.mrf.mxu0
      %5501 = vmatprep.mubr.f32.mxu0 0.0
      %5502 = vmatmul.mubr.f32.gmra.mxu0 %v5325
      %v5503 = vpop.f32.mrf.mxu0
      %v5504 = vadd.f32 0.0, %v5503
      %v5505 = vpop.f32.mrf.mxu0
      %5506 = vmatprep.mubr.f32.mxu0 0.0
      %5507 = vmatmul.mubr.f32.gmra.mxu0 %v5328
      %v5508 = vpop.f32.mrf.mxu0
      %v5509 = vadd.f32 0.0, %v5508
      %v5510 = vpop.f32.mrf.mxu0
      %5511 = vmatprep.mubr.f32.mxu0 0.0
      %5512 = vmatmul.mubr.f32.gmra.mxu0 %v5331
      %v5513 = vpop.f32.mrf.mxu0
      %v5514 = vadd.f32 0.0, %v5513
      %v5515 = vpop.f32.mrf.mxu0
      %5516 = vmatprep.mubr.f32.mxu0 0.0
      %5517 = vmatmul.mubr.f32.gmra.mxu0 %v5334
      %v5518 = vpop.f32.mrf.mxu0
      %v5519 = vadd.f32 0.0, %v5518
      %v5520 = vpop.f32.mrf.mxu0
      %5521 = vmatprep.mubr.f32.mxu0 0.0
      %5522 = vmatmul.mubr.f32.gmra.mxu0 %v5337
      %v5523 = vpop.f32.mrf.mxu0
      %v5524 = vadd.f32 0.0, %v5523
      %v5525 = vpop.f32.mrf.mxu0
      %5526 = vmatprep.mubr.f32.mxu0 0.0
      %5527 = vmatmul.mubr.f32.gmra.mxu0 %v5340
      %v5528 = vpop.f32.mrf.mxu0
      %v5529 = vadd.f32 0.0, %v5528
      %v5530 = vpop.f32.mrf.mxu0
      %5531 = vmatprep.mubr.f32.mxu0 0.0
      %5532 = vmatmul.mubr.f32.gmra.mxu0 %v5343
      %v5533 = vpop.f32.mrf.mxu0
      %v5534 = vadd.f32 0.0, %v5533
      %v5535 = vpop.f32.mrf.mxu0
      %5536 = vmatprep.mubr.f32.mxu0 0.0
      %5537 = vmatmul.mubr.f32.gmra.mxu0 %v5346
      %v5538 = vpop.f32.mrf.mxu0
      %v5539 = vadd.f32 0.0, %v5538
      %v5540 = vpop.f32.mrf.mxu0
      %5541 = vmatprep.mubr.f32.mxu0 0.0
      %5542 = vmatmul.mubr.f32.gmra.mxu0 %v5349
      %v5543 = vpop.f32.mrf.mxu0
      %v5544 = vadd.f32 0.0, %v5543
      %v5545 = vpop.f32.mrf.mxu0
      %5546 = vmatprep.mubr.f32.mxu0 0.0
      %5547 = vmatmul.mubr.f32.gmra.mxu0 %v5352
      %v5548 = vpop.f32.mrf.mxu0
      %v5549 = vadd.f32 0.0, %v5548
      %v5550 = vpop.f32.mrf.mxu0
      %5551 = vmatprep.mubr.f32.mxu0 0.0
      %5552 = vmatmul.mubr.f32.gmra.mxu0 %v5355
      %v5553 = vpop.f32.mrf.mxu0
      %v5554 = vadd.f32 0.0, %v5553
      %v5555 = vpop.f32.mrf.mxu0
      %5556 = vmatprep.mubr.f32.mxu0 0.0
      %5557 = vmatmul.mubr.f32.gmra.mxu0 %v5358
      %v5558 = vpop.f32.mrf.mxu0
      %v5559 = vadd.f32 0.0, %v5558
      %v5560 = vpop.f32.mrf.mxu0
      %5561 = vmatprep.mubr.f32.mxu0 0.0
      %5562 = vmatmul.mubr.f32.gmra.mxu0 %v5361
      %v5563 = vpop.f32.mrf.mxu0
      %v5564 = vadd.f32 0.0, %v5563
      %v5565 = vpop.f32.mrf.mxu0
      %5566 = vmatprep.mubr.f32.mxu0 0.0
      %5567 = vmatmul.mubr.f32.gmra.mxu0 %v5364
      %v5568 = vpop.f32.mrf.mxu0
      %v5569 = vadd.f32 0.0, %v5568
      %v5570 = vpop.f32.mrf.mxu0
      %5571 = vmatprep.mubr.f32.mxu0 0.0
      %5572 = vmatmul.mubr.f32.gmra.mxu0 %v5367
      %v5573 = vpop.f32.mrf.mxu0
      %v5574 = vadd.f32 0.0, %v5573
      %v5575 = vpop.f32.mrf.mxu0
      %5576 = vmatprep.mubr.f32.mxu0 0.0
      %5577 = vmatmul.mubr.f32.gmra.mxu0 %v5370
      %v5578 = vpop.f32.mrf.mxu0
      %v5579 = vadd.f32 0.0, %v5578
      %v5580 = vpop.f32.mrf.mxu0
      %5581 = vmatprep.mubr.f32.mxu0 0.0
      %5582 = vmatmul.mubr.f32.gmra.mxu0 %v5373
      %v5583 = vpop.f32.mrf.mxu0
      %v5584 = vadd.f32 0.0, %v5583
      %v5585 = vpop.f32.mrf.mxu0
      %5586 = vmatprep.mubr.f32.mxu0 0.0
      %5587 = vmatmul.mubr.f32.gmra.mxu0 %v5376
      %v5588 = vpop.f32.mrf.mxu0
      %v5589 = vadd.f32 0.0, %v5588
      %v5590 = vpop.f32.mrf.mxu0
      %5591 = vmatprep.mubr.f32.mxu0 0.0
      %5592 = vmatmul.mubr.f32.gmra.mxu0 %v5379
      %v5593 = vpop.f32.mrf.mxu0
      %v5594 = vadd.f32 0.0, %v5593
      %v5595 = vpop.f32.mrf.mxu0
      %5596 = vmatprep.mubr.f32.mxu0 0.0
      %5597 = vmatmul.mubr.f32.gmra.mxu0 %v5382
      %v5598 = vpop.f32.mrf.mxu0
      %v5599 = vadd.f32 0.0, %v5598
      %v5600 = vpop.f32.mrf.mxu0
      %5601 = vmatprep.mubr.f32.mxu0 0.0
      %5602 = vmatmul.mubr.f32.gmra.mxu0 %v5385
      %v5603 = vpop.f32.mrf.mxu0
      %v5604 = vadd.f32 0.0, %v5603
      %v5605 = vpop.f32.mrf.mxu0
      %5606 = vmatprep.mubr.f32.mxu0 0.0
      %5607 = vmatmul.mubr.f32.gmra.mxu0 %v5388
      %v5608 = vpop.f32.mrf.mxu0
      %v5609 = vadd.f32 0.0, %v5608
      %v5610 = vpop.f32.mrf.mxu0
      %5611 = vmatprep.mubr.f32.mxu0 0.0
      %5612 = vmatmul.mubr.f32.gmra.mxu0 %v5391
      %v5613 = vpop.f32.mrf.mxu0
      %v5614 = vadd.f32 0.0, %v5613
      %v5615 = vpop.f32.mrf.mxu0
      %5616 = vmatprep.mubr.f32.mxu0 0.0
      %5617 = vmatmul.mubr.f32.gmra.mxu0 %v5394
      %v5618 = vpop.f32.mrf.mxu0
      %v5619 = vadd.f32 0.0, %v5618
      %v5620 = vpop.f32.mrf.mxu0
      %5621 = vmatprep.mubr.f32.mxu0 0.0
      %5622 = vmatmul.mubr.f32.gmra.mxu0 %v5397
      %v5623 = vpop.f32.mrf.mxu0
      %v5624 = vadd.f32 0.0, %v5623
      %v5625 = vpop.f32.mrf.mxu0
      %5626 = vdwg.mxu0
      %v5627 = vadd.f32 %v5233, %v5469
      %v5628 = vadd.f32 %v5234, %v5474
      %v5629 = vadd.f32 %v5235, %v5479
      %v5630 = vadd.f32 %v5236, %v5484
      %v5631 = vadd.f32 %v5237, %v5489
      %v5632 = vadd.f32 %v5238, %v5494
      %v5633 = vadd.f32 %v5239, %v5499
      %v5634 = vadd.f32 %v5240, %v5504
      %v5635 = vadd.f32 %v5241, %v5509
      %v5636 = vadd.f32 %v5242, %v5514
      %v5637 = vadd.f32 %v5243, %v5519
      %v5638 = vadd.f32 %v5244, %v5524
      %v5639 = vadd.f32 %v5245, %v5529
      %v5640 = vadd.f32 %v5246, %v5534
      %v5641 = vadd.f32 %v5247, %v5539
      %v5642 = vadd.f32 %v5248, %v5544
      %v5643 = vadd.f32 %v5249, %v5549
      %v5644 = vadd.f32 %v5250, %v5554
      %v5645 = vadd.f32 %v5251, %v5559
      %v5646 = vadd.f32 %v5252, %v5564
      %v5647 = vadd.f32 %v5253, %v5569
      %v5648 = vadd.f32 %v5254, %v5574
      %v5649 = vadd.f32 %v5255, %v5579
      %v5650 = vadd.f32 %v5256, %v5584
      %v5651 = vadd.f32 %v5257, %v5589
      %v5652 = vadd.f32 %v5258, %v5594
      %v5653 = vadd.f32 %v5259, %v5599
      %v5654 = vadd.f32 %v5260, %v5604
      %v5655 = vadd.f32 %v5261, %v5609
      %v5656 = vadd.f32 %v5262, %v5614
      %v5657 = vadd.f32 %v5263, %v5619
      %v5658 = vadd.f32 %v5264, %v5624
      %s5659 = scalar_lea.vmem %s3, 20
      %v5660 = vld [vmem:[%s5659] sm:$0xf]
      %v5662 = vsel %vm257, %v5297, 0
      %v5665 = vsel %vm257, %v5298, 0
      %v5668 = vsel %vm602, %v5660, 0
      %5670 = vmatprep.subr.mxu0 0.0
      %5671 = vmatpush1.msra.mxu0 0.0
      %5672 = vmatprep.subr.mxu0 0.0
      %5673 = vmatpush1.msra.mxu0 0.0
      %5674 = vmatprep.subr.mxu0 0.0
      %5675 = vmatpush1.msra.mxu0 0.0
      %5676 = vmatprep.subr.mxu0 0.0
      %5677 = vmatpush1.msra.mxu0 0.0
      %5678 = vmatprep.subr.mxu0 0.0
      %5679 = vmatpush1.msra.mxu0 0.0
      %5680 = vmatprep.subr.mxu0 0.0
      %5681 = vmatpush1.msra.mxu0 0.0
      %5682 = vmatprep.subr.mxu0 0.0
      %5683 = vmatpush1.msra.mxu0 0.0
      %5684 = vmatprep.subr.mxu0 0.0
      %5685 = vmatpush1.msra.mxu0 0.0
      %5686 = vmatprep.subr.mxu0 0.0
      %5687 = vmatpush1.msra.mxu0 0.0
      %5688 = vmatprep.subr.mxu0 0.0
      %5689 = vmatpush1.msra.mxu0 0.0
      %5690 = vmatprep.subr.mxu0 0.0
      %5691 = vmatpush1.msra.mxu0 0.0
      %5692 = vmatprep.subr.mxu0 0.0
      %5693 = vmatpush1.msra.mxu0 0.0
      %5694 = vmatprep.subr.mxu0 0.0
      %5695 = vmatpush1.msra.mxu0 0.0
      %5696 = vmatprep.subr.mxu0 0.0
      %5697 = vmatpush1.msra.mxu0 0.0
      %5698 = vmatprep.subr.mxu0 0.0
      %5699 = vmatpush1.msra.mxu0 0.0
      %5700 = vmatprep.subr.mxu0 0.0
      %5701 = vmatpush1.msra.mxu0 %v5668
      %5702 = vmatprep.subr.mxu0 0.0
      %5703 = vmatpush2.msra.mxu0 0.0
      %5704 = vmatprep.subr.mxu0 0.0
      %5705 = vmatpush2.msra.mxu0 0.0
      %5706 = vmatprep.subr.mxu0 0.0
      %5707 = vmatpush2.msra.mxu0 0.0
      %5708 = vmatprep.subr.mxu0 0.0
      %5709 = vmatpush2.msra.mxu0 0.0
      %5710 = vmatprep.subr.mxu0 0.0
      %5711 = vmatpush2.msra.mxu0 0.0
      %5712 = vmatprep.subr.mxu0 0.0
      %5713 = vmatpush2.msra.mxu0 0.0
      %5714 = vmatprep.subr.mxu0 0.0
      %5715 = vmatpush2.msra.mxu0 0.0
      %5716 = vmatprep.subr.mxu0 0.0
      %5717 = vmatpush2.msra.mxu0 0.0
      %5718 = vmatprep.subr.mxu0 0.0
      %5719 = vmatpush2.msra.mxu0 0.0
      %5720 = vmatprep.subr.mxu0 0.0
      %5721 = vmatpush2.msra.mxu0 0.0
      %5722 = vmatprep.subr.mxu0 0.0
      %5723 = vmatpush2.msra.mxu0 0.0
      %5724 = vmatprep.subr.mxu0 0.0
      %5725 = vmatpush2.msra.mxu0 0.0
      %5726 = vmatprep.subr.mxu0 0.0
      %5727 = vmatpush2.msra.mxu0 0.0
      %5728 = vmatprep.subr.mxu0 0.0
      %5729 = vmatpush2.msra.mxu0 0.0
      %5730 = vmatprep.subr.mxu0 0.0
      %5731 = vmatpush2.msra.mxu0 0.0
      %5732 = vmatprep.subr.mxu0 0.0
      %5733 = vmatpush2.msra.mxu0 0.0
      %5734 = vmatprep.mubr.f32.mxu0 0.0
      %5735 = vmatmul.mubr.f32.gmra.mxu0 %v5310
      %v5736 = vpop.f32.mrf.mxu0
      %v5737 = vadd.f32 0.0, %v5736
      %v5738 = vpop.f32.mrf.mxu0
      %5739 = vmatprep.mubr.f32.mxu0 0.0
      %5740 = vmatmul.mubr.f32.gmra.mxu0 %v5313
      %v5741 = vpop.f32.mrf.mxu0
      %v5742 = vadd.f32 0.0, %v5741
      %v5743 = vpop.f32.mrf.mxu0
      %5744 = vmatprep.mubr.f32.mxu0 0.0
      %5745 = vmatmul.mubr.f32.gmra.mxu0 %v5316
      %v5746 = vpop.f32.mrf.mxu0
      %v5747 = vadd.f32 0.0, %v5746
      %v5748 = vpop.f32.mrf.mxu0
      %5749 = vmatprep.mubr.f32.mxu0 0.0
      %5750 = vmatmul.mubr.f32.gmra.mxu0 %v5319
      %v5751 = vpop.f32.mrf.mxu0
      %v5752 = vadd.f32 0.0, %v5751
      %v5753 = vpop.f32.mrf.mxu0
      %5754 = vmatprep.mubr.f32.mxu0 0.0
      %5755 = vmatmul.mubr.f32.gmra.mxu0 %v5322
      %v5756 = vpop.f32.mrf.mxu0
      %v5757 = vadd.f32 0.0, %v5756
      %v5758 = vpop.f32.mrf.mxu0
      %5759 = vmatprep.mubr.f32.mxu0 0.0
      %5760 = vmatmul.mubr.f32.gmra.mxu0 %v5325
      %v5761 = vpop.f32.mrf.mxu0
      %v5762 = vadd.f32 0.0, %v5761
      %v5763 = vpop.f32.mrf.mxu0
      %5764 = vmatprep.mubr.f32.mxu0 0.0
      %5765 = vmatmul.mubr.f32.gmra.mxu0 %v5328
      %v5766 = vpop.f32.mrf.mxu0
      %v5767 = vadd.f32 0.0, %v5766
      %v5768 = vpop.f32.mrf.mxu0
      %5769 = vmatprep.mubr.f32.mxu0 0.0
      %5770 = vmatmul.mubr.f32.gmra.mxu0 %v5331
      %v5771 = vpop.f32.mrf.mxu0
      %v5772 = vadd.f32 0.0, %v5771
      %v5773 = vpop.f32.mrf.mxu0
      %5774 = vmatprep.mubr.f32.mxu0 0.0
      %5775 = vmatmul.mubr.f32.gmra.mxu0 %v5334
      %v5776 = vpop.f32.mrf.mxu0
      %v5777 = vadd.f32 0.0, %v5776
      %v5778 = vpop.f32.mrf.mxu0
      %5779 = vmatprep.mubr.f32.mxu0 0.0
      %5780 = vmatmul.mubr.f32.gmra.mxu0 %v5337
      %v5781 = vpop.f32.mrf.mxu0
      %v5782 = vadd.f32 0.0, %v5781
      %v5783 = vpop.f32.mrf.mxu0
      %5784 = vmatprep.mubr.f32.mxu0 0.0
      %5785 = vmatmul.mubr.f32.gmra.mxu0 %v5340
      %v5786 = vpop.f32.mrf.mxu0
      %v5787 = vadd.f32 0.0, %v5786
      %v5788 = vpop.f32.mrf.mxu0
      %5789 = vmatprep.mubr.f32.mxu0 0.0
      %5790 = vmatmul.mubr.f32.gmra.mxu0 %v5343
      %v5791 = vpop.f32.mrf.mxu0
      %v5792 = vadd.f32 0.0, %v5791
      %v5793 = vpop.f32.mrf.mxu0
      %5794 = vmatprep.mubr.f32.mxu0 0.0
      %5795 = vmatmul.mubr.f32.gmra.mxu0 %v5346
      %v5796 = vpop.f32.mrf.mxu0
      %v5797 = vadd.f32 0.0, %v5796
      %v5798 = vpop.f32.mrf.mxu0
      %5799 = vmatprep.mubr.f32.mxu0 0.0
      %5800 = vmatmul.mubr.f32.gmra.mxu0 %v5349
      %v5801 = vpop.f32.mrf.mxu0
      %v5802 = vadd.f32 0.0, %v5801
      %v5803 = vpop.f32.mrf.mxu0
      %5804 = vmatprep.mubr.f32.mxu0 0.0
      %5805 = vmatmul.mubr.f32.gmra.mxu0 %v5352
      %v5806 = vpop.f32.mrf.mxu0
      %v5807 = vadd.f32 0.0, %v5806
      %v5808 = vpop.f32.mrf.mxu0
      %5809 = vmatprep.mubr.f32.mxu0 0.0
      %5810 = vmatmul.mubr.f32.gmra.mxu0 %v5355
      %v5811 = vpop.f32.mrf.mxu0
      %v5812 = vadd.f32 0.0, %v5811
      %v5813 = vpop.f32.mrf.mxu0
      %5814 = vmatprep.mubr.f32.mxu0 0.0
      %5815 = vmatmul.mubr.f32.gmra.mxu0 %v5358
      %v5816 = vpop.f32.mrf.mxu0
      %v5817 = vadd.f32 0.0, %v5816
      %v5818 = vpop.f32.mrf.mxu0
      %5819 = vmatprep.mubr.f32.mxu0 0.0
      %5820 = vmatmul.mubr.f32.gmra.mxu0 %v5361
      %v5821 = vpop.f32.mrf.mxu0
      %v5822 = vadd.f32 0.0, %v5821
      %v5823 = vpop.f32.mrf.mxu0
      %5824 = vmatprep.mubr.f32.mxu0 0.0
      %5825 = vmatmul.mubr.f32.gmra.mxu0 %v5364
      %v5826 = vpop.f32.mrf.mxu0
      %v5827 = vadd.f32 0.0, %v5826
      %v5828 = vpop.f32.mrf.mxu0
      %5829 = vmatprep.mubr.f32.mxu0 0.0
      %5830 = vmatmul.mubr.f32.gmra.mxu0 %v5367
      %v5831 = vpop.f32.mrf.mxu0
      %v5832 = vadd.f32 0.0, %v5831
      %v5833 = vpop.f32.mrf.mxu0
      %5834 = vmatprep.mubr.f32.mxu0 0.0
      %5835 = vmatmul.mubr.f32.gmra.mxu0 %v5370
      %v5836 = vpop.f32.mrf.mxu0
      %v5837 = vadd.f32 0.0, %v5836
      %v5838 = vpop.f32.mrf.mxu0
      %5839 = vmatprep.mubr.f32.mxu0 0.0
      %5840 = vmatmul.mubr.f32.gmra.mxu0 %v5373
      %v5841 = vpop.f32.mrf.mxu0
      %v5842 = vadd.f32 0.0, %v5841
      %v5843 = vpop.f32.mrf.mxu0
      %5844 = vmatprep.mubr.f32.mxu0 0.0
      %5845 = vmatmul.mubr.f32.gmra.mxu0 %v5376
      %v5846 = vpop.f32.mrf.mxu0
      %v5847 = vadd.f32 0.0, %v5846
      %v5848 = vpop.f32.mrf.mxu0
      %5849 = vmatprep.mubr.f32.mxu0 0.0
      %5850 = vmatmul.mubr.f32.gmra.mxu0 %v5379
      %v5851 = vpop.f32.mrf.mxu0
      %v5852 = vadd.f32 0.0, %v5851
      %v5853 = vpop.f32.mrf.mxu0
      %5854 = vmatprep.mubr.f32.mxu0 0.0
      %5855 = vmatmul.mubr.f32.gmra.mxu0 %v5382
      %v5856 = vpop.f32.mrf.mxu0
      %v5857 = vadd.f32 0.0, %v5856
      %v5858 = vpop.f32.mrf.mxu0
      %5859 = vmatprep.mubr.f32.mxu0 0.0
      %5860 = vmatmul.mubr.f32.gmra.mxu0 %v5385
      %v5861 = vpop.f32.mrf.mxu0
      %v5862 = vadd.f32 0.0, %v5861
      %v5863 = vpop.f32.mrf.mxu0
      %5864 = vmatprep.mubr.f32.mxu0 0.0
      %5865 = vmatmul.mubr.f32.gmra.mxu0 %v5388
      %v5866 = vpop.f32.mrf.mxu0
      %v5867 = vadd.f32 0.0, %v5866
      %v5868 = vpop.f32.mrf.mxu0
      %5869 = vmatprep.mubr.f32.mxu0 0.0
      %5870 = vmatmul.mubr.f32.gmra.mxu0 %v5391
      %v5871 = vpop.f32.mrf.mxu0
      %v5872 = vadd.f32 0.0, %v5871
      %v5873 = vpop.f32.mrf.mxu0
      %5874 = vmatprep.mubr.f32.mxu0 0.0
      %5875 = vmatmul.mubr.f32.gmra.mxu0 %v5394
      %v5876 = vpop.f32.mrf.mxu0
      %v5877 = vadd.f32 0.0, %v5876
      %v5878 = vpop.f32.mrf.mxu0
      %5879 = vmatprep.mubr.f32.mxu0 0.0
      %5880 = vmatmul.mubr.f32.gmra.mxu0 %v5397
      %v5881 = vpop.f32.mrf.mxu0
      %v5882 = vadd.f32 0.0, %v5881
      %v5883 = vpop.f32.mrf.mxu0
      %5884 = vmatprep.mubr.f32.mxu0 0.0
      %5885 = vmatmul.mubr.f32.gmra.mxu0 %v5662
      %v5886 = vpop.f32.mrf.mxu0
      %v5887 = vadd.f32 0.0, %v5886
      %v5888 = vpop.f32.mrf.mxu0
      %5889 = vmatprep.mubr.f32.mxu0 0.0
      %5890 = vmatmul.mubr.f32.gmra.mxu0 %v5665
      %v5891 = vpop.f32.mrf.mxu0
      %v5892 = vadd.f32 0.0, %v5891
      %v5893 = vpop.f32.mrf.mxu0
      %5894 = vdwg.mxu0
      %v5895 = vadd.f32 %v5627, %v5737
      %v5896 = vadd.f32 %v5628, %v5742
      %v5897 = vadd.f32 %v5629, %v5747
      %v5898 = vadd.f32 %v5630, %v5752
      %v5899 = vadd.f32 %v5631, %v5757
      %v5900 = vadd.f32 %v5632, %v5762
      %v5901 = vadd.f32 %v5633, %v5767
      %v5902 = vadd.f32 %v5634, %v5772
      %v5903 = vadd.f32 %v5635, %v5777
      %v5904 = vadd.f32 %v5636, %v5782
      %v5905 = vadd.f32 %v5637, %v5787
      %v5906 = vadd.f32 %v5638, %v5792
      %v5907 = vadd.f32 %v5639, %v5797
      %v5908 = vadd.f32 %v5640, %v5802
      %v5909 = vadd.f32 %v5641, %v5807
      %v5910 = vadd.f32 %v5642, %v5812
      %v5911 = vadd.f32 %v5643, %v5817
      %v5912 = vadd.f32 %v5644, %v5822
      %v5913 = vadd.f32 %v5645, %v5827
      %v5914 = vadd.f32 %v5646, %v5832
      %v5915 = vadd.f32 %v5647, %v5837
      %v5916 = vadd.f32 %v5648, %v5842
      %v5917 = vadd.f32 %v5649, %v5847
      %v5918 = vadd.f32 %v5650, %v5852
      %v5919 = vadd.f32 %v5651, %v5857
      %v5920 = vadd.f32 %v5652, %v5862
      %v5921 = vadd.f32 %v5653, %v5867
      %v5922 = vadd.f32 %v5654, %v5872
      %v5923 = vadd.f32 %v5655, %v5877
      %v5924 = vadd.f32 %v5656, %v5882
      %v5925 = vadd.f32 %v5657, %v5887
      %v5926 = vadd.f32 %v5658, %v5892
      %s5927 = scalar_lea.vmem %s3, 32
      %v5928 = vld [vmem:[%s5927] sm:$0xf]
      %v5930 = vsel %vm257, %v5299, 0
      %v5933 = vsel %vm257, %v5300, 0
      %v5936 = vsel %vm602, %v5928, 0
      %5938 = vmatprep.subr.mxu0 0.0
      %5939 = vmatpush1.msra.mxu0 0.0
      %5940 = vmatprep.subr.mxu0 0.0
      %5941 = vmatpush1.msra.mxu0 0.0
      %5942 = vmatprep.subr.mxu0 0.0
      %5943 = vmatpush1.msra.mxu0 0.0
      %5944 = vmatprep.subr.mxu0 0.0
      %5945 = vmatpush1.msra.mxu0 0.0
      %5946 = vmatprep.subr.mxu0 0.0
      %5947 = vmatpush1.msra.mxu0 0.0
      %5948 = vmatprep.subr.mxu0 0.0
      %5949 = vmatpush1.msra.mxu0 0.0
      %5950 = vmatprep.subr.mxu0 0.0
      %5951 = vmatpush1.msra.mxu0 0.0
      %5952 = vmatprep.subr.mxu0 0.0
      %5953 = vmatpush1.msra.mxu0 0.0
      %5954 = vmatprep.subr.mxu0 0.0
      %5955 = vmatpush1.msra.mxu0 0.0
      %5956 = vmatprep.subr.mxu0 0.0
      %5957 = vmatpush1.msra.mxu0 0.0
      %5958 = vmatprep.subr.mxu0 0.0
      %5959 = vmatpush1.msra.mxu0 0.0
      %5960 = vmatprep.subr.mxu0 0.0
      %5961 = vmatpush1.msra.mxu0 0.0
      %5962 = vmatprep.subr.mxu0 0.0
      %5963 = vmatpush1.msra.mxu0 0.0
      %5964 = vmatprep.subr.mxu0 0.0
      %5965 = vmatpush1.msra.mxu0 0.0
      %5966 = vmatprep.subr.mxu0 0.0
      %5967 = vmatpush1.msra.mxu0 0.0
      %5968 = vmatprep.subr.mxu0 0.0
      %5969 = vmatpush1.msra.mxu0 %v5936
      %5970 = vmatprep.subr.mxu0 0.0
      %5971 = vmatpush2.msra.mxu0 0.0
      %5972 = vmatprep.subr.mxu0 0.0
      %5973 = vmatpush2.msra.mxu0 0.0
      %5974 = vmatprep.subr.mxu0 0.0
      %5975 = vmatpush2.msra.mxu0 0.0
      %5976 = vmatprep.subr.mxu0 0.0
      %5977 = vmatpush2.msra.mxu0 0.0
      %5978 = vmatprep.subr.mxu0 0.0
      %5979 = vmatpush2.msra.mxu0 0.0
      %5980 = vmatprep.subr.mxu0 0.0
      %5981 = vmatpush2.msra.mxu0 0.0
      %5982 = vmatprep.subr.mxu0 0.0
      %5983 = vmatpush2.msra.mxu0 0.0
      %5984 = vmatprep.subr.mxu0 0.0
      %5985 = vmatpush2.msra.mxu0 0.0
      %5986 = vmatprep.subr.mxu0 0.0
      %5987 = vmatpush2.msra.mxu0 0.0
      %5988 = vmatprep.subr.mxu0 0.0
      %5989 = vmatpush2.msra.mxu0 0.0
      %5990 = vmatprep.subr.mxu0 0.0
      %5991 = vmatpush2.msra.mxu0 0.0
      %5992 = vmatprep.subr.mxu0 0.0
      %5993 = vmatpush2.msra.mxu0 0.0
      %5994 = vmatprep.subr.mxu0 0.0
      %5995 = vmatpush2.msra.mxu0 0.0
      %5996 = vmatprep.subr.mxu0 0.0
      %5997 = vmatpush2.msra.mxu0 0.0
      %5998 = vmatprep.subr.mxu0 0.0
      %5999 = vmatpush2.msra.mxu0 0.0
      %6000 = vmatprep.subr.mxu0 0.0
      %6001 = vmatpush2.msra.mxu0 0.0
      %6002 = vmatprep.mubr.f32.mxu0 0.0
      %6003 = vmatmul.mubr.f32.gmra.mxu0 %v5316
      %v6004 = vpop.f32.mrf.mxu0
      %v6005 = vadd.f32 0.0, %v6004
      %v6006 = vpop.f32.mrf.mxu0
      %6007 = vmatprep.mubr.f32.mxu0 0.0
      %6008 = vmatmul.mubr.f32.gmra.mxu0 %v5319
      %v6009 = vpop.f32.mrf.mxu0
      %v6010 = vadd.f32 0.0, %v6009
      %v6011 = vpop.f32.mrf.mxu0
      %6012 = vmatprep.mubr.f32.mxu0 0.0
      %6013 = vmatmul.mubr.f32.gmra.mxu0 %v5322
      %v6014 = vpop.f32.mrf.mxu0
      %v6015 = vadd.f32 0.0, %v6014
      %v6016 = vpop.f32.mrf.mxu0
      %6017 = vmatprep.mubr.f32.mxu0 0.0
      %6018 = vmatmul.mubr.f32.gmra.mxu0 %v5325
      %v6019 = vpop.f32.mrf.mxu0
      %v6020 = vadd.f32 0.0, %v6019
      %v6021 = vpop.f32.mrf.mxu0
      %6022 = vmatprep.mubr.f32.mxu0 0.0
      %6023 = vmatmul.mubr.f32.gmra.mxu0 %v5328
      %v6024 = vpop.f32.mrf.mxu0
      %v6025 = vadd.f32 0.0, %v6024
      %v6026 = vpop.f32.mrf.mxu0
      %6027 = vmatprep.mubr.f32.mxu0 0.0
      %6028 = vmatmul.mubr.f32.gmra.mxu0 %v5331
      %v6029 = vpop.f32.mrf.mxu0
      %v6030 = vadd.f32 0.0, %v6029
      %v6031 = vpop.f32.mrf.mxu0
      %6032 = vmatprep.mubr.f32.mxu0 0.0
      %6033 = vmatmul.mubr.f32.gmra.mxu0 %v5334
      %v6034 = vpop.f32.mrf.mxu0
      %v6035 = vadd.f32 0.0, %v6034
      %v6036 = vpop.f32.mrf.mxu0
      %6037 = vmatprep.mubr.f32.mxu0 0.0
      %6038 = vmatmul.mubr.f32.gmra.mxu0 %v5337
      %v6039 = vpop.f32.mrf.mxu0
      %v6040 = vadd.f32 0.0, %v6039
      %v6041 = vpop.f32.mrf.mxu0
      %6042 = vmatprep.mubr.f32.mxu0 0.0
      %6043 = vmatmul.mubr.f32.gmra.mxu0 %v5340
      %v6044 = vpop.f32.mrf.mxu0
      %v6045 = vadd.f32 0.0, %v6044
      %v6046 = vpop.f32.mrf.mxu0
      %6047 = vmatprep.mubr.f32.mxu0 0.0
      %6048 = vmatmul.mubr.f32.gmra.mxu0 %v5343
      %v6049 = vpop.f32.mrf.mxu0
      %v6050 = vadd.f32 0.0, %v6049
      %v6051 = vpop.f32.mrf.mxu0
      %6052 = vmatprep.mubr.f32.mxu0 0.0
      %6053 = vmatmul.mubr.f32.gmra.mxu0 %v5346
      %v6054 = vpop.f32.mrf.mxu0
      %v6055 = vadd.f32 0.0, %v6054
      %v6056 = vpop.f32.mrf.mxu0
      %6057 = vmatprep.mubr.f32.mxu0 0.0
      %6058 = vmatmul.mubr.f32.gmra.mxu0 %v5349
      %v6059 = vpop.f32.mrf.mxu0
      %v6060 = vadd.f32 0.0, %v6059
      %v6061 = vpop.f32.mrf.mxu0
      %6062 = vmatprep.mubr.f32.mxu0 0.0
      %6063 = vmatmul.mubr.f32.gmra.mxu0 %v5352
      %v6064 = vpop.f32.mrf.mxu0
      %v6065 = vadd.f32 0.0, %v6064
      %v6066 = vpop.f32.mrf.mxu0
      %6067 = vmatprep.mubr.f32.mxu0 0.0
      %6068 = vmatmul.mubr.f32.gmra.mxu0 %v5355
      %v6069 = vpop.f32.mrf.mxu0
      %v6070 = vadd.f32 0.0, %v6069
      %v6071 = vpop.f32.mrf.mxu0
      %6072 = vmatprep.mubr.f32.mxu0 0.0
      %6073 = vmatmul.mubr.f32.gmra.mxu0 %v5358
      %v6074 = vpop.f32.mrf.mxu0
      %v6075 = vadd.f32 0.0, %v6074
      %v6076 = vpop.f32.mrf.mxu0
      %6077 = vmatprep.mubr.f32.mxu0 0.0
      %6078 = vmatmul.mubr.f32.gmra.mxu0 %v5361
      %v6079 = vpop.f32.mrf.mxu0
      %v6080 = vadd.f32 0.0, %v6079
      %v6081 = vpop.f32.mrf.mxu0
      %6082 = vmatprep.mubr.f32.mxu0 0.0
      %6083 = vmatmul.mubr.f32.gmra.mxu0 %v5364
      %v6084 = vpop.f32.mrf.mxu0
      %v6085 = vadd.f32 0.0, %v6084
      %v6086 = vpop.f32.mrf.mxu0
      %6087 = vmatprep.mubr.f32.mxu0 0.0
      %6088 = vmatmul.mubr.f32.gmra.mxu0 %v5367
      %v6089 = vpop.f32.mrf.mxu0
      %v6090 = vadd.f32 0.0, %v6089
      %v6091 = vpop.f32.mrf.mxu0
      %6092 = vmatprep.mubr.f32.mxu0 0.0
      %6093 = vmatmul.mubr.f32.gmra.mxu0 %v5370
      %v6094 = vpop.f32.mrf.mxu0
      %v6095 = vadd.f32 0.0, %v6094
      %v6096 = vpop.f32.mrf.mxu0
      %6097 = vmatprep.mubr.f32.mxu0 0.0
      %6098 = vmatmul.mubr.f32.gmra.mxu0 %v5373
      %v6099 = vpop.f32.mrf.mxu0
      %v6100 = vadd.f32 0.0, %v6099
      %v6101 = vpop.f32.mrf.mxu0
      %6102 = vmatprep.mubr.f32.mxu0 0.0
      %6103 = vmatmul.mubr.f32.gmra.mxu0 %v5376
      %v6104 = vpop.f32.mrf.mxu0
      %v6105 = vadd.f32 0.0, %v6104
      %v6106 = vpop.f32.mrf.mxu0
      %6107 = vmatprep.mubr.f32.mxu0 0.0
      %6108 = vmatmul.mubr.f32.gmra.mxu0 %v5379
      %v6109 = vpop.f32.mrf.mxu0
      %v6110 = vadd.f32 0.0, %v6109
      %v6111 = vpop.f32.mrf.mxu0
      %6112 = vmatprep.mubr.f32.mxu0 0.0
      %6113 = vmatmul.mubr.f32.gmra.mxu0 %v5382
      %v6114 = vpop.f32.mrf.mxu0
      %v6115 = vadd.f32 0.0, %v6114
      %v6116 = vpop.f32.mrf.mxu0
      %6117 = vmatprep.mubr.f32.mxu0 0.0
      %6118 = vmatmul.mubr.f32.gmra.mxu0 %v5385
      %v6119 = vpop.f32.mrf.mxu0
      %v6120 = vadd.f32 0.0, %v6119
      %v6121 = vpop.f32.mrf.mxu0
      %6122 = vmatprep.mubr.f32.mxu0 0.0
      %6123 = vmatmul.mubr.f32.gmra.mxu0 %v5388
      %v6124 = vpop.f32.mrf.mxu0
      %v6125 = vadd.f32 0.0, %v6124
      %v6126 = vpop.f32.mrf.mxu0
      %6127 = vmatprep.mubr.f32.mxu0 0.0
      %6128 = vmatmul.mubr.f32.gmra.mxu0 %v5391
      %v6129 = vpop.f32.mrf.mxu0
      %v6130 = vadd.f32 0.0, %v6129
      %v6131 = vpop.f32.mrf.mxu0
      %6132 = vmatprep.mubr.f32.mxu0 0.0
      %6133 = vmatmul.mubr.f32.gmra.mxu0 %v5394
      %v6134 = vpop.f32.mrf.mxu0
      %v6135 = vadd.f32 0.0, %v6134
      %v6136 = vpop.f32.mrf.mxu0
      %6137 = vmatprep.mubr.f32.mxu0 0.0
      %6138 = vmatmul.mubr.f32.gmra.mxu0 %v5397
      %v6139 = vpop.f32.mrf.mxu0
      %v6140 = vadd.f32 0.0, %v6139
      %v6141 = vpop.f32.mrf.mxu0
      %6142 = vmatprep.mubr.f32.mxu0 0.0
      %6143 = vmatmul.mubr.f32.gmra.mxu0 %v5662
      %v6144 = vpop.f32.mrf.mxu0
      %v6145 = vadd.f32 0.0, %v6144
      %v6146 = vpop.f32.mrf.mxu0
      %6147 = vmatprep.mubr.f32.mxu0 0.0
      %6148 = vmatmul.mubr.f32.gmra.mxu0 %v5665
      %v6149 = vpop.f32.mrf.mxu0
      %v6150 = vadd.f32 0.0, %v6149
      %v6151 = vpop.f32.mrf.mxu0
      %6152 = vmatprep.mubr.f32.mxu0 0.0
      %6153 = vmatmul.mubr.f32.gmra.mxu0 %v5930
      %v6154 = vpop.f32.mrf.mxu0
      %v6155 = vadd.f32 0.0, %v6154
      %v6156 = vpop.f32.mrf.mxu0
      %6157 = vmatprep.mubr.f32.mxu0 0.0
      %6158 = vmatmul.mubr.f32.gmra.mxu0 %v5933
      %v6159 = vpop.f32.mrf.mxu0
      %v6160 = vadd.f32 0.0, %v6159
      %v6161 = vpop.f32.mrf.mxu0
      %6162 = vdwg.mxu0
      %v6163 = vadd.f32 %v5895, %v6005
      %v6164 = vadd.f32 %v5896, %v6010
      %v6165 = vadd.f32 %v5897, %v6015
      %v6166 = vadd.f32 %v5898, %v6020
      %v6167 = vadd.f32 %v5899, %v6025
      %v6168 = vadd.f32 %v5900, %v6030
      %v6169 = vadd.f32 %v5901, %v6035
      %v6170 = vadd.f32 %v5902, %v6040
      %v6171 = vadd.f32 %v5903, %v6045
      %v6172 = vadd.f32 %v5904, %v6050
      %v6173 = vadd.f32 %v5905, %v6055
      %v6174 = vadd.f32 %v5906, %v6060
      %v6175 = vadd.f32 %v5907, %v6065
      %v6176 = vadd.f32 %v5908, %v6070
      %v6177 = vadd.f32 %v5909, %v6075
      %v6178 = vadd.f32 %v5910, %v6080
      %v6179 = vadd.f32 %v5911, %v6085
      %v6180 = vadd.f32 %v5912, %v6090
      %v6181 = vadd.f32 %v5913, %v6095
      %v6182 = vadd.f32 %v5914, %v6100
      %v6183 = vadd.f32 %v5915, %v6105
      %v6184 = vadd.f32 %v5916, %v6110
      %v6185 = vadd.f32 %v5917, %v6115
      %v6186 = vadd.f32 %v5918, %v6120
      %v6187 = vadd.f32 %v5919, %v6125
      %v6188 = vadd.f32 %v5920, %v6130
      %v6189 = vadd.f32 %v5921, %v6135
      %v6190 = vadd.f32 %v5922, %v6140
      %v6191 = vadd.f32 %v5923, %v6145
      %v6192 = vadd.f32 %v5924, %v6150
      %v6193 = vadd.f32 %v5925, %v6155
      %v6194 = vadd.f32 %v5926, %v6160
      %v6195 = vld [vmem:[%s4] sm:$0x1]
      %v6197 = vlaneseq
      %v6198 = vshrl.u32 %v6197, 7
      %v6199 = vsub.s32 0, %v6198
      %v6200 = vrot.slane %v6195, %v6199
      %v6202 = vadd.f32 %v6163, %v6200
      %v6203 = vadd.f32 %v6164, %v6200
      %v6204 = vadd.f32 %v6165, %v6200
      %v6205 = vadd.f32 %v6166, %v6200
      %v6206 = vadd.f32 %v6167, %v6200
      %v6207 = vadd.f32 %v6168, %v6200
      %v6208 = vadd.f32 %v6169, %v6200
      %v6209 = vadd.f32 %v6170, %v6200
      %v6210 = vadd.f32 %v6171, %v6200
      %v6211 = vadd.f32 %v6172, %v6200
      %v6212 = vadd.f32 %v6173, %v6200
      %v6213 = vadd.f32 %v6174, %v6200
      %v6214 = vadd.f32 %v6175, %v6200
      %v6215 = vadd.f32 %v6176, %v6200
      %v6216 = vadd.f32 %v6177, %v6200
      %v6217 = vadd.f32 %v6178, %v6200
      %v6218 = vadd.f32 %v6179, %v6200
      %v6219 = vadd.f32 %v6180, %v6200
      %v6220 = vadd.f32 %v6181, %v6200
      %v6221 = vadd.f32 %v6182, %v6200
      %v6222 = vadd.f32 %v6183, %v6200
      %v6223 = vadd.f32 %v6184, %v6200
      %v6224 = vadd.f32 %v6185, %v6200
      %v6225 = vadd.f32 %v6186, %v6200
      %v6226 = vadd.f32 %v6187, %v6200
      %v6227 = vadd.f32 %v6188, %v6200
      %v6228 = vadd.f32 %v6189, %v6200
      %v6229 = vadd.f32 %v6190, %v6200
      %v6230 = vadd.f32 %v6191, %v6200
      %v6231 = vadd.f32 %v6192, %v6200
      %v6232 = vadd.f32 %v6193, %v6200
      %v6233 = vadd.f32 %v6194, %v6200
      %v6234 = vadd.f32 %v6202, %v225
      %v6235 = vadd.f32 %v6203, %v226
      %v6236 = vadd.f32 %v6204, %v227
      %v6237 = vadd.f32 %v6205, %v228
      %v6238 = vadd.f32 %v6206, %v229
      %v6239 = vadd.f32 %v6207, %v230
      %v6240 = vadd.f32 %v6208, %v231
      %v6241 = vadd.f32 %v6209, %v232
      %v6242 = vadd.f32 %v6210, %v233
      %v6243 = vadd.f32 %v6211, %v234
      %v6244 = vadd.f32 %v6212, %v235
      %v6245 = vadd.f32 %v6213, %v236
      %v6246 = vadd.f32 %v6214, %v237
      %v6247 = vadd.f32 %v6215, %v238
      %v6248 = vadd.f32 %v6216, %v239
      %v6249 = vadd.f32 %v6217, %v240
      %v6250 = vadd.f32 %v6218, %v241
      %v6251 = vadd.f32 %v6219, %v242
      %v6252 = vadd.f32 %v6220, %v243
      %v6253 = vadd.f32 %v6221, %v244
      %v6254 = vadd.f32 %v6222, %v245
      %v6255 = vadd.f32 %v6223, %v246
      %v6256 = vadd.f32 %v6224, %v247
      %v6257 = vadd.f32 %v6225, %v248
      %v6258 = vadd.f32 %v6226, %v249
      %v6259 = vadd.f32 %v6227, %v250
      %v6260 = vadd.f32 %v6228, %v251
      %v6261 = vadd.f32 %v6229, %v252
      %v6262 = vadd.f32 %v6230, %v253
      %v6263 = vadd.f32 %v6231, %v254
      %v6264 = vadd.f32 %v6232, %v255
      %v6265 = vadd.f32 %v6233, %v256
      %v6266 = vmax.f32 %v6234, 0.0
      %v6267 = vmax.f32 %v6235, 0.0
      %v6268 = vmax.f32 %v6236, 0.0
      %v6269 = vmax.f32 %v6237, 0.0
      %v6270 = vmax.f32 %v6238, 0.0
      %v6271 = vmax.f32 %v6239, 0.0
      %v6272 = vmax.f32 %v6240, 0.0
      %v6273 = vmax.f32 %v6241, 0.0
      %v6274 = vmax.f32 %v6242, 0.0
      %v6275 = vmax.f32 %v6243, 0.0
      %v6276 = vmax.f32 %v6244, 0.0
      %v6277 = vmax.f32 %v6245, 0.0
      %v6278 = vmax.f32 %v6246, 0.0
      %v6279 = vmax.f32 %v6247, 0.0
      %v6280 = vmax.f32 %v6248, 0.0
      %v6281 = vmax.f32 %v6249, 0.0
      %v6282 = vmax.f32 %v6250, 0.0
      %v6283 = vmax.f32 %v6251, 0.0
      %v6284 = vmax.f32 %v6252, 0.0
      %v6285 = vmax.f32 %v6253, 0.0
      %v6286 = vmax.f32 %v6254, 0.0
      %v6287 = vmax.f32 %v6255, 0.0
      %v6288 = vmax.f32 %v6256, 0.0
      %v6289 = vmax.f32 %v6257, 0.0
      %v6290 = vmax.f32 %v6258, 0.0
      %v6291 = vmax.f32 %v6259, 0.0
      %v6292 = vmax.f32 %v6260, 0.0
      %v6293 = vmax.f32 %v6261, 0.0
      %v6294 = vmax.f32 %v6262, 0.0
      %v6295 = vmax.f32 %v6263, 0.0
      %v6296 = vmax.f32 %v6264, 0.0
      %v6297 = vmax.f32 %v6265, 0.0
      %6298 = vst.msk [vmem:[%s224] sm:$0xff] %vm257, %v6266
      %6299 = vst.msk [vmem:[%s224 + $0x8] sm:$0xff] %vm257, %v6267
      %6300 = vst.msk [vmem:[%s224 + $0x10] sm:$0xff] %vm257, %v6268
      %6301 = vst.msk [vmem:[%s224 + $0x18] sm:$0xff] %vm257, %v6269
      %6302 = vst.msk [vmem:[%s224 + $0x20] sm:$0xff] %vm257, %v6270
      %6303 = vst.msk [vmem:[%s224 + $0x28] sm:$0xff] %vm257, %v6271
      %6304 = vst.msk [vmem:[%s224 + $0x30] sm:$0xff] %vm257, %v6272
      %6305 = vst.msk [vmem:[%s224 + $0x38] sm:$0xff] %vm257, %v6273
      %6306 = vst.msk [vmem:[%s224 + $0x40] sm:$0xff] %vm257, %v6274
      %6307 = vst.msk [vmem:[%s224 + $0x48] sm:$0xff] %vm257, %v6275
      %6308 = vst.msk [vmem:[%s224 + $0x50] sm:$0xff] %vm257, %v6276
      %6309 = vst.msk [vmem:[%s224 + $0x58] sm:$0xff] %vm257, %v6277
      %6310 = vst.msk [vmem:[%s224 + $0x60] sm:$0xff] %vm257, %v6278
      %6311 = vst.msk [vmem:[%s224 + $0x68] sm:$0xff] %vm257, %v6279
      %6312 = vst.msk [vmem:[%s224 + $0x70] sm:$0xff] %vm257, %v6280
      %6313 = vst.msk [vmem:[%s224 + $0x78] sm:$0xff] %vm257, %v6281
      %6314 = vst.msk [vmem:[%s224 + $0x80] sm:$0xff] %vm257, %v6282
      %6315 = vst.msk [vmem:[%s224 + $0x88] sm:$0xff] %vm257, %v6283
      %6316 = vst.msk [vmem:[%s224 + $0x90] sm:$0xff] %vm257, %v6284
      %6317 = vst.msk [vmem:[%s224 + $0x98] sm:$0xff] %vm257, %v6285
      %6318 = vst.msk [vmem:[%s224 + $0xa0] sm:$0xff] %vm257, %v6286
      %6319 = vst.msk [vmem:[%s224 + $0xa8] sm:$0xff] %vm257, %v6287
      %6320 = vst.msk [vmem:[%s224 + $0xb0] sm:$0xff] %vm257, %v6288
      %6321 = vst.msk [vmem:[%s224 + $0xb8] sm:$0xff] %vm257, %v6289
      %6322 = vst.msk [vmem:[%s224 + $0xc0] sm:$0xff] %vm257, %v6290
      %6323 = vst.msk [vmem:[%s224 + $0xc8] sm:$0xff] %vm257, %v6291
      %6324 = vst.msk [vmem:[%s224 + $0xd0] sm:$0xff] %vm257, %v6292
      %6325 = vst.msk [vmem:[%s224 + $0xd8] sm:$0xff] %vm257, %v6293
      %6326 = vst.msk [vmem:[%s224 + $0xe0] sm:$0xff] %vm257, %v6294
      %6327 = vst.msk [vmem:[%s224 + $0xe8] sm:$0xff] %vm257, %v6295
      %6328 = vst.msk [vmem:[%s224 + $0xf0] sm:$0xff] %vm257, %v6296
      %6329 = vst.msk [vmem:[%s224 + $0xf8] sm:$0xff] %vm257, %v6297
      %p6330 = scmp.lt.s32.totalorder %s16, 1
      %s6331 = scalar_select %p6330, %s16, 1
      %s6332 = smul.addr %s6331, 32
      %s6333 = smul.addr %s6332, 8
      %s6334 = scalar_lea.vmem %s5, %s6333
      // Predicated region
      $region41: #{tpu_custom_call.1} parent=39 // pred_check
        %p6335 = pneg %p144
      $region42: #{tpu_custom_call.1} parent=39 // pred_check_branch
        %6337 = sbr.rel (%p6335) target = $region44
      $region43: #{tpu_custom_call.1} parent=39 // pred_region
        _
      $region44: #{tpu_custom_call.1} parent=39 // pred_fallthru
        _
    $region40: #{tpu_custom_call.1} parent=5 // pred_fallthru
      _
    %p6338 = scmp.le.s32.totalorder 2, %s11
    // Predicated region
    $region45: #{tpu_custom_call.1} parent=5 // pred_check
      %p6339 = pneg %p6338
    $region46: #{tpu_custom_call.1} parent=5 // pred_check_branch
      %6341 = sbr.rel (%p6339) target = $region48
    $region47: #{tpu_custom_call.1} parent=5 // pred_region
      %s6342 = ssub.s32 %s11, 2
      // Predicated region
      $region49: #{tpu_custom_call.1} parent=47 // pred_check
        %p6343 = pneg %p150
      $region50: #{tpu_custom_call.1} parent=47 // pred_check_branch
        %6345 = sbr.rel (%p6343) target = $region52
      $region51: #{tpu_custom_call.1} parent=47 // pred_region
        %p6346 = scmp.lt.s32.totalorder %s17, 1
        %s6347 = scalar_select %p6346, %s17, 1
        %s6348 = smul.addr %s6347, 32
        %s6349 = smul.addr %s6348, 8
        %s6350 = scalar_lea.vmem %s5, %s6349
      $region52: #{tpu_custom_call.1} parent=47 // pred_fallthru
        _
    $region48: #{tpu_custom_call.1} parent=5 // pred_fallthru
      _
  $region6: #{tpu_custom_call.1} parent=0 // loop_footer
    %s15 = sadd.s32 1, %s11
  $region7: #{tpu_custom_call.1} parent=0 // loop_footer_branch
    %10 = sbr.rel target = $region3
  $region8: #{tpu_custom_call.1} parent=0 // loop_exit
    _

</llo_original>
